<compile_context>
chip_gen: v7x
topology: tpu7x:2x2x1
jax: 0.10.0
libtpu: 0.0.40
codegen_flags: <defaults>
</compile_context>

<pallas_src>
import jax
import jax.numpy as jnp
from jax.experimental import pallas as pl
from jax.experimental.pallas import tpu as pltpu


# ----------------------------- Pallas kernels ------------------------------ #

def _conv_pool_kernel(w_ref, b_ref, p00_ref, p01_ref, p10_ref, p11_ref, o_ref):
    """Fused Conv2d(5x5, pad=2) + bias + MaxPool2d(2) on one lane tile.

    w_ref : (Cout, K)   bf16 reshaped conv weight (K = Cin*25, sublane-padded)
    b_ref : (Cout, 1)   f32 bias
    p??   : (K, Mo)     bf16 im2col columns of the four 2x2 pooling phases
    o_ref : (Cout, Mo)  bf16 pooled activations (channel-major, lane-dense)
    """
    w = w_ref[...]
    y = jnp.dot(w, p00_ref[...], preferred_element_type=jnp.float32)
    y = jnp.maximum(y, jnp.dot(w, p01_ref[...], preferred_element_type=jnp.float32))
    y = jnp.maximum(y, jnp.dot(w, p10_ref[...], preferred_element_type=jnp.float32))
    y = jnp.maximum(y, jnp.dot(w, p11_ref[...], preferred_element_type=jnp.float32))
    o_ref[...] = (y + b_ref[...]).astype(o_ref.dtype)


def _mlp_kernel(x_ref, w1_ref, b1_ref, w2_ref, b2_ref, o_ref):
    """Fused Linear(1024->64) + Linear(64->10), bf16 MXU / f32 accumulate."""
    h = jnp.dot(x_ref[...], w1_ref[...], preferred_element_type=jnp.float32)
    h = (h + b1_ref[...]).astype(jnp.bfloat16)
    y = jnp.dot(h, w2_ref[...], preferred_element_type=jnp.float32)
    o_ref[...] = (y + b2_ref[...]).astype(o_ref.dtype)


# ------------------------------ wrappers ----------------------------------- #

def _pick_block(dim, align=128, max_block=512):
    """Largest multiple of `align` <= max_block that divides `dim`, else `dim`."""
    if dim % align == 0:
        b = min(max_block, dim)
        b -= b % align
        while b >= align:
            if dim % b == 0:
                return b
            b -= align
    return dim


def conv5x5_maxpool2(x_cm, w2, b):
    """Fused Conv2d(5,1,2) + MaxPool2d(2).

    x_cm : (Cin, B, H, W)  channel-major bf16 activations
    w2   : (Cout, K_pad)   bf16 reshaped (+padded) conv weight
    b    : (Cout, 1)       f32 bias
    returns (Cout, B, H//2, W//2) channel-major bf16
    """
    Cin, B, H, W = x_cm.shape
    Cout, K_pad = w2.shape
    K = Cin * 25
    Ho, Wo = H // 2, W // 2
    Mo = B * Ho * Wo

    xp = jnp.pad(x_cm, ((0, 0), (0, 0), (2, 2), (2, 2)))

    # im2col columns, pre-split into the four 2x2 pooling phases (XLA glue:
    # static strided slices + stack). K-order is (cin, kh, kw), matching the
    # PyTorch weight flatten order.
    groups = []
    for p in (0, 1):
        for q in (0, 1):
            taps = []
            for kh in range(5):
                for kw in range(5):
                    taps.append(
                        xp[:, :, kh + p: kh + p + H: 2, kw + q: kw + q + W: 2])
            g = jnp.stack(taps, axis=1).reshape(K, Mo)
            if K_pad != K:
                g = jnp.pad(g, ((0, K_pad - K), (0, 0)))
            groups.append(g)

    tn = _pick_block(Mo)
    grid = (Mo // tn,)
    out = pl.pallas_call(
        _conv_pool_kernel,
        out_shape=jax.ShapeDtypeStruct((Cout, Mo), jnp.bfloat16),
        grid_spec=pltpu.PrefetchScalarGridSpec(
            num_scalar_prefetch=0,
            grid=grid,
            in_specs=[
                pl.BlockSpec((Cout, K_pad), lambda j: (0, 0)),
                pl.BlockSpec((Cout, 1), lambda j: (0, 0)),
            ] + [pl.BlockSpec((K_pad, tn), lambda j: (0, j))] * 4,
            out_specs=pl.BlockSpec((Cout, tn), lambda j: (0, j)),
        ),
        compiler_params=pltpu.CompilerParams(
            dimension_semantics=("parallel",)),
    )(w2, b, *groups)
    return out.reshape(Cout, B, Ho, Wo)


def mlp(x, w1t, b1, w2t, b2):
    """x: (B, 1024) bf16 -> (B, 10) f32, both linear layers in one kernel."""
    B, K1 = x.shape
    N1 = w1t.shape[1]
    N2 = w2t.shape[1]
    tb = _pick_block(B)
    grid = (B // tb,)
    return pl.pallas_call(
        _mlp_kernel,
        out_shape=jax.ShapeDtypeStruct((B, N2), jnp.float32),
        grid_spec=pltpu.PrefetchScalarGridSpec(
            num_scalar_prefetch=0,
            grid=grid,
            in_specs=[
                pl.BlockSpec((tb, K1), lambda i: (i, 0)),
                pl.BlockSpec((K1, N1), lambda i: (0, 0)),
                pl.BlockSpec((1, N1), lambda i: (0, 0)),
                pl.BlockSpec((N1, N2), lambda i: (0, 0)),
                pl.BlockSpec((1, N2), lambda i: (0, 0)),
            ],
            out_specs=pl.BlockSpec((tb, N2), lambda i: (i, 0)),
        ),
        compiler_params=pltpu.CompilerParams(
            dimension_semantics=("parallel",)),
    )(x, w1t, b1, w2t, b2)


# --------------------------- params / forward ------------------------------ #

def init_params(key):
    ks = jax.random.split(key, 10)

    def u(k, shape, fan_in):
        bound = 1.0 / jnp.sqrt(fan_in)
        return jax.random.uniform(k, shape, jnp.float32, -bound, bound)

    def conv_w(k, cout, cin):
        kk = cin * 25
        w = u(k, (cout, cin, 5, 5), kk).reshape(cout, kk)
        k_pad = -(-kk // 8) * 8                      # sublane-align K
        if k_pad != kk:
            w = jnp.pad(w, ((0, 0), (0, k_pad - kk)))
        return w.astype(jnp.bfloat16)

    return {
        # conv weights pre-reshaped (Cout, K_pad) bf16; biases (Cout, 1) f32
        "c1_w": conv_w(ks[0], 32, 3),
        "c1_b": u(ks[1], (32, 1), 3 * 25),
        "c2_w": conv_w(ks[2], 32, 32),
        "c2_b": u(ks[3], (32, 1), 32 * 25),
        "c3_w": conv_w(ks[4], 64, 32),
        "c3_b": u(ks[5], (64, 1), 32 * 25),
        # linear weights pre-transposed to (in, out) bf16; biases (1, out) f32
        "l1_w": u(ks[6], (64, 64 * 4 * 4), 64 * 4 * 4).T.astype(jnp.bfloat16),
        "l1_b": u(ks[7], (1, 64), 64 * 4 * 4),
        "l2_w": u(ks[8], (10, 64), 64).T.astype(jnp.bfloat16),
        "l2_b": u(ks[9], (1, 10), 64),
    }


def tudui_forward(x, params):
    # NCHW -> channel-major (C, B, H, W), bf16, once at the boundary.
    x = x.astype(jnp.bfloat16).transpose(1, 0, 2, 3)           # (3,  B, 32, 32)
    x = conv5x5_maxpool2(x, params["c1_w"], params["c1_b"])    # (32, B, 16, 16)
    x = conv5x5_maxpool2(x, params["c2_w"], params["c2_b"])    # (32, B,  8,  8)
    x = conv5x5_maxpool2(x, params["c3_w"], params["c3_b"])    # (64, B,  4,  4)
    B = x.shape[1]
    # PyTorch nn.Flatten order: per-batch (C, H, W).
    x = x.transpose(1, 0, 2, 3).reshape(B, -1)                 # (B, 1024)
    return mlp(x, params["l1_w"], params["l1_b"],
               params["l2_w"], params["l2_b"])                 # (B, 10) f32


if __name__ == "__main__":
    key = jax.random.PRNGKey(0)
    k_x, k_p = jax.random.split(key)
    # Module implies 3x32x32 inputs (Flatten -> 64*4*4 = 1024). Small batch=2.
    x = jax.random.normal(k_x, (2, 3, 32, 32), jnp.float32)
    params = init_params(k_p)

    out = jax.jit(tudui_forward)(x, params)
    out = jax.block_until_ready(out)
    assert out.shape == (2, 10), out.shape
    print("KERNEL_OK")
</pallas_src>

<mosaic_0001>
module attributes {stable_mosaic.version = 11 : i64} {
  func.func @_conv_pool_kernel(%arg0: i32, %arg1: memref<32x80xbf16, #tpu.memory_space<vmem>>, %arg2: memref<32x1xf32, #tpu.memory_space<vmem>>, %arg3: memref<80x512xbf16, #tpu.memory_space<vmem>>, %arg4: memref<80x512xbf16, #tpu.memory_space<vmem>>, %arg5: memref<80x512xbf16, #tpu.memory_space<vmem>>, %arg6: memref<80x512xbf16, #tpu.memory_space<vmem>>, %arg7: memref<32x512xbf16, #tpu.memory_space<vmem>>) attributes {dimension_semantics = [#tpu.dimension_semantics<parallel>], iteration_bounds = array<i64: 1>, scalar_prefetch = 0 : i64, scratch_operands = 0 : i64, tpu.core_type = #tpu.core_type<tc>, window_params = [{pipeline_mode = #tpu.pipeline_mode<synchronous>, transform_indices = @transform_0, window_bounds = array<i64: 32, 80>}, {pipeline_mode = #tpu.pipeline_mode<synchronous>, transform_indices = @transform_1, window_bounds = array<i64: 32, 1>}, {transform_indices = @transform_2, window_bounds = array<i64: 80, 512>}, {transform_indices = @transform_3, window_bounds = array<i64: 80, 512>}, {transform_indices = @transform_4, window_bounds = array<i64: 80, 512>}, {transform_indices = @transform_5, window_bounds = array<i64: 80, 512>}, {transform_indices = @transform_6, window_bounds = array<i64: 32, 512>}]} {
    %c0 = arith.constant 0 : index
    %c0_0 = arith.constant 0 : index
    %0 = vector.load %arg1[%c0, %c0_0] : memref<32x80xbf16, #tpu.memory_space<vmem>>, vector<32x80xbf16>
    %c0_1 = arith.constant 0 : index
    %c0_2 = arith.constant 0 : index
    %1 = vector.load %arg3[%c0_1, %c0_2] : memref<80x512xbf16, #tpu.memory_space<vmem>>, vector<80x512xbf16>
    %cst = arith.constant dense<0.000000e+00> : vector<32x512xf32>
    %2 = tpu.matmul %0, %1, %cst {dimension_numbers = #tpu.dot_dimension_numbers<[1], [0], [0], [1], [0, 0, 1, 1], [], []>} : vector<32x80xbf16>, vector<80x512xbf16>, vector<32x512xf32> -> vector<32x512xf32>
    %c0_3 = arith.constant 0 : index
    %c0_4 = arith.constant 0 : index
    %3 = vector.load %arg4[%c0_3, %c0_4] : memref<80x512xbf16, #tpu.memory_space<vmem>>, vector<80x512xbf16>
    %cst_5 = arith.constant dense<0.000000e+00> : vector<32x512xf32>
    %4 = tpu.matmul %0, %3, %cst_5 {dimension_numbers = #tpu.dot_dimension_numbers<[1], [0], [0], [1], [0, 0, 1, 1], [], []>} : vector<32x80xbf16>, vector<80x512xbf16>, vector<32x512xf32> -> vector<32x512xf32>
    %5 = arith.maximumf %2, %4 : vector<32x512xf32>
    %c0_6 = arith.constant 0 : index
    %c0_7 = arith.constant 0 : index
    %6 = vector.load %arg5[%c0_6, %c0_7] : memref<80x512xbf16, #tpu.memory_space<vmem>>, vector<80x512xbf16>
    %cst_8 = arith.constant dense<0.000000e+00> : vector<32x512xf32>
    %7 = tpu.matmul %0, %6, %cst_8 {dimension_numbers = #tpu.dot_dimension_numbers<[1], [0], [0], [1], [0, 0, 1, 1], [], []>} : vector<32x80xbf16>, vector<80x512xbf16>, vector<32x512xf32> -> vector<32x512xf32>
    %8 = arith.maximumf %5, %7 : vector<32x512xf32>
    %c0_9 = arith.constant 0 : index
    %c0_10 = arith.constant 0 : index
    %9 = vector.load %arg6[%c0_9, %c0_10] : memref<80x512xbf16, #tpu.memory_space<vmem>>, vector<80x512xbf16>
    %cst_11 = arith.constant dense<0.000000e+00> : vector<32x512xf32>
    %10 = tpu.matmul %0, %9, %cst_11 {dimension_numbers = #tpu.dot_dimension_numbers<[1], [0], [0], [1], [0, 0, 1, 1], [], []>} : vector<32x80xbf16>, vector<80x512xbf16>, vector<32x512xf32> -> vector<32x512xf32>
    %11 = arith.maximumf %8, %10 : vector<32x512xf32>
    %c0_12 = arith.constant 0 : index
    %c0_13 = arith.constant 0 : index
    %12 = vector.load %arg2[%c0_12, %c0_13] : memref<32x1xf32, #tpu.memory_space<vmem>>, vector<32x1xf32>
    %13 = vector.broadcast %12 : vector<32x1xf32> to vector<32x512xf32>
    %14 = arith.addf %11, %13 : vector<32x512xf32>
    %15 = arith.truncf %14 : vector<32x512xf32> to vector<32x512xbf16>
    %c0_14 = arith.constant 0 : index
    %c0_15 = arith.constant 0 : index
    %16 = vector.load %arg7[%c0_14, %c0_15] : memref<32x512xbf16, #tpu.memory_space<vmem>>, vector<32x512xbf16>
    tpu.vector_store %arg7[%c0_14, %c0_15], %15 {strides = array<i32>} : memref<32x512xbf16, #tpu.memory_space<vmem>>, vector<32x512xbf16>,
    return
  }
  func.func @transform_0(%arg0: i32) -> (i32, i32) {
    %c0_i32 = arith.constant 0 : i32
    %c0_i32_0 = arith.constant 0 : i32
    %c0_i32_1 = arith.constant 0 : i32
    return %c0_i32, %c0_i32_0 : i32, i32
  }
  func.func @transform_1(%arg0: i32) -> (i32, i32) {
    %c0_i32 = arith.constant 0 : i32
    %c0_i32_0 = arith.constant 0 : i32
    %c0_i32_1 = arith.constant 0 : i32
    return %c0_i32, %c0_i32_0 : i32, i32
  }
  func.func @transform_2(%arg0: i32) -> (i32, i32) {
    %c0_i32 = arith.constant 0 : i32
    %c0_i32_0 = arith.constant 0 : i32
    return %c0_i32, %arg0 : i32, i32
  }
  func.func @transform_3(%arg0: i32) -> (i32, i32) {
    %c0_i32 = arith.constant 0 : i32
    %c0_i32_0 = arith.constant 0 : i32
    return %c0_i32, %arg0 : i32, i32
  }
  func.func @transform_4(%arg0: i32) -> (i32, i32) {
    %c0_i32 = arith.constant 0 : i32
    %c0_i32_0 = arith.constant 0 : i32
    return %c0_i32, %arg0 : i32, i32
  }
  func.func @transform_5(%arg0: i32) -> (i32, i32) {
    %c0_i32 = arith.constant 0 : i32
    %c0_i32_0 = arith.constant 0 : i32
    return %c0_i32, %arg0 : i32, i32
  }
  func.func @transform_6(%arg0: i32) -> (i32, i32) {
    %c0_i32 = arith.constant 0 : i32
    %c0_i32_0 = arith.constant 0 : i32
    return %c0_i32, %arg0 : i32, i32
  }
}

module attributes {stable_mosaic.version = 11 : i64} {
  func.func @_conv_pool_kernel(%arg0: i32, %arg1: memref<32x800xbf16, #tpu.memory_space<vmem>>, %arg2: memref<32x1xf32, #tpu.memory_space<vmem>>, %arg3: memref<800x128xbf16, #tpu.memory_space<vmem>>, %arg4: memref<800x128xbf16, #tpu.memory_space<vmem>>, %arg5: memref<800x128xbf16, #tpu.memory_space<vmem>>, %arg6: memref<800x128xbf16, #tpu.memory_space<vmem>>, %arg7: memref<32x128xbf16, #tpu.memory_space<vmem>>) attributes {dimension_semantics = [#tpu.dimension_semantics<parallel>], iteration_bounds = array<i64: 1>, scalar_prefetch = 0 : i64, scratch_operands = 0 : i64, tpu.core_type = #tpu.core_type<tc>, window_params = [{pipeline_mode = #tpu.pipeline_mode<synchronous>, transform_indices = @transform_0, window_bounds = array<i64: 32, 800>}, {pipeline_mode = #tpu.pipeline_mode<synchronous>, transform_indices = @transform_1, window_bounds = array<i64: 32, 1>}, {transform_indices = @transform_2, window_bounds = array<i64: 800, 128>}, {transform_indices = @transform_3, window_bounds = array<i64: 800, 128>}, {transform_indices = @transform_4, window_bounds = array<i64: 800, 128>}, {transform_indices = @transform_5, window_bounds = array<i64: 800, 128>}, {transform_indices = @transform_6, window_bounds = array<i64: 32, 128>}]} {
    %c0 = arith.constant 0 : index
    %c0_0 = arith.constant 0 : index
    %0 = vector.load %arg1[%c0, %c0_0] : memref<32x800xbf16, #tpu.memory_space<vmem>>, vector<32x800xbf16>
    %c0_1 = arith.constant 0 : index
    %c0_2 = arith.constant 0 : index
    %1 = vector.load %arg3[%c0_1, %c0_2] : memref<800x128xbf16, #tpu.memory_space<vmem>>, vector<800x128xbf16>
    %cst = arith.constant dense<0.000000e+00> : vector<32x128xf32>
    %2 = tpu.matmul %0, %1, %cst {dimension_numbers = #tpu.dot_dimension_numbers<[1], [0], [0], [1], [0, 0, 1, 1], [], []>} : vector<32x800xbf16>, vector<800x128xbf16>, vector<32x128xf32> -> vector<32x128xf32>
    %c0_3 = arith.constant 0 : index
    %c0_4 = arith.constant 0 : index
    %3 = vector.load %arg4[%c0_3, %c0_4] : memref<800x128xbf16, #tpu.memory_space<vmem>>, vector<800x128xbf16>
    %cst_5 = arith.constant dense<0.000000e+00> : vector<32x128xf32>
    %4 = tpu.matmul %0, %3, %cst_5 {dimension_numbers = #tpu.dot_dimension_numbers<[1], [0], [0], [1], [0, 0, 1, 1], [], []>} : vector<32x800xbf16>, vector<800x128xbf16>, vector<32x128xf32> -> vector<32x128xf32>
    %5 = arith.maximumf %2, %4 : vector<32x128xf32>
    %c0_6 = arith.constant 0 : index
    %c0_7 = arith.constant 0 : index
    %6 = vector.load %arg5[%c0_6, %c0_7] : memref<800x128xbf16, #tpu.memory_space<vmem>>, vector<800x128xbf16>
    %cst_8 = arith.constant dense<0.000000e+00> : vector<32x128xf32>
    %7 = tpu.matmul %0, %6, %cst_8 {dimension_numbers = #tpu.dot_dimension_numbers<[1], [0], [0], [1], [0, 0, 1, 1], [], []>} : vector<32x800xbf16>, vector<800x128xbf16>, vector<32x128xf32> -> vector<32x128xf32>
    %8 = arith.maximumf %5, %7 : vector<32x128xf32>
    %c0_9 = arith.constant 0 : index
    %c0_10 = arith.constant 0 : index
    %9 = vector.load %arg6[%c0_9, %c0_10] : memref<800x128xbf16, #tpu.memory_space<vmem>>, vector<800x128xbf16>
    %cst_11 = arith.constant dense<0.000000e+00> : vector<32x128xf32>
    %10 = tpu.matmul %0, %9, %cst_11 {dimension_numbers = #tpu.dot_dimension_numbers<[1], [0], [0], [1], [0, 0, 1, 1], [], []>} : vector<32x800xbf16>, vector<800x128xbf16>, vector<32x128xf32> -> vector<32x128xf32>
    %11 = arith.maximumf %8, %10 : vector<32x128xf32>
    %c0_12 = arith.constant 0 : index
    %c0_13 = arith.constant 0 : index
    %12 = vector.load %arg2[%c0_12, %c0_13] : memref<32x1xf32, #tpu.memory_space<vmem>>, vector<32x1xf32>
    %13 = vector.broadcast %12 : vector<32x1xf32> to vector<32x128xf32>
    %14 = arith.addf %11, %13 : vector<32x128xf32>
    %15 = arith.truncf %14 : vector<32x128xf32> to vector<32x128xbf16>
    %c0_14 = arith.constant 0 : index
    %c0_15 = arith.constant 0 : index
    %16 = vector.load %arg7[%c0_14, %c0_15] : memref<32x128xbf16, #tpu.memory_space<vmem>>, vector<32x128xbf16>
    tpu.vector_store %arg7[%c0_14, %c0_15], %15 {strides = array<i32>} : memref<32x128xbf16, #tpu.memory_space<vmem>>, vector<32x128xbf16>,
    return
  }
  func.func @transform_0(%arg0: i32) -> (i32, i32) {
    %c0_i32 = arith.constant 0 : i32
    %c0_i32_0 = arith.constant 0 : i32
    %c0_i32_1 = arith.constant 0 : i32
    return %c0_i32, %c0_i32_0 : i32, i32
  }
  func.func @transform_1(%arg0: i32) -> (i32, i32) {
    %c0_i32 = arith.constant 0 : i32
    %c0_i32_0 = arith.constant 0 : i32
    %c0_i32_1 = arith.constant 0 : i32
    return %c0_i32, %c0_i32_0 : i32, i32
  }
  func.func @transform_2(%arg0: i32) -> (i32, i32) {
    %c0_i32 = arith.constant 0 : i32
    %c0_i32_0 = arith.constant 0 : i32
    return %c0_i32, %arg0 : i32, i32
  }
  func.func @transform_3(%arg0: i32) -> (i32, i32) {
    %c0_i32 = arith.constant 0 : i32
    %c0_i32_0 = arith.constant 0 : i32
    return %c0_i32, %arg0 : i32, i32
  }
  func.func @transform_4(%arg0: i32) -> (i32, i32) {
    %c0_i32 = arith.constant 0 : i32
    %c0_i32_0 = arith.constant 0 : i32
    return %c0_i32, %arg0 : i32, i32
  }
  func.func @transform_5(%arg0: i32) -> (i32, i32) {
    %c0_i32 = arith.constant 0 : i32
    %c0_i32_0 = arith.constant 0 : i32
    return %c0_i32, %arg0 : i32, i32
  }
  func.func @transform_6(%arg0: i32) -> (i32, i32) {
    %c0_i32 = arith.constant 0 : i32
    %c0_i32_0 = arith.constant 0 : i32
    return %c0_i32, %arg0 : i32, i32
  }
}

module attributes {stable_mosaic.version = 11 : i64} {
  func.func @_conv_pool_kernel(%arg0: i32, %arg1: memref<64x800xbf16, #tpu.memory_space<vmem>>, %arg2: memref<64x1xf32, #tpu.memory_space<vmem>>, %arg3: memref<800x32xbf16, #tpu.memory_space<vmem>>, %arg4: memref<800x32xbf16, #tpu.memory_space<vmem>>, %arg5: memref<800x32xbf16, #tpu.memory_space<vmem>>, %arg6: memref<800x32xbf16, #tpu.memory_space<vmem>>, %arg7: memref<64x32xbf16, #tpu.memory_space<vmem>>) attributes {dimension_semantics = [#tpu.dimension_semantics<parallel>], iteration_bounds = array<i64: 1>, scalar_prefetch = 0 : i64, scratch_operands = 0 : i64, tpu.core_type = #tpu.core_type<tc>, window_params = [{pipeline_mode = #tpu.pipeline_mode<synchronous>, transform_indices = @transform_0, window_bounds = array<i64: 64, 800>}, {pipeline_mode = #tpu.pipeline_mode<synchronous>, transform_indices = @transform_1, window_bounds = array<i64: 64, 1>}, {transform_indices = @transform_2, window_bounds = array<i64: 800, 32>}, {transform_indices = @transform_3, window_bounds = array<i64: 800, 32>}, {transform_indices = @transform_4, window_bounds = array<i64: 800, 32>}, {transform_indices = @transform_5, window_bounds = array<i64: 800, 32>}, {transform_indices = @transform_6, window_bounds = array<i64: 64, 32>}]} {
    %c0 = arith.constant 0 : index
    %c0_0 = arith.constant 0 : index
    %0 = vector.load %arg1[%c0, %c0_0] : memref<64x800xbf16, #tpu.memory_space<vmem>>, vector<64x800xbf16>
    %c0_1 = arith.constant 0 : index
    %c0_2 = arith.constant 0 : index
    %1 = vector.load %arg3[%c0_1, %c0_2] : memref<800x32xbf16, #tpu.memory_space<vmem>>, vector<800x32xbf16>
    %cst = arith.constant dense<0.000000e+00> : vector<64x32xf32>
    %2 = tpu.matmul %0, %1, %cst {dimension_numbers = #tpu.dot_dimension_numbers<[1], [0], [0], [1], [0, 0, 1, 1], [], []>} : vector<64x800xbf16>, vector<800x32xbf16>, vector<64x32xf32> -> vector<64x32xf32>
    %c0_3 = arith.constant 0 : index
    %c0_4 = arith.constant 0 : index
    %3 = vector.load %arg4[%c0_3, %c0_4] : memref<800x32xbf16, #tpu.memory_space<vmem>>, vector<800x32xbf16>
    %cst_5 = arith.constant dense<0.000000e+00> : vector<64x32xf32>
    %4 = tpu.matmul %0, %3, %cst_5 {dimension_numbers = #tpu.dot_dimension_numbers<[1], [0], [0], [1], [0, 0, 1, 1], [], []>} : vector<64x800xbf16>, vector<800x32xbf16>, vector<64x32xf32> -> vector<64x32xf32>
    %5 = arith.maximumf %2, %4 : vector<64x32xf32>
    %c0_6 = arith.constant 0 : index
    %c0_7 = arith.constant 0 : index
    %6 = vector.load %arg5[%c0_6, %c0_7] : memref<800x32xbf16, #tpu.memory_space<vmem>>, vector<800x32xbf16>
    %cst_8 = arith.constant dense<0.000000e+00> : vector<64x32xf32>
    %7 = tpu.matmul %0, %6, %cst_8 {dimension_numbers = #tpu.dot_dimension_numbers<[1], [0], [0], [1], [0, 0, 1, 1], [], []>} : vector<64x800xbf16>, vector<800x32xbf16>, vector<64x32xf32> -> vector<64x32xf32>
    %8 = arith.maximumf %5, %7 : vector<64x32xf32>
    %c0_9 = arith.constant 0 : index
    %c0_10 = arith.constant 0 : index
    %9 = vector.load %arg6[%c0_9, %c0_10] : memref<800x32xbf16, #tpu.memory_space<vmem>>, vector<800x32xbf16>
    %cst_11 = arith.constant dense<0.000000e+00> : vector<64x32xf32>
    %10 = tpu.matmul %0, %9, %cst_11 {dimension_numbers = #tpu.dot_dimension_numbers<[1], [0], [0], [1], [0, 0, 1, 1], [], []>} : vector<64x800xbf16>, vector<800x32xbf16>, vector<64x32xf32> -> vector<64x32xf32>
    %11 = arith.maximumf %8, %10 : vector<64x32xf32>
    %c0_12 = arith.constant 0 : index
    %c0_13 = arith.constant 0 : index
    %12 = vector.load %arg2[%c0_12, %c0_13] : memref<64x1xf32, #tpu.memory_space<vmem>>, vector<64x1xf32>
    %13 = vector.broadcast %12 : vector<64x1xf32> to vector<64x32xf32>
    %14 = arith.addf %11, %13 : vector<64x32xf32>
    %15 = arith.truncf %14 : vector<64x32xf32> to vector<64x32xbf16>
    %c0_14 = arith.constant 0 : index
    %c0_15 = arith.constant 0 : index
    %16 = vector.load %arg7[%c0_14, %c0_15] : memref<64x32xbf16, #tpu.memory_space<vmem>>, vector<64x32xbf16>
    tpu.vector_store %arg7[%c0_14, %c0_15], %15 {strides = array<i32>} : memref<64x32xbf16, #tpu.memory_space<vmem>>, vector<64x32xbf16>,
    return
  }
  func.func @transform_0(%arg0: i32) -> (i32, i32) {
    %c0_i32 = arith.constant 0 : i32
    %c0_i32_0 = arith.constant 0 : i32
    %c0_i32_1 = arith.constant 0 : i32
    return %c0_i32, %c0_i32_0 : i32, i32
  }
  func.func @transform_1(%arg0: i32) -> (i32, i32) {
    %c0_i32 = arith.constant 0 : i32
    %c0_i32_0 = arith.constant 0 : i32
    %c0_i32_1 = arith.constant 0 : i32
    return %c0_i32, %c0_i32_0 : i32, i32
  }
  func.func @transform_2(%arg0: i32) -> (i32, i32) {
    %c0_i32 = arith.constant 0 : i32
    %c0_i32_0 = arith.constant 0 : i32
    return %c0_i32, %arg0 : i32, i32
  }
  func.func @transform_3(%arg0: i32) -> (i32, i32) {
    %c0_i32 = arith.constant 0 : i32
    %c0_i32_0 = arith.constant 0 : i32
    return %c0_i32, %arg0 : i32, i32
  }
  func.func @transform_4(%arg0: i32) -> (i32, i32) {
    %c0_i32 = arith.constant 0 : i32
    %c0_i32_0 = arith.constant 0 : i32
    return %c0_i32, %arg0 : i32, i32
  }
  func.func @transform_5(%arg0: i32) -> (i32, i32) {
    %c0_i32 = arith.constant 0 : i32
    %c0_i32_0 = arith.constant 0 : i32
    return %c0_i32, %arg0 : i32, i32
  }
  func.func @transform_6(%arg0: i32) -> (i32, i32) {
    %c0_i32 = arith.constant 0 : i32
    %c0_i32_0 = arith.constant 0 : i32
    return %c0_i32, %arg0 : i32, i32
  }
}

module attributes {stable_mosaic.version = 11 : i64} {
  func.func @_mlp_kernel(%arg0: i32, %arg1: memref<2x1024xbf16, #tpu.memory_space<vmem>>, %arg2: memref<1024x64xbf16, #tpu.memory_space<vmem>>, %arg3: memref<1x64xf32, #tpu.memory_space<vmem>>, %arg4: memref<64x10xbf16, #tpu.memory_space<vmem>>, %arg5: memref<1x10xf32, #tpu.memory_space<vmem>>, %arg6: memref<2x10xf32, #tpu.memory_space<vmem>>) attributes {dimension_semantics = [#tpu.dimension_semantics<parallel>], iteration_bounds = array<i64: 1>, scalar_prefetch = 0 : i64, scratch_operands = 0 : i64, tpu.core_type = #tpu.core_type<tc>, window_params = [{transform_indices = @transform_0, window_bounds = array<i64: 2, 1024>}, {pipeline_mode = #tpu.pipeline_mode<synchronous>, transform_indices = @transform_1, window_bounds = array<i64: 1024, 64>}, {pipeline_mode = #tpu.pipeline_mode<synchronous>, transform_indices = @transform_2, window_bounds = array<i64: 1, 64>}, {pipeline_mode = #tpu.pipeline_mode<synchronous>, transform_indices = @transform_3, window_bounds = array<i64: 64, 10>}, {pipeline_mode = #tpu.pipeline_mode<synchronous>, transform_indices = @transform_4, window_bounds = array<i64: 1, 10>}, {transform_indices = @transform_5, window_bounds = array<i64: 2, 10>}]} {
    %c0 = arith.constant 0 : index
    %c0_0 = arith.constant 0 : index
    %0 = vector.load %arg1[%c0, %c0_0] : memref<2x1024xbf16, #tpu.memory_space<vmem>>, vector<2x1024xbf16>
    %c0_1 = arith.constant 0 : index
    %c0_2 = arith.constant 0 : index
    %1 = vector.load %arg2[%c0_1, %c0_2] : memref<1024x64xbf16, #tpu.memory_space<vmem>>, vector<1024x64xbf16>
    %cst = arith.constant dense<0.000000e+00> : vector<2x64xf32>
    %2 = tpu.matmul %0, %1, %cst {dimension_numbers = #tpu.dot_dimension_numbers<[1], [0], [0], [1], [0, 0, 1, 1], [], []>} : vector<2x1024xbf16>, vector<1024x64xbf16>, vector<2x64xf32> -> vector<2x64xf32>
    %c0_3 = arith.constant 0 : index
    %c0_4 = arith.constant 0 : index
    %3 = vector.load %arg3[%c0_3, %c0_4] : memref<1x64xf32, #tpu.memory_space<vmem>>, vector<1x64xf32>
    %4 = vector.broadcast %3 : vector<1x64xf32> to vector<2x64xf32>
    %5 = arith.addf %2, %4 : vector<2x64xf32>
    %6 = arith.truncf %5 : vector<2x64xf32> to vector<2x64xbf16>
    %c0_5 = arith.constant 0 : index
    %c0_6 = arith.constant 0 : index
    %7 = vector.load %arg4[%c0_5, %c0_6] : memref<64x10xbf16, #tpu.memory_space<vmem>>, vector<64x10xbf16>
    %cst_7 = arith.constant dense<0.000000e+00> : vector<2x10xf32>
    %8 = tpu.matmul %6, %7, %cst_7 {dimension_numbers = #tpu.dot_dimension_numbers<[1], [0], [0], [1], [0, 0, 1, 1], [], []>} : vector<2x64xbf16>, vector<64x10xbf16>, vector<2x10xf32> -> vector<2x10xf32>
    %c0_8 = arith.constant 0 : index
    %c0_9 = arith.constant 0 : index
    %9 = vector.load %arg5[%c0_8, %c0_9] : memref<1x10xf32, #tpu.memory_space<vmem>>, vector<1x10xf32>
    %10 = vector.broadcast %9 : vector<1x10xf32> to vector<2x10xf32>
    %11 = arith.addf %8, %10 : vector<2x10xf32>
    %c0_10 = arith.constant 0 : index
    %c0_11 = arith.constant 0 : index
    %12 = vector.load %arg6[%c0_10, %c0_11] : memref<2x10xf32, #tpu.memory_space<vmem>>, vector<2x10xf32>
    tpu.vector_store %arg6[%c0_10, %c0_11], %11 {strides = array<i32>} : memref<2x10xf32, #tpu.memory_space<vmem>>, vector<2x10xf32>,
    return
  }
  func.func @transform_0(%arg0: i32) -> (i32, i32) {
    %c0_i32 = arith.constant 0 : i32
    %c0_i32_0 = arith.constant 0 : i32
    return %arg0, %c0_i32 : i32, i32
  }
  func.func @transform_1(%arg0: i32) -> (i32, i32) {
    %c0_i32 = arith.constant 0 : i32
    %c0_i32_0 = arith.constant 0 : i32
    %c0_i32_1 = arith.constant 0 : i32
    return %c0_i32, %c0_i32_0 : i32, i32
  }
  func.func @transform_2(%arg0: i32) -> (i32, i32) {
    %c0_i32 = arith.constant 0 : i32
    %c0_i32_0 = arith.constant 0 : i32
    %c0_i32_1 = arith.constant 0 : i32
    return %c0_i32, %c0_i32_0 : i32, i32
  }
  func.func @transform_3(%arg0: i32) -> (i32, i32) {
    %c0_i32 = arith.constant 0 : i32
    %c0_i32_0 = arith.constant 0 : i32
    %c0_i32_1 = arith.constant 0 : i32
    return %c0_i32, %c0_i32_0 : i32, i32
  }
  func.func @transform_4(%arg0: i32) -> (i32, i32) {
    %c0_i32 = arith.constant 0 : i32
    %c0_i32_0 = arith.constant 0 : i32
    %c0_i32_1 = arith.constant 0 : i32
    return %c0_i32, %c0_i32_0 : i32, i32
  }
  func.func @transform_5(%arg0: i32) -> (i32, i32) {
    %c0_i32 = arith.constant 0 : i32
    %c0_i32_0 = arith.constant 0 : i32
    return %arg0, %c0_i32 : i32, i32
  }
}

</mosaic_0001>

<llo_original>
// kernel: tudui_forward.4
$region0: #{tudui_forward.4}
  #allocation0 [shape = 'u32[]', space=smem, size = 0x4, offset = 0x4, fixed_abs, tag = 'smem constant byte address 0x4 - core index']
  #allocation1 [shape = 'u32[144,128]{1,0:T(1,128)}', space=vmem, size = 0x12000, scoped, tag = 'internal scratch']
  %s0 = inlined_call_operand.vmem [shape: bf16[32,80], index: 0, kind: input, shape index: {}]
  %s1 = inlined_call_operand.vmem [shape: f32[32,1], index: 1, kind: input, shape index: {}]
  %s2 = inlined_call_operand.vmem [shape: bf16[80,512], index: 2, kind: input, shape index: {}]
  %s3 = inlined_call_operand.vmem [shape: bf16[80,512], index: 3, kind: input, shape index: {}]
  %s4 = inlined_call_operand.vmem [shape: bf16[80,512], index: 4, kind: input, shape index: {}]
  %s5 = inlined_call_operand.vmem [shape: bf16[80,512], index: 5, kind: input, shape index: {}]
  %s6 = inlined_call_operand.vmem [shape: bf16[32,512], index: 6, kind: output, shape index: {}]
  %s7 = sld [smem:[#allocation0]]
  $region34: #{tudui_forward.4} parent=0
    _
  %s9 = ssub.s32 1, %s7
  %s10 = scalar_select 0, %s9, %s7
  // Predicated region
  $region2: #{tudui_forward.4} parent=0 // pred_check
    _
  $region3: #{tudui_forward.4} parent=0 // pred_check_branch
    %12 = sbr.rel (0) target = $region5
  $region4: #{tudui_forward.4} parent=0 // pred_region
    _
  $region5: #{tudui_forward.4} parent=0 // pred_fallthru
    _
  // Predicated region
  $region6: #{tudui_forward.4} parent=0 // pred_check
    _
  $region7: #{tudui_forward.4} parent=0 // pred_check_branch
    %14 = sbr.rel (0) target = $region9
  $region8: #{tudui_forward.4} parent=0 // pred_region
    _
  $region9: #{tudui_forward.4} parent=0 // pred_fallthru
    _
  // Predicated region
  $region10: #{tudui_forward.4} parent=0 // pred_check
    _
  $region11: #{tudui_forward.4} parent=0 // pred_check_branch
    %16 = sbr.rel (0) target = $region13
  $region12: #{tudui_forward.4} parent=0 // pred_region
    _
  $region13: #{tudui_forward.4} parent=0 // pred_fallthru
    _
  // Predicated region
  $region14: #{tudui_forward.4} parent=0 // pred_check
    _
  $region15: #{tudui_forward.4} parent=0 // pred_check_branch
    %18 = sbr.rel (0) target = $region17
  $region16: #{tudui_forward.4} parent=0 // pred_region
    _
  $region17: #{tudui_forward.4} parent=0 // pred_fallthru
    _
  // Predicated region
  $region18: #{tudui_forward.4} parent=0 // pred_check
    _
  $region19: #{tudui_forward.4} parent=0 // pred_check_branch
    %20 = sbr.rel (0) target = $region21
  $region20: #{tudui_forward.4} parent=0 // pred_region
    _
  $region21: #{tudui_forward.4} parent=0 // pred_fallthru
    _
  // Predicated region
  $region22: #{tudui_forward.4} parent=0 // pred_check
    _
  $region23: #{tudui_forward.4} parent=0 // pred_check_branch
    %22 = sbr.rel (0) target = $region25
  $region24: #{tudui_forward.4} parent=0 // pred_region
    _
  $region25: #{tudui_forward.4} parent=0 // pred_fallthru
    _
  %v24 = vld [vmem:[%s0] sm:$0xf]
  %v25 = vld [vmem:[%s0 + $0x4] sm:$0xf]
  %v26 = vld [vmem:[%s0 + $0x8] sm:$0xf]
  %v27 = vld [vmem:[%s0 + $0xc] sm:$0xf]
  %v28 = vld [vmem:[%s2] sm:$0xff]
  %v29 = vld [vmem:[%s2 + $0x8] sm:$0xff]
  %v30 = vld [vmem:[%s2 + $0x10] sm:$0xff]
  %v31 = vld [vmem:[%s2 + $0x18] sm:$0xff]
  %v32 = vld [vmem:[%s2 + $0x20] sm:$0xff]
  %v33 = vld [vmem:[%s2 + $0x28] sm:$0xff]
  %v34 = vld [vmem:[%s2 + $0x30] sm:$0xff]
  %v35 = vld [vmem:[%s2 + $0x38] sm:$0xff]
  %v36 = vld [vmem:[%s2 + $0x40] sm:$0xff]
  %v37 = vld [vmem:[%s2 + $0x48] sm:$0xff]
  %v38 = vld [vmem:[%s2 + $0x50] sm:$0xff]
  %v39 = vld [vmem:[%s2 + $0x58] sm:$0xff]
  %v40 = vld [vmem:[%s2 + $0x60] sm:$0xff]
  %v41 = vld [vmem:[%s2 + $0x68] sm:$0xff]
  %v42 = vld [vmem:[%s2 + $0x70] sm:$0xff]
  %v43 = vld [vmem:[%s2 + $0x78] sm:$0xff]
  %v44 = vld [vmem:[%s2 + $0x80] sm:$0xff]
  %v45 = vld [vmem:[%s2 + $0x88] sm:$0xff]
  %v46 = vld [vmem:[%s2 + $0x90] sm:$0xff]
  %v47 = vld [vmem:[%s2 + $0x98] sm:$0xff]
  %v52 = vunpack.c.l.b16 %v24
  %v53 = vunpack.c.l.b16 %v25
  %v54 = vunpack.c.l.b16 %v26
  %v55 = vunpack.c.l.b16 %v27
  %v56 = vpack.c.b16 %v53, %v52
  %v57 = vpack.c.b16 %v55, %v54
  %v78 = vunpack.c.l.b16 %v28
  %v79 = vunpack.c.h.b16 %v28
  %v80 = vunpack.c.l.b16 %v29
  %v81 = vunpack.c.h.b16 %v29
  %v82 = vunpack.c.l.b16 %v30
  %v83 = vunpack.c.h.b16 %v30
  %v84 = vunpack.c.l.b16 %v31
  %v85 = vunpack.c.h.b16 %v31
  %v86 = vunpack.c.l.b16 %v32
  %v87 = vunpack.c.h.b16 %v32
  %v88 = vunpack.c.l.b16 %v33
  %v89 = vunpack.c.h.b16 %v33
  %v90 = vunpack.c.l.b16 %v34
  %v91 = vunpack.c.h.b16 %v34
  %v92 = vunpack.c.l.b16 %v35
  %v93 = vunpack.c.h.b16 %v35
  %v94 = vunpack.c.l.b16 %v36
  %v95 = vunpack.c.h.b16 %v36
  %v96 = vunpack.c.l.b16 %v37
  %v97 = vunpack.c.h.b16 %v37
  %v98 = vunpack.c.l.b16 %v38
  %v99 = vunpack.c.h.b16 %v38
  %v100 = vunpack.c.l.b16 %v39
  %v101 = vunpack.c.h.b16 %v39
  %v102 = vunpack.c.l.b16 %v40
  %v103 = vunpack.c.h.b16 %v40
  %v104 = vunpack.c.l.b16 %v41
  %v105 = vunpack.c.h.b16 %v41
  %v106 = vunpack.c.l.b16 %v42
  %v107 = vunpack.c.h.b16 %v42
  %v108 = vunpack.c.l.b16 %v43
  %v109 = vunpack.c.h.b16 %v43
  %v110 = vunpack.c.l.b16 %v44
  %v111 = vunpack.c.h.b16 %v44
  %v112 = vunpack.c.l.b16 %v45
  %v113 = vunpack.c.h.b16 %v45
  %v114 = vunpack.c.l.b16 %v46
  %v115 = vunpack.c.h.b16 %v46
  %v116 = vunpack.c.l.b16 %v47
  %v117 = vunpack.c.h.b16 %v47
  %v118 = vpack.c.b16 %v82, %v78
  %v119 = vpack.c.b16 %v83, %v79
  %v120 = vpack.c.b16 %v84, %v80
  %v121 = vpack.c.b16 %v85, %v81
  %v122 = vpack.c.b16 %v90, %v86
  %v123 = vpack.c.b16 %v91, %v87
  %v124 = vpack.c.b16 %v92, %v88
  %v125 = vpack.c.b16 %v93, %v89
  %v126 = vpack.c.b16 %v98, %v94
  %v127 = vpack.c.b16 %v99, %v95
  %v128 = vpack.c.b16 %v100, %v96
  %v129 = vpack.c.b16 %v101, %v97
  %v130 = vpack.c.b16 %v106, %v102
  %v131 = vpack.c.b16 %v107, %v103
  %v132 = vpack.c.b16 %v108, %v104
  %v133 = vpack.c.b16 %v109, %v105
  %v134 = vpack.c.b16 %v114, %v110
  %v135 = vpack.c.b16 %v115, %v111
  %v136 = vpack.c.b16 %v116, %v112
  %v137 = vpack.c.b16 %v117, %v113
  %vm158 = vcmask 654336
  %v160 = vsel %vm158, %v56, 0
  %v163 = vsel %vm158, %v57, 0
  %165 = vmatprep.subr.bf16.mxu0 %v119
  %166 = vmatpush1.bf16.msra.mxu0 %v118
  %167 = vmatprep.subr.bf16.mxu0 %v123
  %168 = vmatpush1.bf16.msra.mxu0 %v122
  %169 = vmatprep.subr.bf16.mxu0 %v127
  %170 = vmatpush1.bf16.msra.mxu0 %v126
  %171 = vmatprep.subr.bf16.mxu0 %v131
  %172 = vmatpush1.bf16.msra.mxu0 %v130
  %173 = vmatprep.subr.bf16.mxu0 %v135
  %174 = vmatpush1.bf16.msra.mxu0 %v134
  %175 = vmatprep.subr.bf16.mxu0 0
  %176 = vmatpush1.bf16.msra.mxu0 0
  %177 = vmatprep.subr.bf16.mxu0 0
  %178 = vmatpush1.bf16.msra.mxu0 0
  %179 = vmatprep.subr.bf16.mxu0 0
  %180 = vmatpush1.bf16.msra.mxu0 0
  %181 = vmatprep.subr.bf16.mxu0 0
  %182 = vmatpush1.bf16.msra.mxu0 0
  %183 = vmatprep.subr.bf16.mxu0 0
  %184 = vmatpush1.bf16.msra.mxu0 0
  %185 = vmatprep.subr.bf16.mxu0 0
  %186 = vmatpush1.bf16.msra.mxu0 0
  %187 = vmatprep.subr.bf16.mxu0 0
  %188 = vmatpush1.bf16.msra.mxu0 0
  %189 = vmatprep.subr.bf16.mxu0 0
  %190 = vmatpush1.bf16.msra.mxu0 0
  %191 = vmatprep.subr.bf16.mxu0 0
  %192 = vmatpush1.bf16.msra.mxu0 0
  %193 = vmatprep.subr.bf16.mxu0 0
  %194 = vmatpush1.bf16.msra.mxu0 0
  %195 = vmatprep.subr.bf16.mxu0 0
  %196 = vmatpush1.bf16.msra.mxu0 0
  %197 = vmatprep.mubr.bf16.mxu0 0
  %198 = vmatmul.mubr.bf16.gmra.mrb[0].mxu0 %v160
  %v199 = vpop.f32.mrb[0].mxu0
  %v200 = vadd.f32 0.0, %v199
  %v201 = vpop.f32.mrb[0].mxu0
  %v202 = vadd.f32 0.0, %v201
  %v203 = vpop.f32.mrb[0].mxu0
  %v204 = vadd.f32 0.0, %v203
  %v205 = vpop.f32.mrb[0].mxu0
  %v206 = vadd.f32 0.0, %v205
  %207 = vmatprep.mubr.bf16.mxu0 0
  %208 = vmatmul.mubr.bf16.gmra.mrb[0].mxu0 %v163
  %v209 = vpop.f32.mrb[0].mxu0
  %v210 = vadd.f32 0.0, %v209
  %v211 = vpop.f32.mrb[0].mxu0
  %v212 = vadd.f32 0.0, %v211
  %v213 = vpop.f32.mrb[0].mxu0
  %v214 = vadd.f32 0.0, %v213
  %v215 = vpop.f32.mrb[0].mxu0
  %v216 = vadd.f32 0.0, %v215
  %217 = vdwg.mxu0
  %218 = vmatprep.subr.bf16.mxu0 %v121
  %219 = vmatpush1.bf16.msra.mxu0 %v120
  %220 = vmatprep.subr.bf16.mxu0 %v125
  %221 = vmatpush1.bf16.msra.mxu0 %v124
  %222 = vmatprep.subr.bf16.mxu0 %v129
  %223 = vmatpush1.bf16.msra.mxu0 %v128
  %224 = vmatprep.subr.bf16.mxu0 %v133
  %225 = vmatpush1.bf16.msra.mxu0 %v132
  %226 = vmatprep.subr.bf16.mxu0 %v137
  %227 = vmatpush1.bf16.msra.mxu0 %v136
  %228 = vmatprep.subr.bf16.mxu0 0
  %229 = vmatpush1.bf16.msra.mxu0 0
  %230 = vmatprep.subr.bf16.mxu0 0
  %231 = vmatpush1.bf16.msra.mxu0 0
  %232 = vmatprep.subr.bf16.mxu0 0
  %233 = vmatpush1.bf16.msra.mxu0 0
  %234 = vmatprep.subr.bf16.mxu0 0
  %235 = vmatpush1.bf16.msra.mxu0 0
  %236 = vmatprep.subr.bf16.mxu0 0
  %237 = vmatpush1.bf16.msra.mxu0 0
  %238 = vmatprep.subr.bf16.mxu0 0
  %239 = vmatpush1.bf16.msra.mxu0 0
  %240 = vmatprep.subr.bf16.mxu0 0
  %241 = vmatpush1.bf16.msra.mxu0 0
  %242 = vmatprep.subr.bf16.mxu0 0
  %243 = vmatpush1.bf16.msra.mxu0 0
  %244 = vmatprep.subr.bf16.mxu0 0
  %245 = vmatpush1.bf16.msra.mxu0 0
  %246 = vmatprep.subr.bf16.mxu0 0
  %247 = vmatpush1.bf16.msra.mxu0 0
  %248 = vmatprep.subr.bf16.mxu0 0
  %249 = vmatpush1.bf16.msra.mxu0 0
  %250 = vmatprep.mubr.bf16.mxu0 0
  %251 = vmatmul.mubr.bf16.gmra.mrb[0].mxu0 %v160
  %v252 = vpop.f32.mrb[0].mxu0
  %v253 = vadd.f32 0.0, %v252
  %v254 = vpop.f32.mrb[0].mxu0
  %v255 = vadd.f32 0.0, %v254
  %v256 = vpop.f32.mrb[0].mxu0
  %v257 = vadd.f32 0.0, %v256
  %v258 = vpop.f32.mrb[0].mxu0
  %v259 = vadd.f32 0.0, %v258
  %260 = vmatprep.mubr.bf16.mxu0 0
  %261 = vmatmul.mubr.bf16.gmra.mrb[0].mxu0 %v163
  %v262 = vpop.f32.mrb[0].mxu0
  %v263 = vadd.f32 0.0, %v262
  %v264 = vpop.f32.mrb[0].mxu0
  %v265 = vadd.f32 0.0, %v264
  %v266 = vpop.f32.mrb[0].mxu0
  %v267 = vadd.f32 0.0, %v266
  %v268 = vpop.f32.mrb[0].mxu0
  %v269 = vadd.f32 0.0, %v268
  %270 = vdwg.mxu0
  %v271 = vld [vmem:[%s3] sm:$0xff]
  %v272 = vld [vmem:[%s3 + $0x8] sm:$0xff]
  %v273 = vld [vmem:[%s3 + $0x10] sm:$0xff]
  %v274 = vld [vmem:[%s3 + $0x18] sm:$0xff]
  %v275 = vld [vmem:[%s3 + $0x20] sm:$0xff]
  %v276 = vld [vmem:[%s3 + $0x28] sm:$0xff]
  %v277 = vld [vmem:[%s3 + $0x30] sm:$0xff]
  %v278 = vld [vmem:[%s3 + $0x38] sm:$0xff]
  %v279 = vld [vmem:[%s3 + $0x40] sm:$0xff]
  %v280 = vld [vmem:[%s3 + $0x48] sm:$0xff]
  %v281 = vld [vmem:[%s3 + $0x50] sm:$0xff]
  %v282 = vld [vmem:[%s3 + $0x58] sm:$0xff]
  %v283 = vld [vmem:[%s3 + $0x60] sm:$0xff]
  %v284 = vld [vmem:[%s3 + $0x68] sm:$0xff]
  %v285 = vld [vmem:[%s3 + $0x70] sm:$0xff]
  %v286 = vld [vmem:[%s3 + $0x78] sm:$0xff]
  %v287 = vld [vmem:[%s3 + $0x80] sm:$0xff]
  %v288 = vld [vmem:[%s3 + $0x88] sm:$0xff]
  %v289 = vld [vmem:[%s3 + $0x90] sm:$0xff]
  %v290 = vld [vmem:[%s3 + $0x98] sm:$0xff]
  %v311 = vunpack.c.l.b16 %v271
  %v312 = vunpack.c.h.b16 %v271
  %v313 = vunpack.c.l.b16 %v272
  %v314 = vunpack.c.h.b16 %v272
  %v315 = vunpack.c.l.b16 %v273
  %v316 = vunpack.c.h.b16 %v273
  %v317 = vunpack.c.l.b16 %v274
  %v318 = vunpack.c.h.b16 %v274
  %v319 = vunpack.c.l.b16 %v275
  %v320 = vunpack.c.h.b16 %v275
  %v321 = vunpack.c.l.b16 %v276
  %v322 = vunpack.c.h.b16 %v276
  %v323 = vunpack.c.l.b16 %v277
  %v324 = vunpack.c.h.b16 %v277
  %v325 = vunpack.c.l.b16 %v278
  %v326 = vunpack.c.h.b16 %v278
  %v327 = vunpack.c.l.b16 %v279
  %v328 = vunpack.c.h.b16 %v279
  %v329 = vunpack.c.l.b16 %v280
  %v330 = vunpack.c.h.b16 %v280
  %v331 = vunpack.c.l.b16 %v281
  %v332 = vunpack.c.h.b16 %v281
  %v333 = vunpack.c.l.b16 %v282
  %v334 = vunpack.c.h.b16 %v282
  %v335 = vunpack.c.l.b16 %v283
  %v336 = vunpack.c.h.b16 %v283
  %v337 = vunpack.c.l.b16 %v284
  %v338 = vunpack.c.h.b16 %v284
  %v339 = vunpack.c.l.b16 %v285
  %v340 = vunpack.c.h.b16 %v285
  %v341 = vunpack.c.l.b16 %v286
  %v342 = vunpack.c.h.b16 %v286
  %v343 = vunpack.c.l.b16 %v287
  %v344 = vunpack.c.h.b16 %v287
  %v345 = vunpack.c.l.b16 %v288
  %v346 = vunpack.c.h.b16 %v288
  %v347 = vunpack.c.l.b16 %v289
  %v348 = vunpack.c.h.b16 %v289
  %v349 = vunpack.c.l.b16 %v290
  %v350 = vunpack.c.h.b16 %v290
  %v351 = vpack.c.b16 %v315, %v311
  %v352 = vpack.c.b16 %v316, %v312
  %v353 = vpack.c.b16 %v317, %v313
  %v354 = vpack.c.b16 %v318, %v314
  %v355 = vpack.c.b16 %v323, %v319
  %v356 = vpack.c.b16 %v324, %v320
  %v357 = vpack.c.b16 %v325, %v321
  %v358 = vpack.c.b16 %v326, %v322
  %v359 = vpack.c.b16 %v331, %v327
  %v360 = vpack.c.b16 %v332, %v328
  %v361 = vpack.c.b16 %v333, %v329
  %v362 = vpack.c.b16 %v334, %v330
  %v363 = vpack.c.b16 %v339, %v335
  %v364 = vpack.c.b16 %v340, %v336
  %v365 = vpack.c.b16 %v341, %v337
  %v366 = vpack.c.b16 %v342, %v338
  %v367 = vpack.c.b16 %v347, %v343
  %v368 = vpack.c.b16 %v348, %v344
  %v369 = vpack.c.b16 %v349, %v345
  %v370 = vpack.c.b16 %v350, %v346
  %391 = vmatprep.subr.bf16.mxu0 %v352
  %392 = vmatpush1.bf16.msra.mxu0 %v351
  %393 = vmatprep.subr.bf16.mxu0 %v356
  %394 = vmatpush1.bf16.msra.mxu0 %v355
  %395 = vmatprep.subr.bf16.mxu0 %v360
  %396 = vmatpush1.bf16.msra.mxu0 %v359
  %397 = vmatprep.subr.bf16.mxu0 %v364
  %398 = vmatpush1.bf16.msra.mxu0 %v363
  %399 = vmatprep.subr.bf16.mxu0 %v368
  %400 = vmatpush1.bf16.msra.mxu0 %v367
  %401 = vmatprep.subr.bf16.mxu0 0
  %402 = vmatpush1.bf16.msra.mxu0 0
  %403 = vmatprep.subr.bf16.mxu0 0
  %404 = vmatpush1.bf16.msra.mxu0 0
  %405 = vmatprep.subr.bf16.mxu0 0
  %406 = vmatpush1.bf16.msra.mxu0 0
  %407 = vmatprep.subr.bf16.mxu0 0
  %408 = vmatpush1.bf16.msra.mxu0 0
  %409 = vmatprep.subr.bf16.mxu0 0
  %410 = vmatpush1.bf16.msra.mxu0 0
  %411 = vmatprep.subr.bf16.mxu0 0
  %412 = vmatpush1.bf16.msra.mxu0 0
  %413 = vmatprep.subr.bf16.mxu0 0
  %414 = vmatpush1.bf16.msra.mxu0 0
  %415 = vmatprep.subr.bf16.mxu0 0
  %416 = vmatpush1.bf16.msra.mxu0 0
  %417 = vmatprep.subr.bf16.mxu0 0
  %418 = vmatpush1.bf16.msra.mxu0 0
  %419 = vmatprep.subr.bf16.mxu0 0
  %420 = vmatpush1.bf16.msra.mxu0 0
  %421 = vmatprep.subr.bf16.mxu0 0
  %422 = vmatpush1.bf16.msra.mxu0 0
  %423 = vmatprep.mubr.bf16.mxu0 0
  %424 = vmatmul.mubr.bf16.gmra.mrb[0].mxu0 %v160
  %v425 = vpop.f32.mrb[0].mxu0
  %v426 = vadd.f32 0.0, %v425
  %v427 = vpop.f32.mrb[0].mxu0
  %v428 = vadd.f32 0.0, %v427
  %v429 = vpop.f32.mrb[0].mxu0
  %v430 = vadd.f32 0.0, %v429
  %v431 = vpop.f32.mrb[0].mxu0
  %v432 = vadd.f32 0.0, %v431
  %433 = vmatprep.mubr.bf16.mxu0 0
  %434 = vmatmul.mubr.bf16.gmra.mrb[0].mxu0 %v163
  %v435 = vpop.f32.mrb[0].mxu0
  %v436 = vadd.f32 0.0, %v435
  %v437 = vpop.f32.mrb[0].mxu0
  %v438 = vadd.f32 0.0, %v437
  %v439 = vpop.f32.mrb[0].mxu0
  %v440 = vadd.f32 0.0, %v439
  %v441 = vpop.f32.mrb[0].mxu0
  %v442 = vadd.f32 0.0, %v441
  %443 = vdwg.mxu0
  %444 = vmatprep.subr.bf16.mxu0 %v354
  %445 = vmatpush1.bf16.msra.mxu0 %v353
  %446 = vmatprep.subr.bf16.mxu0 %v358
  %447 = vmatpush1.bf16.msra.mxu0 %v357
  %448 = vmatprep.subr.bf16.mxu0 %v362
  %449 = vmatpush1.bf16.msra.mxu0 %v361
  %450 = vmatprep.subr.bf16.mxu0 %v366
  %451 = vmatpush1.bf16.msra.mxu0 %v365
  %452 = vmatprep.subr.bf16.mxu0 %v370
  %453 = vmatpush1.bf16.msra.mxu0 %v369
  %454 = vmatprep.subr.bf16.mxu0 0
  %455 = vmatpush1.bf16.msra.mxu0 0
  %456 = vmatprep.subr.bf16.mxu0 0
  %457 = vmatpush1.bf16.msra.mxu0 0
  %458 = vmatprep.subr.bf16.mxu0 0
  %459 = vmatpush1.bf16.msra.mxu0 0
  %460 = vmatprep.subr.bf16.mxu0 0
  %461 = vmatpush1.bf16.msra.mxu0 0
  %462 = vmatprep.subr.bf16.mxu0 0
  %463 = vmatpush1.bf16.msra.mxu0 0
  %464 = vmatprep.subr.bf16.mxu0 0
  %465 = vmatpush1.bf16.msra.mxu0 0
  %466 = vmatprep.subr.bf16.mxu0 0
  %467 = vmatpush1.bf16.msra.mxu0 0
  %468 = vmatprep.subr.bf16.mxu0 0
  %469 = vmatpush1.bf16.msra.mxu0 0
  %470 = vmatprep.subr.bf16.mxu0 0
  %471 = vmatpush1.bf16.msra.mxu0 0
  %472 = vmatprep.subr.bf16.mxu0 0
  %473 = vmatpush1.bf16.msra.mxu0 0
  %474 = vmatprep.subr.bf16.mxu0 0
  %475 = vmatpush1.bf16.msra.mxu0 0
  %476 = vmatprep.mubr.bf16.mxu0 0
  %477 = vmatmul.mubr.bf16.gmra.mrb[0].mxu0 %v160
  %v478 = vpop.f32.mrb[0].mxu0
  %v479 = vadd.f32 0.0, %v478
  %v480 = vpop.f32.mrb[0].mxu0
  %v481 = vadd.f32 0.0, %v480
  %v482 = vpop.f32.mrb[0].mxu0
  %v483 = vadd.f32 0.0, %v482
  %v484 = vpop.f32.mrb[0].mxu0
  %v485 = vadd.f32 0.0, %v484
  %486 = vmatprep.mubr.bf16.mxu0 0
  %487 = vmatmul.mubr.bf16.gmra.mrb[0].mxu0 %v163
  %v488 = vpop.f32.mrb[0].mxu0
  %v489 = vadd.f32 0.0, %v488
  %v490 = vpop.f32.mrb[0].mxu0
  %v491 = vadd.f32 0.0, %v490
  %v492 = vpop.f32.mrb[0].mxu0
  %v493 = vadd.f32 0.0, %v492
  %v494 = vpop.f32.mrb[0].mxu0
  %v495 = vadd.f32 0.0, %v494
  %496 = vdwg.mxu0
  %v497 = vmax.f32 %v200, %v426
  %v498 = vmax.f32 %v202, %v428
  %v499 = vmax.f32 %v253, %v479
  %v500 = vmax.f32 %v255, %v481
  %v501 = vmax.f32 %v204, %v430
  %v502 = vmax.f32 %v206, %v432
  %v503 = vmax.f32 %v257, %v483
  %v504 = vmax.f32 %v259, %v485
  %v505 = vmax.f32 %v210, %v436
  %v506 = vmax.f32 %v212, %v438
  %v507 = vmax.f32 %v263, %v489
  %v508 = vmax.f32 %v265, %v491
  %v509 = vmax.f32 %v214, %v440
  %v510 = vmax.f32 %v216, %v442
  %v511 = vmax.f32 %v267, %v493
  %v512 = vmax.f32 %v269, %v495
  %v513 = vld [vmem:[%s4] sm:$0xff]
  %v514 = vld [vmem:[%s4 + $0x8] sm:$0xff]
  %v515 = vld [vmem:[%s4 + $0x10] sm:$0xff]
  %v516 = vld [vmem:[%s4 + $0x18] sm:$0xff]
  %v517 = vld [vmem:[%s4 + $0x20] sm:$0xff]
  %v518 = vld [vmem:[%s4 + $0x28] sm:$0xff]
  %v519 = vld [vmem:[%s4 + $0x30] sm:$0xff]
  %v520 = vld [vmem:[%s4 + $0x38] sm:$0xff]
  %v521 = vld [vmem:[%s4 + $0x40] sm:$0xff]
  %v522 = vld [vmem:[%s4 + $0x48] sm:$0xff]
  %v523 = vld [vmem:[%s4 + $0x50] sm:$0xff]
  %v524 = vld [vmem:[%s4 + $0x58] sm:$0xff]
  %v525 = vld [vmem:[%s4 + $0x60] sm:$0xff]
  %v526 = vld [vmem:[%s4 + $0x68] sm:$0xff]
  %v527 = vld [vmem:[%s4 + $0x70] sm:$0xff]
  %v528 = vld [vmem:[%s4 + $0x78] sm:$0xff]
  %v529 = vld [vmem:[%s4 + $0x80] sm:$0xff]
  %v530 = vld [vmem:[%s4 + $0x88] sm:$0xff]
  %v531 = vld [vmem:[%s4 + $0x90] sm:$0xff]
  %v532 = vld [vmem:[%s4 + $0x98] sm:$0xff]
  %v553 = vunpack.c.l.b16 %v513
  %v554 = vunpack.c.h.b16 %v513
  %v555 = vunpack.c.l.b16 %v514
  %v556 = vunpack.c.h.b16 %v514
  %v557 = vunpack.c.l.b16 %v515
  %v558 = vunpack.c.h.b16 %v515
  %v559 = vunpack.c.l.b16 %v516
  %v560 = vunpack.c.h.b16 %v516
  %v561 = vunpack.c.l.b16 %v517
  %v562 = vunpack.c.h.b16 %v517
  %v563 = vunpack.c.l.b16 %v518
  %v564 = vunpack.c.h.b16 %v518
  %v565 = vunpack.c.l.b16 %v519
  %v566 = vunpack.c.h.b16 %v519
  %v567 = vunpack.c.l.b16 %v520
  %v568 = vunpack.c.h.b16 %v520
  %v569 = vunpack.c.l.b16 %v521
  %v570 = vunpack.c.h.b16 %v521
  %v571 = vunpack.c.l.b16 %v522
  %v572 = vunpack.c.h.b16 %v522
  %v573 = vunpack.c.l.b16 %v523
  %v574 = vunpack.c.h.b16 %v523
  %v575 = vunpack.c.l.b16 %v524
  %v576 = vunpack.c.h.b16 %v524
  %v577 = vunpack.c.l.b16 %v525
  %v578 = vunpack.c.h.b16 %v525
  %v579 = vunpack.c.l.b16 %v526
  %v580 = vunpack.c.h.b16 %v526
  %v581 = vunpack.c.l.b16 %v527
  %v582 = vunpack.c.h.b16 %v527
  %v583 = vunpack.c.l.b16 %v528
  %v584 = vunpack.c.h.b16 %v528
  %v585 = vunpack.c.l.b16 %v529
  %v586 = vunpack.c.h.b16 %v529
  %v587 = vunpack.c.l.b16 %v530
  %v588 = vunpack.c.h.b16 %v530
  %v589 = vunpack.c.l.b16 %v531
  %v590 = vunpack.c.h.b16 %v531
  %v591 = vunpack.c.l.b16 %v532
  %v592 = vunpack.c.h.b16 %v532
  %v593 = vpack.c.b16 %v557, %v553
  %v594 = vpack.c.b16 %v558, %v554
  %v595 = vpack.c.b16 %v559, %v555
  %v596 = vpack.c.b16 %v560, %v556
  %v597 = vpack.c.b16 %v565, %v561
  %v598 = vpack.c.b16 %v566, %v562
  %v599 = vpack.c.b16 %v567, %v563
  %v600 = vpack.c.b16 %v568, %v564
  %v601 = vpack.c.b16 %v573, %v569
  %v602 = vpack.c.b16 %v574, %v570
  %v603 = vpack.c.b16 %v575, %v571
  %v604 = vpack.c.b16 %v576, %v572
  %v605 = vpack.c.b16 %v581, %v577
  %v606 = vpack.c.b16 %v582, %v578
  %v607 = vpack.c.b16 %v583, %v579
  %v608 = vpack.c.b16 %v584, %v580
  %v609 = vpack.c.b16 %v589, %v585
  %v610 = vpack.c.b16 %v590, %v586
  %v611 = vpack.c.b16 %v591, %v587
  %v612 = vpack.c.b16 %v592, %v588
  %633 = vmatprep.subr.bf16.mxu0 %v594
  %634 = vmatpush1.bf16.msra.mxu0 %v593
  %635 = vmatprep.subr.bf16.mxu0 %v598
  %636 = vmatpush1.bf16.msra.mxu0 %v597
  %637 = vmatprep.subr.bf16.mxu0 %v602
  %638 = vmatpush1.bf16.msra.mxu0 %v601
  %639 = vmatprep.subr.bf16.mxu0 %v606
  %640 = vmatpush1.bf16.msra.mxu0 %v605
  %641 = vmatprep.subr.bf16.mxu0 %v610
  %642 = vmatpush1.bf16.msra.mxu0 %v609
  %643 = vmatprep.subr.bf16.mxu0 0
  %644 = vmatpush1.bf16.msra.mxu0 0
  %645 = vmatprep.subr.bf16.mxu0 0
  %646 = vmatpush1.bf16.msra.mxu0 0
  %647 = vmatprep.subr.bf16.mxu0 0
  %648 = vmatpush1.bf16.msra.mxu0 0
  %649 = vmatprep.subr.bf16.mxu0 0
  %650 = vmatpush1.bf16.msra.mxu0 0
  %651 = vmatprep.subr.bf16.mxu0 0
  %652 = vmatpush1.bf16.msra.mxu0 0
  %653 = vmatprep.subr.bf16.mxu0 0
  %654 = vmatpush1.bf16.msra.mxu0 0
  %655 = vmatprep.subr.bf16.mxu0 0
  %656 = vmatpush1.bf16.msra.mxu0 0
  %657 = vmatprep.subr.bf16.mxu0 0
  %658 = vmatpush1.bf16.msra.mxu0 0
  %659 = vmatprep.subr.bf16.mxu0 0
  %660 = vmatpush1.bf16.msra.mxu0 0
  %661 = vmatprep.subr.bf16.mxu0 0
  %662 = vmatpush1.bf16.msra.mxu0 0
  %663 = vmatprep.subr.bf16.mxu0 0
  %664 = vmatpush1.bf16.msra.mxu0 0
  %665 = vmatprep.mubr.bf16.mxu0 0
  %666 = vmatmul.mubr.bf16.gmra.mrb[0].mxu0 %v160
  %v667 = vpop.f32.mrb[0].mxu0
  %v668 = vadd.f32 0.0, %v667
  %v669 = vpop.f32.mrb[0].mxu0
  %v670 = vadd.f32 0.0, %v669
  %v671 = vpop.f32.mrb[0].mxu0
  %v672 = vadd.f32 0.0, %v671
  %v673 = vpop.f32.mrb[0].mxu0
  %v674 = vadd.f32 0.0, %v673
  %675 = vmatprep.mubr.bf16.mxu0 0
  %676 = vmatmul.mubr.bf16.gmra.mrb[0].mxu0 %v163
  %v677 = vpop.f32.mrb[0].mxu0
  %v678 = vadd.f32 0.0, %v677
  %v679 = vpop.f32.mrb[0].mxu0
  %v680 = vadd.f32 0.0, %v679
  %v681 = vpop.f32.mrb[0].mxu0
  %v682 = vadd.f32 0.0, %v681
  %v683 = vpop.f32.mrb[0].mxu0
  %v684 = vadd.f32 0.0, %v683
  %685 = vdwg.mxu0
  %686 = vmatprep.subr.bf16.mxu0 %v596
  %687 = vmatpush1.bf16.msra.mxu0 %v595
  %688 = vmatprep.subr.bf16.mxu0 %v600
  %689 = vmatpush1.bf16.msra.mxu0 %v599
  %690 = vmatprep.subr.bf16.mxu0 %v604
  %691 = vmatpush1.bf16.msra.mxu0 %v603
  %692 = vmatprep.subr.bf16.mxu0 %v608
  %693 = vmatpush1.bf16.msra.mxu0 %v607
  %694 = vmatprep.subr.bf16.mxu0 %v612
  %695 = vmatpush1.bf16.msra.mxu0 %v611
  %696 = vmatprep.subr.bf16.mxu0 0
  %697 = vmatpush1.bf16.msra.mxu0 0
  %698 = vmatprep.subr.bf16.mxu0 0
  %699 = vmatpush1.bf16.msra.mxu0 0
  %700 = vmatprep.subr.bf16.mxu0 0
  %701 = vmatpush1.bf16.msra.mxu0 0
  %702 = vmatprep.subr.bf16.mxu0 0
  %703 = vmatpush1.bf16.msra.mxu0 0
  %704 = vmatprep.subr.bf16.mxu0 0
  %705 = vmatpush1.bf16.msra.mxu0 0
  %706 = vmatprep.subr.bf16.mxu0 0
  %707 = vmatpush1.bf16.msra.mxu0 0
  %708 = vmatprep.subr.bf16.mxu0 0
  %709 = vmatpush1.bf16.msra.mxu0 0
  %710 = vmatprep.subr.bf16.mxu0 0
  %711 = vmatpush1.bf16.msra.mxu0 0
  %712 = vmatprep.subr.bf16.mxu0 0
  %713 = vmatpush1.bf16.msra.mxu0 0
  %714 = vmatprep.subr.bf16.mxu0 0
  %715 = vmatpush1.bf16.msra.mxu0 0
  %716 = vmatprep.subr.bf16.mxu0 0
  %717 = vmatpush1.bf16.msra.mxu0 0
  %718 = vmatprep.mubr.bf16.mxu0 0
  %719 = vmatmul.mubr.bf16.gmra.mrb[0].mxu0 %v160
  %v720 = vpop.f32.mrb[0].mxu0
  %v721 = vadd.f32 0.0, %v720
  %v722 = vpop.f32.mrb[0].mxu0
  %v723 = vadd.f32 0.0, %v722
  %v724 = vpop.f32.mrb[0].mxu0
  %v725 = vadd.f32 0.0, %v724
  %v726 = vpop.f32.mrb[0].mxu0
  %v727 = vadd.f32 0.0, %v726
  %728 = vmatprep.mubr.bf16.mxu0 0
  %729 = vmatmul.mubr.bf16.gmra.mrb[0].mxu0 %v163
  %v730 = vpop.f32.mrb[0].mxu0
  %v731 = vadd.f32 0.0, %v730
  %v732 = vpop.f32.mrb[0].mxu0
  %v733 = vadd.f32 0.0, %v732
  %v734 = vpop.f32.mrb[0].mxu0
  %v735 = vadd.f32 0.0, %v734
  %v736 = vpop.f32.mrb[0].mxu0
  %v737 = vadd.f32 0.0, %v736
  %738 = vdwg.mxu0
  %v739 = vmax.f32 %v497, %v668
  %v740 = vmax.f32 %v498, %v670
  %v741 = vmax.f32 %v499, %v721
  %v742 = vmax.f32 %v500, %v723
  %v743 = vmax.f32 %v501, %v672
  %v744 = vmax.f32 %v502, %v674
  %v745 = vmax.f32 %v503, %v725
  %v746 = vmax.f32 %v504, %v727
  %v747 = vmax.f32 %v505, %v678
  %v748 = vmax.f32 %v506, %v680
  %v749 = vmax.f32 %v507, %v731
  %v750 = vmax.f32 %v508, %v733
  %v751 = vmax.f32 %v509, %v682
  %v752 = vmax.f32 %v510, %v684
  %v753 = vmax.f32 %v511, %v735
  %v754 = vmax.f32 %v512, %v737
  %v755 = vld [vmem:[%s5] sm:$0xff]
  %v756 = vld [vmem:[%s5 + $0x8] sm:$0xff]
  %v757 = vld [vmem:[%s5 + $0x10] sm:$0xff]
  %v758 = vld [vmem:[%s5 + $0x18] sm:$0xff]
  %v759 = vld [vmem:[%s5 + $0x20] sm:$0xff]
  %v760 = vld [vmem:[%s5 + $0x28] sm:$0xff]
  %v761 = vld [vmem:[%s5 + $0x30] sm:$0xff]
  %v762 = vld [vmem:[%s5 + $0x38] sm:$0xff]
  %v763 = vld [vmem:[%s5 + $0x40] sm:$0xff]
  %v764 = vld [vmem:[%s5 + $0x48] sm:$0xff]
  %v765 = vld [vmem:[%s5 + $0x50] sm:$0xff]
  %v766 = vld [vmem:[%s5 + $0x58] sm:$0xff]
  %v767 = vld [vmem:[%s5 + $0x60] sm:$0xff]
  %v768 = vld [vmem:[%s5 + $0x68] sm:$0xff]
  %v769 = vld [vmem:[%s5 + $0x70] sm:$0xff]
  %v770 = vld [vmem:[%s5 + $0x78] sm:$0xff]
  %v771 = vld [vmem:[%s5 + $0x80] sm:$0xff]
  %v772 = vld [vmem:[%s5 + $0x88] sm:$0xff]
  %v773 = vld [vmem:[%s5 + $0x90] sm:$0xff]
  %v774 = vld [vmem:[%s5 + $0x98] sm:$0xff]
  %v795 = vunpack.c.l.b16 %v755
  %v796 = vunpack.c.h.b16 %v755
  %v797 = vunpack.c.l.b16 %v756
  %v798 = vunpack.c.h.b16 %v756
  %v799 = vunpack.c.l.b16 %v757
  %v800 = vunpack.c.h.b16 %v757
  %v801 = vunpack.c.l.b16 %v758
  %v802 = vunpack.c.h.b16 %v758
  %v803 = vunpack.c.l.b16 %v759
  %v804 = vunpack.c.h.b16 %v759
  %v805 = vunpack.c.l.b16 %v760
  %v806 = vunpack.c.h.b16 %v760
  %v807 = vunpack.c.l.b16 %v761
  %v808 = vunpack.c.h.b16 %v761
  %v809 = vunpack.c.l.b16 %v762
  %v810 = vunpack.c.h.b16 %v762
  %v811 = vunpack.c.l.b16 %v763
  %v812 = vunpack.c.h.b16 %v763
  %v813 = vunpack.c.l.b16 %v764
  %v814 = vunpack.c.h.b16 %v764
  %v815 = vunpack.c.l.b16 %v765
  %v816 = vunpack.c.h.b16 %v765
  %v817 = vunpack.c.l.b16 %v766
  %v818 = vunpack.c.h.b16 %v766
  %v819 = vunpack.c.l.b16 %v767
  %v820 = vunpack.c.h.b16 %v767
  %v821 = vunpack.c.l.b16 %v768
  %v822 = vunpack.c.h.b16 %v768
  %v823 = vunpack.c.l.b16 %v769
  %v824 = vunpack.c.h.b16 %v769
  %v825 = vunpack.c.l.b16 %v770
  %v826 = vunpack.c.h.b16 %v770
  %v827 = vunpack.c.l.b16 %v771
  %v828 = vunpack.c.h.b16 %v771
  %v829 = vunpack.c.l.b16 %v772
  %v830 = vunpack.c.h.b16 %v772
  %v831 = vunpack.c.l.b16 %v773
  %v832 = vunpack.c.h.b16 %v773
  %v833 = vunpack.c.l.b16 %v774
  %v834 = vunpack.c.h.b16 %v774
  %v835 = vpack.c.b16 %v799, %v795
  %v836 = vpack.c.b16 %v800, %v796
  %v837 = vpack.c.b16 %v801, %v797
  %v838 = vpack.c.b16 %v802, %v798
  %v839 = vpack.c.b16 %v807, %v803
  %v840 = vpack.c.b16 %v808, %v804
  %v841 = vpack.c.b16 %v809, %v805
  %v842 = vpack.c.b16 %v810, %v806
  %v843 = vpack.c.b16 %v815, %v811
  %v844 = vpack.c.b16 %v816, %v812
  %v845 = vpack.c.b16 %v817, %v813
  %v846 = vpack.c.b16 %v818, %v814
  %v847 = vpack.c.b16 %v823, %v819
  %v848 = vpack.c.b16 %v824, %v820
  %v849 = vpack.c.b16 %v825, %v821
  %v850 = vpack.c.b16 %v826, %v822
  %v851 = vpack.c.b16 %v831, %v827
  %v852 = vpack.c.b16 %v832, %v828
  %v853 = vpack.c.b16 %v833, %v829
  %v854 = vpack.c.b16 %v834, %v830
  %875 = vmatprep.subr.bf16.mxu0 %v836
  %876 = vmatpush1.bf16.msra.mxu0 %v835
  %877 = vmatprep.subr.bf16.mxu0 %v840
  %878 = vmatpush1.bf16.msra.mxu0 %v839
  %879 = vmatprep.subr.bf16.mxu0 %v844
  %880 = vmatpush1.bf16.msra.mxu0 %v843
  %881 = vmatprep.subr.bf16.mxu0 %v848
  %882 = vmatpush1.bf16.msra.mxu0 %v847
  %883 = vmatprep.subr.bf16.mxu0 %v852
  %884 = vmatpush1.bf16.msra.mxu0 %v851
  %885 = vmatprep.subr.bf16.mxu0 0
  %886 = vmatpush1.bf16.msra.mxu0 0
  %887 = vmatprep.subr.bf16.mxu0 0
  %888 = vmatpush1.bf16.msra.mxu0 0
  %889 = vmatprep.subr.bf16.mxu0 0
  %890 = vmatpush1.bf16.msra.mxu0 0
  %891 = vmatprep.subr.bf16.mxu0 0
  %892 = vmatpush1.bf16.msra.mxu0 0
  %893 = vmatprep.subr.bf16.mxu0 0
  %894 = vmatpush1.bf16.msra.mxu0 0
  %895 = vmatprep.subr.bf16.mxu0 0
  %896 = vmatpush1.bf16.msra.mxu0 0
  %897 = vmatprep.subr.bf16.mxu0 0
  %898 = vmatpush1.bf16.msra.mxu0 0
  %899 = vmatprep.subr.bf16.mxu0 0
  %900 = vmatpush1.bf16.msra.mxu0 0
  %901 = vmatprep.subr.bf16.mxu0 0
  %902 = vmatpush1.bf16.msra.mxu0 0
  %903 = vmatprep.subr.bf16.mxu0 0
  %904 = vmatpush1.bf16.msra.mxu0 0
  %905 = vmatprep.subr.bf16.mxu0 0
  %906 = vmatpush1.bf16.msra.mxu0 0
  %907 = vmatprep.mubr.bf16.mxu0 0
  %908 = vmatmul.mubr.bf16.gmra.mrb[0].mxu0 %v160
  %v909 = vpop.f32.mrb[0].mxu0
  %v910 = vadd.f32 0.0, %v909
  %v911 = vpop.f32.mrb[0].mxu0
  %v912 = vadd.f32 0.0, %v911
  %v913 = vpop.f32.mrb[0].mxu0
  %v914 = vadd.f32 0.0, %v913
  %v915 = vpop.f32.mrb[0].mxu0
  %v916 = vadd.f32 0.0, %v915
  %917 = vmatprep.mubr.bf16.mxu0 0
  %918 = vmatmul.mubr.bf16.gmra.mrb[0].mxu0 %v163
  %v919 = vpop.f32.mrb[0].mxu0
  %v920 = vadd.f32 0.0, %v919
  %v921 = vpop.f32.mrb[0].mxu0
  %v922 = vadd.f32 0.0, %v921
  %v923 = vpop.f32.mrb[0].mxu0
  %v924 = vadd.f32 0.0, %v923
  %v925 = vpop.f32.mrb[0].mxu0
  %v926 = vadd.f32 0.0, %v925
  %927 = vdwg.mxu0
  %928 = vmatprep.subr.bf16.mxu0 %v838
  %929 = vmatpush1.bf16.msra.mxu0 %v837
  %930 = vmatprep.subr.bf16.mxu0 %v842
  %931 = vmatpush1.bf16.msra.mxu0 %v841
  %932 = vmatprep.subr.bf16.mxu0 %v846
  %933 = vmatpush1.bf16.msra.mxu0 %v845
  %934 = vmatprep.subr.bf16.mxu0 %v850
  %935 = vmatpush1.bf16.msra.mxu0 %v849
  %936 = vmatprep.subr.bf16.mxu0 %v854
  %937 = vmatpush1.bf16.msra.mxu0 %v853
  %938 = vmatprep.subr.bf16.mxu0 0
  %939 = vmatpush1.bf16.msra.mxu0 0
  %940 = vmatprep.subr.bf16.mxu0 0
  %941 = vmatpush1.bf16.msra.mxu0 0
  %942 = vmatprep.subr.bf16.mxu0 0
  %943 = vmatpush1.bf16.msra.mxu0 0
  %944 = vmatprep.subr.bf16.mxu0 0
  %945 = vmatpush1.bf16.msra.mxu0 0
  %946 = vmatprep.subr.bf16.mxu0 0
  %947 = vmatpush1.bf16.msra.mxu0 0
  %948 = vmatprep.subr.bf16.mxu0 0
  %949 = vmatpush1.bf16.msra.mxu0 0
  %950 = vmatprep.subr.bf16.mxu0 0
  %951 = vmatpush1.bf16.msra.mxu0 0
  %952 = vmatprep.subr.bf16.mxu0 0
  %953 = vmatpush1.bf16.msra.mxu0 0
  %954 = vmatprep.subr.bf16.mxu0 0
  %955 = vmatpush1.bf16.msra.mxu0 0
  %956 = vmatprep.subr.bf16.mxu0 0
  %957 = vmatpush1.bf16.msra.mxu0 0
  %958 = vmatprep.subr.bf16.mxu0 0
  %959 = vmatpush1.bf16.msra.mxu0 0
  %960 = vmatprep.mubr.bf16.mxu0 0
  %961 = vmatmul.mubr.bf16.gmra.mrb[0].mxu0 %v160
  %v962 = vpop.f32.mrb[0].mxu0
  %v963 = vadd.f32 0.0, %v962
  %v964 = vpop.f32.mrb[0].mxu0
  %v965 = vadd.f32 0.0, %v964
  %v966 = vpop.f32.mrb[0].mxu0
  %v967 = vadd.f32 0.0, %v966
  %v968 = vpop.f32.mrb[0].mxu0
  %v969 = vadd.f32 0.0, %v968
  %970 = vmatprep.mubr.bf16.mxu0 0
  %971 = vmatmul.mubr.bf16.gmra.mrb[0].mxu0 %v163
  %v972 = vpop.f32.mrb[0].mxu0
  %v973 = vadd.f32 0.0, %v972
  %v974 = vpop.f32.mrb[0].mxu0
  %v975 = vadd.f32 0.0, %v974
  %v976 = vpop.f32.mrb[0].mxu0
  %v977 = vadd.f32 0.0, %v976
  %v978 = vpop.f32.mrb[0].mxu0
  %v979 = vadd.f32 0.0, %v978
  %980 = vdwg.mxu0
  %v981 = vmax.f32 %v739, %v910
  %v982 = vmax.f32 %v740, %v912
  %v983 = vmax.f32 %v741, %v963
  %v984 = vmax.f32 %v742, %v965
  %v985 = vmax.f32 %v743, %v914
  %v986 = vmax.f32 %v744, %v916
  %v987 = vmax.f32 %v745, %v967
  %v988 = vmax.f32 %v746, %v969
  %v989 = vmax.f32 %v747, %v920
  %v990 = vmax.f32 %v748, %v922
  %v991 = vmax.f32 %v749, %v973
  %v992 = vmax.f32 %v750, %v975
  %v993 = vmax.f32 %v751, %v924
  %v994 = vmax.f32 %v752, %v926
  %v995 = vmax.f32 %v753, %v977
  %v996 = vmax.f32 %v754, %v979
  %v997 = vld [vmem:[%s1] sm:$0xff]
  %v998 = vld [vmem:[%s1 + $0x8] sm:$0xff]
  %v999 = vld [vmem:[%s1 + $0x10] sm:$0xff]
  %v1000 = vld [vmem:[%s1 + $0x18] sm:$0xff]
  %1002 = vset.pattern.permute.xlu0 0
  %1003 = vperm.xlu0 %1002, %v997
  %v1004 = vpop.permute.xlu0 %1003
  %1007 = vset.pattern.permute.xlu0 0
  %1008 = vperm.xlu0 %1007, %v998
  %v1009 = vpop.permute.xlu0 %1008
  %1012 = vset.pattern.permute.xlu0 0
  %1013 = vperm.xlu0 %1012, %v999
  %v1014 = vpop.permute.xlu0 %1013
  %1017 = vset.pattern.permute.xlu0 0
  %1018 = vperm.xlu0 %1017, %v1000
  %v1019 = vpop.permute.xlu0 %1018
  %v1021 = vadd.f32 %v981, %v1004
  %v1022 = vadd.f32 %v982, %v1004
  %v1023 = vadd.f32 %v983, %v1004
  %v1024 = vadd.f32 %v984, %v1004
  %v1025 = vadd.f32 %v985, %v1009
  %v1026 = vadd.f32 %v986, %v1009
  %v1027 = vadd.f32 %v987, %v1009
  %v1028 = vadd.f32 %v988, %v1009
  %v1029 = vadd.f32 %v989, %v1014
  %v1030 = vadd.f32 %v990, %v1014
  %v1031 = vadd.f32 %v991, %v1014
  %v1032 = vadd.f32 %v992, %v1014
  %v1033 = vadd.f32 %v993, %v1019
  %v1034 = vadd.f32 %v994, %v1019
  %v1035 = vadd.f32 %v995, %v1019
  %v1036 = vadd.f32 %v996, %v1019
  %v1037 = vpack.c.bf16 %v1025, %v1021
  %v1038 = vpack.c.bf16 %v1026, %v1022
  %v1039 = vpack.c.bf16 %v1027, %v1023
  %v1040 = vpack.c.bf16 %v1028, %v1024
  %v1041 = vpack.c.bf16 %v1033, %v1029
  %v1042 = vpack.c.bf16 %v1034, %v1030
  %v1043 = vpack.c.bf16 %v1035, %v1031
  %v1044 = vpack.c.bf16 %v1036, %v1032
  %v1053 = vunpack.c.l.b16 %v1037
  %v1054 = vunpack.c.l.b16 %v1038
  %v1055 = vunpack.c.l.b16 %v1039
  %v1056 = vunpack.c.l.b16 %v1040
  %v1057 = vunpack.c.h.b16 %v1037
  %v1058 = vunpack.c.h.b16 %v1038
  %v1059 = vunpack.c.h.b16 %v1039
  %v1060 = vunpack.c.h.b16 %v1040
  %v1061 = vunpack.c.l.b16 %v1041
  %v1062 = vunpack.c.l.b16 %v1042
  %v1063 = vunpack.c.l.b16 %v1043
  %v1064 = vunpack.c.l.b16 %v1044
  %v1065 = vunpack.c.h.b16 %v1041
  %v1066 = vunpack.c.h.b16 %v1042
  %v1067 = vunpack.c.h.b16 %v1043
  %v1068 = vunpack.c.h.b16 %v1044
  %v1069 = vpack.c.b16 %v1054, %v1053
  %v1070 = vpack.c.b16 %v1056, %v1055
  %v1071 = vpack.c.b16 %v1058, %v1057
  %v1072 = vpack.c.b16 %v1060, %v1059
  %v1073 = vpack.c.b16 %v1062, %v1061
  %v1074 = vpack.c.b16 %v1064, %v1063
  %v1075 = vpack.c.b16 %v1066, %v1065
  %v1076 = vpack.c.b16 %v1068, %v1067
  %1085 = vst [vmem:[%s6] sm:$0xff] %v1069
  %1086 = vst [vmem:[%s6 + $0x8] sm:$0xff] %v1070
  %1087 = vst [vmem:[%s6 + $0x10] sm:$0xff] %v1071
  %1088 = vst [vmem:[%s6 + $0x18] sm:$0xff] %v1072
  %1089 = vst [vmem:[%s6 + $0x20] sm:$0xff] %v1073
  %1090 = vst [vmem:[%s6 + $0x28] sm:$0xff] %v1074
  %1091 = vst [vmem:[%s6 + $0x30] sm:$0xff] %v1075
  %1092 = vst [vmem:[%s6 + $0x38] sm:$0xff] %v1076
  // Predicated region
  $region26: #{tudui_forward.4} parent=0 // pred_check
    _
  $region27: #{tudui_forward.4} parent=0 // pred_check_branch
    %1094 = sbr.rel (0) target = $region29
  $region28: #{tudui_forward.4} parent=0 // pred_region
    _
  $region29: #{tudui_forward.4} parent=0 // pred_fallthru
    _
  // Predicated region
  $region30: #{tudui_forward.4} parent=0 // pred_check
    _
  $region31: #{tudui_forward.4} parent=0 // pred_check_branch
    %1096 = sbr.rel (0) target = $region33
  $region32: #{tudui_forward.4} parent=0 // pred_region
    _
  $region33: #{tudui_forward.4} parent=0 // pred_fallthru
    _

// kernel: tudui_forward.5
$region0: #{tudui_forward.5}
  #allocation0 [shape = 'u32[]', space=smem, size = 0x4, offset = 0x4, fixed_abs, tag = 'smem constant byte address 0x4 - core index']
  #allocation1 [shape = 'u32[144,128]{1,0:T(1,128)}', space=vmem, size = 0x12000, scoped, tag = 'internal scratch']
  %s0 = inlined_call_operand.vmem [shape: bf16[32,800], index: 0, kind: input, shape index: {}]
  %s1 = inlined_call_operand.vmem [shape: f32[32,1], index: 1, kind: input, shape index: {}]
  %s2 = inlined_call_operand.vmem [shape: bf16[800,128], index: 2, kind: input, shape index: {}]
  %s3 = inlined_call_operand.vmem [shape: bf16[800,128], index: 3, kind: input, shape index: {}]
  %s4 = inlined_call_operand.vmem [shape: bf16[800,128], index: 4, kind: input, shape index: {}]
  %s5 = inlined_call_operand.vmem [shape: bf16[800,128], index: 5, kind: input, shape index: {}]
  %s6 = inlined_call_operand.vmem [shape: bf16[32,128], index: 6, kind: output, shape index: {}]
  %s7 = sld [smem:[#allocation0]]
  $region34: #{tudui_forward.5} parent=0
    _
  %s9 = ssub.s32 1, %s7
  %s10 = scalar_select 0, %s9, %s7
  // Predicated region
  $region2: #{tudui_forward.5} parent=0 // pred_check
    _
  $region3: #{tudui_forward.5} parent=0 // pred_check_branch
    %12 = sbr.rel (0) target = $region5
  $region4: #{tudui_forward.5} parent=0 // pred_region
    _
  $region5: #{tudui_forward.5} parent=0 // pred_fallthru
    _
  // Predicated region
  $region6: #{tudui_forward.5} parent=0 // pred_check
    _
  $region7: #{tudui_forward.5} parent=0 // pred_check_branch
    %14 = sbr.rel (0) target = $region9
  $region8: #{tudui_forward.5} parent=0 // pred_region
    _
  $region9: #{tudui_forward.5} parent=0 // pred_fallthru
    _
  // Predicated region
  $region10: #{tudui_forward.5} parent=0 // pred_check
    _
  $region11: #{tudui_forward.5} parent=0 // pred_check_branch
    %16 = sbr.rel (0) target = $region13
  $region12: #{tudui_forward.5} parent=0 // pred_region
    _
  $region13: #{tudui_forward.5} parent=0 // pred_fallthru
    _
  // Predicated region
  $region14: #{tudui_forward.5} parent=0 // pred_check
    _
  $region15: #{tudui_forward.5} parent=0 // pred_check_branch
    %18 = sbr.rel (0) target = $region17
  $region16: #{tudui_forward.5} parent=0 // pred_region
    _
  $region17: #{tudui_forward.5} parent=0 // pred_fallthru
    _
  // Predicated region
  $region18: #{tudui_forward.5} parent=0 // pred_check
    _
  $region19: #{tudui_forward.5} parent=0 // pred_check_branch
    %20 = sbr.rel (0) target = $region21
  $region20: #{tudui_forward.5} parent=0 // pred_region
    _
  $region21: #{tudui_forward.5} parent=0 // pred_fallthru
    _
  // Predicated region
  $region22: #{tudui_forward.5} parent=0 // pred_check
    _
  $region23: #{tudui_forward.5} parent=0 // pred_check_branch
    %22 = sbr.rel (0) target = $region25
  $region24: #{tudui_forward.5} parent=0 // pred_region
    _
  $region25: #{tudui_forward.5} parent=0 // pred_fallthru
    _
  %v24 = vld [vmem:[%s0] sm:$0xff]
  %v25 = vld [vmem:[%s0 + $0x8] sm:$0xff]
  %v26 = vld [vmem:[%s0 + $0x10] sm:$0xff]
  %v27 = vld [vmem:[%s0 + $0x18] sm:$0xf]
  %v28 = vld [vmem:[%s0 + $0x1c] sm:$0xff]
  %v29 = vld [vmem:[%s0 + $0x24] sm:$0xff]
  %v30 = vld [vmem:[%s0 + $0x2c] sm:$0xff]
  %v31 = vld [vmem:[%s0 + $0x34] sm:$0xf]
  %v32 = vld [vmem:[%s0 + $0x38] sm:$0xff]
  %v33 = vld [vmem:[%s0 + $0x40] sm:$0xff]
  %v34 = vld [vmem:[%s0 + $0x48] sm:$0xff]
  %v35 = vld [vmem:[%s0 + $0x50] sm:$0xf]
  %v36 = vld [vmem:[%s0 + $0x54] sm:$0xff]
  %v37 = vld [vmem:[%s0 + $0x5c] sm:$0xff]
  %v38 = vld [vmem:[%s0 + $0x64] sm:$0xff]
  %v39 = vld [vmem:[%s0 + $0x6c] sm:$0xf]
  %v40 = vld [vmem:[%s2] sm:$0xf]
  %v41 = vld [vmem:[%s2 + $0x4] sm:$0xf]
  %v42 = vld [vmem:[%s2 + $0x8] sm:$0xf]
  %v43 = vld [vmem:[%s2 + $0xc] sm:$0xf]
  %v44 = vld [vmem:[%s2 + $0x10] sm:$0xf]
  %v45 = vld [vmem:[%s2 + $0x14] sm:$0xf]
  %v46 = vld [vmem:[%s2 + $0x18] sm:$0xf]
  %v47 = vld [vmem:[%s2 + $0x1c] sm:$0xf]
  %v48 = vld [vmem:[%s2 + $0x20] sm:$0xf]
  %v49 = vld [vmem:[%s2 + $0x24] sm:$0xf]
  %v50 = vld [vmem:[%s2 + $0x28] sm:$0xf]
  %v51 = vld [vmem:[%s2 + $0x2c] sm:$0xf]
  %v52 = vld [vmem:[%s2 + $0x30] sm:$0xf]
  %v53 = vld [vmem:[%s2 + $0x34] sm:$0xf]
  %v54 = vld [vmem:[%s2 + $0x38] sm:$0xf]
  %v55 = vld [vmem:[%s2 + $0x3c] sm:$0xf]
  %v56 = vld [vmem:[%s2 + $0x40] sm:$0xf]
  %v57 = vld [vmem:[%s2 + $0x44] sm:$0xf]
  %v58 = vld [vmem:[%s2 + $0x48] sm:$0xf]
  %v59 = vld [vmem:[%s2 + $0x4c] sm:$0xf]
  %v60 = vld [vmem:[%s2 + $0x50] sm:$0xf]
  %v61 = vld [vmem:[%s2 + $0x54] sm:$0xf]
  %v62 = vld [vmem:[%s2 + $0x58] sm:$0xf]
  %v63 = vld [vmem:[%s2 + $0x5c] sm:$0xf]
  %v64 = vld [vmem:[%s2 + $0x60] sm:$0xf]
  %v65 = vld [vmem:[%s2 + $0x64] sm:$0xf]
  %v66 = vld [vmem:[%s2 + $0x68] sm:$0xf]
  %v67 = vld [vmem:[%s2 + $0x6c] sm:$0xf]
  %v68 = vld [vmem:[%s2 + $0x70] sm:$0xf]
  %v69 = vld [vmem:[%s2 + $0x74] sm:$0xf]
  %v70 = vld [vmem:[%s2 + $0x78] sm:$0xf]
  %v71 = vld [vmem:[%s2 + $0x7c] sm:$0xf]
  %v72 = vld [vmem:[%s2 + $0x80] sm:$0xf]
  %v73 = vld [vmem:[%s2 + $0x84] sm:$0xf]
  %v74 = vld [vmem:[%s2 + $0x88] sm:$0xf]
  %v75 = vld [vmem:[%s2 + $0x8c] sm:$0xf]
  %v76 = vld [vmem:[%s2 + $0x90] sm:$0xf]
  %v77 = vld [vmem:[%s2 + $0x94] sm:$0xf]
  %v78 = vld [vmem:[%s2 + $0x98] sm:$0xf]
  %v79 = vld [vmem:[%s2 + $0x9c] sm:$0xf]
  %v80 = vld [vmem:[%s2 + $0xa0] sm:$0xf]
  %v81 = vld [vmem:[%s2 + $0xa4] sm:$0xf]
  %v82 = vld [vmem:[%s2 + $0xa8] sm:$0xf]
  %v83 = vld [vmem:[%s2 + $0xac] sm:$0xf]
  %v84 = vld [vmem:[%s2 + $0xb0] sm:$0xf]
  %v85 = vld [vmem:[%s2 + $0xb4] sm:$0xf]
  %v86 = vld [vmem:[%s2 + $0xb8] sm:$0xf]
  %v87 = vld [vmem:[%s2 + $0xbc] sm:$0xf]
  %v88 = vld [vmem:[%s2 + $0xc0] sm:$0xf]
  %v89 = vld [vmem:[%s2 + $0xc4] sm:$0xf]
  %v90 = vld [vmem:[%s2 + $0xc8] sm:$0xf]
  %v91 = vld [vmem:[%s2 + $0xcc] sm:$0xf]
  %v92 = vld [vmem:[%s2 + $0xd0] sm:$0xf]
  %v93 = vld [vmem:[%s2 + $0xd4] sm:$0xf]
  %v94 = vld [vmem:[%s2 + $0xd8] sm:$0xf]
  %v95 = vld [vmem:[%s2 + $0xdc] sm:$0xf]
  %v96 = vld [vmem:[%s2 + $0xe0] sm:$0xf]
  %v97 = vld [vmem:[%s2 + $0xe4] sm:$0xf]
  %v98 = vld [vmem:[%s2 + $0xe8] sm:$0xf]
  %v99 = vld [vmem:[%s2 + $0xec] sm:$0xf]
  %v100 = vld [vmem:[%s2 + $0xf0] sm:$0xf]
  %v101 = vld [vmem:[%s2 + $0xf4] sm:$0xf]
  %v102 = vld [vmem:[%s2 + $0xf8] sm:$0xf]
  %v103 = vld [vmem:[%s2 + $0xfc] sm:$0xf]
  %v104 = vld [vmem:[%s2 + $0x100] sm:$0xf]
  %v105 = vld [vmem:[%s2 + $0x104] sm:$0xf]
  %v106 = vld [vmem:[%s2 + $0x108] sm:$0xf]
  %v107 = vld [vmem:[%s2 + $0x10c] sm:$0xf]
  %v108 = vld [vmem:[%s2 + $0x110] sm:$0xf]
  %v109 = vld [vmem:[%s2 + $0x114] sm:$0xf]
  %v110 = vld [vmem:[%s2 + $0x118] sm:$0xf]
  %v111 = vld [vmem:[%s2 + $0x11c] sm:$0xf]
  %v112 = vld [vmem:[%s2 + $0x120] sm:$0xf]
  %v113 = vld [vmem:[%s2 + $0x124] sm:$0xf]
  %v114 = vld [vmem:[%s2 + $0x128] sm:$0xf]
  %v115 = vld [vmem:[%s2 + $0x12c] sm:$0xf]
  %v116 = vld [vmem:[%s2 + $0x130] sm:$0xf]
  %v117 = vld [vmem:[%s2 + $0x134] sm:$0xf]
  %v118 = vld [vmem:[%s2 + $0x138] sm:$0xf]
  %v119 = vld [vmem:[%s2 + $0x13c] sm:$0xf]
  %v120 = vld [vmem:[%s2 + $0x140] sm:$0xf]
  %v121 = vld [vmem:[%s2 + $0x144] sm:$0xf]
  %v122 = vld [vmem:[%s2 + $0x148] sm:$0xf]
  %v123 = vld [vmem:[%s2 + $0x14c] sm:$0xf]
  %v124 = vld [vmem:[%s2 + $0x150] sm:$0xf]
  %v125 = vld [vmem:[%s2 + $0x154] sm:$0xf]
  %v126 = vld [vmem:[%s2 + $0x158] sm:$0xf]
  %v127 = vld [vmem:[%s2 + $0x15c] sm:$0xf]
  %v128 = vld [vmem:[%s2 + $0x160] sm:$0xf]
  %v129 = vld [vmem:[%s2 + $0x164] sm:$0xf]
  %v130 = vld [vmem:[%s2 + $0x168] sm:$0xf]
  %v131 = vld [vmem:[%s2 + $0x16c] sm:$0xf]
  %v132 = vld [vmem:[%s2 + $0x170] sm:$0xf]
  %v133 = vld [vmem:[%s2 + $0x174] sm:$0xf]
  %v134 = vld [vmem:[%s2 + $0x178] sm:$0xf]
  %v135 = vld [vmem:[%s2 + $0x17c] sm:$0xf]
  %v136 = vld [vmem:[%s2 + $0x180] sm:$0xf]
  %v137 = vld [vmem:[%s2 + $0x184] sm:$0xf]
  %v138 = vld [vmem:[%s2 + $0x188] sm:$0xf]
  %v139 = vld [vmem:[%s2 + $0x18c] sm:$0xf]
  %v156 = vunpack.c.l.b16 %v24
  %v157 = vunpack.c.h.b16 %v24
  %v158 = vunpack.c.l.b16 %v25
  %v159 = vunpack.c.h.b16 %v25
  %v160 = vunpack.c.l.b16 %v26
  %v161 = vunpack.c.h.b16 %v26
  %v162 = vunpack.c.l.b16 %v27
  %v163 = vunpack.c.l.b16 %v28
  %v164 = vunpack.c.h.b16 %v28
  %v165 = vunpack.c.l.b16 %v29
  %v166 = vunpack.c.h.b16 %v29
  %v167 = vunpack.c.l.b16 %v30
  %v168 = vunpack.c.h.b16 %v30
  %v169 = vunpack.c.l.b16 %v31
  %v170 = vunpack.c.l.b16 %v32
  %v171 = vunpack.c.h.b16 %v32
  %v172 = vunpack.c.l.b16 %v33
  %v173 = vunpack.c.h.b16 %v33
  %v174 = vunpack.c.l.b16 %v34
  %v175 = vunpack.c.h.b16 %v34
  %v176 = vunpack.c.l.b16 %v35
  %v177 = vunpack.c.l.b16 %v36
  %v178 = vunpack.c.h.b16 %v36
  %v179 = vunpack.c.l.b16 %v37
  %v180 = vunpack.c.h.b16 %v37
  %v181 = vunpack.c.l.b16 %v38
  %v182 = vunpack.c.h.b16 %v38
  %v183 = vunpack.c.l.b16 %v39
  %v184 = vpack.c.b16 %v163, %v156
  %v185 = vpack.c.b16 %v164, %v157
  %v186 = vpack.c.b16 %v165, %v158
  %v187 = vpack.c.b16 %v166, %v159
  %v188 = vpack.c.b16 %v167, %v160
  %v189 = vpack.c.b16 %v168, %v161
  %v190 = vpack.c.b16 %v169, %v162
  %v191 = vpack.c.b16 %v177, %v170
  %v192 = vpack.c.b16 %v178, %v171
  %v193 = vpack.c.b16 %v179, %v172
  %v194 = vpack.c.b16 %v180, %v173
  %v195 = vpack.c.b16 %v181, %v174
  %v196 = vpack.c.b16 %v182, %v175
  %v197 = vpack.c.b16 %v183, %v176
  %v310 = vunpack.c.l.b16 %v40
  %v311 = vunpack.c.l.b16 %v41
  %v312 = vunpack.c.l.b16 %v42
  %v313 = vunpack.c.l.b16 %v43
  %v314 = vunpack.c.l.b16 %v44
  %v315 = vunpack.c.l.b16 %v45
  %v316 = vunpack.c.l.b16 %v46
  %v317 = vunpack.c.l.b16 %v47
  %v318 = vunpack.c.l.b16 %v48
  %v319 = vunpack.c.l.b16 %v49
  %v320 = vunpack.c.l.b16 %v50
  %v321 = vunpack.c.l.b16 %v51
  %v322 = vunpack.c.l.b16 %v52
  %v323 = vunpack.c.l.b16 %v53
  %v324 = vunpack.c.l.b16 %v54
  %v325 = vunpack.c.l.b16 %v55
  %v326 = vunpack.c.l.b16 %v56
  %v327 = vunpack.c.l.b16 %v57
  %v328 = vunpack.c.l.b16 %v58
  %v329 = vunpack.c.l.b16 %v59
  %v330 = vunpack.c.l.b16 %v60
  %v331 = vunpack.c.l.b16 %v61
  %v332 = vunpack.c.l.b16 %v62
  %v333 = vunpack.c.l.b16 %v63
  %v334 = vunpack.c.l.b16 %v64
  %v335 = vunpack.c.l.b16 %v65
  %v336 = vunpack.c.l.b16 %v66
  %v337 = vunpack.c.l.b16 %v67
  %v338 = vunpack.c.l.b16 %v68
  %v339 = vunpack.c.l.b16 %v69
  %v340 = vunpack.c.l.b16 %v70
  %v341 = vunpack.c.l.b16 %v71
  %v342 = vunpack.c.l.b16 %v72
  %v343 = vunpack.c.l.b16 %v73
  %v344 = vunpack.c.l.b16 %v74
  %v345 = vunpack.c.l.b16 %v75
  %v346 = vunpack.c.l.b16 %v76
  %v347 = vunpack.c.l.b16 %v77
  %v348 = vunpack.c.l.b16 %v78
  %v349 = vunpack.c.l.b16 %v79
  %v350 = vunpack.c.l.b16 %v80
  %v351 = vunpack.c.l.b16 %v81
  %v352 = vunpack.c.l.b16 %v82
  %v353 = vunpack.c.l.b16 %v83
  %v354 = vunpack.c.l.b16 %v84
  %v355 = vunpack.c.l.b16 %v85
  %v356 = vunpack.c.l.b16 %v86
  %v357 = vunpack.c.l.b16 %v87
  %v358 = vunpack.c.l.b16 %v88
  %v359 = vunpack.c.l.b16 %v89
  %v360 = vunpack.c.l.b16 %v90
  %v361 = vunpack.c.l.b16 %v91
  %v362 = vunpack.c.l.b16 %v92
  %v363 = vunpack.c.l.b16 %v93
  %v364 = vunpack.c.l.b16 %v94
  %v365 = vunpack.c.l.b16 %v95
  %v366 = vunpack.c.l.b16 %v96
  %v367 = vunpack.c.l.b16 %v97
  %v368 = vunpack.c.l.b16 %v98
  %v369 = vunpack.c.l.b16 %v99
  %v370 = vunpack.c.l.b16 %v100
  %v371 = vunpack.c.l.b16 %v101
  %v372 = vunpack.c.l.b16 %v102
  %v373 = vunpack.c.l.b16 %v103
  %v374 = vunpack.c.l.b16 %v104
  %v375 = vunpack.c.l.b16 %v105
  %v376 = vunpack.c.l.b16 %v106
  %v377 = vunpack.c.l.b16 %v107
  %v378 = vunpack.c.l.b16 %v108
  %v379 = vunpack.c.l.b16 %v109
  %v380 = vunpack.c.l.b16 %v110
  %v381 = vunpack.c.l.b16 %v111
  %v382 = vunpack.c.l.b16 %v112
  %v383 = vunpack.c.l.b16 %v113
  %v384 = vunpack.c.l.b16 %v114
  %v385 = vunpack.c.l.b16 %v115
  %v386 = vunpack.c.l.b16 %v116
  %v387 = vunpack.c.l.b16 %v117
  %v388 = vunpack.c.l.b16 %v118
  %v389 = vunpack.c.l.b16 %v119
  %v390 = vunpack.c.l.b16 %v120
  %v391 = vunpack.c.l.b16 %v121
  %v392 = vunpack.c.l.b16 %v122
  %v393 = vunpack.c.l.b16 %v123
  %v394 = vunpack.c.l.b16 %v124
  %v395 = vunpack.c.l.b16 %v125
  %v396 = vunpack.c.l.b16 %v126
  %v397 = vunpack.c.l.b16 %v127
  %v398 = vunpack.c.l.b16 %v128
  %v399 = vunpack.c.l.b16 %v129
  %v400 = vunpack.c.l.b16 %v130
  %v401 = vunpack.c.l.b16 %v131
  %v402 = vunpack.c.l.b16 %v132
  %v403 = vunpack.c.l.b16 %v133
  %v404 = vunpack.c.l.b16 %v134
  %v405 = vunpack.c.l.b16 %v135
  %v406 = vunpack.c.l.b16 %v136
  %v407 = vunpack.c.l.b16 %v137
  %v408 = vunpack.c.l.b16 %v138
  %v409 = vunpack.c.l.b16 %v139
  %v410 = vpack.c.b16 %v311, %v310
  %v411 = vpack.c.b16 %v313, %v312
  %v412 = vpack.c.b16 %v315, %v314
  %v413 = vpack.c.b16 %v317, %v316
  %v414 = vpack.c.b16 %v319, %v318
  %v415 = vpack.c.b16 %v321, %v320
  %v416 = vpack.c.b16 %v323, %v322
  %v417 = vpack.c.b16 %v325, %v324
  %v418 = vpack.c.b16 %v327, %v326
  %v419 = vpack.c.b16 %v329, %v328
  %v420 = vpack.c.b16 %v331, %v330
  %v421 = vpack.c.b16 %v333, %v332
  %v422 = vpack.c.b16 %v335, %v334
  %v423 = vpack.c.b16 %v337, %v336
  %v424 = vpack.c.b16 %v339, %v338
  %v425 = vpack.c.b16 %v341, %v340
  %v426 = vpack.c.b16 %v343, %v342
  %v427 = vpack.c.b16 %v345, %v344
  %v428 = vpack.c.b16 %v347, %v346
  %v429 = vpack.c.b16 %v349, %v348
  %v430 = vpack.c.b16 %v351, %v350
  %v431 = vpack.c.b16 %v353, %v352
  %v432 = vpack.c.b16 %v355, %v354
  %v433 = vpack.c.b16 %v357, %v356
  %v434 = vpack.c.b16 %v359, %v358
  %v435 = vpack.c.b16 %v361, %v360
  %v436 = vpack.c.b16 %v363, %v362
  %v437 = vpack.c.b16 %v365, %v364
  %v438 = vpack.c.b16 %v367, %v366
  %v439 = vpack.c.b16 %v369, %v368
  %v440 = vpack.c.b16 %v371, %v370
  %v441 = vpack.c.b16 %v373, %v372
  %v442 = vpack.c.b16 %v375, %v374
  %v443 = vpack.c.b16 %v377, %v376
  %v444 = vpack.c.b16 %v379, %v378
  %v445 = vpack.c.b16 %v381, %v380
  %v446 = vpack.c.b16 %v383, %v382
  %v447 = vpack.c.b16 %v385, %v384
  %v448 = vpack.c.b16 %v387, %v386
  %v449 = vpack.c.b16 %v389, %v388
  %v450 = vpack.c.b16 %v391, %v390
  %v451 = vpack.c.b16 %v393, %v392
  %v452 = vpack.c.b16 %v395, %v394
  %v453 = vpack.c.b16 %v397, %v396
  %v454 = vpack.c.b16 %v399, %v398
  %v455 = vpack.c.b16 %v401, %v400
  %v456 = vpack.c.b16 %v403, %v402
  %v457 = vpack.c.b16 %v405, %v404
  %v458 = vpack.c.b16 %v407, %v406
  %v459 = vpack.c.b16 %v409, %v408
  %vm510 = vcmask 261120
  %v512 = vsel %vm510, %v190, 0
  %v515 = vsel %vm510, %v197, 0
  %517 = vmatprep.subr.bf16.mxu0 0
  %518 = vmatpush1.bf16.msra.mxu0 %v410
  %519 = vmatprep.subr.bf16.mxu0 0
  %520 = vmatpush1.bf16.msra.mxu0 %v411
  %521 = vmatprep.subr.bf16.mxu0 0
  %522 = vmatpush1.bf16.msra.mxu0 %v412
  %523 = vmatprep.subr.bf16.mxu0 0
  %524 = vmatpush1.bf16.msra.mxu0 %v413
  %525 = vmatprep.subr.bf16.mxu0 0
  %526 = vmatpush1.bf16.msra.mxu0 %v414
  %527 = vmatprep.subr.bf16.mxu0 0
  %528 = vmatpush1.bf16.msra.mxu0 %v415
  %529 = vmatprep.subr.bf16.mxu0 0
  %530 = vmatpush1.bf16.msra.mxu0 %v416
  %531 = vmatprep.subr.bf16.mxu0 0
  %532 = vmatpush1.bf16.msra.mxu0 %v417
  %533 = vmatprep.subr.bf16.mxu0 0
  %534 = vmatpush1.bf16.msra.mxu0 %v418
  %535 = vmatprep.subr.bf16.mxu0 0
  %536 = vmatpush1.bf16.msra.mxu0 %v419
  %537 = vmatprep.subr.bf16.mxu0 0
  %538 = vmatpush1.bf16.msra.mxu0 %v420
  %539 = vmatprep.subr.bf16.mxu0 0
  %540 = vmatpush1.bf16.msra.mxu0 %v421
  %541 = vmatprep.subr.bf16.mxu0 0
  %542 = vmatpush1.bf16.msra.mxu0 %v422
  %543 = vmatprep.subr.bf16.mxu0 0
  %544 = vmatpush1.bf16.msra.mxu0 %v423
  %545 = vmatprep.subr.bf16.mxu0 0
  %546 = vmatpush1.bf16.msra.mxu0 %v424
  %547 = vmatprep.subr.bf16.mxu0 0
  %548 = vmatpush1.bf16.msra.mxu0 %v425
  %549 = vmatprep.mubr.bf16.mxu0 %v185
  %550 = vmatmul.mubr.bf16.gmra.mrb[0].mxu0 %v184
  %v551 = vpop.f32.mrb[0].mxu0
  %v552 = vadd.f32 0.0, %v551
  %v553 = vpop.f32.mrb[0].mxu0
  %v554 = vpop.f32.mrb[0].mxu0
  %v555 = vadd.f32 0.0, %v554
  %v556 = vpop.f32.mrb[0].mxu0
  %557 = vmatprep.mubr.bf16.mxu0 %v192
  %558 = vmatmul.mubr.bf16.gmra.mrb[0].mxu0 %v191
  %v559 = vpop.f32.mrb[0].mxu0
  %v560 = vadd.f32 0.0, %v559
  %v561 = vpop.f32.mrb[0].mxu0
  %v562 = vpop.f32.mrb[0].mxu0
  %v563 = vadd.f32 0.0, %v562
  %v564 = vpop.f32.mrb[0].mxu0
  %565 = vdwg.mxu0
  %566 = vmatprep.subr.bf16.mxu0 0
  %567 = vmatpush1.bf16.msra.mxu0 %v426
  %568 = vmatprep.subr.bf16.mxu0 0
  %569 = vmatpush1.bf16.msra.mxu0 %v427
  %570 = vmatprep.subr.bf16.mxu0 0
  %571 = vmatpush1.bf16.msra.mxu0 %v428
  %572 = vmatprep.subr.bf16.mxu0 0
  %573 = vmatpush1.bf16.msra.mxu0 %v429
  %574 = vmatprep.subr.bf16.mxu0 0
  %575 = vmatpush1.bf16.msra.mxu0 %v430
  %576 = vmatprep.subr.bf16.mxu0 0
  %577 = vmatpush1.bf16.msra.mxu0 %v431
  %578 = vmatprep.subr.bf16.mxu0 0
  %579 = vmatpush1.bf16.msra.mxu0 %v432
  %580 = vmatprep.subr.bf16.mxu0 0
  %581 = vmatpush1.bf16.msra.mxu0 %v433
  %582 = vmatprep.subr.bf16.mxu0 0
  %583 = vmatpush1.bf16.msra.mxu0 %v434
  %584 = vmatprep.subr.bf16.mxu0 0
  %585 = vmatpush1.bf16.msra.mxu0 %v435
  %586 = vmatprep.subr.bf16.mxu0 0
  %587 = vmatpush1.bf16.msra.mxu0 %v436
  %588 = vmatprep.subr.bf16.mxu0 0
  %589 = vmatpush1.bf16.msra.mxu0 %v437
  %590 = vmatprep.subr.bf16.mxu0 0
  %591 = vmatpush1.bf16.msra.mxu0 %v438
  %592 = vmatprep.subr.bf16.mxu0 0
  %593 = vmatpush1.bf16.msra.mxu0 %v439
  %594 = vmatprep.subr.bf16.mxu0 0
  %595 = vmatpush1.bf16.msra.mxu0 %v440
  %596 = vmatprep.subr.bf16.mxu0 0
  %597 = vmatpush1.bf16.msra.mxu0 %v441
  %598 = vmatprep.mubr.bf16.mxu0 %v187
  %599 = vmatmul.mubr.bf16.gmra.mrb[0].mxu0 %v186
  %v600 = vpop.f32.mrb[0].mxu0
  %v601 = vadd.f32 %v552, %v600
  %v602 = vpop.f32.mrb[0].mxu0
  %v603 = vpop.f32.mrb[0].mxu0
  %v604 = vadd.f32 %v555, %v603
  %v605 = vpop.f32.mrb[0].mxu0
  %606 = vmatprep.mubr.bf16.mxu0 %v194
  %607 = vmatmul.mubr.bf16.gmra.mrb[0].mxu0 %v193
  %v608 = vpop.f32.mrb[0].mxu0
  %v609 = vadd.f32 %v560, %v608
  %v610 = vpop.f32.mrb[0].mxu0
  %v611 = vpop.f32.mrb[0].mxu0
  %v612 = vadd.f32 %v563, %v611
  %v613 = vpop.f32.mrb[0].mxu0
  %614 = vdwg.mxu0
  %615 = vmatprep.subr.bf16.mxu0 0
  %616 = vmatpush1.bf16.msra.mxu0 %v442
  %617 = vmatprep.subr.bf16.mxu0 0
  %618 = vmatpush1.bf16.msra.mxu0 %v443
  %619 = vmatprep.subr.bf16.mxu0 0
  %620 = vmatpush1.bf16.msra.mxu0 %v444
  %621 = vmatprep.subr.bf16.mxu0 0
  %622 = vmatpush1.bf16.msra.mxu0 %v445
  %623 = vmatprep.subr.bf16.mxu0 0
  %624 = vmatpush1.bf16.msra.mxu0 %v446
  %625 = vmatprep.subr.bf16.mxu0 0
  %626 = vmatpush1.bf16.msra.mxu0 %v447
  %627 = vmatprep.subr.bf16.mxu0 0
  %628 = vmatpush1.bf16.msra.mxu0 %v448
  %629 = vmatprep.subr.bf16.mxu0 0
  %630 = vmatpush1.bf16.msra.mxu0 %v449
  %631 = vmatprep.subr.bf16.mxu0 0
  %632 = vmatpush1.bf16.msra.mxu0 %v450
  %633 = vmatprep.subr.bf16.mxu0 0
  %634 = vmatpush1.bf16.msra.mxu0 %v451
  %635 = vmatprep.subr.bf16.mxu0 0
  %636 = vmatpush1.bf16.msra.mxu0 %v452
  %637 = vmatprep.subr.bf16.mxu0 0
  %638 = vmatpush1.bf16.msra.mxu0 %v453
  %639 = vmatprep.subr.bf16.mxu0 0
  %640 = vmatpush1.bf16.msra.mxu0 %v454
  %641 = vmatprep.subr.bf16.mxu0 0
  %642 = vmatpush1.bf16.msra.mxu0 %v455
  %643 = vmatprep.subr.bf16.mxu0 0
  %644 = vmatpush1.bf16.msra.mxu0 %v456
  %645 = vmatprep.subr.bf16.mxu0 0
  %646 = vmatpush1.bf16.msra.mxu0 %v457
  %647 = vmatprep.mubr.bf16.mxu0 %v189
  %648 = vmatmul.mubr.bf16.gmra.mrb[0].mxu0 %v188
  %v649 = vpop.f32.mrb[0].mxu0
  %v650 = vadd.f32 %v601, %v649
  %v651 = vpop.f32.mrb[0].mxu0
  %v652 = vpop.f32.mrb[0].mxu0
  %v653 = vadd.f32 %v604, %v652
  %v654 = vpop.f32.mrb[0].mxu0
  %655 = vmatprep.mubr.bf16.mxu0 %v196
  %656 = vmatmul.mubr.bf16.gmra.mrb[0].mxu0 %v195
  %v657 = vpop.f32.mrb[0].mxu0
  %v658 = vadd.f32 %v609, %v657
  %v659 = vpop.f32.mrb[0].mxu0
  %v660 = vpop.f32.mrb[0].mxu0
  %v661 = vadd.f32 %v612, %v660
  %v662 = vpop.f32.mrb[0].mxu0
  %663 = vdwg.mxu0
  %664 = vmatprep.subr.bf16.mxu0 0
  %665 = vmatpush1.bf16.msra.mxu0 %v458
  %666 = vmatprep.subr.bf16.mxu0 0
  %667 = vmatpush1.bf16.msra.mxu0 %v459
  %668 = vmatprep.subr.bf16.mxu0 0
  %669 = vmatpush1.bf16.msra.mxu0 0
  %670 = vmatprep.subr.bf16.mxu0 0
  %671 = vmatpush1.bf16.msra.mxu0 0
  %672 = vmatprep.subr.bf16.mxu0 0
  %673 = vmatpush1.bf16.msra.mxu0 0
  %674 = vmatprep.subr.bf16.mxu0 0
  %675 = vmatpush1.bf16.msra.mxu0 0
  %676 = vmatprep.subr.bf16.mxu0 0
  %677 = vmatpush1.bf16.msra.mxu0 0
  %678 = vmatprep.subr.bf16.mxu0 0
  %679 = vmatpush1.bf16.msra.mxu0 0
  %680 = vmatprep.subr.bf16.mxu0 0
  %681 = vmatpush1.bf16.msra.mxu0 0
  %682 = vmatprep.subr.bf16.mxu0 0
  %683 = vmatpush1.bf16.msra.mxu0 0
  %684 = vmatprep.subr.bf16.mxu0 0
  %685 = vmatpush1.bf16.msra.mxu0 0
  %686 = vmatprep.subr.bf16.mxu0 0
  %687 = vmatpush1.bf16.msra.mxu0 0
  %688 = vmatprep.subr.bf16.mxu0 0
  %689 = vmatpush1.bf16.msra.mxu0 0
  %690 = vmatprep.subr.bf16.mxu0 0
  %691 = vmatpush1.bf16.msra.mxu0 0
  %692 = vmatprep.subr.bf16.mxu0 0
  %693 = vmatpush1.bf16.msra.mxu0 0
  %694 = vmatprep.subr.bf16.mxu0 0
  %695 = vmatpush1.bf16.msra.mxu0 0
  %696 = vmatprep.mubr.bf16.mxu0 0
  %697 = vmatmul.mubr.bf16.gmra.mrb[0].mxu0 %v512
  %v698 = vpop.f32.mrb[0].mxu0
  %v699 = vadd.f32 %v650, %v698
  %v700 = vpop.f32.mrb[0].mxu0
  %v701 = vpop.f32.mrb[0].mxu0
  %v702 = vadd.f32 %v653, %v701
  %v703 = vpop.f32.mrb[0].mxu0
  %704 = vmatprep.mubr.bf16.mxu0 0
  %705 = vmatmul.mubr.bf16.gmra.mrb[0].mxu0 %v515
  %v706 = vpop.f32.mrb[0].mxu0
  %v707 = vadd.f32 %v658, %v706
  %v708 = vpop.f32.mrb[0].mxu0
  %v709 = vpop.f32.mrb[0].mxu0
  %v710 = vadd.f32 %v661, %v709
  %v711 = vpop.f32.mrb[0].mxu0
  %712 = vdwg.mxu0
  %v713 = vld [vmem:[%s3] sm:$0xf]
  %v714 = vld [vmem:[%s3 + $0x4] sm:$0xf]
  %v715 = vld [vmem:[%s3 + $0x8] sm:$0xf]
  %v716 = vld [vmem:[%s3 + $0xc] sm:$0xf]
  %v717 = vld [vmem:[%s3 + $0x10] sm:$0xf]
  %v718 = vld [vmem:[%s3 + $0x14] sm:$0xf]
  %v719 = vld [vmem:[%s3 + $0x18] sm:$0xf]
  %v720 = vld [vmem:[%s3 + $0x1c] sm:$0xf]
  %v721 = vld [vmem:[%s3 + $0x20] sm:$0xf]
  %v722 = vld [vmem:[%s3 + $0x24] sm:$0xf]
  %v723 = vld [vmem:[%s3 + $0x28] sm:$0xf]
  %v724 = vld [vmem:[%s3 + $0x2c] sm:$0xf]
  %v725 = vld [vmem:[%s3 + $0x30] sm:$0xf]
  %v726 = vld [vmem:[%s3 + $0x34] sm:$0xf]
  %v727 = vld [vmem:[%s3 + $0x38] sm:$0xf]
  %v728 = vld [vmem:[%s3 + $0x3c] sm:$0xf]
  %v729 = vld [vmem:[%s3 + $0x40] sm:$0xf]
  %v730 = vld [vmem:[%s3 + $0x44] sm:$0xf]
  %v731 = vld [vmem:[%s3 + $0x48] sm:$0xf]
  %v732 = vld [vmem:[%s3 + $0x4c] sm:$0xf]
  %v733 = vld [vmem:[%s3 + $0x50] sm:$0xf]
  %v734 = vld [vmem:[%s3 + $0x54] sm:$0xf]
  %v735 = vld [vmem:[%s3 + $0x58] sm:$0xf]
  %v736 = vld [vmem:[%s3 + $0x5c] sm:$0xf]
  %v737 = vld [vmem:[%s3 + $0x60] sm:$0xf]
  %v738 = vld [vmem:[%s3 + $0x64] sm:$0xf]
  %v739 = vld [vmem:[%s3 + $0x68] sm:$0xf]
  %v740 = vld [vmem:[%s3 + $0x6c] sm:$0xf]
  %v741 = vld [vmem:[%s3 + $0x70] sm:$0xf]
  %v742 = vld [vmem:[%s3 + $0x74] sm:$0xf]
  %v743 = vld [vmem:[%s3 + $0x78] sm:$0xf]
  %v744 = vld [vmem:[%s3 + $0x7c] sm:$0xf]
  %v745 = vld [vmem:[%s3 + $0x80] sm:$0xf]
  %v746 = vld [vmem:[%s3 + $0x84] sm:$0xf]
  %v747 = vld [vmem:[%s3 + $0x88] sm:$0xf]
  %v748 = vld [vmem:[%s3 + $0x8c] sm:$0xf]
  %v749 = vld [vmem:[%s3 + $0x90] sm:$0xf]
  %v750 = vld [vmem:[%s3 + $0x94] sm:$0xf]
  %v751 = vld [vmem:[%s3 + $0x98] sm:$0xf]
  %v752 = vld [vmem:[%s3 + $0x9c] sm:$0xf]
  %v753 = vld [vmem:[%s3 + $0xa0] sm:$0xf]
  %v754 = vld [vmem:[%s3 + $0xa4] sm:$0xf]
  %v755 = vld [vmem:[%s3 + $0xa8] sm:$0xf]
  %v756 = vld [vmem:[%s3 + $0xac] sm:$0xf]
  %v757 = vld [vmem:[%s3 + $0xb0] sm:$0xf]
  %v758 = vld [vmem:[%s3 + $0xb4] sm:$0xf]
  %v759 = vld [vmem:[%s3 + $0xb8] sm:$0xf]
  %v760 = vld [vmem:[%s3 + $0xbc] sm:$0xf]
  %v761 = vld [vmem:[%s3 + $0xc0] sm:$0xf]
  %v762 = vld [vmem:[%s3 + $0xc4] sm:$0xf]
  %v763 = vld [vmem:[%s3 + $0xc8] sm:$0xf]
  %v764 = vld [vmem:[%s3 + $0xcc] sm:$0xf]
  %v765 = vld [vmem:[%s3 + $0xd0] sm:$0xf]
  %v766 = vld [vmem:[%s3 + $0xd4] sm:$0xf]
  %v767 = vld [vmem:[%s3 + $0xd8] sm:$0xf]
  %v768 = vld [vmem:[%s3 + $0xdc] sm:$0xf]
  %v769 = vld [vmem:[%s3 + $0xe0] sm:$0xf]
  %v770 = vld [vmem:[%s3 + $0xe4] sm:$0xf]
  %v771 = vld [vmem:[%s3 + $0xe8] sm:$0xf]
  %v772 = vld [vmem:[%s3 + $0xec] sm:$0xf]
  %v773 = vld [vmem:[%s3 + $0xf0] sm:$0xf]
  %v774 = vld [vmem:[%s3 + $0xf4] sm:$0xf]
  %v775 = vld [vmem:[%s3 + $0xf8] sm:$0xf]
  %v776 = vld [vmem:[%s3 + $0xfc] sm:$0xf]
  %v777 = vld [vmem:[%s3 + $0x100] sm:$0xf]
  %v778 = vld [vmem:[%s3 + $0x104] sm:$0xf]
  %v779 = vld [vmem:[%s3 + $0x108] sm:$0xf]
  %v780 = vld [vmem:[%s3 + $0x10c] sm:$0xf]
  %v781 = vld [vmem:[%s3 + $0x110] sm:$0xf]
  %v782 = vld [vmem:[%s3 + $0x114] sm:$0xf]
  %v783 = vld [vmem:[%s3 + $0x118] sm:$0xf]
  %v784 = vld [vmem:[%s3 + $0x11c] sm:$0xf]
  %v785 = vld [vmem:[%s3 + $0x120] sm:$0xf]
  %v786 = vld [vmem:[%s3 + $0x124] sm:$0xf]
  %v787 = vld [vmem:[%s3 + $0x128] sm:$0xf]
  %v788 = vld [vmem:[%s3 + $0x12c] sm:$0xf]
  %v789 = vld [vmem:[%s3 + $0x130] sm:$0xf]
  %v790 = vld [vmem:[%s3 + $0x134] sm:$0xf]
  %v791 = vld [vmem:[%s3 + $0x138] sm:$0xf]
  %v792 = vld [vmem:[%s3 + $0x13c] sm:$0xf]
  %v793 = vld [vmem:[%s3 + $0x140] sm:$0xf]
  %v794 = vld [vmem:[%s3 + $0x144] sm:$0xf]
  %v795 = vld [vmem:[%s3 + $0x148] sm:$0xf]
  %v796 = vld [vmem:[%s3 + $0x14c] sm:$0xf]
  %v797 = vld [vmem:[%s3 + $0x150] sm:$0xf]
  %v798 = vld [vmem:[%s3 + $0x154] sm:$0xf]
  %v799 = vld [vmem:[%s3 + $0x158] sm:$0xf]
  %v800 = vld [vmem:[%s3 + $0x15c] sm:$0xf]
  %v801 = vld [vmem:[%s3 + $0x160] sm:$0xf]
  %v802 = vld [vmem:[%s3 + $0x164] sm:$0xf]
  %v803 = vld [vmem:[%s3 + $0x168] sm:$0xf]
  %v804 = vld [vmem:[%s3 + $0x16c] sm:$0xf]
  %v805 = vld [vmem:[%s3 + $0x170] sm:$0xf]
  %v806 = vld [vmem:[%s3 + $0x174] sm:$0xf]
  %v807 = vld [vmem:[%s3 + $0x178] sm:$0xf]
  %v808 = vld [vmem:[%s3 + $0x17c] sm:$0xf]
  %v809 = vld [vmem:[%s3 + $0x180] sm:$0xf]
  %v810 = vld [vmem:[%s3 + $0x184] sm:$0xf]
  %v811 = vld [vmem:[%s3 + $0x188] sm:$0xf]
  %v812 = vld [vmem:[%s3 + $0x18c] sm:$0xf]
  %v913 = vunpack.c.l.b16 %v713
  %v914 = vunpack.c.l.b16 %v714
  %v915 = vunpack.c.l.b16 %v715
  %v916 = vunpack.c.l.b16 %v716
  %v917 = vunpack.c.l.b16 %v717
  %v918 = vunpack.c.l.b16 %v718
  %v919 = vunpack.c.l.b16 %v719
  %v920 = vunpack.c.l.b16 %v720
  %v921 = vunpack.c.l.b16 %v721
  %v922 = vunpack.c.l.b16 %v722
  %v923 = vunpack.c.l.b16 %v723
  %v924 = vunpack.c.l.b16 %v724
  %v925 = vunpack.c.l.b16 %v725
  %v926 = vunpack.c.l.b16 %v726
  %v927 = vunpack.c.l.b16 %v727
  %v928 = vunpack.c.l.b16 %v728
  %v929 = vunpack.c.l.b16 %v729
  %v930 = vunpack.c.l.b16 %v730
  %v931 = vunpack.c.l.b16 %v731
  %v932 = vunpack.c.l.b16 %v732
  %v933 = vunpack.c.l.b16 %v733
  %v934 = vunpack.c.l.b16 %v734
  %v935 = vunpack.c.l.b16 %v735
  %v936 = vunpack.c.l.b16 %v736
  %v937 = vunpack.c.l.b16 %v737
  %v938 = vunpack.c.l.b16 %v738
  %v939 = vunpack.c.l.b16 %v739
  %v940 = vunpack.c.l.b16 %v740
  %v941 = vunpack.c.l.b16 %v741
  %v942 = vunpack.c.l.b16 %v742
  %v943 = vunpack.c.l.b16 %v743
  %v944 = vunpack.c.l.b16 %v744
  %v945 = vunpack.c.l.b16 %v745
  %v946 = vunpack.c.l.b16 %v746
  %v947 = vunpack.c.l.b16 %v747
  %v948 = vunpack.c.l.b16 %v748
  %v949 = vunpack.c.l.b16 %v749
  %v950 = vunpack.c.l.b16 %v750
  %v951 = vunpack.c.l.b16 %v751
  %v952 = vunpack.c.l.b16 %v752
  %v953 = vunpack.c.l.b16 %v753
  %v954 = vunpack.c.l.b16 %v754
  %v955 = vunpack.c.l.b16 %v755
  %v956 = vunpack.c.l.b16 %v756
  %v957 = vunpack.c.l.b16 %v757
  %v958 = vunpack.c.l.b16 %v758
  %v959 = vunpack.c.l.b16 %v759
  %v960 = vunpack.c.l.b16 %v760
  %v961 = vunpack.c.l.b16 %v761
  %v962 = vunpack.c.l.b16 %v762
  %v963 = vunpack.c.l.b16 %v763
  %v964 = vunpack.c.l.b16 %v764
  %v965 = vunpack.c.l.b16 %v765
  %v966 = vunpack.c.l.b16 %v766
  %v967 = vunpack.c.l.b16 %v767
  %v968 = vunpack.c.l.b16 %v768
  %v969 = vunpack.c.l.b16 %v769
  %v970 = vunpack.c.l.b16 %v770
  %v971 = vunpack.c.l.b16 %v771
  %v972 = vunpack.c.l.b16 %v772
  %v973 = vunpack.c.l.b16 %v773
  %v974 = vunpack.c.l.b16 %v774
  %v975 = vunpack.c.l.b16 %v775
  %v976 = vunpack.c.l.b16 %v776
  %v977 = vunpack.c.l.b16 %v777
  %v978 = vunpack.c.l.b16 %v778
  %v979 = vunpack.c.l.b16 %v779
  %v980 = vunpack.c.l.b16 %v780
  %v981 = vunpack.c.l.b16 %v781
  %v982 = vunpack.c.l.b16 %v782
  %v983 = vunpack.c.l.b16 %v783
  %v984 = vunpack.c.l.b16 %v784
  %v985 = vunpack.c.l.b16 %v785
  %v986 = vunpack.c.l.b16 %v786
  %v987 = vunpack.c.l.b16 %v787
  %v988 = vunpack.c.l.b16 %v788
  %v989 = vunpack.c.l.b16 %v789
  %v990 = vunpack.c.l.b16 %v790
  %v991 = vunpack.c.l.b16 %v791
  %v992 = vunpack.c.l.b16 %v792
  %v993 = vunpack.c.l.b16 %v793
  %v994 = vunpack.c.l.b16 %v794
  %v995 = vunpack.c.l.b16 %v795
  %v996 = vunpack.c.l.b16 %v796
  %v997 = vunpack.c.l.b16 %v797
  %v998 = vunpack.c.l.b16 %v798
  %v999 = vunpack.c.l.b16 %v799
  %v1000 = vunpack.c.l.b16 %v800
  %v1001 = vunpack.c.l.b16 %v801
  %v1002 = vunpack.c.l.b16 %v802
  %v1003 = vunpack.c.l.b16 %v803
  %v1004 = vunpack.c.l.b16 %v804
  %v1005 = vunpack.c.l.b16 %v805
  %v1006 = vunpack.c.l.b16 %v806
  %v1007 = vunpack.c.l.b16 %v807
  %v1008 = vunpack.c.l.b16 %v808
  %v1009 = vunpack.c.l.b16 %v809
  %v1010 = vunpack.c.l.b16 %v810
  %v1011 = vunpack.c.l.b16 %v811
  %v1012 = vunpack.c.l.b16 %v812
  %v1013 = vpack.c.b16 %v914, %v913
  %v1014 = vpack.c.b16 %v916, %v915
  %v1015 = vpack.c.b16 %v918, %v917
  %v1016 = vpack.c.b16 %v920, %v919
  %v1017 = vpack.c.b16 %v922, %v921
  %v1018 = vpack.c.b16 %v924, %v923
  %v1019 = vpack.c.b16 %v926, %v925
  %v1020 = vpack.c.b16 %v928, %v927
  %v1021 = vpack.c.b16 %v930, %v929
  %v1022 = vpack.c.b16 %v932, %v931
  %v1023 = vpack.c.b16 %v934, %v933
  %v1024 = vpack.c.b16 %v936, %v935
  %v1025 = vpack.c.b16 %v938, %v937
  %v1026 = vpack.c.b16 %v940, %v939
  %v1027 = vpack.c.b16 %v942, %v941
  %v1028 = vpack.c.b16 %v944, %v943
  %v1029 = vpack.c.b16 %v946, %v945
  %v1030 = vpack.c.b16 %v948, %v947
  %v1031 = vpack.c.b16 %v950, %v949
  %v1032 = vpack.c.b16 %v952, %v951
  %v1033 = vpack.c.b16 %v954, %v953
  %v1034 = vpack.c.b16 %v956, %v955
  %v1035 = vpack.c.b16 %v958, %v957
  %v1036 = vpack.c.b16 %v960, %v959
  %v1037 = vpack.c.b16 %v962, %v961
  %v1038 = vpack.c.b16 %v964, %v963
  %v1039 = vpack.c.b16 %v966, %v965
  %v1040 = vpack.c.b16 %v968, %v967
  %v1041 = vpack.c.b16 %v970, %v969
  %v1042 = vpack.c.b16 %v972, %v971
  %v1043 = vpack.c.b16 %v974, %v973
  %v1044 = vpack.c.b16 %v976, %v975
  %v1045 = vpack.c.b16 %v978, %v977
  %v1046 = vpack.c.b16 %v980, %v979
  %v1047 = vpack.c.b16 %v982, %v981
  %v1048 = vpack.c.b16 %v984, %v983
  %v1049 = vpack.c.b16 %v986, %v985
  %v1050 = vpack.c.b16 %v988, %v987
  %v1051 = vpack.c.b16 %v990, %v989
  %v1052 = vpack.c.b16 %v992, %v991
  %v1053 = vpack.c.b16 %v994, %v993
  %v1054 = vpack.c.b16 %v996, %v995
  %v1055 = vpack.c.b16 %v998, %v997
  %v1056 = vpack.c.b16 %v1000, %v999
  %v1057 = vpack.c.b16 %v1002, %v1001
  %v1058 = vpack.c.b16 %v1004, %v1003
  %v1059 = vpack.c.b16 %v1006, %v1005
  %v1060 = vpack.c.b16 %v1008, %v1007
  %v1061 = vpack.c.b16 %v1010, %v1009
  %v1062 = vpack.c.b16 %v1012, %v1011
  %1113 = vmatprep.subr.bf16.mxu0 0
  %1114 = vmatpush1.bf16.msra.mxu0 %v1013
  %1115 = vmatprep.subr.bf16.mxu0 0
  %1116 = vmatpush1.bf16.msra.mxu0 %v1014
  %1117 = vmatprep.subr.bf16.mxu0 0
  %1118 = vmatpush1.bf16.msra.mxu0 %v1015
  %1119 = vmatprep.subr.bf16.mxu0 0
  %1120 = vmatpush1.bf16.msra.mxu0 %v1016
  %1121 = vmatprep.subr.bf16.mxu0 0
  %1122 = vmatpush1.bf16.msra.mxu0 %v1017
  %1123 = vmatprep.subr.bf16.mxu0 0
  %1124 = vmatpush1.bf16.msra.mxu0 %v1018
  %1125 = vmatprep.subr.bf16.mxu0 0
  %1126 = vmatpush1.bf16.msra.mxu0 %v1019
  %1127 = vmatprep.subr.bf16.mxu0 0
  %1128 = vmatpush1.bf16.msra.mxu0 %v1020
  %1129 = vmatprep.subr.bf16.mxu0 0
  %1130 = vmatpush1.bf16.msra.mxu0 %v1021
  %1131 = vmatprep.subr.bf16.mxu0 0
  %1132 = vmatpush1.bf16.msra.mxu0 %v1022
  %1133 = vmatprep.subr.bf16.mxu0 0
  %1134 = vmatpush1.bf16.msra.mxu0 %v1023
  %1135 = vmatprep.subr.bf16.mxu0 0
  %1136 = vmatpush1.bf16.msra.mxu0 %v1024
  %1137 = vmatprep.subr.bf16.mxu0 0
  %1138 = vmatpush1.bf16.msra.mxu0 %v1025
  %1139 = vmatprep.subr.bf16.mxu0 0
  %1140 = vmatpush1.bf16.msra.mxu0 %v1026
  %1141 = vmatprep.subr.bf16.mxu0 0
  %1142 = vmatpush1.bf16.msra.mxu0 %v1027
  %1143 = vmatprep.subr.bf16.mxu0 0
  %1144 = vmatpush1.bf16.msra.mxu0 %v1028
  %1145 = vmatprep.mubr.bf16.mxu0 %v185
  %1146 = vmatmul.mubr.bf16.gmra.mrb[0].mxu0 %v184
  %v1147 = vpop.f32.mrb[0].mxu0
  %v1148 = vadd.f32 0.0, %v1147
  %v1149 = vpop.f32.mrb[0].mxu0
  %v1150 = vpop.f32.mrb[0].mxu0
  %v1151 = vadd.f32 0.0, %v1150
  %v1152 = vpop.f32.mrb[0].mxu0
  %1153 = vmatprep.mubr.bf16.mxu0 %v192
  %1154 = vmatmul.mubr.bf16.gmra.mrb[0].mxu0 %v191
  %v1155 = vpop.f32.mrb[0].mxu0
  %v1156 = vadd.f32 0.0, %v1155
  %v1157 = vpop.f32.mrb[0].mxu0
  %v1158 = vpop.f32.mrb[0].mxu0
  %v1159 = vadd.f32 0.0, %v1158
  %v1160 = vpop.f32.mrb[0].mxu0
  %1161 = vdwg.mxu0
  %1162 = vmatprep.subr.bf16.mxu0 0
  %1163 = vmatpush1.bf16.msra.mxu0 %v1029
  %1164 = vmatprep.subr.bf16.mxu0 0
  %1165 = vmatpush1.bf16.msra.mxu0 %v1030
  %1166 = vmatprep.subr.bf16.mxu0 0
  %1167 = vmatpush1.bf16.msra.mxu0 %v1031
  %1168 = vmatprep.subr.bf16.mxu0 0
  %1169 = vmatpush1.bf16.msra.mxu0 %v1032
  %1170 = vmatprep.subr.bf16.mxu0 0
  %1171 = vmatpush1.bf16.msra.mxu0 %v1033
  %1172 = vmatprep.subr.bf16.mxu0 0
  %1173 = vmatpush1.bf16.msra.mxu0 %v1034
  %1174 = vmatprep.subr.bf16.mxu0 0
  %1175 = vmatpush1.bf16.msra.mxu0 %v1035
  %1176 = vmatprep.subr.bf16.mxu0 0
  %1177 = vmatpush1.bf16.msra.mxu0 %v1036
  %1178 = vmatprep.subr.bf16.mxu0 0
  %1179 = vmatpush1.bf16.msra.mxu0 %v1037
  %1180 = vmatprep.subr.bf16.mxu0 0
  %1181 = vmatpush1.bf16.msra.mxu0 %v1038
  %1182 = vmatprep.subr.bf16.mxu0 0
  %1183 = vmatpush1.bf16.msra.mxu0 %v1039
  %1184 = vmatprep.subr.bf16.mxu0 0
  %1185 = vmatpush1.bf16.msra.mxu0 %v1040
  %1186 = vmatprep.subr.bf16.mxu0 0
  %1187 = vmatpush1.bf16.msra.mxu0 %v1041
  %1188 = vmatprep.subr.bf16.mxu0 0
  %1189 = vmatpush1.bf16.msra.mxu0 %v1042
  %1190 = vmatprep.subr.bf16.mxu0 0
  %1191 = vmatpush1.bf16.msra.mxu0 %v1043
  %1192 = vmatprep.subr.bf16.mxu0 0
  %1193 = vmatpush1.bf16.msra.mxu0 %v1044
  %1194 = vmatprep.mubr.bf16.mxu0 %v187
  %1195 = vmatmul.mubr.bf16.gmra.mrb[0].mxu0 %v186
  %v1196 = vpop.f32.mrb[0].mxu0
  %v1197 = vadd.f32 %v1148, %v1196
  %v1198 = vpop.f32.mrb[0].mxu0
  %v1199 = vpop.f32.mrb[0].mxu0
  %v1200 = vadd.f32 %v1151, %v1199
  %v1201 = vpop.f32.mrb[0].mxu0
  %1202 = vmatprep.mubr.bf16.mxu0 %v194
  %1203 = vmatmul.mubr.bf16.gmra.mrb[0].mxu0 %v193
  %v1204 = vpop.f32.mrb[0].mxu0
  %v1205 = vadd.f32 %v1156, %v1204
  %v1206 = vpop.f32.mrb[0].mxu0
  %v1207 = vpop.f32.mrb[0].mxu0
  %v1208 = vadd.f32 %v1159, %v1207
  %v1209 = vpop.f32.mrb[0].mxu0
  %1210 = vdwg.mxu0
  %1211 = vmatprep.subr.bf16.mxu0 0
  %1212 = vmatpush1.bf16.msra.mxu0 %v1045
  %1213 = vmatprep.subr.bf16.mxu0 0
  %1214 = vmatpush1.bf16.msra.mxu0 %v1046
  %1215 = vmatprep.subr.bf16.mxu0 0
  %1216 = vmatpush1.bf16.msra.mxu0 %v1047
  %1217 = vmatprep.subr.bf16.mxu0 0
  %1218 = vmatpush1.bf16.msra.mxu0 %v1048
  %1219 = vmatprep.subr.bf16.mxu0 0
  %1220 = vmatpush1.bf16.msra.mxu0 %v1049
  %1221 = vmatprep.subr.bf16.mxu0 0
  %1222 = vmatpush1.bf16.msra.mxu0 %v1050
  %1223 = vmatprep.subr.bf16.mxu0 0
  %1224 = vmatpush1.bf16.msra.mxu0 %v1051
  %1225 = vmatprep.subr.bf16.mxu0 0
  %1226 = vmatpush1.bf16.msra.mxu0 %v1052
  %1227 = vmatprep.subr.bf16.mxu0 0
  %1228 = vmatpush1.bf16.msra.mxu0 %v1053
  %1229 = vmatprep.subr.bf16.mxu0 0
  %1230 = vmatpush1.bf16.msra.mxu0 %v1054
  %1231 = vmatprep.subr.bf16.mxu0 0
  %1232 = vmatpush1.bf16.msra.mxu0 %v1055
  %1233 = vmatprep.subr.bf16.mxu0 0
  %1234 = vmatpush1.bf16.msra.mxu0 %v1056
  %1235 = vmatprep.subr.bf16.mxu0 0
  %1236 = vmatpush1.bf16.msra.mxu0 %v1057
  %1237 = vmatprep.subr.bf16.mxu0 0
  %1238 = vmatpush1.bf16.msra.mxu0 %v1058
  %1239 = vmatprep.subr.bf16.mxu0 0
  %1240 = vmatpush1.bf16.msra.mxu0 %v1059
  %1241 = vmatprep.subr.bf16.mxu0 0
  %1242 = vmatpush1.bf16.msra.mxu0 %v1060
  %1243 = vmatprep.mubr.bf16.mxu0 %v189
  %1244 = vmatmul.mubr.bf16.gmra.mrb[0].mxu0 %v188
  %v1245 = vpop.f32.mrb[0].mxu0
  %v1246 = vadd.f32 %v1197, %v1245
  %v1247 = vpop.f32.mrb[0].mxu0
  %v1248 = vpop.f32.mrb[0].mxu0
  %v1249 = vadd.f32 %v1200, %v1248
  %v1250 = vpop.f32.mrb[0].mxu0
  %1251 = vmatprep.mubr.bf16.mxu0 %v196
  %1252 = vmatmul.mubr.bf16.gmra.mrb[0].mxu0 %v195
  %v1253 = vpop.f32.mrb[0].mxu0
  %v1254 = vadd.f32 %v1205, %v1253
  %v1255 = vpop.f32.mrb[0].mxu0
  %v1256 = vpop.f32.mrb[0].mxu0
  %v1257 = vadd.f32 %v1208, %v1256
  %v1258 = vpop.f32.mrb[0].mxu0
  %1259 = vdwg.mxu0
  %1260 = vmatprep.subr.bf16.mxu0 0
  %1261 = vmatpush1.bf16.msra.mxu0 %v1061
  %1262 = vmatprep.subr.bf16.mxu0 0
  %1263 = vmatpush1.bf16.msra.mxu0 %v1062
  %1264 = vmatprep.subr.bf16.mxu0 0
  %1265 = vmatpush1.bf16.msra.mxu0 0
  %1266 = vmatprep.subr.bf16.mxu0 0
  %1267 = vmatpush1.bf16.msra.mxu0 0
  %1268 = vmatprep.subr.bf16.mxu0 0
  %1269 = vmatpush1.bf16.msra.mxu0 0
  %1270 = vmatprep.subr.bf16.mxu0 0
  %1271 = vmatpush1.bf16.msra.mxu0 0
  %1272 = vmatprep.subr.bf16.mxu0 0
  %1273 = vmatpush1.bf16.msra.mxu0 0
  %1274 = vmatprep.subr.bf16.mxu0 0
  %1275 = vmatpush1.bf16.msra.mxu0 0
  %1276 = vmatprep.subr.bf16.mxu0 0
  %1277 = vmatpush1.bf16.msra.mxu0 0
  %1278 = vmatprep.subr.bf16.mxu0 0
  %1279 = vmatpush1.bf16.msra.mxu0 0
  %1280 = vmatprep.subr.bf16.mxu0 0
  %1281 = vmatpush1.bf16.msra.mxu0 0
  %1282 = vmatprep.subr.bf16.mxu0 0
  %1283 = vmatpush1.bf16.msra.mxu0 0
  %1284 = vmatprep.subr.bf16.mxu0 0
  %1285 = vmatpush1.bf16.msra.mxu0 0
  %1286 = vmatprep.subr.bf16.mxu0 0
  %1287 = vmatpush1.bf16.msra.mxu0 0
  %1288 = vmatprep.subr.bf16.mxu0 0
  %1289 = vmatpush1.bf16.msra.mxu0 0
  %1290 = vmatprep.subr.bf16.mxu0 0
  %1291 = vmatpush1.bf16.msra.mxu0 0
  %1292 = vmatprep.mubr.bf16.mxu0 0
  %1293 = vmatmul.mubr.bf16.gmra.mrb[0].mxu0 %v512
  %v1294 = vpop.f32.mrb[0].mxu0
  %v1295 = vadd.f32 %v1246, %v1294
  %v1296 = vpop.f32.mrb[0].mxu0
  %v1297 = vpop.f32.mrb[0].mxu0
  %v1298 = vadd.f32 %v1249, %v1297
  %v1299 = vpop.f32.mrb[0].mxu0
  %1300 = vmatprep.mubr.bf16.mxu0 0
  %1301 = vmatmul.mubr.bf16.gmra.mrb[0].mxu0 %v515
  %v1302 = vpop.f32.mrb[0].mxu0
  %v1303 = vadd.f32 %v1254, %v1302
  %v1304 = vpop.f32.mrb[0].mxu0
  %v1305 = vpop.f32.mrb[0].mxu0
  %v1306 = vadd.f32 %v1257, %v1305
  %v1307 = vpop.f32.mrb[0].mxu0
  %1308 = vdwg.mxu0
  %v1309 = vmax.f32 %v699, %v1295
  %v1310 = vmax.f32 %v702, %v1298
  %v1311 = vmax.f32 %v707, %v1303
  %v1312 = vmax.f32 %v710, %v1306
  %v1313 = vld [vmem:[%s4] sm:$0xf]
  %v1314 = vld [vmem:[%s4 + $0x4] sm:$0xf]
  %v1315 = vld [vmem:[%s4 + $0x8] sm:$0xf]
  %v1316 = vld [vmem:[%s4 + $0xc] sm:$0xf]
  %v1317 = vld [vmem:[%s4 + $0x10] sm:$0xf]
  %v1318 = vld [vmem:[%s4 + $0x14] sm:$0xf]
  %v1319 = vld [vmem:[%s4 + $0x18] sm:$0xf]
  %v1320 = vld [vmem:[%s4 + $0x1c] sm:$0xf]
  %v1321 = vld [vmem:[%s4 + $0x20] sm:$0xf]
  %v1322 = vld [vmem:[%s4 + $0x24] sm:$0xf]
  %v1323 = vld [vmem:[%s4 + $0x28] sm:$0xf]
  %v1324 = vld [vmem:[%s4 + $0x2c] sm:$0xf]
  %v1325 = vld [vmem:[%s4 + $0x30] sm:$0xf]
  %v1326 = vld [vmem:[%s4 + $0x34] sm:$0xf]
  %v1327 = vld [vmem:[%s4 + $0x38] sm:$0xf]
  %v1328 = vld [vmem:[%s4 + $0x3c] sm:$0xf]
  %v1329 = vld [vmem:[%s4 + $0x40] sm:$0xf]
  %v1330 = vld [vmem:[%s4 + $0x44] sm:$0xf]
  %v1331 = vld [vmem:[%s4 + $0x48] sm:$0xf]
  %v1332 = vld [vmem:[%s4 + $0x4c] sm:$0xf]
  %v1333 = vld [vmem:[%s4 + $0x50] sm:$0xf]
  %v1334 = vld [vmem:[%s4 + $0x54] sm:$0xf]
  %v1335 = vld [vmem:[%s4 + $0x58] sm:$0xf]
  %v1336 = vld [vmem:[%s4 + $0x5c] sm:$0xf]
  %v1337 = vld [vmem:[%s4 + $0x60] sm:$0xf]
  %v1338 = vld [vmem:[%s4 + $0x64] sm:$0xf]
  %v1339 = vld [vmem:[%s4 + $0x68] sm:$0xf]
  %v1340 = vld [vmem:[%s4 + $0x6c] sm:$0xf]
  %v1341 = vld [vmem:[%s4 + $0x70] sm:$0xf]
  %v1342 = vld [vmem:[%s4 + $0x74] sm:$0xf]
  %v1343 = vld [vmem:[%s4 + $0x78] sm:$0xf]
  %v1344 = vld [vmem:[%s4 + $0x7c] sm:$0xf]
  %v1345 = vld [vmem:[%s4 + $0x80] sm:$0xf]
  %v1346 = vld [vmem:[%s4 + $0x84] sm:$0xf]
  %v1347 = vld [vmem:[%s4 + $0x88] sm:$0xf]
  %v1348 = vld [vmem:[%s4 + $0x8c] sm:$0xf]
  %v1349 = vld [vmem:[%s4 + $0x90] sm:$0xf]
  %v1350 = vld [vmem:[%s4 + $0x94] sm:$0xf]
  %v1351 = vld [vmem:[%s4 + $0x98] sm:$0xf]
  %v1352 = vld [vmem:[%s4 + $0x9c] sm:$0xf]
  %v1353 = vld [vmem:[%s4 + $0xa0] sm:$0xf]
  %v1354 = vld [vmem:[%s4 + $0xa4] sm:$0xf]
  %v1355 = vld [vmem:[%s4 + $0xa8] sm:$0xf]
  %v1356 = vld [vmem:[%s4 + $0xac] sm:$0xf]
  %v1357 = vld [vmem:[%s4 + $0xb0] sm:$0xf]
  %v1358 = vld [vmem:[%s4 + $0xb4] sm:$0xf]
  %v1359 = vld [vmem:[%s4 + $0xb8] sm:$0xf]
  %v1360 = vld [vmem:[%s4 + $0xbc] sm:$0xf]
  %v1361 = vld [vmem:[%s4 + $0xc0] sm:$0xf]
  %v1362 = vld [vmem:[%s4 + $0xc4] sm:$0xf]
  %v1363 = vld [vmem:[%s4 + $0xc8] sm:$0xf]
  %v1364 = vld [vmem:[%s4 + $0xcc] sm:$0xf]
  %v1365 = vld [vmem:[%s4 + $0xd0] sm:$0xf]
  %v1366 = vld [vmem:[%s4 + $0xd4] sm:$0xf]
  %v1367 = vld [vmem:[%s4 + $0xd8] sm:$0xf]
  %v1368 = vld [vmem:[%s4 + $0xdc] sm:$0xf]
  %v1369 = vld [vmem:[%s4 + $0xe0] sm:$0xf]
  %v1370 = vld [vmem:[%s4 + $0xe4] sm:$0xf]
  %v1371 = vld [vmem:[%s4 + $0xe8] sm:$0xf]
  %v1372 = vld [vmem:[%s4 + $0xec] sm:$0xf]
  %v1373 = vld [vmem:[%s4 + $0xf0] sm:$0xf]
  %v1374 = vld [vmem:[%s4 + $0xf4] sm:$0xf]
  %v1375 = vld [vmem:[%s4 + $0xf8] sm:$0xf]
  %v1376 = vld [vmem:[%s4 + $0xfc] sm:$0xf]
  %v1377 = vld [vmem:[%s4 + $0x100] sm:$0xf]
  %v1378 = vld [vmem:[%s4 + $0x104] sm:$0xf]
  %v1379 = vld [vmem:[%s4 + $0x108] sm:$0xf]
  %v1380 = vld [vmem:[%s4 + $0x10c] sm:$0xf]
  %v1381 = vld [vmem:[%s4 + $0x110] sm:$0xf]
  %v1382 = vld [vmem:[%s4 + $0x114] sm:$0xf]
  %v1383 = vld [vmem:[%s4 + $0x118] sm:$0xf]
  %v1384 = vld [vmem:[%s4 + $0x11c] sm:$0xf]
  %v1385 = vld [vmem:[%s4 + $0x120] sm:$0xf]
  %v1386 = vld [vmem:[%s4 + $0x124] sm:$0xf]
  %v1387 = vld [vmem:[%s4 + $0x128] sm:$0xf]
  %v1388 = vld [vmem:[%s4 + $0x12c] sm:$0xf]
  %v1389 = vld [vmem:[%s4 + $0x130] sm:$0xf]
  %v1390 = vld [vmem:[%s4 + $0x134] sm:$0xf]
  %v1391 = vld [vmem:[%s4 + $0x138] sm:$0xf]
  %v1392 = vld [vmem:[%s4 + $0x13c] sm:$0xf]
  %v1393 = vld [vmem:[%s4 + $0x140] sm:$0xf]
  %v1394 = vld [vmem:[%s4 + $0x144] sm:$0xf]
  %v1395 = vld [vmem:[%s4 + $0x148] sm:$0xf]
  %v1396 = vld [vmem:[%s4 + $0x14c] sm:$0xf]
  %v1397 = vld [vmem:[%s4 + $0x150] sm:$0xf]
  %v1398 = vld [vmem:[%s4 + $0x154] sm:$0xf]
  %v1399 = vld [vmem:[%s4 + $0x158] sm:$0xf]
  %v1400 = vld [vmem:[%s4 + $0x15c] sm:$0xf]
  %v1401 = vld [vmem:[%s4 + $0x160] sm:$0xf]
  %v1402 = vld [vmem:[%s4 + $0x164] sm:$0xf]
  %v1403 = vld [vmem:[%s4 + $0x168] sm:$0xf]
  %v1404 = vld [vmem:[%s4 + $0x16c] sm:$0xf]
  %v1405 = vld [vmem:[%s4 + $0x170] sm:$0xf]
  %v1406 = vld [vmem:[%s4 + $0x174] sm:$0xf]
  %v1407 = vld [vmem:[%s4 + $0x178] sm:$0xf]
  %v1408 = vld [vmem:[%s4 + $0x17c] sm:$0xf]
  %v1409 = vld [vmem:[%s4 + $0x180] sm:$0xf]
  %v1410 = vld [vmem:[%s4 + $0x184] sm:$0xf]
  %v1411 = vld [vmem:[%s4 + $0x188] sm:$0xf]
  %v1412 = vld [vmem:[%s4 + $0x18c] sm:$0xf]
  %v1513 = vunpack.c.l.b16 %v1313
  %v1514 = vunpack.c.l.b16 %v1314
  %v1515 = vunpack.c.l.b16 %v1315
  %v1516 = vunpack.c.l.b16 %v1316
  %v1517 = vunpack.c.l.b16 %v1317
  %v1518 = vunpack.c.l.b16 %v1318
  %v1519 = vunpack.c.l.b16 %v1319
  %v1520 = vunpack.c.l.b16 %v1320
  %v1521 = vunpack.c.l.b16 %v1321
  %v1522 = vunpack.c.l.b16 %v1322
  %v1523 = vunpack.c.l.b16 %v1323
  %v1524 = vunpack.c.l.b16 %v1324
  %v1525 = vunpack.c.l.b16 %v1325
  %v1526 = vunpack.c.l.b16 %v1326
  %v1527 = vunpack.c.l.b16 %v1327
  %v1528 = vunpack.c.l.b16 %v1328
  %v1529 = vunpack.c.l.b16 %v1329
  %v1530 = vunpack.c.l.b16 %v1330
  %v1531 = vunpack.c.l.b16 %v1331
  %v1532 = vunpack.c.l.b16 %v1332
  %v1533 = vunpack.c.l.b16 %v1333
  %v1534 = vunpack.c.l.b16 %v1334
  %v1535 = vunpack.c.l.b16 %v1335
  %v1536 = vunpack.c.l.b16 %v1336
  %v1537 = vunpack.c.l.b16 %v1337
  %v1538 = vunpack.c.l.b16 %v1338
  %v1539 = vunpack.c.l.b16 %v1339
  %v1540 = vunpack.c.l.b16 %v1340
  %v1541 = vunpack.c.l.b16 %v1341
  %v1542 = vunpack.c.l.b16 %v1342
  %v1543 = vunpack.c.l.b16 %v1343
  %v1544 = vunpack.c.l.b16 %v1344
  %v1545 = vunpack.c.l.b16 %v1345
  %v1546 = vunpack.c.l.b16 %v1346
  %v1547 = vunpack.c.l.b16 %v1347
  %v1548 = vunpack.c.l.b16 %v1348
  %v1549 = vunpack.c.l.b16 %v1349
  %v1550 = vunpack.c.l.b16 %v1350
  %v1551 = vunpack.c.l.b16 %v1351
  %v1552 = vunpack.c.l.b16 %v1352
  %v1553 = vunpack.c.l.b16 %v1353
  %v1554 = vunpack.c.l.b16 %v1354
  %v1555 = vunpack.c.l.b16 %v1355
  %v1556 = vunpack.c.l.b16 %v1356
  %v1557 = vunpack.c.l.b16 %v1357
  %v1558 = vunpack.c.l.b16 %v1358
  %v1559 = vunpack.c.l.b16 %v1359
  %v1560 = vunpack.c.l.b16 %v1360
  %v1561 = vunpack.c.l.b16 %v1361
  %v1562 = vunpack.c.l.b16 %v1362
  %v1563 = vunpack.c.l.b16 %v1363
  %v1564 = vunpack.c.l.b16 %v1364
  %v1565 = vunpack.c.l.b16 %v1365
  %v1566 = vunpack.c.l.b16 %v1366
  %v1567 = vunpack.c.l.b16 %v1367
  %v1568 = vunpack.c.l.b16 %v1368
  %v1569 = vunpack.c.l.b16 %v1369
  %v1570 = vunpack.c.l.b16 %v1370
  %v1571 = vunpack.c.l.b16 %v1371
  %v1572 = vunpack.c.l.b16 %v1372
  %v1573 = vunpack.c.l.b16 %v1373
  %v1574 = vunpack.c.l.b16 %v1374
  %v1575 = vunpack.c.l.b16 %v1375
  %v1576 = vunpack.c.l.b16 %v1376
  %v1577 = vunpack.c.l.b16 %v1377
  %v1578 = vunpack.c.l.b16 %v1378
  %v1579 = vunpack.c.l.b16 %v1379
  %v1580 = vunpack.c.l.b16 %v1380
  %v1581 = vunpack.c.l.b16 %v1381
  %v1582 = vunpack.c.l.b16 %v1382
  %v1583 = vunpack.c.l.b16 %v1383
  %v1584 = vunpack.c.l.b16 %v1384
  %v1585 = vunpack.c.l.b16 %v1385
  %v1586 = vunpack.c.l.b16 %v1386
  %v1587 = vunpack.c.l.b16 %v1387
  %v1588 = vunpack.c.l.b16 %v1388
  %v1589 = vunpack.c.l.b16 %v1389
  %v1590 = vunpack.c.l.b16 %v1390
  %v1591 = vunpack.c.l.b16 %v1391
  %v1592 = vunpack.c.l.b16 %v1392
  %v1593 = vunpack.c.l.b16 %v1393
  %v1594 = vunpack.c.l.b16 %v1394
  %v1595 = vunpack.c.l.b16 %v1395
  %v1596 = vunpack.c.l.b16 %v1396
  %v1597 = vunpack.c.l.b16 %v1397
  %v1598 = vunpack.c.l.b16 %v1398
  %v1599 = vunpack.c.l.b16 %v1399
  %v1600 = vunpack.c.l.b16 %v1400
  %v1601 = vunpack.c.l.b16 %v1401
  %v1602 = vunpack.c.l.b16 %v1402
  %v1603 = vunpack.c.l.b16 %v1403
  %v1604 = vunpack.c.l.b16 %v1404
  %v1605 = vunpack.c.l.b16 %v1405
  %v1606 = vunpack.c.l.b16 %v1406
  %v1607 = vunpack.c.l.b16 %v1407
  %v1608 = vunpack.c.l.b16 %v1408
  %v1609 = vunpack.c.l.b16 %v1409
  %v1610 = vunpack.c.l.b16 %v1410
  %v1611 = vunpack.c.l.b16 %v1411
  %v1612 = vunpack.c.l.b16 %v1412
  %v1613 = vpack.c.b16 %v1514, %v1513
  %v1614 = vpack.c.b16 %v1516, %v1515
  %v1615 = vpack.c.b16 %v1518, %v1517
  %v1616 = vpack.c.b16 %v1520, %v1519
  %v1617 = vpack.c.b16 %v1522, %v1521
  %v1618 = vpack.c.b16 %v1524, %v1523
  %v1619 = vpack.c.b16 %v1526, %v1525
  %v1620 = vpack.c.b16 %v1528, %v1527
  %v1621 = vpack.c.b16 %v1530, %v1529
  %v1622 = vpack.c.b16 %v1532, %v1531
  %v1623 = vpack.c.b16 %v1534, %v1533
  %v1624 = vpack.c.b16 %v1536, %v1535
  %v1625 = vpack.c.b16 %v1538, %v1537
  %v1626 = vpack.c.b16 %v1540, %v1539
  %v1627 = vpack.c.b16 %v1542, %v1541
  %v1628 = vpack.c.b16 %v1544, %v1543
  %v1629 = vpack.c.b16 %v1546, %v1545
  %v1630 = vpack.c.b16 %v1548, %v1547
  %v1631 = vpack.c.b16 %v1550, %v1549
  %v1632 = vpack.c.b16 %v1552, %v1551
  %v1633 = vpack.c.b16 %v1554, %v1553
  %v1634 = vpack.c.b16 %v1556, %v1555
  %v1635 = vpack.c.b16 %v1558, %v1557
  %v1636 = vpack.c.b16 %v1560, %v1559
  %v1637 = vpack.c.b16 %v1562, %v1561
  %v1638 = vpack.c.b16 %v1564, %v1563
  %v1639 = vpack.c.b16 %v1566, %v1565
  %v1640 = vpack.c.b16 %v1568, %v1567
  %v1641 = vpack.c.b16 %v1570, %v1569
  %v1642 = vpack.c.b16 %v1572, %v1571
  %v1643 = vpack.c.b16 %v1574, %v1573
  %v1644 = vpack.c.b16 %v1576, %v1575
  %v1645 = vpack.c.b16 %v1578, %v1577
  %v1646 = vpack.c.b16 %v1580, %v1579
  %v1647 = vpack.c.b16 %v1582, %v1581
  %v1648 = vpack.c.b16 %v1584, %v1583
  %v1649 = vpack.c.b16 %v1586, %v1585
  %v1650 = vpack.c.b16 %v1588, %v1587
  %v1651 = vpack.c.b16 %v1590, %v1589
  %v1652 = vpack.c.b16 %v1592, %v1591
  %v1653 = vpack.c.b16 %v1594, %v1593
  %v1654 = vpack.c.b16 %v1596, %v1595
  %v1655 = vpack.c.b16 %v1598, %v1597
  %v1656 = vpack.c.b16 %v1600, %v1599
  %v1657 = vpack.c.b16 %v1602, %v1601
  %v1658 = vpack.c.b16 %v1604, %v1603
  %v1659 = vpack.c.b16 %v1606, %v1605
  %v1660 = vpack.c.b16 %v1608, %v1607
  %v1661 = vpack.c.b16 %v1610, %v1609
  %v1662 = vpack.c.b16 %v1612, %v1611
  %1713 = vmatprep.subr.bf16.mxu0 0
  %1714 = vmatpush1.bf16.msra.mxu0 %v1613
  %1715 = vmatprep.subr.bf16.mxu0 0
  %1716 = vmatpush1.bf16.msra.mxu0 %v1614
  %1717 = vmatprep.subr.bf16.mxu0 0
  %1718 = vmatpush1.bf16.msra.mxu0 %v1615
  %1719 = vmatprep.subr.bf16.mxu0 0
  %1720 = vmatpush1.bf16.msra.mxu0 %v1616
  %1721 = vmatprep.subr.bf16.mxu0 0
  %1722 = vmatpush1.bf16.msra.mxu0 %v1617
  %1723 = vmatprep.subr.bf16.mxu0 0
  %1724 = vmatpush1.bf16.msra.mxu0 %v1618
  %1725 = vmatprep.subr.bf16.mxu0 0
  %1726 = vmatpush1.bf16.msra.mxu0 %v1619
  %1727 = vmatprep.subr.bf16.mxu0 0
  %1728 = vmatpush1.bf16.msra.mxu0 %v1620
  %1729 = vmatprep.subr.bf16.mxu0 0
  %1730 = vmatpush1.bf16.msra.mxu0 %v1621
  %1731 = vmatprep.subr.bf16.mxu0 0
  %1732 = vmatpush1.bf16.msra.mxu0 %v1622
  %1733 = vmatprep.subr.bf16.mxu0 0
  %1734 = vmatpush1.bf16.msra.mxu0 %v1623
  %1735 = vmatprep.subr.bf16.mxu0 0
  %1736 = vmatpush1.bf16.msra.mxu0 %v1624
  %1737 = vmatprep.subr.bf16.mxu0 0
  %1738 = vmatpush1.bf16.msra.mxu0 %v1625
  %1739 = vmatprep.subr.bf16.mxu0 0
  %1740 = vmatpush1.bf16.msra.mxu0 %v1626
  %1741 = vmatprep.subr.bf16.mxu0 0
  %1742 = vmatpush1.bf16.msra.mxu0 %v1627
  %1743 = vmatprep.subr.bf16.mxu0 0
  %1744 = vmatpush1.bf16.msra.mxu0 %v1628
  %1745 = vmatprep.mubr.bf16.mxu0 %v185
  %1746 = vmatmul.mubr.bf16.gmra.mrb[0].mxu0 %v184
  %v1747 = vpop.f32.mrb[0].mxu0
  %v1748 = vadd.f32 0.0, %v1747
  %v1749 = vpop.f32.mrb[0].mxu0
  %v1750 = vpop.f32.mrb[0].mxu0
  %v1751 = vadd.f32 0.0, %v1750
  %v1752 = vpop.f32.mrb[0].mxu0
  %1753 = vmatprep.mubr.bf16.mxu0 %v192
  %1754 = vmatmul.mubr.bf16.gmra.mrb[0].mxu0 %v191
  %v1755 = vpop.f32.mrb[0].mxu0
  %v1756 = vadd.f32 0.0, %v1755
  %v1757 = vpop.f32.mrb[0].mxu0
  %v1758 = vpop.f32.mrb[0].mxu0
  %v1759 = vadd.f32 0.0, %v1758
  %v1760 = vpop.f32.mrb[0].mxu0
  %1761 = vdwg.mxu0
  %1762 = vmatprep.subr.bf16.mxu0 0
  %1763 = vmatpush1.bf16.msra.mxu0 %v1629
  %1764 = vmatprep.subr.bf16.mxu0 0
  %1765 = vmatpush1.bf16.msra.mxu0 %v1630
  %1766 = vmatprep.subr.bf16.mxu0 0
  %1767 = vmatpush1.bf16.msra.mxu0 %v1631
  %1768 = vmatprep.subr.bf16.mxu0 0
  %1769 = vmatpush1.bf16.msra.mxu0 %v1632
  %1770 = vmatprep.subr.bf16.mxu0 0
  %1771 = vmatpush1.bf16.msra.mxu0 %v1633
  %1772 = vmatprep.subr.bf16.mxu0 0
  %1773 = vmatpush1.bf16.msra.mxu0 %v1634
  %1774 = vmatprep.subr.bf16.mxu0 0
  %1775 = vmatpush1.bf16.msra.mxu0 %v1635
  %1776 = vmatprep.subr.bf16.mxu0 0
  %1777 = vmatpush1.bf16.msra.mxu0 %v1636
  %1778 = vmatprep.subr.bf16.mxu0 0
  %1779 = vmatpush1.bf16.msra.mxu0 %v1637
  %1780 = vmatprep.subr.bf16.mxu0 0
  %1781 = vmatpush1.bf16.msra.mxu0 %v1638
  %1782 = vmatprep.subr.bf16.mxu0 0
  %1783 = vmatpush1.bf16.msra.mxu0 %v1639
  %1784 = vmatprep.subr.bf16.mxu0 0
  %1785 = vmatpush1.bf16.msra.mxu0 %v1640
  %1786 = vmatprep.subr.bf16.mxu0 0
  %1787 = vmatpush1.bf16.msra.mxu0 %v1641
  %1788 = vmatprep.subr.bf16.mxu0 0
  %1789 = vmatpush1.bf16.msra.mxu0 %v1642
  %1790 = vmatprep.subr.bf16.mxu0 0
  %1791 = vmatpush1.bf16.msra.mxu0 %v1643
  %1792 = vmatprep.subr.bf16.mxu0 0
  %1793 = vmatpush1.bf16.msra.mxu0 %v1644
  %1794 = vmatprep.mubr.bf16.mxu0 %v187
  %1795 = vmatmul.mubr.bf16.gmra.mrb[0].mxu0 %v186
  %v1796 = vpop.f32.mrb[0].mxu0
  %v1797 = vadd.f32 %v1748, %v1796
  %v1798 = vpop.f32.mrb[0].mxu0
  %v1799 = vpop.f32.mrb[0].mxu0
  %v1800 = vadd.f32 %v1751, %v1799
  %v1801 = vpop.f32.mrb[0].mxu0
  %1802 = vmatprep.mubr.bf16.mxu0 %v194
  %1803 = vmatmul.mubr.bf16.gmra.mrb[0].mxu0 %v193
  %v1804 = vpop.f32.mrb[0].mxu0
  %v1805 = vadd.f32 %v1756, %v1804
  %v1806 = vpop.f32.mrb[0].mxu0
  %v1807 = vpop.f32.mrb[0].mxu0
  %v1808 = vadd.f32 %v1759, %v1807
  %v1809 = vpop.f32.mrb[0].mxu0
  %1810 = vdwg.mxu0
  %1811 = vmatprep.subr.bf16.mxu0 0
  %1812 = vmatpush1.bf16.msra.mxu0 %v1645
  %1813 = vmatprep.subr.bf16.mxu0 0
  %1814 = vmatpush1.bf16.msra.mxu0 %v1646
  %1815 = vmatprep.subr.bf16.mxu0 0
  %1816 = vmatpush1.bf16.msra.mxu0 %v1647
  %1817 = vmatprep.subr.bf16.mxu0 0
  %1818 = vmatpush1.bf16.msra.mxu0 %v1648
  %1819 = vmatprep.subr.bf16.mxu0 0
  %1820 = vmatpush1.bf16.msra.mxu0 %v1649
  %1821 = vmatprep.subr.bf16.mxu0 0
  %1822 = vmatpush1.bf16.msra.mxu0 %v1650
  %1823 = vmatprep.subr.bf16.mxu0 0
  %1824 = vmatpush1.bf16.msra.mxu0 %v1651
  %1825 = vmatprep.subr.bf16.mxu0 0
  %1826 = vmatpush1.bf16.msra.mxu0 %v1652
  %1827 = vmatprep.subr.bf16.mxu0 0
  %1828 = vmatpush1.bf16.msra.mxu0 %v1653
  %1829 = vmatprep.subr.bf16.mxu0 0
  %1830 = vmatpush1.bf16.msra.mxu0 %v1654
  %1831 = vmatprep.subr.bf16.mxu0 0
  %1832 = vmatpush1.bf16.msra.mxu0 %v1655
  %1833 = vmatprep.subr.bf16.mxu0 0
  %1834 = vmatpush1.bf16.msra.mxu0 %v1656
  %1835 = vmatprep.subr.bf16.mxu0 0
  %1836 = vmatpush1.bf16.msra.mxu0 %v1657
  %1837 = vmatprep.subr.bf16.mxu0 0
  %1838 = vmatpush1.bf16.msra.mxu0 %v1658
  %1839 = vmatprep.subr.bf16.mxu0 0
  %1840 = vmatpush1.bf16.msra.mxu0 %v1659
  %1841 = vmatprep.subr.bf16.mxu0 0
  %1842 = vmatpush1.bf16.msra.mxu0 %v1660
  %1843 = vmatprep.mubr.bf16.mxu0 %v189
  %1844 = vmatmul.mubr.bf16.gmra.mrb[0].mxu0 %v188
  %v1845 = vpop.f32.mrb[0].mxu0
  %v1846 = vadd.f32 %v1797, %v1845
  %v1847 = vpop.f32.mrb[0].mxu0
  %v1848 = vpop.f32.mrb[0].mxu0
  %v1849 = vadd.f32 %v1800, %v1848
  %v1850 = vpop.f32.mrb[0].mxu0
  %1851 = vmatprep.mubr.bf16.mxu0 %v196
  %1852 = vmatmul.mubr.bf16.gmra.mrb[0].mxu0 %v195
  %v1853 = vpop.f32.mrb[0].mxu0
  %v1854 = vadd.f32 %v1805, %v1853
  %v1855 = vpop.f32.mrb[0].mxu0
  %v1856 = vpop.f32.mrb[0].mxu0
  %v1857 = vadd.f32 %v1808, %v1856
  %v1858 = vpop.f32.mrb[0].mxu0
  %1859 = vdwg.mxu0
  %1860 = vmatprep.subr.bf16.mxu0 0
  %1861 = vmatpush1.bf16.msra.mxu0 %v1661
  %1862 = vmatprep.subr.bf16.mxu0 0
  %1863 = vmatpush1.bf16.msra.mxu0 %v1662
  %1864 = vmatprep.subr.bf16.mxu0 0
  %1865 = vmatpush1.bf16.msra.mxu0 0
  %1866 = vmatprep.subr.bf16.mxu0 0
  %1867 = vmatpush1.bf16.msra.mxu0 0
  %1868 = vmatprep.subr.bf16.mxu0 0
  %1869 = vmatpush1.bf16.msra.mxu0 0
  %1870 = vmatprep.subr.bf16.mxu0 0
  %1871 = vmatpush1.bf16.msra.mxu0 0
  %1872 = vmatprep.subr.bf16.mxu0 0
  %1873 = vmatpush1.bf16.msra.mxu0 0
  %1874 = vmatprep.subr.bf16.mxu0 0
  %1875 = vmatpush1.bf16.msra.mxu0 0
  %1876 = vmatprep.subr.bf16.mxu0 0
  %1877 = vmatpush1.bf16.msra.mxu0 0
  %1878 = vmatprep.subr.bf16.mxu0 0
  %1879 = vmatpush1.bf16.msra.mxu0 0
  %1880 = vmatprep.subr.bf16.mxu0 0
  %1881 = vmatpush1.bf16.msra.mxu0 0
  %1882 = vmatprep.subr.bf16.mxu0 0
  %1883 = vmatpush1.bf16.msra.mxu0 0
  %1884 = vmatprep.subr.bf16.mxu0 0
  %1885 = vmatpush1.bf16.msra.mxu0 0
  %1886 = vmatprep.subr.bf16.mxu0 0
  %1887 = vmatpush1.bf16.msra.mxu0 0
  %1888 = vmatprep.subr.bf16.mxu0 0
  %1889 = vmatpush1.bf16.msra.mxu0 0
  %1890 = vmatprep.subr.bf16.mxu0 0
  %1891 = vmatpush1.bf16.msra.mxu0 0
  %1892 = vmatprep.mubr.bf16.mxu0 0
  %1893 = vmatmul.mubr.bf16.gmra.mrb[0].mxu0 %v512
  %v1894 = vpop.f32.mrb[0].mxu0
  %v1895 = vadd.f32 %v1846, %v1894
  %v1896 = vpop.f32.mrb[0].mxu0
  %v1897 = vpop.f32.mrb[0].mxu0
  %v1898 = vadd.f32 %v1849, %v1897
  %v1899 = vpop.f32.mrb[0].mxu0
  %1900 = vmatprep.mubr.bf16.mxu0 0
  %1901 = vmatmul.mubr.bf16.gmra.mrb[0].mxu0 %v515
  %v1902 = vpop.f32.mrb[0].mxu0
  %v1903 = vadd.f32 %v1854, %v1902
  %v1904 = vpop.f32.mrb[0].mxu0
  %v1905 = vpop.f32.mrb[0].mxu0
  %v1906 = vadd.f32 %v1857, %v1905
  %v1907 = vpop.f32.mrb[0].mxu0
  %1908 = vdwg.mxu0
  %v1909 = vmax.f32 %v1309, %v1895
  %v1910 = vmax.f32 %v1310, %v1898
  %v1911 = vmax.f32 %v1311, %v1903
  %v1912 = vmax.f32 %v1312, %v1906
  %v1913 = vld [vmem:[%s5] sm:$0xf]
  %v1914 = vld [vmem:[%s5 + $0x4] sm:$0xf]
  %v1915 = vld [vmem:[%s5 + $0x8] sm:$0xf]
  %v1916 = vld [vmem:[%s5 + $0xc] sm:$0xf]
  %v1917 = vld [vmem:[%s5 + $0x10] sm:$0xf]
  %v1918 = vld [vmem:[%s5 + $0x14] sm:$0xf]
  %v1919 = vld [vmem:[%s5 + $0x18] sm:$0xf]
  %v1920 = vld [vmem:[%s5 + $0x1c] sm:$0xf]
  %v1921 = vld [vmem:[%s5 + $0x20] sm:$0xf]
  %v1922 = vld [vmem:[%s5 + $0x24] sm:$0xf]
  %v1923 = vld [vmem:[%s5 + $0x28] sm:$0xf]
  %v1924 = vld [vmem:[%s5 + $0x2c] sm:$0xf]
  %v1925 = vld [vmem:[%s5 + $0x30] sm:$0xf]
  %v1926 = vld [vmem:[%s5 + $0x34] sm:$0xf]
  %v1927 = vld [vmem:[%s5 + $0x38] sm:$0xf]
  %v1928 = vld [vmem:[%s5 + $0x3c] sm:$0xf]
  %v1929 = vld [vmem:[%s5 + $0x40] sm:$0xf]
  %v1930 = vld [vmem:[%s5 + $0x44] sm:$0xf]
  %v1931 = vld [vmem:[%s5 + $0x48] sm:$0xf]
  %v1932 = vld [vmem:[%s5 + $0x4c] sm:$0xf]
  %v1933 = vld [vmem:[%s5 + $0x50] sm:$0xf]
  %v1934 = vld [vmem:[%s5 + $0x54] sm:$0xf]
  %v1935 = vld [vmem:[%s5 + $0x58] sm:$0xf]
  %v1936 = vld [vmem:[%s5 + $0x5c] sm:$0xf]
  %v1937 = vld [vmem:[%s5 + $0x60] sm:$0xf]
  %v1938 = vld [vmem:[%s5 + $0x64] sm:$0xf]
  %v1939 = vld [vmem:[%s5 + $0x68] sm:$0xf]
  %v1940 = vld [vmem:[%s5 + $0x6c] sm:$0xf]
  %v1941 = vld [vmem:[%s5 + $0x70] sm:$0xf]
  %v1942 = vld [vmem:[%s5 + $0x74] sm:$0xf]
  %v1943 = vld [vmem:[%s5 + $0x78] sm:$0xf]
  %v1944 = vld [vmem:[%s5 + $0x7c] sm:$0xf]
  %v1945 = vld [vmem:[%s5 + $0x80] sm:$0xf]
  %v1946 = vld [vmem:[%s5 + $0x84] sm:$0xf]
  %v1947 = vld [vmem:[%s5 + $0x88] sm:$0xf]
  %v1948 = vld [vmem:[%s5 + $0x8c] sm:$0xf]
  %v1949 = vld [vmem:[%s5 + $0x90] sm:$0xf]
  %v1950 = vld [vmem:[%s5 + $0x94] sm:$0xf]
  %v1951 = vld [vmem:[%s5 + $0x98] sm:$0xf]
  %v1952 = vld [vmem:[%s5 + $0x9c] sm:$0xf]
  %v1953 = vld [vmem:[%s5 + $0xa0] sm:$0xf]
  %v1954 = vld [vmem:[%s5 + $0xa4] sm:$0xf]
  %v1955 = vld [vmem:[%s5 + $0xa8] sm:$0xf]
  %v1956 = vld [vmem:[%s5 + $0xac] sm:$0xf]
  %v1957 = vld [vmem:[%s5 + $0xb0] sm:$0xf]
  %v1958 = vld [vmem:[%s5 + $0xb4] sm:$0xf]
  %v1959 = vld [vmem:[%s5 + $0xb8] sm:$0xf]
  %v1960 = vld [vmem:[%s5 + $0xbc] sm:$0xf]
  %v1961 = vld [vmem:[%s5 + $0xc0] sm:$0xf]
  %v1962 = vld [vmem:[%s5 + $0xc4] sm:$0xf]
  %v1963 = vld [vmem:[%s5 + $0xc8] sm:$0xf]
  %v1964 = vld [vmem:[%s5 + $0xcc] sm:$0xf]
  %v1965 = vld [vmem:[%s5 + $0xd0] sm:$0xf]
  %v1966 = vld [vmem:[%s5 + $0xd4] sm:$0xf]
  %v1967 = vld [vmem:[%s5 + $0xd8] sm:$0xf]
  %v1968 = vld [vmem:[%s5 + $0xdc] sm:$0xf]
  %v1969 = vld [vmem:[%s5 + $0xe0] sm:$0xf]
  %v1970 = vld [vmem:[%s5 + $0xe4] sm:$0xf]
  %v1971 = vld [vmem:[%s5 + $0xe8] sm:$0xf]
  %v1972 = vld [vmem:[%s5 + $0xec] sm:$0xf]
  %v1973 = vld [vmem:[%s5 + $0xf0] sm:$0xf]
  %v1974 = vld [vmem:[%s5 + $0xf4] sm:$0xf]
  %v1975 = vld [vmem:[%s5 + $0xf8] sm:$0xf]
  %v1976 = vld [vmem:[%s5 + $0xfc] sm:$0xf]
  %v1977 = vld [vmem:[%s5 + $0x100] sm:$0xf]
  %v1978 = vld [vmem:[%s5 + $0x104] sm:$0xf]
  %v1979 = vld [vmem:[%s5 + $0x108] sm:$0xf]
  %v1980 = vld [vmem:[%s5 + $0x10c] sm:$0xf]
  %v1981 = vld [vmem:[%s5 + $0x110] sm:$0xf]
  %v1982 = vld [vmem:[%s5 + $0x114] sm:$0xf]
  %v1983 = vld [vmem:[%s5 + $0x118] sm:$0xf]
  %v1984 = vld [vmem:[%s5 + $0x11c] sm:$0xf]
  %v1985 = vld [vmem:[%s5 + $0x120] sm:$0xf]
  %v1986 = vld [vmem:[%s5 + $0x124] sm:$0xf]
  %v1987 = vld [vmem:[%s5 + $0x128] sm:$0xf]
  %v1988 = vld [vmem:[%s5 + $0x12c] sm:$0xf]
  %v1989 = vld [vmem:[%s5 + $0x130] sm:$0xf]
  %v1990 = vld [vmem:[%s5 + $0x134] sm:$0xf]
  %v1991 = vld [vmem:[%s5 + $0x138] sm:$0xf]
  %v1992 = vld [vmem:[%s5 + $0x13c] sm:$0xf]
  %v1993 = vld [vmem:[%s5 + $0x140] sm:$0xf]
  %v1994 = vld [vmem:[%s5 + $0x144] sm:$0xf]
  %v1995 = vld [vmem:[%s5 + $0x148] sm:$0xf]
  %v1996 = vld [vmem:[%s5 + $0x14c] sm:$0xf]
  %v1997 = vld [vmem:[%s5 + $0x150] sm:$0xf]
  %v1998 = vld [vmem:[%s5 + $0x154] sm:$0xf]
  %v1999 = vld [vmem:[%s5 + $0x158] sm:$0xf]
  %v2000 = vld [vmem:[%s5 + $0x15c] sm:$0xf]
  %v2001 = vld [vmem:[%s5 + $0x160] sm:$0xf]
  %v2002 = vld [vmem:[%s5 + $0x164] sm:$0xf]
  %v2003 = vld [vmem:[%s5 + $0x168] sm:$0xf]
  %v2004 = vld [vmem:[%s5 + $0x16c] sm:$0xf]
  %v2005 = vld [vmem:[%s5 + $0x170] sm:$0xf]
  %v2006 = vld [vmem:[%s5 + $0x174] sm:$0xf]
  %v2007 = vld [vmem:[%s5 + $0x178] sm:$0xf]
  %v2008 = vld [vmem:[%s5 + $0x17c] sm:$0xf]
  %v2009 = vld [vmem:[%s5 + $0x180] sm:$0xf]
  %v2010 = vld [vmem:[%s5 + $0x184] sm:$0xf]
  %v2011 = vld [vmem:[%s5 + $0x188] sm:$0xf]
  %v2012 = vld [vmem:[%s5 + $0x18c] sm:$0xf]
  %v2113 = vunpack.c.l.b16 %v1913
  %v2114 = vunpack.c.l.b16 %v1914
  %v2115 = vunpack.c.l.b16 %v1915
  %v2116 = vunpack.c.l.b16 %v1916
  %v2117 = vunpack.c.l.b16 %v1917
  %v2118 = vunpack.c.l.b16 %v1918
  %v2119 = vunpack.c.l.b16 %v1919
  %v2120 = vunpack.c.l.b16 %v1920
  %v2121 = vunpack.c.l.b16 %v1921
  %v2122 = vunpack.c.l.b16 %v1922
  %v2123 = vunpack.c.l.b16 %v1923
  %v2124 = vunpack.c.l.b16 %v1924
  %v2125 = vunpack.c.l.b16 %v1925
  %v2126 = vunpack.c.l.b16 %v1926
  %v2127 = vunpack.c.l.b16 %v1927
  %v2128 = vunpack.c.l.b16 %v1928
  %v2129 = vunpack.c.l.b16 %v1929
  %v2130 = vunpack.c.l.b16 %v1930
  %v2131 = vunpack.c.l.b16 %v1931
  %v2132 = vunpack.c.l.b16 %v1932
  %v2133 = vunpack.c.l.b16 %v1933
  %v2134 = vunpack.c.l.b16 %v1934
  %v2135 = vunpack.c.l.b16 %v1935
  %v2136 = vunpack.c.l.b16 %v1936
  %v2137 = vunpack.c.l.b16 %v1937
  %v2138 = vunpack.c.l.b16 %v1938
  %v2139 = vunpack.c.l.b16 %v1939
  %v2140 = vunpack.c.l.b16 %v1940
  %v2141 = vunpack.c.l.b16 %v1941
  %v2142 = vunpack.c.l.b16 %v1942
  %v2143 = vunpack.c.l.b16 %v1943
  %v2144 = vunpack.c.l.b16 %v1944
  %v2145 = vunpack.c.l.b16 %v1945
  %v2146 = vunpack.c.l.b16 %v1946
  %v2147 = vunpack.c.l.b16 %v1947
  %v2148 = vunpack.c.l.b16 %v1948
  %v2149 = vunpack.c.l.b16 %v1949
  %v2150 = vunpack.c.l.b16 %v1950
  %v2151 = vunpack.c.l.b16 %v1951
  %v2152 = vunpack.c.l.b16 %v1952
  %v2153 = vunpack.c.l.b16 %v1953
  %v2154 = vunpack.c.l.b16 %v1954
  %v2155 = vunpack.c.l.b16 %v1955
  %v2156 = vunpack.c.l.b16 %v1956
  %v2157 = vunpack.c.l.b16 %v1957
  %v2158 = vunpack.c.l.b16 %v1958
  %v2159 = vunpack.c.l.b16 %v1959
  %v2160 = vunpack.c.l.b16 %v1960
  %v2161 = vunpack.c.l.b16 %v1961
  %v2162 = vunpack.c.l.b16 %v1962
  %v2163 = vunpack.c.l.b16 %v1963
  %v2164 = vunpack.c.l.b16 %v1964
  %v2165 = vunpack.c.l.b16 %v1965
  %v2166 = vunpack.c.l.b16 %v1966
  %v2167 = vunpack.c.l.b16 %v1967
  %v2168 = vunpack.c.l.b16 %v1968
  %v2169 = vunpack.c.l.b16 %v1969
  %v2170 = vunpack.c.l.b16 %v1970
  %v2171 = vunpack.c.l.b16 %v1971
  %v2172 = vunpack.c.l.b16 %v1972
  %v2173 = vunpack.c.l.b16 %v1973
  %v2174 = vunpack.c.l.b16 %v1974
  %v2175 = vunpack.c.l.b16 %v1975
  %v2176 = vunpack.c.l.b16 %v1976
  %v2177 = vunpack.c.l.b16 %v1977
  %v2178 = vunpack.c.l.b16 %v1978
  %v2179 = vunpack.c.l.b16 %v1979
  %v2180 = vunpack.c.l.b16 %v1980
  %v2181 = vunpack.c.l.b16 %v1981
  %v2182 = vunpack.c.l.b16 %v1982
  %v2183 = vunpack.c.l.b16 %v1983
  %v2184 = vunpack.c.l.b16 %v1984
  %v2185 = vunpack.c.l.b16 %v1985
  %v2186 = vunpack.c.l.b16 %v1986
  %v2187 = vunpack.c.l.b16 %v1987
  %v2188 = vunpack.c.l.b16 %v1988
  %v2189 = vunpack.c.l.b16 %v1989
  %v2190 = vunpack.c.l.b16 %v1990
  %v2191 = vunpack.c.l.b16 %v1991
  %v2192 = vunpack.c.l.b16 %v1992
  %v2193 = vunpack.c.l.b16 %v1993
  %v2194 = vunpack.c.l.b16 %v1994
  %v2195 = vunpack.c.l.b16 %v1995
  %v2196 = vunpack.c.l.b16 %v1996
  %v2197 = vunpack.c.l.b16 %v1997
  %v2198 = vunpack.c.l.b16 %v1998
  %v2199 = vunpack.c.l.b16 %v1999
  %v2200 = vunpack.c.l.b16 %v2000
  %v2201 = vunpack.c.l.b16 %v2001
  %v2202 = vunpack.c.l.b16 %v2002
  %v2203 = vunpack.c.l.b16 %v2003
  %v2204 = vunpack.c.l.b16 %v2004
  %v2205 = vunpack.c.l.b16 %v2005
  %v2206 = vunpack.c.l.b16 %v2006
  %v2207 = vunpack.c.l.b16 %v2007
  %v2208 = vunpack.c.l.b16 %v2008
  %v2209 = vunpack.c.l.b16 %v2009
  %v2210 = vunpack.c.l.b16 %v2010
  %v2211 = vunpack.c.l.b16 %v2011
  %v2212 = vunpack.c.l.b16 %v2012
  %v2213 = vpack.c.b16 %v2114, %v2113
  %v2214 = vpack.c.b16 %v2116, %v2115
  %v2215 = vpack.c.b16 %v2118, %v2117
  %v2216 = vpack.c.b16 %v2120, %v2119
  %v2217 = vpack.c.b16 %v2122, %v2121
  %v2218 = vpack.c.b16 %v2124, %v2123
  %v2219 = vpack.c.b16 %v2126, %v2125
  %v2220 = vpack.c.b16 %v2128, %v2127
  %v2221 = vpack.c.b16 %v2130, %v2129
  %v2222 = vpack.c.b16 %v2132, %v2131
  %v2223 = vpack.c.b16 %v2134, %v2133
  %v2224 = vpack.c.b16 %v2136, %v2135
  %v2225 = vpack.c.b16 %v2138, %v2137
  %v2226 = vpack.c.b16 %v2140, %v2139
  %v2227 = vpack.c.b16 %v2142, %v2141
  %v2228 = vpack.c.b16 %v2144, %v2143
  %v2229 = vpack.c.b16 %v2146, %v2145
  %v2230 = vpack.c.b16 %v2148, %v2147
  %v2231 = vpack.c.b16 %v2150, %v2149
  %v2232 = vpack.c.b16 %v2152, %v2151
  %v2233 = vpack.c.b16 %v2154, %v2153
  %v2234 = vpack.c.b16 %v2156, %v2155
  %v2235 = vpack.c.b16 %v2158, %v2157
  %v2236 = vpack.c.b16 %v2160, %v2159
  %v2237 = vpack.c.b16 %v2162, %v2161
  %v2238 = vpack.c.b16 %v2164, %v2163
  %v2239 = vpack.c.b16 %v2166, %v2165
  %v2240 = vpack.c.b16 %v2168, %v2167
  %v2241 = vpack.c.b16 %v2170, %v2169
  %v2242 = vpack.c.b16 %v2172, %v2171
  %v2243 = vpack.c.b16 %v2174, %v2173
  %v2244 = vpack.c.b16 %v2176, %v2175
  %v2245 = vpack.c.b16 %v2178, %v2177
  %v2246 = vpack.c.b16 %v2180, %v2179
  %v2247 = vpack.c.b16 %v2182, %v2181
  %v2248 = vpack.c.b16 %v2184, %v2183
  %v2249 = vpack.c.b16 %v2186, %v2185
  %v2250 = vpack.c.b16 %v2188, %v2187
  %v2251 = vpack.c.b16 %v2190, %v2189
  %v2252 = vpack.c.b16 %v2192, %v2191
  %v2253 = vpack.c.b16 %v2194, %v2193
  %v2254 = vpack.c.b16 %v2196, %v2195
  %v2255 = vpack.c.b16 %v2198, %v2197
  %v2256 = vpack.c.b16 %v2200, %v2199
  %v2257 = vpack.c.b16 %v2202, %v2201
  %v2258 = vpack.c.b16 %v2204, %v2203
  %v2259 = vpack.c.b16 %v2206, %v2205
  %v2260 = vpack.c.b16 %v2208, %v2207
  %v2261 = vpack.c.b16 %v2210, %v2209
  %v2262 = vpack.c.b16 %v2212, %v2211
  %2313 = vmatprep.subr.bf16.mxu0 0
  %2314 = vmatpush1.bf16.msra.mxu0 %v2213
  %2315 = vmatprep.subr.bf16.mxu0 0
  %2316 = vmatpush1.bf16.msra.mxu0 %v2214
  %2317 = vmatprep.subr.bf16.mxu0 0
  %2318 = vmatpush1.bf16.msra.mxu0 %v2215
  %2319 = vmatprep.subr.bf16.mxu0 0
  %2320 = vmatpush1.bf16.msra.mxu0 %v2216
  %2321 = vmatprep.subr.bf16.mxu0 0
  %2322 = vmatpush1.bf16.msra.mxu0 %v2217
  %2323 = vmatprep.subr.bf16.mxu0 0
  %2324 = vmatpush1.bf16.msra.mxu0 %v2218
  %2325 = vmatprep.subr.bf16.mxu0 0
  %2326 = vmatpush1.bf16.msra.mxu0 %v2219
  %2327 = vmatprep.subr.bf16.mxu0 0
  %2328 = vmatpush1.bf16.msra.mxu0 %v2220
  %2329 = vmatprep.subr.bf16.mxu0 0
  %2330 = vmatpush1.bf16.msra.mxu0 %v2221
  %2331 = vmatprep.subr.bf16.mxu0 0
  %2332 = vmatpush1.bf16.msra.mxu0 %v2222
  %2333 = vmatprep.subr.bf16.mxu0 0
  %2334 = vmatpush1.bf16.msra.mxu0 %v2223
  %2335 = vmatprep.subr.bf16.mxu0 0
  %2336 = vmatpush1.bf16.msra.mxu0 %v2224
  %2337 = vmatprep.subr.bf16.mxu0 0
  %2338 = vmatpush1.bf16.msra.mxu0 %v2225
  %2339 = vmatprep.subr.bf16.mxu0 0
  %2340 = vmatpush1.bf16.msra.mxu0 %v2226
  %2341 = vmatprep.subr.bf16.mxu0 0
  %2342 = vmatpush1.bf16.msra.mxu0 %v2227
  %2343 = vmatprep.subr.bf16.mxu0 0
  %2344 = vmatpush1.bf16.msra.mxu0 %v2228
  %2345 = vmatprep.mubr.bf16.mxu0 %v185
  %2346 = vmatmul.mubr.bf16.gmra.mrb[0].mxu0 %v184
  %v2347 = vpop.f32.mrb[0].mxu0
  %v2348 = vadd.f32 0.0, %v2347
  %v2349 = vpop.f32.mrb[0].mxu0
  %v2350 = vpop.f32.mrb[0].mxu0
  %v2351 = vadd.f32 0.0, %v2350
  %v2352 = vpop.f32.mrb[0].mxu0
  %2353 = vmatprep.mubr.bf16.mxu0 %v192
  %2354 = vmatmul.mubr.bf16.gmra.mrb[0].mxu0 %v191
  %v2355 = vpop.f32.mrb[0].mxu0
  %v2356 = vadd.f32 0.0, %v2355
  %v2357 = vpop.f32.mrb[0].mxu0
  %v2358 = vpop.f32.mrb[0].mxu0
  %v2359 = vadd.f32 0.0, %v2358
  %v2360 = vpop.f32.mrb[0].mxu0
  %2361 = vdwg.mxu0
  %2362 = vmatprep.subr.bf16.mxu0 0
  %2363 = vmatpush1.bf16.msra.mxu0 %v2229
  %2364 = vmatprep.subr.bf16.mxu0 0
  %2365 = vmatpush1.bf16.msra.mxu0 %v2230
  %2366 = vmatprep.subr.bf16.mxu0 0
  %2367 = vmatpush1.bf16.msra.mxu0 %v2231
  %2368 = vmatprep.subr.bf16.mxu0 0
  %2369 = vmatpush1.bf16.msra.mxu0 %v2232
  %2370 = vmatprep.subr.bf16.mxu0 0
  %2371 = vmatpush1.bf16.msra.mxu0 %v2233
  %2372 = vmatprep.subr.bf16.mxu0 0
  %2373 = vmatpush1.bf16.msra.mxu0 %v2234
  %2374 = vmatprep.subr.bf16.mxu0 0
  %2375 = vmatpush1.bf16.msra.mxu0 %v2235
  %2376 = vmatprep.subr.bf16.mxu0 0
  %2377 = vmatpush1.bf16.msra.mxu0 %v2236
  %2378 = vmatprep.subr.bf16.mxu0 0
  %2379 = vmatpush1.bf16.msra.mxu0 %v2237
  %2380 = vmatprep.subr.bf16.mxu0 0
  %2381 = vmatpush1.bf16.msra.mxu0 %v2238
  %2382 = vmatprep.subr.bf16.mxu0 0
  %2383 = vmatpush1.bf16.msra.mxu0 %v2239
  %2384 = vmatprep.subr.bf16.mxu0 0
  %2385 = vmatpush1.bf16.msra.mxu0 %v2240
  %2386 = vmatprep.subr.bf16.mxu0 0
  %2387 = vmatpush1.bf16.msra.mxu0 %v2241
  %2388 = vmatprep.subr.bf16.mxu0 0
  %2389 = vmatpush1.bf16.msra.mxu0 %v2242
  %2390 = vmatprep.subr.bf16.mxu0 0
  %2391 = vmatpush1.bf16.msra.mxu0 %v2243
  %2392 = vmatprep.subr.bf16.mxu0 0
  %2393 = vmatpush1.bf16.msra.mxu0 %v2244
  %2394 = vmatprep.mubr.bf16.mxu0 %v187
  %2395 = vmatmul.mubr.bf16.gmra.mrb[0].mxu0 %v186
  %v2396 = vpop.f32.mrb[0].mxu0
  %v2397 = vadd.f32 %v2348, %v2396
  %v2398 = vpop.f32.mrb[0].mxu0
  %v2399 = vpop.f32.mrb[0].mxu0
  %v2400 = vadd.f32 %v2351, %v2399
  %v2401 = vpop.f32.mrb[0].mxu0
  %2402 = vmatprep.mubr.bf16.mxu0 %v194
  %2403 = vmatmul.mubr.bf16.gmra.mrb[0].mxu0 %v193
  %v2404 = vpop.f32.mrb[0].mxu0
  %v2405 = vadd.f32 %v2356, %v2404
  %v2406 = vpop.f32.mrb[0].mxu0
  %v2407 = vpop.f32.mrb[0].mxu0
  %v2408 = vadd.f32 %v2359, %v2407
  %v2409 = vpop.f32.mrb[0].mxu0
  %2410 = vdwg.mxu0
  %2411 = vmatprep.subr.bf16.mxu0 0
  %2412 = vmatpush1.bf16.msra.mxu0 %v2245
  %2413 = vmatprep.subr.bf16.mxu0 0
  %2414 = vmatpush1.bf16.msra.mxu0 %v2246
  %2415 = vmatprep.subr.bf16.mxu0 0
  %2416 = vmatpush1.bf16.msra.mxu0 %v2247
  %2417 = vmatprep.subr.bf16.mxu0 0
  %2418 = vmatpush1.bf16.msra.mxu0 %v2248
  %2419 = vmatprep.subr.bf16.mxu0 0
  %2420 = vmatpush1.bf16.msra.mxu0 %v2249
  %2421 = vmatprep.subr.bf16.mxu0 0
  %2422 = vmatpush1.bf16.msra.mxu0 %v2250
  %2423 = vmatprep.subr.bf16.mxu0 0
  %2424 = vmatpush1.bf16.msra.mxu0 %v2251
  %2425 = vmatprep.subr.bf16.mxu0 0
  %2426 = vmatpush1.bf16.msra.mxu0 %v2252
  %2427 = vmatprep.subr.bf16.mxu0 0
  %2428 = vmatpush1.bf16.msra.mxu0 %v2253
  %2429 = vmatprep.subr.bf16.mxu0 0
  %2430 = vmatpush1.bf16.msra.mxu0 %v2254
  %2431 = vmatprep.subr.bf16.mxu0 0
  %2432 = vmatpush1.bf16.msra.mxu0 %v2255
  %2433 = vmatprep.subr.bf16.mxu0 0
  %2434 = vmatpush1.bf16.msra.mxu0 %v2256
  %2435 = vmatprep.subr.bf16.mxu0 0
  %2436 = vmatpush1.bf16.msra.mxu0 %v2257
  %2437 = vmatprep.subr.bf16.mxu0 0
  %2438 = vmatpush1.bf16.msra.mxu0 %v2258
  %2439 = vmatprep.subr.bf16.mxu0 0
  %2440 = vmatpush1.bf16.msra.mxu0 %v2259
  %2441 = vmatprep.subr.bf16.mxu0 0
  %2442 = vmatpush1.bf16.msra.mxu0 %v2260
  %2443 = vmatprep.mubr.bf16.mxu0 %v189
  %2444 = vmatmul.mubr.bf16.gmra.mrb[0].mxu0 %v188
  %v2445 = vpop.f32.mrb[0].mxu0
  %v2446 = vadd.f32 %v2397, %v2445
  %v2447 = vpop.f32.mrb[0].mxu0
  %v2448 = vpop.f32.mrb[0].mxu0
  %v2449 = vadd.f32 %v2400, %v2448
  %v2450 = vpop.f32.mrb[0].mxu0
  %2451 = vmatprep.mubr.bf16.mxu0 %v196
  %2452 = vmatmul.mubr.bf16.gmra.mrb[0].mxu0 %v195
  %v2453 = vpop.f32.mrb[0].mxu0
  %v2454 = vadd.f32 %v2405, %v2453
  %v2455 = vpop.f32.mrb[0].mxu0
  %v2456 = vpop.f32.mrb[0].mxu0
  %v2457 = vadd.f32 %v2408, %v2456
  %v2458 = vpop.f32.mrb[0].mxu0
  %2459 = vdwg.mxu0
  %2460 = vmatprep.subr.bf16.mxu0 0
  %2461 = vmatpush1.bf16.msra.mxu0 %v2261
  %2462 = vmatprep.subr.bf16.mxu0 0
  %2463 = vmatpush1.bf16.msra.mxu0 %v2262
  %2464 = vmatprep.subr.bf16.mxu0 0
  %2465 = vmatpush1.bf16.msra.mxu0 0
  %2466 = vmatprep.subr.bf16.mxu0 0
  %2467 = vmatpush1.bf16.msra.mxu0 0
  %2468 = vmatprep.subr.bf16.mxu0 0
  %2469 = vmatpush1.bf16.msra.mxu0 0
  %2470 = vmatprep.subr.bf16.mxu0 0
  %2471 = vmatpush1.bf16.msra.mxu0 0
  %2472 = vmatprep.subr.bf16.mxu0 0
  %2473 = vmatpush1.bf16.msra.mxu0 0
  %2474 = vmatprep.subr.bf16.mxu0 0
  %2475 = vmatpush1.bf16.msra.mxu0 0
  %2476 = vmatprep.subr.bf16.mxu0 0
  %2477 = vmatpush1.bf16.msra.mxu0 0
  %2478 = vmatprep.subr.bf16.mxu0 0
  %2479 = vmatpush1.bf16.msra.mxu0 0
  %2480 = vmatprep.subr.bf16.mxu0 0
  %2481 = vmatpush1.bf16.msra.mxu0 0
  %2482 = vmatprep.subr.bf16.mxu0 0
  %2483 = vmatpush1.bf16.msra.mxu0 0
  %2484 = vmatprep.subr.bf16.mxu0 0
  %2485 = vmatpush1.bf16.msra.mxu0 0
  %2486 = vmatprep.subr.bf16.mxu0 0
  %2487 = vmatpush1.bf16.msra.mxu0 0
  %2488 = vmatprep.subr.bf16.mxu0 0
  %2489 = vmatpush1.bf16.msra.mxu0 0
  %2490 = vmatprep.subr.bf16.mxu0 0
  %2491 = vmatpush1.bf16.msra.mxu0 0
  %2492 = vmatprep.mubr.bf16.mxu0 0
  %2493 = vmatmul.mubr.bf16.gmra.mrb[0].mxu0 %v512
  %v2494 = vpop.f32.mrb[0].mxu0
  %v2495 = vadd.f32 %v2446, %v2494
  %v2496 = vpop.f32.mrb[0].mxu0
  %v2497 = vpop.f32.mrb[0].mxu0
  %v2498 = vadd.f32 %v2449, %v2497
  %v2499 = vpop.f32.mrb[0].mxu0
  %2500 = vmatprep.mubr.bf16.mxu0 0
  %2501 = vmatmul.mubr.bf16.gmra.mrb[0].mxu0 %v515
  %v2502 = vpop.f32.mrb[0].mxu0
  %v2503 = vadd.f32 %v2454, %v2502
  %v2504 = vpop.f32.mrb[0].mxu0
  %v2505 = vpop.f32.mrb[0].mxu0
  %v2506 = vadd.f32 %v2457, %v2505
  %v2507 = vpop.f32.mrb[0].mxu0
  %2508 = vdwg.mxu0
  %v2509 = vmax.f32 %v1909, %v2495
  %v2510 = vmax.f32 %v1910, %v2498
  %v2511 = vmax.f32 %v1911, %v2503
  %v2512 = vmax.f32 %v1912, %v2506
  %v2513 = vld [vmem:[%s1] sm:$0xff]
  %v2514 = vld [vmem:[%s1 + $0x8] sm:$0xff]
  %v2515 = vld [vmem:[%s1 + $0x10] sm:$0xff]
  %v2516 = vld [vmem:[%s1 + $0x18] sm:$0xff]
  %2518 = vset.pattern.permute.xlu0 0
  %2519 = vperm.xlu0 %2518, %v2513
  %v2520 = vpop.permute.xlu0 %2519
  %2523 = vset.pattern.permute.xlu0 0
  %2524 = vperm.xlu0 %2523, %v2514
  %v2525 = vpop.permute.xlu0 %2524
  %2528 = vset.pattern.permute.xlu0 0
  %2529 = vperm.xlu0 %2528, %v2515
  %v2530 = vpop.permute.xlu0 %2529
  %2533 = vset.pattern.permute.xlu0 0
  %2534 = vperm.xlu0 %2533, %v2516
  %v2535 = vpop.permute.xlu0 %2534
  %v2537 = vadd.f32 %v2509, %v2520
  %v2538 = vadd.f32 %v2510, %v2525
  %v2539 = vadd.f32 %v2511, %v2530
  %v2540 = vadd.f32 %v2512, %v2535
  %v2541 = vpack.c.bf16 %v2538, %v2537
  %v2542 = vpack.c.bf16 %v2540, %v2539
  %v2545 = vunpack.c.l.b16 %v2541
  %v2546 = vunpack.c.h.b16 %v2541
  %v2547 = vunpack.c.l.b16 %v2542
  %v2548 = vunpack.c.h.b16 %v2542
  %v2549 = vpack.c.b16 %v2545, %v2545
  %v2550 = vpack.c.b16 %v2546, %v2546
  %v2551 = vpack.c.b16 %v2547, %v2547
  %v2552 = vpack.c.b16 %v2548, %v2548
  %2557 = vst [vmem:[%s6] sm:$0xf] %v2549
  %2558 = vst [vmem:[%s6 + $0x4] sm:$0xf] %v2550
  %2559 = vst [vmem:[%s6 + $0x8] sm:$0xf] %v2551
  %2560 = vst [vmem:[%s6 + $0xc] sm:$0xf] %v2552
  // Predicated region
  $region26: #{tudui_forward.5} parent=0 // pred_check
    _
  $region27: #{tudui_forward.5} parent=0 // pred_check_branch
    %2562 = sbr.rel (0) target = $region29
  $region28: #{tudui_forward.5} parent=0 // pred_region
    _
  $region29: #{tudui_forward.5} parent=0 // pred_fallthru
    _
  // Predicated region
  $region30: #{tudui_forward.5} parent=0 // pred_check
    _
  $region31: #{tudui_forward.5} parent=0 // pred_check_branch
    %2564 = sbr.rel (0) target = $region33
  $region32: #{tudui_forward.5} parent=0 // pred_region
    _
  $region33: #{tudui_forward.5} parent=0 // pred_fallthru
    _

// kernel: tudui_forward.6
$region0: #{tudui_forward.6}
  #allocation0 [shape = 'u32[]', space=smem, size = 0x4, offset = 0x4, fixed_abs, tag = 'smem constant byte address 0x4 - core index']
  #allocation1 [shape = 'u32[144,128]{1,0:T(1,128)}', space=vmem, size = 0x12000, scoped, tag = 'internal scratch']
  %s0 = inlined_call_operand.vmem [shape: bf16[64,800], index: 0, kind: input, shape index: {}]
  %s1 = inlined_call_operand.vmem [shape: f32[64,1], index: 1, kind: input, shape index: {}]
  %s2 = inlined_call_operand.vmem [shape: bf16[800,32], index: 2, kind: input, shape index: {}]
  %s3 = inlined_call_operand.vmem [shape: bf16[800,32], index: 3, kind: input, shape index: {}]
  %s4 = inlined_call_operand.vmem [shape: bf16[800,32], index: 4, kind: input, shape index: {}]
  %s5 = inlined_call_operand.vmem [shape: bf16[800,32], index: 5, kind: input, shape index: {}]
  %s6 = inlined_call_operand.vmem [shape: bf16[64,32], index: 6, kind: output, shape index: {}]
  %s7 = sld [smem:[#allocation0]]
  $region34: #{tudui_forward.6} parent=0
    _
  %s9 = ssub.s32 1, %s7
  %s10 = scalar_select 0, %s9, %s7
  // Predicated region
  $region2: #{tudui_forward.6} parent=0 // pred_check
    _
  $region3: #{tudui_forward.6} parent=0 // pred_check_branch
    %12 = sbr.rel (0) target = $region5
  $region4: #{tudui_forward.6} parent=0 // pred_region
    _
  $region5: #{tudui_forward.6} parent=0 // pred_fallthru
    _
  // Predicated region
  $region6: #{tudui_forward.6} parent=0 // pred_check
    _
  $region7: #{tudui_forward.6} parent=0 // pred_check_branch
    %14 = sbr.rel (0) target = $region9
  $region8: #{tudui_forward.6} parent=0 // pred_region
    _
  $region9: #{tudui_forward.6} parent=0 // pred_fallthru
    _
  // Predicated region
  $region10: #{tudui_forward.6} parent=0 // pred_check
    _
  $region11: #{tudui_forward.6} parent=0 // pred_check_branch
    %16 = sbr.rel (0) target = $region13
  $region12: #{tudui_forward.6} parent=0 // pred_region
    _
  $region13: #{tudui_forward.6} parent=0 // pred_fallthru
    _
  // Predicated region
  $region14: #{tudui_forward.6} parent=0 // pred_check
    _
  $region15: #{tudui_forward.6} parent=0 // pred_check_branch
    %18 = sbr.rel (0) target = $region17
  $region16: #{tudui_forward.6} parent=0 // pred_region
    _
  $region17: #{tudui_forward.6} parent=0 // pred_fallthru
    _
  // Predicated region
  $region18: #{tudui_forward.6} parent=0 // pred_check
    _
  $region19: #{tudui_forward.6} parent=0 // pred_check_branch
    %20 = sbr.rel (0) target = $region21
  $region20: #{tudui_forward.6} parent=0 // pred_region
    _
  $region21: #{tudui_forward.6} parent=0 // pred_fallthru
    _
  // Predicated region
  $region22: #{tudui_forward.6} parent=0 // pred_check
    _
  $region23: #{tudui_forward.6} parent=0 // pred_check_branch
    %22 = sbr.rel (0) target = $region25
  $region24: #{tudui_forward.6} parent=0 // pred_region
    _
  $region25: #{tudui_forward.6} parent=0 // pred_fallthru
    _
  %v24 = vld [vmem:[%s0] sm:$0xff]
  %v25 = vld [vmem:[%s0 + $0x8] sm:$0xff]
  %v26 = vld [vmem:[%s0 + $0x10] sm:$0xff]
  %v27 = vld [vmem:[%s0 + $0x18] sm:$0xf]
  %v28 = vld [vmem:[%s0 + $0x1c] sm:$0xff]
  %v29 = vld [vmem:[%s0 + $0x24] sm:$0xff]
  %v30 = vld [vmem:[%s0 + $0x2c] sm:$0xff]
  %v31 = vld [vmem:[%s0 + $0x34] sm:$0xf]
  %v32 = vld [vmem:[%s0 + $0x38] sm:$0xff]
  %v33 = vld [vmem:[%s0 + $0x40] sm:$0xff]
  %v34 = vld [vmem:[%s0 + $0x48] sm:$0xff]
  %v35 = vld [vmem:[%s0 + $0x50] sm:$0xf]
  %v36 = vld [vmem:[%s0 + $0x54] sm:$0xff]
  %v37 = vld [vmem:[%s0 + $0x5c] sm:$0xff]
  %v38 = vld [vmem:[%s0 + $0x64] sm:$0xff]
  %v39 = vld [vmem:[%s0 + $0x6c] sm:$0xf]
  %v40 = vld [vmem:[%s0 + $0x70] sm:$0xff]
  %v41 = vld [vmem:[%s0 + $0x78] sm:$0xff]
  %v42 = vld [vmem:[%s0 + $0x80] sm:$0xff]
  %v43 = vld [vmem:[%s0 + $0x88] sm:$0xf]
  %v44 = vld [vmem:[%s0 + $0x8c] sm:$0xff]
  %v45 = vld [vmem:[%s0 + $0x94] sm:$0xff]
  %v46 = vld [vmem:[%s0 + $0x9c] sm:$0xff]
  %v47 = vld [vmem:[%s0 + $0xa4] sm:$0xf]
  %v48 = vld [vmem:[%s0 + $0xa8] sm:$0xff]
  %v49 = vld [vmem:[%s0 + $0xb0] sm:$0xff]
  %v50 = vld [vmem:[%s0 + $0xb8] sm:$0xff]
  %v51 = vld [vmem:[%s0 + $0xc0] sm:$0xf]
  %v52 = vld [vmem:[%s0 + $0xc4] sm:$0xff]
  %v53 = vld [vmem:[%s0 + $0xcc] sm:$0xff]
  %v54 = vld [vmem:[%s0 + $0xd4] sm:$0xff]
  %v55 = vld [vmem:[%s0 + $0xdc] sm:$0xf]
  %v56 = vld [vmem:[%s2] sm:$0xf]
  %v57 = vld [vmem:[%s2 + $0x4] sm:$0xf]
  %v58 = vld [vmem:[%s2 + $0x8] sm:$0xf]
  %v59 = vld [vmem:[%s2 + $0xc] sm:$0xf]
  %v60 = vld [vmem:[%s2 + $0x10] sm:$0xf]
  %v61 = vld [vmem:[%s2 + $0x14] sm:$0xf]
  %v62 = vld [vmem:[%s2 + $0x18] sm:$0xf]
  %v63 = vld [vmem:[%s2 + $0x1c] sm:$0xf]
  %v64 = vld [vmem:[%s2 + $0x20] sm:$0xf]
  %v65 = vld [vmem:[%s2 + $0x24] sm:$0xf]
  %v66 = vld [vmem:[%s2 + $0x28] sm:$0xf]
  %v67 = vld [vmem:[%s2 + $0x2c] sm:$0xf]
  %v68 = vld [vmem:[%s2 + $0x30] sm:$0xf]
  %v69 = vld [vmem:[%s2 + $0x34] sm:$0xf]
  %v70 = vld [vmem:[%s2 + $0x38] sm:$0xf]
  %v71 = vld [vmem:[%s2 + $0x3c] sm:$0xf]
  %v72 = vld [vmem:[%s2 + $0x40] sm:$0xf]
  %v73 = vld [vmem:[%s2 + $0x44] sm:$0xf]
  %v74 = vld [vmem:[%s2 + $0x48] sm:$0xf]
  %v75 = vld [vmem:[%s2 + $0x4c] sm:$0xf]
  %v76 = vld [vmem:[%s2 + $0x50] sm:$0xf]
  %v77 = vld [vmem:[%s2 + $0x54] sm:$0xf]
  %v78 = vld [vmem:[%s2 + $0x58] sm:$0xf]
  %v79 = vld [vmem:[%s2 + $0x5c] sm:$0xf]
  %v80 = vld [vmem:[%s2 + $0x60] sm:$0xf]
  %v81 = vld [vmem:[%s2 + $0x64] sm:$0xf]
  %v82 = vld [vmem:[%s2 + $0x68] sm:$0xf]
  %v83 = vld [vmem:[%s2 + $0x6c] sm:$0xf]
  %v84 = vld [vmem:[%s2 + $0x70] sm:$0xf]
  %v85 = vld [vmem:[%s2 + $0x74] sm:$0xf]
  %v86 = vld [vmem:[%s2 + $0x78] sm:$0xf]
  %v87 = vld [vmem:[%s2 + $0x7c] sm:$0xf]
  %v88 = vld [vmem:[%s2 + $0x80] sm:$0xf]
  %v89 = vld [vmem:[%s2 + $0x84] sm:$0xf]
  %v90 = vld [vmem:[%s2 + $0x88] sm:$0xf]
  %v91 = vld [vmem:[%s2 + $0x8c] sm:$0xf]
  %v92 = vld [vmem:[%s2 + $0x90] sm:$0xf]
  %v93 = vld [vmem:[%s2 + $0x94] sm:$0xf]
  %v94 = vld [vmem:[%s2 + $0x98] sm:$0xf]
  %v95 = vld [vmem:[%s2 + $0x9c] sm:$0xf]
  %v96 = vld [vmem:[%s2 + $0xa0] sm:$0xf]
  %v97 = vld [vmem:[%s2 + $0xa4] sm:$0xf]
  %v98 = vld [vmem:[%s2 + $0xa8] sm:$0xf]
  %v99 = vld [vmem:[%s2 + $0xac] sm:$0xf]
  %v100 = vld [vmem:[%s2 + $0xb0] sm:$0xf]
  %v101 = vld [vmem:[%s2 + $0xb4] sm:$0xf]
  %v102 = vld [vmem:[%s2 + $0xb8] sm:$0xf]
  %v103 = vld [vmem:[%s2 + $0xbc] sm:$0xf]
  %v104 = vld [vmem:[%s2 + $0xc0] sm:$0xf]
  %v105 = vld [vmem:[%s2 + $0xc4] sm:$0xf]
  %v106 = vld [vmem:[%s2 + $0xc8] sm:$0xf]
  %v107 = vld [vmem:[%s2 + $0xcc] sm:$0xf]
  %v108 = vld [vmem:[%s2 + $0xd0] sm:$0xf]
  %v109 = vld [vmem:[%s2 + $0xd4] sm:$0xf]
  %v110 = vld [vmem:[%s2 + $0xd8] sm:$0xf]
  %v111 = vld [vmem:[%s2 + $0xdc] sm:$0xf]
  %v112 = vld [vmem:[%s2 + $0xe0] sm:$0xf]
  %v113 = vld [vmem:[%s2 + $0xe4] sm:$0xf]
  %v114 = vld [vmem:[%s2 + $0xe8] sm:$0xf]
  %v115 = vld [vmem:[%s2 + $0xec] sm:$0xf]
  %v116 = vld [vmem:[%s2 + $0xf0] sm:$0xf]
  %v117 = vld [vmem:[%s2 + $0xf4] sm:$0xf]
  %v118 = vld [vmem:[%s2 + $0xf8] sm:$0xf]
  %v119 = vld [vmem:[%s2 + $0xfc] sm:$0xf]
  %v120 = vld [vmem:[%s2 + $0x100] sm:$0xf]
  %v121 = vld [vmem:[%s2 + $0x104] sm:$0xf]
  %v122 = vld [vmem:[%s2 + $0x108] sm:$0xf]
  %v123 = vld [vmem:[%s2 + $0x10c] sm:$0xf]
  %v124 = vld [vmem:[%s2 + $0x110] sm:$0xf]
  %v125 = vld [vmem:[%s2 + $0x114] sm:$0xf]
  %v126 = vld [vmem:[%s2 + $0x118] sm:$0xf]
  %v127 = vld [vmem:[%s2 + $0x11c] sm:$0xf]
  %v128 = vld [vmem:[%s2 + $0x120] sm:$0xf]
  %v129 = vld [vmem:[%s2 + $0x124] sm:$0xf]
  %v130 = vld [vmem:[%s2 + $0x128] sm:$0xf]
  %v131 = vld [vmem:[%s2 + $0x12c] sm:$0xf]
  %v132 = vld [vmem:[%s2 + $0x130] sm:$0xf]
  %v133 = vld [vmem:[%s2 + $0x134] sm:$0xf]
  %v134 = vld [vmem:[%s2 + $0x138] sm:$0xf]
  %v135 = vld [vmem:[%s2 + $0x13c] sm:$0xf]
  %v136 = vld [vmem:[%s2 + $0x140] sm:$0xf]
  %v137 = vld [vmem:[%s2 + $0x144] sm:$0xf]
  %v138 = vld [vmem:[%s2 + $0x148] sm:$0xf]
  %v139 = vld [vmem:[%s2 + $0x14c] sm:$0xf]
  %v140 = vld [vmem:[%s2 + $0x150] sm:$0xf]
  %v141 = vld [vmem:[%s2 + $0x154] sm:$0xf]
  %v142 = vld [vmem:[%s2 + $0x158] sm:$0xf]
  %v143 = vld [vmem:[%s2 + $0x15c] sm:$0xf]
  %v144 = vld [vmem:[%s2 + $0x160] sm:$0xf]
  %v145 = vld [vmem:[%s2 + $0x164] sm:$0xf]
  %v146 = vld [vmem:[%s2 + $0x168] sm:$0xf]
  %v147 = vld [vmem:[%s2 + $0x16c] sm:$0xf]
  %v148 = vld [vmem:[%s2 + $0x170] sm:$0xf]
  %v149 = vld [vmem:[%s2 + $0x174] sm:$0xf]
  %v150 = vld [vmem:[%s2 + $0x178] sm:$0xf]
  %v151 = vld [vmem:[%s2 + $0x17c] sm:$0xf]
  %v152 = vld [vmem:[%s2 + $0x180] sm:$0xf]
  %v153 = vld [vmem:[%s2 + $0x184] sm:$0xf]
  %v154 = vld [vmem:[%s2 + $0x188] sm:$0xf]
  %v155 = vld [vmem:[%s2 + $0x18c] sm:$0xf]
  %v188 = vunpack.c.l.b16 %v24
  %v189 = vunpack.c.h.b16 %v24
  %v190 = vunpack.c.l.b16 %v25
  %v191 = vunpack.c.h.b16 %v25
  %v192 = vunpack.c.l.b16 %v26
  %v193 = vunpack.c.h.b16 %v26
  %v194 = vunpack.c.l.b16 %v27
  %v195 = vunpack.c.l.b16 %v28
  %v196 = vunpack.c.h.b16 %v28
  %v197 = vunpack.c.l.b16 %v29
  %v198 = vunpack.c.h.b16 %v29
  %v199 = vunpack.c.l.b16 %v30
  %v200 = vunpack.c.h.b16 %v30
  %v201 = vunpack.c.l.b16 %v31
  %v202 = vunpack.c.l.b16 %v32
  %v203 = vunpack.c.h.b16 %v32
  %v204 = vunpack.c.l.b16 %v33
  %v205 = vunpack.c.h.b16 %v33
  %v206 = vunpack.c.l.b16 %v34
  %v207 = vunpack.c.h.b16 %v34
  %v208 = vunpack.c.l.b16 %v35
  %v209 = vunpack.c.l.b16 %v36
  %v210 = vunpack.c.h.b16 %v36
  %v211 = vunpack.c.l.b16 %v37
  %v212 = vunpack.c.h.b16 %v37
  %v213 = vunpack.c.l.b16 %v38
  %v214 = vunpack.c.h.b16 %v38
  %v215 = vunpack.c.l.b16 %v39
  %v216 = vunpack.c.l.b16 %v40
  %v217 = vunpack.c.h.b16 %v40
  %v218 = vunpack.c.l.b16 %v41
  %v219 = vunpack.c.h.b16 %v41
  %v220 = vunpack.c.l.b16 %v42
  %v221 = vunpack.c.h.b16 %v42
  %v222 = vunpack.c.l.b16 %v43
  %v223 = vunpack.c.l.b16 %v44
  %v224 = vunpack.c.h.b16 %v44
  %v225 = vunpack.c.l.b16 %v45
  %v226 = vunpack.c.h.b16 %v45
  %v227 = vunpack.c.l.b16 %v46
  %v228 = vunpack.c.h.b16 %v46
  %v229 = vunpack.c.l.b16 %v47
  %v230 = vunpack.c.l.b16 %v48
  %v231 = vunpack.c.h.b16 %v48
  %v232 = vunpack.c.l.b16 %v49
  %v233 = vunpack.c.h.b16 %v49
  %v234 = vunpack.c.l.b16 %v50
  %v235 = vunpack.c.h.b16 %v50
  %v236 = vunpack.c.l.b16 %v51
  %v237 = vunpack.c.l.b16 %v52
  %v238 = vunpack.c.h.b16 %v52
  %v239 = vunpack.c.l.b16 %v53
  %v240 = vunpack.c.h.b16 %v53
  %v241 = vunpack.c.l.b16 %v54
  %v242 = vunpack.c.h.b16 %v54
  %v243 = vunpack.c.l.b16 %v55
  %v244 = vpack.c.b16 %v195, %v188
  %v245 = vpack.c.b16 %v196, %v189
  %v246 = vpack.c.b16 %v197, %v190
  %v247 = vpack.c.b16 %v198, %v191
  %v248 = vpack.c.b16 %v199, %v192
  %v249 = vpack.c.b16 %v200, %v193
  %v250 = vpack.c.b16 %v201, %v194
  %v251 = vpack.c.b16 %v209, %v202
  %v252 = vpack.c.b16 %v210, %v203
  %v253 = vpack.c.b16 %v211, %v204
  %v254 = vpack.c.b16 %v212, %v205
  %v255 = vpack.c.b16 %v213, %v206
  %v256 = vpack.c.b16 %v214, %v207
  %v257 = vpack.c.b16 %v215, %v208
  %v258 = vpack.c.b16 %v223, %v216
  %v259 = vpack.c.b16 %v224, %v217
  %v260 = vpack.c.b16 %v225, %v218
  %v261 = vpack.c.b16 %v226, %v219
  %v262 = vpack.c.b16 %v227, %v220
  %v263 = vpack.c.b16 %v228, %v221
  %v264 = vpack.c.b16 %v229, %v222
  %v265 = vpack.c.b16 %v237, %v230
  %v266 = vpack.c.b16 %v238, %v231
  %v267 = vpack.c.b16 %v239, %v232
  %v268 = vpack.c.b16 %v240, %v233
  %v269 = vpack.c.b16 %v241, %v234
  %v270 = vpack.c.b16 %v242, %v235
  %v271 = vpack.c.b16 %v243, %v236
  %v396 = vunpack.c.l.b16 %v56
  %v397 = vunpack.c.l.b16 %v57
  %v398 = vunpack.c.l.b16 %v58
  %v399 = vunpack.c.l.b16 %v59
  %v400 = vunpack.c.l.b16 %v60
  %v401 = vunpack.c.l.b16 %v61
  %v402 = vunpack.c.l.b16 %v62
  %v403 = vunpack.c.l.b16 %v63
  %v404 = vunpack.c.l.b16 %v64
  %v405 = vunpack.c.l.b16 %v65
  %v406 = vunpack.c.l.b16 %v66
  %v407 = vunpack.c.l.b16 %v67
  %v408 = vunpack.c.l.b16 %v68
  %v409 = vunpack.c.l.b16 %v69
  %v410 = vunpack.c.l.b16 %v70
  %v411 = vunpack.c.l.b16 %v71
  %v412 = vunpack.c.l.b16 %v72
  %v413 = vunpack.c.l.b16 %v73
  %v414 = vunpack.c.l.b16 %v74
  %v415 = vunpack.c.l.b16 %v75
  %v416 = vunpack.c.l.b16 %v76
  %v417 = vunpack.c.l.b16 %v77
  %v418 = vunpack.c.l.b16 %v78
  %v419 = vunpack.c.l.b16 %v79
  %v420 = vunpack.c.l.b16 %v80
  %v421 = vunpack.c.l.b16 %v81
  %v422 = vunpack.c.l.b16 %v82
  %v423 = vunpack.c.l.b16 %v83
  %v424 = vunpack.c.l.b16 %v84
  %v425 = vunpack.c.l.b16 %v85
  %v426 = vunpack.c.l.b16 %v86
  %v427 = vunpack.c.l.b16 %v87
  %v428 = vunpack.c.l.b16 %v88
  %v429 = vunpack.c.l.b16 %v89
  %v430 = vunpack.c.l.b16 %v90
  %v431 = vunpack.c.l.b16 %v91
  %v432 = vunpack.c.l.b16 %v92
  %v433 = vunpack.c.l.b16 %v93
  %v434 = vunpack.c.l.b16 %v94
  %v435 = vunpack.c.l.b16 %v95
  %v436 = vunpack.c.l.b16 %v96
  %v437 = vunpack.c.l.b16 %v97
  %v438 = vunpack.c.l.b16 %v98
  %v439 = vunpack.c.l.b16 %v99
  %v440 = vunpack.c.l.b16 %v100
  %v441 = vunpack.c.l.b16 %v101
  %v442 = vunpack.c.l.b16 %v102
  %v443 = vunpack.c.l.b16 %v103
  %v444 = vunpack.c.l.b16 %v104
  %v445 = vunpack.c.l.b16 %v105
  %v446 = vunpack.c.l.b16 %v106
  %v447 = vunpack.c.l.b16 %v107
  %v448 = vunpack.c.l.b16 %v108
  %v449 = vunpack.c.l.b16 %v109
  %v450 = vunpack.c.l.b16 %v110
  %v451 = vunpack.c.l.b16 %v111
  %v452 = vunpack.c.l.b16 %v112
  %v453 = vunpack.c.l.b16 %v113
  %v454 = vunpack.c.l.b16 %v114
  %v455 = vunpack.c.l.b16 %v115
  %v456 = vunpack.c.l.b16 %v116
  %v457 = vunpack.c.l.b16 %v117
  %v458 = vunpack.c.l.b16 %v118
  %v459 = vunpack.c.l.b16 %v119
  %v460 = vunpack.c.l.b16 %v120
  %v461 = vunpack.c.l.b16 %v121
  %v462 = vunpack.c.l.b16 %v122
  %v463 = vunpack.c.l.b16 %v123
  %v464 = vunpack.c.l.b16 %v124
  %v465 = vunpack.c.l.b16 %v125
  %v466 = vunpack.c.l.b16 %v126
  %v467 = vunpack.c.l.b16 %v127
  %v468 = vunpack.c.l.b16 %v128
  %v469 = vunpack.c.l.b16 %v129
  %v470 = vunpack.c.l.b16 %v130
  %v471 = vunpack.c.l.b16 %v131
  %v472 = vunpack.c.l.b16 %v132
  %v473 = vunpack.c.l.b16 %v133
  %v474 = vunpack.c.l.b16 %v134
  %v475 = vunpack.c.l.b16 %v135
  %v476 = vunpack.c.l.b16 %v136
  %v477 = vunpack.c.l.b16 %v137
  %v478 = vunpack.c.l.b16 %v138
  %v479 = vunpack.c.l.b16 %v139
  %v480 = vunpack.c.l.b16 %v140
  %v481 = vunpack.c.l.b16 %v141
  %v482 = vunpack.c.l.b16 %v142
  %v483 = vunpack.c.l.b16 %v143
  %v484 = vunpack.c.l.b16 %v144
  %v485 = vunpack.c.l.b16 %v145
  %v486 = vunpack.c.l.b16 %v146
  %v487 = vunpack.c.l.b16 %v147
  %v488 = vunpack.c.l.b16 %v148
  %v489 = vunpack.c.l.b16 %v149
  %v490 = vunpack.c.l.b16 %v150
  %v491 = vunpack.c.l.b16 %v151
  %v492 = vunpack.c.l.b16 %v152
  %v493 = vunpack.c.l.b16 %v153
  %v494 = vunpack.c.l.b16 %v154
  %v495 = vunpack.c.l.b16 %v155
  %v496 = vpack.c.b16 %v397, %v396
  %v497 = vpack.c.b16 %v399, %v398
  %v498 = vpack.c.b16 %v401, %v400
  %v499 = vpack.c.b16 %v403, %v402
  %v500 = vpack.c.b16 %v405, %v404
  %v501 = vpack.c.b16 %v407, %v406
  %v502 = vpack.c.b16 %v409, %v408
  %v503 = vpack.c.b16 %v411, %v410
  %v504 = vpack.c.b16 %v413, %v412
  %v505 = vpack.c.b16 %v415, %v414
  %v506 = vpack.c.b16 %v417, %v416
  %v507 = vpack.c.b16 %v419, %v418
  %v508 = vpack.c.b16 %v421, %v420
  %v509 = vpack.c.b16 %v423, %v422
  %v510 = vpack.c.b16 %v425, %v424
  %v511 = vpack.c.b16 %v427, %v426
  %v512 = vpack.c.b16 %v429, %v428
  %v513 = vpack.c.b16 %v431, %v430
  %v514 = vpack.c.b16 %v433, %v432
  %v515 = vpack.c.b16 %v435, %v434
  %v516 = vpack.c.b16 %v437, %v436
  %v517 = vpack.c.b16 %v439, %v438
  %v518 = vpack.c.b16 %v441, %v440
  %v519 = vpack.c.b16 %v443, %v442
  %v520 = vpack.c.b16 %v445, %v444
  %v521 = vpack.c.b16 %v447, %v446
  %v522 = vpack.c.b16 %v449, %v448
  %v523 = vpack.c.b16 %v451, %v450
  %v524 = vpack.c.b16 %v453, %v452
  %v525 = vpack.c.b16 %v455, %v454
  %v526 = vpack.c.b16 %v457, %v456
  %v527 = vpack.c.b16 %v459, %v458
  %v528 = vpack.c.b16 %v461, %v460
  %v529 = vpack.c.b16 %v463, %v462
  %v530 = vpack.c.b16 %v465, %v464
  %v531 = vpack.c.b16 %v467, %v466
  %v532 = vpack.c.b16 %v469, %v468
  %v533 = vpack.c.b16 %v471, %v470
  %v534 = vpack.c.b16 %v473, %v472
  %v535 = vpack.c.b16 %v475, %v474
  %v536 = vpack.c.b16 %v477, %v476
  %v537 = vpack.c.b16 %v479, %v478
  %v538 = vpack.c.b16 %v481, %v480
  %v539 = vpack.c.b16 %v483, %v482
  %v540 = vpack.c.b16 %v485, %v484
  %v541 = vpack.c.b16 %v487, %v486
  %v542 = vpack.c.b16 %v489, %v488
  %v543 = vpack.c.b16 %v491, %v490
  %v544 = vpack.c.b16 %v493, %v492
  %v545 = vpack.c.b16 %v495, %v494
  %vm596 = vcmask 261120
  %v598 = vsel %vm596, %v250, 0
  %v601 = vsel %vm596, %v257, 0
  %v604 = vsel %vm596, %v264, 0
  %v607 = vsel %vm596, %v271, 0
  %609 = vmatprep.subr.bf16.mxu0 0
  %610 = vmatpush1.bf16.msra.mxu0 %v496
  %611 = vmatprep.subr.bf16.mxu0 0
  %612 = vmatpush1.bf16.msra.mxu0 %v497
  %613 = vmatprep.subr.bf16.mxu0 0
  %614 = vmatpush1.bf16.msra.mxu0 %v498
  %615 = vmatprep.subr.bf16.mxu0 0
  %616 = vmatpush1.bf16.msra.mxu0 %v499
  %617 = vmatprep.subr.bf16.mxu0 0
  %618 = vmatpush1.bf16.msra.mxu0 %v500
  %619 = vmatprep.subr.bf16.mxu0 0
  %620 = vmatpush1.bf16.msra.mxu0 %v501
  %621 = vmatprep.subr.bf16.mxu0 0
  %622 = vmatpush1.bf16.msra.mxu0 %v502
  %623 = vmatprep.subr.bf16.mxu0 0
  %624 = vmatpush1.bf16.msra.mxu0 %v503
  %625 = vmatprep.subr.bf16.mxu0 0
  %626 = vmatpush1.bf16.msra.mxu0 %v504
  %627 = vmatprep.subr.bf16.mxu0 0
  %628 = vmatpush1.bf16.msra.mxu0 %v505
  %629 = vmatprep.subr.bf16.mxu0 0
  %630 = vmatpush1.bf16.msra.mxu0 %v506
  %631 = vmatprep.subr.bf16.mxu0 0
  %632 = vmatpush1.bf16.msra.mxu0 %v507
  %633 = vmatprep.subr.bf16.mxu0 0
  %634 = vmatpush1.bf16.msra.mxu0 %v508
  %635 = vmatprep.subr.bf16.mxu0 0
  %636 = vmatpush1.bf16.msra.mxu0 %v509
  %637 = vmatprep.subr.bf16.mxu0 0
  %638 = vmatpush1.bf16.msra.mxu0 %v510
  %639 = vmatprep.subr.bf16.mxu0 0
  %640 = vmatpush1.bf16.msra.mxu0 %v511
  %641 = vmatprep.mubr.bf16.mxu0 %v245
  %642 = vmatmul.mubr.bf16.gmra.mrb[0].mxu0 %v244
  %v643 = vpop.f32.mrb[0].mxu0
  %v644 = vadd.f32 0.0, %v643
  %v645 = vpop.f32.mrb[0].mxu0
  %v646 = vpop.f32.mrb[0].mxu0
  %v647 = vadd.f32 0.0, %v646
  %v648 = vpop.f32.mrb[0].mxu0
  %649 = vmatprep.mubr.bf16.mxu0 %v252
  %650 = vmatmul.mubr.bf16.gmra.mrb[0].mxu0 %v251
  %v651 = vpop.f32.mrb[0].mxu0
  %v652 = vadd.f32 0.0, %v651
  %v653 = vpop.f32.mrb[0].mxu0
  %v654 = vpop.f32.mrb[0].mxu0
  %v655 = vadd.f32 0.0, %v654
  %v656 = vpop.f32.mrb[0].mxu0
  %657 = vmatprep.mubr.bf16.mxu0 %v259
  %658 = vmatmul.mubr.bf16.gmra.mrb[0].mxu0 %v258
  %v659 = vpop.f32.mrb[0].mxu0
  %v660 = vadd.f32 0.0, %v659
  %v661 = vpop.f32.mrb[0].mxu0
  %v662 = vpop.f32.mrb[0].mxu0
  %v663 = vadd.f32 0.0, %v662
  %v664 = vpop.f32.mrb[0].mxu0
  %665 = vmatprep.mubr.bf16.mxu0 %v266
  %666 = vmatmul.mubr.bf16.gmra.mrb[0].mxu0 %v265
  %v667 = vpop.f32.mrb[0].mxu0
  %v668 = vadd.f32 0.0, %v667
  %v669 = vpop.f32.mrb[0].mxu0
  %v670 = vpop.f32.mrb[0].mxu0
  %v671 = vadd.f32 0.0, %v670
  %v672 = vpop.f32.mrb[0].mxu0
  %673 = vdwg.mxu0
  %674 = vmatprep.subr.bf16.mxu0 0
  %675 = vmatpush1.bf16.msra.mxu0 %v512
  %676 = vmatprep.subr.bf16.mxu0 0
  %677 = vmatpush1.bf16.msra.mxu0 %v513
  %678 = vmatprep.subr.bf16.mxu0 0
  %679 = vmatpush1.bf16.msra.mxu0 %v514
  %680 = vmatprep.subr.bf16.mxu0 0
  %681 = vmatpush1.bf16.msra.mxu0 %v515
  %682 = vmatprep.subr.bf16.mxu0 0
  %683 = vmatpush1.bf16.msra.mxu0 %v516
  %684 = vmatprep.subr.bf16.mxu0 0
  %685 = vmatpush1.bf16.msra.mxu0 %v517
  %686 = vmatprep.subr.bf16.mxu0 0
  %687 = vmatpush1.bf16.msra.mxu0 %v518
  %688 = vmatprep.subr.bf16.mxu0 0
  %689 = vmatpush1.bf16.msra.mxu0 %v519
  %690 = vmatprep.subr.bf16.mxu0 0
  %691 = vmatpush1.bf16.msra.mxu0 %v520
  %692 = vmatprep.subr.bf16.mxu0 0
  %693 = vmatpush1.bf16.msra.mxu0 %v521
  %694 = vmatprep.subr.bf16.mxu0 0
  %695 = vmatpush1.bf16.msra.mxu0 %v522
  %696 = vmatprep.subr.bf16.mxu0 0
  %697 = vmatpush1.bf16.msra.mxu0 %v523
  %698 = vmatprep.subr.bf16.mxu0 0
  %699 = vmatpush1.bf16.msra.mxu0 %v524
  %700 = vmatprep.subr.bf16.mxu0 0
  %701 = vmatpush1.bf16.msra.mxu0 %v525
  %702 = vmatprep.subr.bf16.mxu0 0
  %703 = vmatpush1.bf16.msra.mxu0 %v526
  %704 = vmatprep.subr.bf16.mxu0 0
  %705 = vmatpush1.bf16.msra.mxu0 %v527
  %706 = vmatprep.mubr.bf16.mxu0 %v247
  %707 = vmatmul.mubr.bf16.gmra.mrb[0].mxu0 %v246
  %v708 = vpop.f32.mrb[0].mxu0
  %v709 = vadd.f32 %v644, %v708
  %v710 = vpop.f32.mrb[0].mxu0
  %v711 = vpop.f32.mrb[0].mxu0
  %v712 = vadd.f32 %v647, %v711
  %v713 = vpop.f32.mrb[0].mxu0
  %714 = vmatprep.mubr.bf16.mxu0 %v254
  %715 = vmatmul.mubr.bf16.gmra.mrb[0].mxu0 %v253
  %v716 = vpop.f32.mrb[0].mxu0
  %v717 = vadd.f32 %v652, %v716
  %v718 = vpop.f32.mrb[0].mxu0
  %v719 = vpop.f32.mrb[0].mxu0
  %v720 = vadd.f32 %v655, %v719
  %v721 = vpop.f32.mrb[0].mxu0
  %722 = vmatprep.mubr.bf16.mxu0 %v261
  %723 = vmatmul.mubr.bf16.gmra.mrb[0].mxu0 %v260
  %v724 = vpop.f32.mrb[0].mxu0
  %v725 = vadd.f32 %v660, %v724
  %v726 = vpop.f32.mrb[0].mxu0
  %v727 = vpop.f32.mrb[0].mxu0
  %v728 = vadd.f32 %v663, %v727
  %v729 = vpop.f32.mrb[0].mxu0
  %730 = vmatprep.mubr.bf16.mxu0 %v268
  %731 = vmatmul.mubr.bf16.gmra.mrb[0].mxu0 %v267
  %v732 = vpop.f32.mrb[0].mxu0
  %v733 = vadd.f32 %v668, %v732
  %v734 = vpop.f32.mrb[0].mxu0
  %v735 = vpop.f32.mrb[0].mxu0
  %v736 = vadd.f32 %v671, %v735
  %v737 = vpop.f32.mrb[0].mxu0
  %738 = vdwg.mxu0
  %739 = vmatprep.subr.bf16.mxu0 0
  %740 = vmatpush1.bf16.msra.mxu0 %v528
  %741 = vmatprep.subr.bf16.mxu0 0
  %742 = vmatpush1.bf16.msra.mxu0 %v529
  %743 = vmatprep.subr.bf16.mxu0 0
  %744 = vmatpush1.bf16.msra.mxu0 %v530
  %745 = vmatprep.subr.bf16.mxu0 0
  %746 = vmatpush1.bf16.msra.mxu0 %v531
  %747 = vmatprep.subr.bf16.mxu0 0
  %748 = vmatpush1.bf16.msra.mxu0 %v532
  %749 = vmatprep.subr.bf16.mxu0 0
  %750 = vmatpush1.bf16.msra.mxu0 %v533
  %751 = vmatprep.subr.bf16.mxu0 0
  %752 = vmatpush1.bf16.msra.mxu0 %v534
  %753 = vmatprep.subr.bf16.mxu0 0
  %754 = vmatpush1.bf16.msra.mxu0 %v535
  %755 = vmatprep.subr.bf16.mxu0 0
  %756 = vmatpush1.bf16.msra.mxu0 %v536
  %757 = vmatprep.subr.bf16.mxu0 0
  %758 = vmatpush1.bf16.msra.mxu0 %v537
  %759 = vmatprep.subr.bf16.mxu0 0
  %760 = vmatpush1.bf16.msra.mxu0 %v538
  %761 = vmatprep.subr.bf16.mxu0 0
  %762 = vmatpush1.bf16.msra.mxu0 %v539
  %763 = vmatprep.subr.bf16.mxu0 0
  %764 = vmatpush1.bf16.msra.mxu0 %v540
  %765 = vmatprep.subr.bf16.mxu0 0
  %766 = vmatpush1.bf16.msra.mxu0 %v541
  %767 = vmatprep.subr.bf16.mxu0 0
  %768 = vmatpush1.bf16.msra.mxu0 %v542
  %769 = vmatprep.subr.bf16.mxu0 0
  %770 = vmatpush1.bf16.msra.mxu0 %v543
  %771 = vmatprep.mubr.bf16.mxu0 %v249
  %772 = vmatmul.mubr.bf16.gmra.mrb[0].mxu0 %v248
  %v773 = vpop.f32.mrb[0].mxu0
  %v774 = vadd.f32 %v709, %v773
  %v775 = vpop.f32.mrb[0].mxu0
  %v776 = vpop.f32.mrb[0].mxu0
  %v777 = vadd.f32 %v712, %v776
  %v778 = vpop.f32.mrb[0].mxu0
  %779 = vmatprep.mubr.bf16.mxu0 %v256
  %780 = vmatmul.mubr.bf16.gmra.mrb[0].mxu0 %v255
  %v781 = vpop.f32.mrb[0].mxu0
  %v782 = vadd.f32 %v717, %v781
  %v783 = vpop.f32.mrb[0].mxu0
  %v784 = vpop.f32.mrb[0].mxu0
  %v785 = vadd.f32 %v720, %v784
  %v786 = vpop.f32.mrb[0].mxu0
  %787 = vmatprep.mubr.bf16.mxu0 %v263
  %788 = vmatmul.mubr.bf16.gmra.mrb[0].mxu0 %v262
  %v789 = vpop.f32.mrb[0].mxu0
  %v790 = vadd.f32 %v725, %v789
  %v791 = vpop.f32.mrb[0].mxu0
  %v792 = vpop.f32.mrb[0].mxu0
  %v793 = vadd.f32 %v728, %v792
  %v794 = vpop.f32.mrb[0].mxu0
  %795 = vmatprep.mubr.bf16.mxu0 %v270
  %796 = vmatmul.mubr.bf16.gmra.mrb[0].mxu0 %v269
  %v797 = vpop.f32.mrb[0].mxu0
  %v798 = vadd.f32 %v733, %v797
  %v799 = vpop.f32.mrb[0].mxu0
  %v800 = vpop.f32.mrb[0].mxu0
  %v801 = vadd.f32 %v736, %v800
  %v802 = vpop.f32.mrb[0].mxu0
  %803 = vdwg.mxu0
  %804 = vmatprep.subr.bf16.mxu0 0
  %805 = vmatpush1.bf16.msra.mxu0 %v544
  %806 = vmatprep.subr.bf16.mxu0 0
  %807 = vmatpush1.bf16.msra.mxu0 %v545
  %808 = vmatprep.subr.bf16.mxu0 0
  %809 = vmatpush1.bf16.msra.mxu0 0
  %810 = vmatprep.subr.bf16.mxu0 0
  %811 = vmatpush1.bf16.msra.mxu0 0
  %812 = vmatprep.subr.bf16.mxu0 0
  %813 = vmatpush1.bf16.msra.mxu0 0
  %814 = vmatprep.subr.bf16.mxu0 0
  %815 = vmatpush1.bf16.msra.mxu0 0
  %816 = vmatprep.subr.bf16.mxu0 0
  %817 = vmatpush1.bf16.msra.mxu0 0
  %818 = vmatprep.subr.bf16.mxu0 0
  %819 = vmatpush1.bf16.msra.mxu0 0
  %820 = vmatprep.subr.bf16.mxu0 0
  %821 = vmatpush1.bf16.msra.mxu0 0
  %822 = vmatprep.subr.bf16.mxu0 0
  %823 = vmatpush1.bf16.msra.mxu0 0
  %824 = vmatprep.subr.bf16.mxu0 0
  %825 = vmatpush1.bf16.msra.mxu0 0
  %826 = vmatprep.subr.bf16.mxu0 0
  %827 = vmatpush1.bf16.msra.mxu0 0
  %828 = vmatprep.subr.bf16.mxu0 0
  %829 = vmatpush1.bf16.msra.mxu0 0
  %830 = vmatprep.subr.bf16.mxu0 0
  %831 = vmatpush1.bf16.msra.mxu0 0
  %832 = vmatprep.subr.bf16.mxu0 0
  %833 = vmatpush1.bf16.msra.mxu0 0
  %834 = vmatprep.subr.bf16.mxu0 0
  %835 = vmatpush1.bf16.msra.mxu0 0
  %836 = vmatprep.mubr.bf16.mxu0 0
  %837 = vmatmul.mubr.bf16.gmra.mrb[0].mxu0 %v598
  %v838 = vpop.f32.mrb[0].mxu0
  %v839 = vadd.f32 %v774, %v838
  %v840 = vpop.f32.mrb[0].mxu0
  %v841 = vpop.f32.mrb[0].mxu0
  %v842 = vadd.f32 %v777, %v841
  %v843 = vpop.f32.mrb[0].mxu0
  %844 = vmatprep.mubr.bf16.mxu0 0
  %845 = vmatmul.mubr.bf16.gmra.mrb[0].mxu0 %v601
  %v846 = vpop.f32.mrb[0].mxu0
  %v847 = vadd.f32 %v782, %v846
  %v848 = vpop.f32.mrb[0].mxu0
  %v849 = vpop.f32.mrb[0].mxu0
  %v850 = vadd.f32 %v785, %v849
  %v851 = vpop.f32.mrb[0].mxu0
  %852 = vmatprep.mubr.bf16.mxu0 0
  %853 = vmatmul.mubr.bf16.gmra.mrb[0].mxu0 %v604
  %v854 = vpop.f32.mrb[0].mxu0
  %v855 = vadd.f32 %v790, %v854
  %v856 = vpop.f32.mrb[0].mxu0
  %v857 = vpop.f32.mrb[0].mxu0
  %v858 = vadd.f32 %v793, %v857
  %v859 = vpop.f32.mrb[0].mxu0
  %860 = vmatprep.mubr.bf16.mxu0 0
  %861 = vmatmul.mubr.bf16.gmra.mrb[0].mxu0 %v607
  %v862 = vpop.f32.mrb[0].mxu0
  %v863 = vadd.f32 %v798, %v862
  %v864 = vpop.f32.mrb[0].mxu0
  %v865 = vpop.f32.mrb[0].mxu0
  %v866 = vadd.f32 %v801, %v865
  %v867 = vpop.f32.mrb[0].mxu0
  %868 = vdwg.mxu0
  %v869 = vld [vmem:[%s3] sm:$0xf]
  %v870 = vld [vmem:[%s3 + $0x4] sm:$0xf]
  %v871 = vld [vmem:[%s3 + $0x8] sm:$0xf]
  %v872 = vld [vmem:[%s3 + $0xc] sm:$0xf]
  %v873 = vld [vmem:[%s3 + $0x10] sm:$0xf]
  %v874 = vld [vmem:[%s3 + $0x14] sm:$0xf]
  %v875 = vld [vmem:[%s3 + $0x18] sm:$0xf]
  %v876 = vld [vmem:[%s3 + $0x1c] sm:$0xf]
  %v877 = vld [vmem:[%s3 + $0x20] sm:$0xf]
  %v878 = vld [vmem:[%s3 + $0x24] sm:$0xf]
  %v879 = vld [vmem:[%s3 + $0x28] sm:$0xf]
  %v880 = vld [vmem:[%s3 + $0x2c] sm:$0xf]
  %v881 = vld [vmem:[%s3 + $0x30] sm:$0xf]
  %v882 = vld [vmem:[%s3 + $0x34] sm:$0xf]
  %v883 = vld [vmem:[%s3 + $0x38] sm:$0xf]
  %v884 = vld [vmem:[%s3 + $0x3c] sm:$0xf]
  %v885 = vld [vmem:[%s3 + $0x40] sm:$0xf]
  %v886 = vld [vmem:[%s3 + $0x44] sm:$0xf]
  %v887 = vld [vmem:[%s3 + $0x48] sm:$0xf]
  %v888 = vld [vmem:[%s3 + $0x4c] sm:$0xf]
  %v889 = vld [vmem:[%s3 + $0x50] sm:$0xf]
  %v890 = vld [vmem:[%s3 + $0x54] sm:$0xf]
  %v891 = vld [vmem:[%s3 + $0x58] sm:$0xf]
  %v892 = vld [vmem:[%s3 + $0x5c] sm:$0xf]
  %v893 = vld [vmem:[%s3 + $0x60] sm:$0xf]
  %v894 = vld [vmem:[%s3 + $0x64] sm:$0xf]
  %v895 = vld [vmem:[%s3 + $0x68] sm:$0xf]
  %v896 = vld [vmem:[%s3 + $0x6c] sm:$0xf]
  %v897 = vld [vmem:[%s3 + $0x70] sm:$0xf]
  %v898 = vld [vmem:[%s3 + $0x74] sm:$0xf]
  %v899 = vld [vmem:[%s3 + $0x78] sm:$0xf]
  %v900 = vld [vmem:[%s3 + $0x7c] sm:$0xf]
  %v901 = vld [vmem:[%s3 + $0x80] sm:$0xf]
  %v902 = vld [vmem:[%s3 + $0x84] sm:$0xf]
  %v903 = vld [vmem:[%s3 + $0x88] sm:$0xf]
  %v904 = vld [vmem:[%s3 + $0x8c] sm:$0xf]
  %v905 = vld [vmem:[%s3 + $0x90] sm:$0xf]
  %v906 = vld [vmem:[%s3 + $0x94] sm:$0xf]
  %v907 = vld [vmem:[%s3 + $0x98] sm:$0xf]
  %v908 = vld [vmem:[%s3 + $0x9c] sm:$0xf]
  %v909 = vld [vmem:[%s3 + $0xa0] sm:$0xf]
  %v910 = vld [vmem:[%s3 + $0xa4] sm:$0xf]
  %v911 = vld [vmem:[%s3 + $0xa8] sm:$0xf]
  %v912 = vld [vmem:[%s3 + $0xac] sm:$0xf]
  %v913 = vld [vmem:[%s3 + $0xb0] sm:$0xf]
  %v914 = vld [vmem:[%s3 + $0xb4] sm:$0xf]
  %v915 = vld [vmem:[%s3 + $0xb8] sm:$0xf]
  %v916 = vld [vmem:[%s3 + $0xbc] sm:$0xf]
  %v917 = vld [vmem:[%s3 + $0xc0] sm:$0xf]
  %v918 = vld [vmem:[%s3 + $0xc4] sm:$0xf]
  %v919 = vld [vmem:[%s3 + $0xc8] sm:$0xf]
  %v920 = vld [vmem:[%s3 + $0xcc] sm:$0xf]
  %v921 = vld [vmem:[%s3 + $0xd0] sm:$0xf]
  %v922 = vld [vmem:[%s3 + $0xd4] sm:$0xf]
  %v923 = vld [vmem:[%s3 + $0xd8] sm:$0xf]
  %v924 = vld [vmem:[%s3 + $0xdc] sm:$0xf]
  %v925 = vld [vmem:[%s3 + $0xe0] sm:$0xf]
  %v926 = vld [vmem:[%s3 + $0xe4] sm:$0xf]
  %v927 = vld [vmem:[%s3 + $0xe8] sm:$0xf]
  %v928 = vld [vmem:[%s3 + $0xec] sm:$0xf]
  %v929 = vld [vmem:[%s3 + $0xf0] sm:$0xf]
  %v930 = vld [vmem:[%s3 + $0xf4] sm:$0xf]
  %v931 = vld [vmem:[%s3 + $0xf8] sm:$0xf]
  %v932 = vld [vmem:[%s3 + $0xfc] sm:$0xf]
  %v933 = vld [vmem:[%s3 + $0x100] sm:$0xf]
  %v934 = vld [vmem:[%s3 + $0x104] sm:$0xf]
  %v935 = vld [vmem:[%s3 + $0x108] sm:$0xf]
  %v936 = vld [vmem:[%s3 + $0x10c] sm:$0xf]
  %v937 = vld [vmem:[%s3 + $0x110] sm:$0xf]
  %v938 = vld [vmem:[%s3 + $0x114] sm:$0xf]
  %v939 = vld [vmem:[%s3 + $0x118] sm:$0xf]
  %v940 = vld [vmem:[%s3 + $0x11c] sm:$0xf]
  %v941 = vld [vmem:[%s3 + $0x120] sm:$0xf]
  %v942 = vld [vmem:[%s3 + $0x124] sm:$0xf]
  %v943 = vld [vmem:[%s3 + $0x128] sm:$0xf]
  %v944 = vld [vmem:[%s3 + $0x12c] sm:$0xf]
  %v945 = vld [vmem:[%s3 + $0x130] sm:$0xf]
  %v946 = vld [vmem:[%s3 + $0x134] sm:$0xf]
  %v947 = vld [vmem:[%s3 + $0x138] sm:$0xf]
  %v948 = vld [vmem:[%s3 + $0x13c] sm:$0xf]
  %v949 = vld [vmem:[%s3 + $0x140] sm:$0xf]
  %v950 = vld [vmem:[%s3 + $0x144] sm:$0xf]
  %v951 = vld [vmem:[%s3 + $0x148] sm:$0xf]
  %v952 = vld [vmem:[%s3 + $0x14c] sm:$0xf]
  %v953 = vld [vmem:[%s3 + $0x150] sm:$0xf]
  %v954 = vld [vmem:[%s3 + $0x154] sm:$0xf]
  %v955 = vld [vmem:[%s3 + $0x158] sm:$0xf]
  %v956 = vld [vmem:[%s3 + $0x15c] sm:$0xf]
  %v957 = vld [vmem:[%s3 + $0x160] sm:$0xf]
  %v958 = vld [vmem:[%s3 + $0x164] sm:$0xf]
  %v959 = vld [vmem:[%s3 + $0x168] sm:$0xf]
  %v960 = vld [vmem:[%s3 + $0x16c] sm:$0xf]
  %v961 = vld [vmem:[%s3 + $0x170] sm:$0xf]
  %v962 = vld [vmem:[%s3 + $0x174] sm:$0xf]
  %v963 = vld [vmem:[%s3 + $0x178] sm:$0xf]
  %v964 = vld [vmem:[%s3 + $0x17c] sm:$0xf]
  %v965 = vld [vmem:[%s3 + $0x180] sm:$0xf]
  %v966 = vld [vmem:[%s3 + $0x184] sm:$0xf]
  %v967 = vld [vmem:[%s3 + $0x188] sm:$0xf]
  %v968 = vld [vmem:[%s3 + $0x18c] sm:$0xf]
  %v1069 = vunpack.c.l.b16 %v869
  %v1070 = vunpack.c.l.b16 %v870
  %v1071 = vunpack.c.l.b16 %v871
  %v1072 = vunpack.c.l.b16 %v872
  %v1073 = vunpack.c.l.b16 %v873
  %v1074 = vunpack.c.l.b16 %v874
  %v1075 = vunpack.c.l.b16 %v875
  %v1076 = vunpack.c.l.b16 %v876
  %v1077 = vunpack.c.l.b16 %v877
  %v1078 = vunpack.c.l.b16 %v878
  %v1079 = vunpack.c.l.b16 %v879
  %v1080 = vunpack.c.l.b16 %v880
  %v1081 = vunpack.c.l.b16 %v881
  %v1082 = vunpack.c.l.b16 %v882
  %v1083 = vunpack.c.l.b16 %v883
  %v1084 = vunpack.c.l.b16 %v884
  %v1085 = vunpack.c.l.b16 %v885
  %v1086 = vunpack.c.l.b16 %v886
  %v1087 = vunpack.c.l.b16 %v887
  %v1088 = vunpack.c.l.b16 %v888
  %v1089 = vunpack.c.l.b16 %v889
  %v1090 = vunpack.c.l.b16 %v890
  %v1091 = vunpack.c.l.b16 %v891
  %v1092 = vunpack.c.l.b16 %v892
  %v1093 = vunpack.c.l.b16 %v893
  %v1094 = vunpack.c.l.b16 %v894
  %v1095 = vunpack.c.l.b16 %v895
  %v1096 = vunpack.c.l.b16 %v896
  %v1097 = vunpack.c.l.b16 %v897
  %v1098 = vunpack.c.l.b16 %v898
  %v1099 = vunpack.c.l.b16 %v899
  %v1100 = vunpack.c.l.b16 %v900
  %v1101 = vunpack.c.l.b16 %v901
  %v1102 = vunpack.c.l.b16 %v902
  %v1103 = vunpack.c.l.b16 %v903
  %v1104 = vunpack.c.l.b16 %v904
  %v1105 = vunpack.c.l.b16 %v905
  %v1106 = vunpack.c.l.b16 %v906
  %v1107 = vunpack.c.l.b16 %v907
  %v1108 = vunpack.c.l.b16 %v908
  %v1109 = vunpack.c.l.b16 %v909
  %v1110 = vunpack.c.l.b16 %v910
  %v1111 = vunpack.c.l.b16 %v911
  %v1112 = vunpack.c.l.b16 %v912
  %v1113 = vunpack.c.l.b16 %v913
  %v1114 = vunpack.c.l.b16 %v914
  %v1115 = vunpack.c.l.b16 %v915
  %v1116 = vunpack.c.l.b16 %v916
  %v1117 = vunpack.c.l.b16 %v917
  %v1118 = vunpack.c.l.b16 %v918
  %v1119 = vunpack.c.l.b16 %v919
  %v1120 = vunpack.c.l.b16 %v920
  %v1121 = vunpack.c.l.b16 %v921
  %v1122 = vunpack.c.l.b16 %v922
  %v1123 = vunpack.c.l.b16 %v923
  %v1124 = vunpack.c.l.b16 %v924
  %v1125 = vunpack.c.l.b16 %v925
  %v1126 = vunpack.c.l.b16 %v926
  %v1127 = vunpack.c.l.b16 %v927
  %v1128 = vunpack.c.l.b16 %v928
  %v1129 = vunpack.c.l.b16 %v929
  %v1130 = vunpack.c.l.b16 %v930
  %v1131 = vunpack.c.l.b16 %v931
  %v1132 = vunpack.c.l.b16 %v932
  %v1133 = vunpack.c.l.b16 %v933
  %v1134 = vunpack.c.l.b16 %v934
  %v1135 = vunpack.c.l.b16 %v935
  %v1136 = vunpack.c.l.b16 %v936
  %v1137 = vunpack.c.l.b16 %v937
  %v1138 = vunpack.c.l.b16 %v938
  %v1139 = vunpack.c.l.b16 %v939
  %v1140 = vunpack.c.l.b16 %v940
  %v1141 = vunpack.c.l.b16 %v941
  %v1142 = vunpack.c.l.b16 %v942
  %v1143 = vunpack.c.l.b16 %v943
  %v1144 = vunpack.c.l.b16 %v944
  %v1145 = vunpack.c.l.b16 %v945
  %v1146 = vunpack.c.l.b16 %v946
  %v1147 = vunpack.c.l.b16 %v947
  %v1148 = vunpack.c.l.b16 %v948
  %v1149 = vunpack.c.l.b16 %v949
  %v1150 = vunpack.c.l.b16 %v950
  %v1151 = vunpack.c.l.b16 %v951
  %v1152 = vunpack.c.l.b16 %v952
  %v1153 = vunpack.c.l.b16 %v953
  %v1154 = vunpack.c.l.b16 %v954
  %v1155 = vunpack.c.l.b16 %v955
  %v1156 = vunpack.c.l.b16 %v956
  %v1157 = vunpack.c.l.b16 %v957
  %v1158 = vunpack.c.l.b16 %v958
  %v1159 = vunpack.c.l.b16 %v959
  %v1160 = vunpack.c.l.b16 %v960
  %v1161 = vunpack.c.l.b16 %v961
  %v1162 = vunpack.c.l.b16 %v962
  %v1163 = vunpack.c.l.b16 %v963
  %v1164 = vunpack.c.l.b16 %v964
  %v1165 = vunpack.c.l.b16 %v965
  %v1166 = vunpack.c.l.b16 %v966
  %v1167 = vunpack.c.l.b16 %v967
  %v1168 = vunpack.c.l.b16 %v968
  %v1169 = vpack.c.b16 %v1070, %v1069
  %v1170 = vpack.c.b16 %v1072, %v1071
  %v1171 = vpack.c.b16 %v1074, %v1073
  %v1172 = vpack.c.b16 %v1076, %v1075
  %v1173 = vpack.c.b16 %v1078, %v1077
  %v1174 = vpack.c.b16 %v1080, %v1079
  %v1175 = vpack.c.b16 %v1082, %v1081
  %v1176 = vpack.c.b16 %v1084, %v1083
  %v1177 = vpack.c.b16 %v1086, %v1085
  %v1178 = vpack.c.b16 %v1088, %v1087
  %v1179 = vpack.c.b16 %v1090, %v1089
  %v1180 = vpack.c.b16 %v1092, %v1091
  %v1181 = vpack.c.b16 %v1094, %v1093
  %v1182 = vpack.c.b16 %v1096, %v1095
  %v1183 = vpack.c.b16 %v1098, %v1097
  %v1184 = vpack.c.b16 %v1100, %v1099
  %v1185 = vpack.c.b16 %v1102, %v1101
  %v1186 = vpack.c.b16 %v1104, %v1103
  %v1187 = vpack.c.b16 %v1106, %v1105
  %v1188 = vpack.c.b16 %v1108, %v1107
  %v1189 = vpack.c.b16 %v1110, %v1109
  %v1190 = vpack.c.b16 %v1112, %v1111
  %v1191 = vpack.c.b16 %v1114, %v1113
  %v1192 = vpack.c.b16 %v1116, %v1115
  %v1193 = vpack.c.b16 %v1118, %v1117
  %v1194 = vpack.c.b16 %v1120, %v1119
  %v1195 = vpack.c.b16 %v1122, %v1121
  %v1196 = vpack.c.b16 %v1124, %v1123
  %v1197 = vpack.c.b16 %v1126, %v1125
  %v1198 = vpack.c.b16 %v1128, %v1127
  %v1199 = vpack.c.b16 %v1130, %v1129
  %v1200 = vpack.c.b16 %v1132, %v1131
  %v1201 = vpack.c.b16 %v1134, %v1133
  %v1202 = vpack.c.b16 %v1136, %v1135
  %v1203 = vpack.c.b16 %v1138, %v1137
  %v1204 = vpack.c.b16 %v1140, %v1139
  %v1205 = vpack.c.b16 %v1142, %v1141
  %v1206 = vpack.c.b16 %v1144, %v1143
  %v1207 = vpack.c.b16 %v1146, %v1145
  %v1208 = vpack.c.b16 %v1148, %v1147
  %v1209 = vpack.c.b16 %v1150, %v1149
  %v1210 = vpack.c.b16 %v1152, %v1151
  %v1211 = vpack.c.b16 %v1154, %v1153
  %v1212 = vpack.c.b16 %v1156, %v1155
  %v1213 = vpack.c.b16 %v1158, %v1157
  %v1214 = vpack.c.b16 %v1160, %v1159
  %v1215 = vpack.c.b16 %v1162, %v1161
  %v1216 = vpack.c.b16 %v1164, %v1163
  %v1217 = vpack.c.b16 %v1166, %v1165
  %v1218 = vpack.c.b16 %v1168, %v1167
  %1269 = vmatprep.subr.bf16.mxu0 0
  %1270 = vmatpush1.bf16.msra.mxu0 %v1169
  %1271 = vmatprep.subr.bf16.mxu0 0
  %1272 = vmatpush1.bf16.msra.mxu0 %v1170
  %1273 = vmatprep.subr.bf16.mxu0 0
  %1274 = vmatpush1.bf16.msra.mxu0 %v1171
  %1275 = vmatprep.subr.bf16.mxu0 0
  %1276 = vmatpush1.bf16.msra.mxu0 %v1172
  %1277 = vmatprep.subr.bf16.mxu0 0
  %1278 = vmatpush1.bf16.msra.mxu0 %v1173
  %1279 = vmatprep.subr.bf16.mxu0 0
  %1280 = vmatpush1.bf16.msra.mxu0 %v1174
  %1281 = vmatprep.subr.bf16.mxu0 0
  %1282 = vmatpush1.bf16.msra.mxu0 %v1175
  %1283 = vmatprep.subr.bf16.mxu0 0
  %1284 = vmatpush1.bf16.msra.mxu0 %v1176
  %1285 = vmatprep.subr.bf16.mxu0 0
  %1286 = vmatpush1.bf16.msra.mxu0 %v1177
  %1287 = vmatprep.subr.bf16.mxu0 0
  %1288 = vmatpush1.bf16.msra.mxu0 %v1178
  %1289 = vmatprep.subr.bf16.mxu0 0
  %1290 = vmatpush1.bf16.msra.mxu0 %v1179
  %1291 = vmatprep.subr.bf16.mxu0 0
  %1292 = vmatpush1.bf16.msra.mxu0 %v1180
  %1293 = vmatprep.subr.bf16.mxu0 0
  %1294 = vmatpush1.bf16.msra.mxu0 %v1181
  %1295 = vmatprep.subr.bf16.mxu0 0
  %1296 = vmatpush1.bf16.msra.mxu0 %v1182
  %1297 = vmatprep.subr.bf16.mxu0 0
  %1298 = vmatpush1.bf16.msra.mxu0 %v1183
  %1299 = vmatprep.subr.bf16.mxu0 0
  %1300 = vmatpush1.bf16.msra.mxu0 %v1184
  %1301 = vmatprep.mubr.bf16.mxu0 %v245
  %1302 = vmatmul.mubr.bf16.gmra.mrb[0].mxu0 %v244
  %v1303 = vpop.f32.mrb[0].mxu0
  %v1304 = vadd.f32 0.0, %v1303
  %v1305 = vpop.f32.mrb[0].mxu0
  %v1306 = vpop.f32.mrb[0].mxu0
  %v1307 = vadd.f32 0.0, %v1306
  %v1308 = vpop.f32.mrb[0].mxu0
  %1309 = vmatprep.mubr.bf16.mxu0 %v252
  %1310 = vmatmul.mubr.bf16.gmra.mrb[0].mxu0 %v251
  %v1311 = vpop.f32.mrb[0].mxu0
  %v1312 = vadd.f32 0.0, %v1311
  %v1313 = vpop.f32.mrb[0].mxu0
  %v1314 = vpop.f32.mrb[0].mxu0
  %v1315 = vadd.f32 0.0, %v1314
  %v1316 = vpop.f32.mrb[0].mxu0
  %1317 = vmatprep.mubr.bf16.mxu0 %v259
  %1318 = vmatmul.mubr.bf16.gmra.mrb[0].mxu0 %v258
  %v1319 = vpop.f32.mrb[0].mxu0
  %v1320 = vadd.f32 0.0, %v1319
  %v1321 = vpop.f32.mrb[0].mxu0
  %v1322 = vpop.f32.mrb[0].mxu0
  %v1323 = vadd.f32 0.0, %v1322
  %v1324 = vpop.f32.mrb[0].mxu0
  %1325 = vmatprep.mubr.bf16.mxu0 %v266
  %1326 = vmatmul.mubr.bf16.gmra.mrb[0].mxu0 %v265
  %v1327 = vpop.f32.mrb[0].mxu0
  %v1328 = vadd.f32 0.0, %v1327
  %v1329 = vpop.f32.mrb[0].mxu0
  %v1330 = vpop.f32.mrb[0].mxu0
  %v1331 = vadd.f32 0.0, %v1330
  %v1332 = vpop.f32.mrb[0].mxu0
  %1333 = vdwg.mxu0
  %1334 = vmatprep.subr.bf16.mxu0 0
  %1335 = vmatpush1.bf16.msra.mxu0 %v1185
  %1336 = vmatprep.subr.bf16.mxu0 0
  %1337 = vmatpush1.bf16.msra.mxu0 %v1186
  %1338 = vmatprep.subr.bf16.mxu0 0
  %1339 = vmatpush1.bf16.msra.mxu0 %v1187
  %1340 = vmatprep.subr.bf16.mxu0 0
  %1341 = vmatpush1.bf16.msra.mxu0 %v1188
  %1342 = vmatprep.subr.bf16.mxu0 0
  %1343 = vmatpush1.bf16.msra.mxu0 %v1189
  %1344 = vmatprep.subr.bf16.mxu0 0
  %1345 = vmatpush1.bf16.msra.mxu0 %v1190
  %1346 = vmatprep.subr.bf16.mxu0 0
  %1347 = vmatpush1.bf16.msra.mxu0 %v1191
  %1348 = vmatprep.subr.bf16.mxu0 0
  %1349 = vmatpush1.bf16.msra.mxu0 %v1192
  %1350 = vmatprep.subr.bf16.mxu0 0
  %1351 = vmatpush1.bf16.msra.mxu0 %v1193
  %1352 = vmatprep.subr.bf16.mxu0 0
  %1353 = vmatpush1.bf16.msra.mxu0 %v1194
  %1354 = vmatprep.subr.bf16.mxu0 0
  %1355 = vmatpush1.bf16.msra.mxu0 %v1195
  %1356 = vmatprep.subr.bf16.mxu0 0
  %1357 = vmatpush1.bf16.msra.mxu0 %v1196
  %1358 = vmatprep.subr.bf16.mxu0 0
  %1359 = vmatpush1.bf16.msra.mxu0 %v1197
  %1360 = vmatprep.subr.bf16.mxu0 0
  %1361 = vmatpush1.bf16.msra.mxu0 %v1198
  %1362 = vmatprep.subr.bf16.mxu0 0
  %1363 = vmatpush1.bf16.msra.mxu0 %v1199
  %1364 = vmatprep.subr.bf16.mxu0 0
  %1365 = vmatpush1.bf16.msra.mxu0 %v1200
  %1366 = vmatprep.mubr.bf16.mxu0 %v247
  %1367 = vmatmul.mubr.bf16.gmra.mrb[0].mxu0 %v246
  %v1368 = vpop.f32.mrb[0].mxu0
  %v1369 = vadd.f32 %v1304, %v1368
  %v1370 = vpop.f32.mrb[0].mxu0
  %v1371 = vpop.f32.mrb[0].mxu0
  %v1372 = vadd.f32 %v1307, %v1371
  %v1373 = vpop.f32.mrb[0].mxu0
  %1374 = vmatprep.mubr.bf16.mxu0 %v254
  %1375 = vmatmul.mubr.bf16.gmra.mrb[0].mxu0 %v253
  %v1376 = vpop.f32.mrb[0].mxu0
  %v1377 = vadd.f32 %v1312, %v1376
  %v1378 = vpop.f32.mrb[0].mxu0
  %v1379 = vpop.f32.mrb[0].mxu0
  %v1380 = vadd.f32 %v1315, %v1379
  %v1381 = vpop.f32.mrb[0].mxu0
  %1382 = vmatprep.mubr.bf16.mxu0 %v261
  %1383 = vmatmul.mubr.bf16.gmra.mrb[0].mxu0 %v260
  %v1384 = vpop.f32.mrb[0].mxu0
  %v1385 = vadd.f32 %v1320, %v1384
  %v1386 = vpop.f32.mrb[0].mxu0
  %v1387 = vpop.f32.mrb[0].mxu0
  %v1388 = vadd.f32 %v1323, %v1387
  %v1389 = vpop.f32.mrb[0].mxu0
  %1390 = vmatprep.mubr.bf16.mxu0 %v268
  %1391 = vmatmul.mubr.bf16.gmra.mrb[0].mxu0 %v267
  %v1392 = vpop.f32.mrb[0].mxu0
  %v1393 = vadd.f32 %v1328, %v1392
  %v1394 = vpop.f32.mrb[0].mxu0
  %v1395 = vpop.f32.mrb[0].mxu0
  %v1396 = vadd.f32 %v1331, %v1395
  %v1397 = vpop.f32.mrb[0].mxu0
  %1398 = vdwg.mxu0
  %1399 = vmatprep.subr.bf16.mxu0 0
  %1400 = vmatpush1.bf16.msra.mxu0 %v1201
  %1401 = vmatprep.subr.bf16.mxu0 0
  %1402 = vmatpush1.bf16.msra.mxu0 %v1202
  %1403 = vmatprep.subr.bf16.mxu0 0
  %1404 = vmatpush1.bf16.msra.mxu0 %v1203
  %1405 = vmatprep.subr.bf16.mxu0 0
  %1406 = vmatpush1.bf16.msra.mxu0 %v1204
  %1407 = vmatprep.subr.bf16.mxu0 0
  %1408 = vmatpush1.bf16.msra.mxu0 %v1205
  %1409 = vmatprep.subr.bf16.mxu0 0
  %1410 = vmatpush1.bf16.msra.mxu0 %v1206
  %1411 = vmatprep.subr.bf16.mxu0 0
  %1412 = vmatpush1.bf16.msra.mxu0 %v1207
  %1413 = vmatprep.subr.bf16.mxu0 0
  %1414 = vmatpush1.bf16.msra.mxu0 %v1208
  %1415 = vmatprep.subr.bf16.mxu0 0
  %1416 = vmatpush1.bf16.msra.mxu0 %v1209
  %1417 = vmatprep.subr.bf16.mxu0 0
  %1418 = vmatpush1.bf16.msra.mxu0 %v1210
  %1419 = vmatprep.subr.bf16.mxu0 0
  %1420 = vmatpush1.bf16.msra.mxu0 %v1211
  %1421 = vmatprep.subr.bf16.mxu0 0
  %1422 = vmatpush1.bf16.msra.mxu0 %v1212
  %1423 = vmatprep.subr.bf16.mxu0 0
  %1424 = vmatpush1.bf16.msra.mxu0 %v1213
  %1425 = vmatprep.subr.bf16.mxu0 0
  %1426 = vmatpush1.bf16.msra.mxu0 %v1214
  %1427 = vmatprep.subr.bf16.mxu0 0
  %1428 = vmatpush1.bf16.msra.mxu0 %v1215
  %1429 = vmatprep.subr.bf16.mxu0 0
  %1430 = vmatpush1.bf16.msra.mxu0 %v1216
  %1431 = vmatprep.mubr.bf16.mxu0 %v249
  %1432 = vmatmul.mubr.bf16.gmra.mrb[0].mxu0 %v248
  %v1433 = vpop.f32.mrb[0].mxu0
  %v1434 = vadd.f32 %v1369, %v1433
  %v1435 = vpop.f32.mrb[0].mxu0
  %v1436 = vpop.f32.mrb[0].mxu0
  %v1437 = vadd.f32 %v1372, %v1436
  %v1438 = vpop.f32.mrb[0].mxu0
  %1439 = vmatprep.mubr.bf16.mxu0 %v256
  %1440 = vmatmul.mubr.bf16.gmra.mrb[0].mxu0 %v255
  %v1441 = vpop.f32.mrb[0].mxu0
  %v1442 = vadd.f32 %v1377, %v1441
  %v1443 = vpop.f32.mrb[0].mxu0
  %v1444 = vpop.f32.mrb[0].mxu0
  %v1445 = vadd.f32 %v1380, %v1444
  %v1446 = vpop.f32.mrb[0].mxu0
  %1447 = vmatprep.mubr.bf16.mxu0 %v263
  %1448 = vmatmul.mubr.bf16.gmra.mrb[0].mxu0 %v262
  %v1449 = vpop.f32.mrb[0].mxu0
  %v1450 = vadd.f32 %v1385, %v1449
  %v1451 = vpop.f32.mrb[0].mxu0
  %v1452 = vpop.f32.mrb[0].mxu0
  %v1453 = vadd.f32 %v1388, %v1452
  %v1454 = vpop.f32.mrb[0].mxu0
  %1455 = vmatprep.mubr.bf16.mxu0 %v270
  %1456 = vmatmul.mubr.bf16.gmra.mrb[0].mxu0 %v269
  %v1457 = vpop.f32.mrb[0].mxu0
  %v1458 = vadd.f32 %v1393, %v1457
  %v1459 = vpop.f32.mrb[0].mxu0
  %v1460 = vpop.f32.mrb[0].mxu0
  %v1461 = vadd.f32 %v1396, %v1460
  %v1462 = vpop.f32.mrb[0].mxu0
  %1463 = vdwg.mxu0
  %1464 = vmatprep.subr.bf16.mxu0 0
  %1465 = vmatpush1.bf16.msra.mxu0 %v1217
  %1466 = vmatprep.subr.bf16.mxu0 0
  %1467 = vmatpush1.bf16.msra.mxu0 %v1218
  %1468 = vmatprep.subr.bf16.mxu0 0
  %1469 = vmatpush1.bf16.msra.mxu0 0
  %1470 = vmatprep.subr.bf16.mxu0 0
  %1471 = vmatpush1.bf16.msra.mxu0 0
  %1472 = vmatprep.subr.bf16.mxu0 0
  %1473 = vmatpush1.bf16.msra.mxu0 0
  %1474 = vmatprep.subr.bf16.mxu0 0
  %1475 = vmatpush1.bf16.msra.mxu0 0
  %1476 = vmatprep.subr.bf16.mxu0 0
  %1477 = vmatpush1.bf16.msra.mxu0 0
  %1478 = vmatprep.subr.bf16.mxu0 0
  %1479 = vmatpush1.bf16.msra.mxu0 0
  %1480 = vmatprep.subr.bf16.mxu0 0
  %1481 = vmatpush1.bf16.msra.mxu0 0
  %1482 = vmatprep.subr.bf16.mxu0 0
  %1483 = vmatpush1.bf16.msra.mxu0 0
  %1484 = vmatprep.subr.bf16.mxu0 0
  %1485 = vmatpush1.bf16.msra.mxu0 0
  %1486 = vmatprep.subr.bf16.mxu0 0
  %1487 = vmatpush1.bf16.msra.mxu0 0
  %1488 = vmatprep.subr.bf16.mxu0 0
  %1489 = vmatpush1.bf16.msra.mxu0 0
  %1490 = vmatprep.subr.bf16.mxu0 0
  %1491 = vmatpush1.bf16.msra.mxu0 0
  %1492 = vmatprep.subr.bf16.mxu0 0
  %1493 = vmatpush1.bf16.msra.mxu0 0
  %1494 = vmatprep.subr.bf16.mxu0 0
  %1495 = vmatpush1.bf16.msra.mxu0 0
  %1496 = vmatprep.mubr.bf16.mxu0 0
  %1497 = vmatmul.mubr.bf16.gmra.mrb[0].mxu0 %v598
  %v1498 = vpop.f32.mrb[0].mxu0
  %v1499 = vadd.f32 %v1434, %v1498
  %v1500 = vpop.f32.mrb[0].mxu0
  %v1501 = vpop.f32.mrb[0].mxu0
  %v1502 = vadd.f32 %v1437, %v1501
  %v1503 = vpop.f32.mrb[0].mxu0
  %1504 = vmatprep.mubr.bf16.mxu0 0
  %1505 = vmatmul.mubr.bf16.gmra.mrb[0].mxu0 %v601
  %v1506 = vpop.f32.mrb[0].mxu0
  %v1507 = vadd.f32 %v1442, %v1506
  %v1508 = vpop.f32.mrb[0].mxu0
  %v1509 = vpop.f32.mrb[0].mxu0
  %v1510 = vadd.f32 %v1445, %v1509
  %v1511 = vpop.f32.mrb[0].mxu0
  %1512 = vmatprep.mubr.bf16.mxu0 0
  %1513 = vmatmul.mubr.bf16.gmra.mrb[0].mxu0 %v604
  %v1514 = vpop.f32.mrb[0].mxu0
  %v1515 = vadd.f32 %v1450, %v1514
  %v1516 = vpop.f32.mrb[0].mxu0
  %v1517 = vpop.f32.mrb[0].mxu0
  %v1518 = vadd.f32 %v1453, %v1517
  %v1519 = vpop.f32.mrb[0].mxu0
  %1520 = vmatprep.mubr.bf16.mxu0 0
  %1521 = vmatmul.mubr.bf16.gmra.mrb[0].mxu0 %v607
  %v1522 = vpop.f32.mrb[0].mxu0
  %v1523 = vadd.f32 %v1458, %v1522
  %v1524 = vpop.f32.mrb[0].mxu0
  %v1525 = vpop.f32.mrb[0].mxu0
  %v1526 = vadd.f32 %v1461, %v1525
  %v1527 = vpop.f32.mrb[0].mxu0
  %1528 = vdwg.mxu0
  %v1529 = vmax.f32 %v839, %v1499
  %v1530 = vmax.f32 %v842, %v1502
  %v1531 = vmax.f32 %v847, %v1507
  %v1532 = vmax.f32 %v850, %v1510
  %v1533 = vmax.f32 %v855, %v1515
  %v1534 = vmax.f32 %v858, %v1518
  %v1535 = vmax.f32 %v863, %v1523
  %v1536 = vmax.f32 %v866, %v1526
  %v1537 = vld [vmem:[%s4] sm:$0xf]
  %v1538 = vld [vmem:[%s4 + $0x4] sm:$0xf]
  %v1539 = vld [vmem:[%s4 + $0x8] sm:$0xf]
  %v1540 = vld [vmem:[%s4 + $0xc] sm:$0xf]
  %v1541 = vld [vmem:[%s4 + $0x10] sm:$0xf]
  %v1542 = vld [vmem:[%s4 + $0x14] sm:$0xf]
  %v1543 = vld [vmem:[%s4 + $0x18] sm:$0xf]
  %v1544 = vld [vmem:[%s4 + $0x1c] sm:$0xf]
  %v1545 = vld [vmem:[%s4 + $0x20] sm:$0xf]
  %v1546 = vld [vmem:[%s4 + $0x24] sm:$0xf]
  %v1547 = vld [vmem:[%s4 + $0x28] sm:$0xf]
  %v1548 = vld [vmem:[%s4 + $0x2c] sm:$0xf]
  %v1549 = vld [vmem:[%s4 + $0x30] sm:$0xf]
  %v1550 = vld [vmem:[%s4 + $0x34] sm:$0xf]
  %v1551 = vld [vmem:[%s4 + $0x38] sm:$0xf]
  %v1552 = vld [vmem:[%s4 + $0x3c] sm:$0xf]
  %v1553 = vld [vmem:[%s4 + $0x40] sm:$0xf]
  %v1554 = vld [vmem:[%s4 + $0x44] sm:$0xf]
  %v1555 = vld [vmem:[%s4 + $0x48] sm:$0xf]
  %v1556 = vld [vmem:[%s4 + $0x4c] sm:$0xf]
  %v1557 = vld [vmem:[%s4 + $0x50] sm:$0xf]
  %v1558 = vld [vmem:[%s4 + $0x54] sm:$0xf]
  %v1559 = vld [vmem:[%s4 + $0x58] sm:$0xf]
  %v1560 = vld [vmem:[%s4 + $0x5c] sm:$0xf]
  %v1561 = vld [vmem:[%s4 + $0x60] sm:$0xf]
  %v1562 = vld [vmem:[%s4 + $0x64] sm:$0xf]
  %v1563 = vld [vmem:[%s4 + $0x68] sm:$0xf]
  %v1564 = vld [vmem:[%s4 + $0x6c] sm:$0xf]
  %v1565 = vld [vmem:[%s4 + $0x70] sm:$0xf]
  %v1566 = vld [vmem:[%s4 + $0x74] sm:$0xf]
  %v1567 = vld [vmem:[%s4 + $0x78] sm:$0xf]
  %v1568 = vld [vmem:[%s4 + $0x7c] sm:$0xf]
  %v1569 = vld [vmem:[%s4 + $0x80] sm:$0xf]
  %v1570 = vld [vmem:[%s4 + $0x84] sm:$0xf]
  %v1571 = vld [vmem:[%s4 + $0x88] sm:$0xf]
  %v1572 = vld [vmem:[%s4 + $0x8c] sm:$0xf]
  %v1573 = vld [vmem:[%s4 + $0x90] sm:$0xf]
  %v1574 = vld [vmem:[%s4 + $0x94] sm:$0xf]
  %v1575 = vld [vmem:[%s4 + $0x98] sm:$0xf]
  %v1576 = vld [vmem:[%s4 + $0x9c] sm:$0xf]
  %v1577 = vld [vmem:[%s4 + $0xa0] sm:$0xf]
  %v1578 = vld [vmem:[%s4 + $0xa4] sm:$0xf]
  %v1579 = vld [vmem:[%s4 + $0xa8] sm:$0xf]
  %v1580 = vld [vmem:[%s4 + $0xac] sm:$0xf]
  %v1581 = vld [vmem:[%s4 + $0xb0] sm:$0xf]
  %v1582 = vld [vmem:[%s4 + $0xb4] sm:$0xf]
  %v1583 = vld [vmem:[%s4 + $0xb8] sm:$0xf]
  %v1584 = vld [vmem:[%s4 + $0xbc] sm:$0xf]
  %v1585 = vld [vmem:[%s4 + $0xc0] sm:$0xf]
  %v1586 = vld [vmem:[%s4 + $0xc4] sm:$0xf]
  %v1587 = vld [vmem:[%s4 + $0xc8] sm:$0xf]
  %v1588 = vld [vmem:[%s4 + $0xcc] sm:$0xf]
  %v1589 = vld [vmem:[%s4 + $0xd0] sm:$0xf]
  %v1590 = vld [vmem:[%s4 + $0xd4] sm:$0xf]
  %v1591 = vld [vmem:[%s4 + $0xd8] sm:$0xf]
  %v1592 = vld [vmem:[%s4 + $0xdc] sm:$0xf]
  %v1593 = vld [vmem:[%s4 + $0xe0] sm:$0xf]
  %v1594 = vld [vmem:[%s4 + $0xe4] sm:$0xf]
  %v1595 = vld [vmem:[%s4 + $0xe8] sm:$0xf]
  %v1596 = vld [vmem:[%s4 + $0xec] sm:$0xf]
  %v1597 = vld [vmem:[%s4 + $0xf0] sm:$0xf]
  %v1598 = vld [vmem:[%s4 + $0xf4] sm:$0xf]
  %v1599 = vld [vmem:[%s4 + $0xf8] sm:$0xf]
  %v1600 = vld [vmem:[%s4 + $0xfc] sm:$0xf]
  %v1601 = vld [vmem:[%s4 + $0x100] sm:$0xf]
  %v1602 = vld [vmem:[%s4 + $0x104] sm:$0xf]
  %v1603 = vld [vmem:[%s4 + $0x108] sm:$0xf]
  %v1604 = vld [vmem:[%s4 + $0x10c] sm:$0xf]
  %v1605 = vld [vmem:[%s4 + $0x110] sm:$0xf]
  %v1606 = vld [vmem:[%s4 + $0x114] sm:$0xf]
  %v1607 = vld [vmem:[%s4 + $0x118] sm:$0xf]
  %v1608 = vld [vmem:[%s4 + $0x11c] sm:$0xf]
  %v1609 = vld [vmem:[%s4 + $0x120] sm:$0xf]
  %v1610 = vld [vmem:[%s4 + $0x124] sm:$0xf]
  %v1611 = vld [vmem:[%s4 + $0x128] sm:$0xf]
  %v1612 = vld [vmem:[%s4 + $0x12c] sm:$0xf]
  %v1613 = vld [vmem:[%s4 + $0x130] sm:$0xf]
  %v1614 = vld [vmem:[%s4 + $0x134] sm:$0xf]
  %v1615 = vld [vmem:[%s4 + $0x138] sm:$0xf]
  %v1616 = vld [vmem:[%s4 + $0x13c] sm:$0xf]
  %v1617 = vld [vmem:[%s4 + $0x140] sm:$0xf]
  %v1618 = vld [vmem:[%s4 + $0x144] sm:$0xf]
  %v1619 = vld [vmem:[%s4 + $0x148] sm:$0xf]
  %v1620 = vld [vmem:[%s4 + $0x14c] sm:$0xf]
  %v1621 = vld [vmem:[%s4 + $0x150] sm:$0xf]
  %v1622 = vld [vmem:[%s4 + $0x154] sm:$0xf]
  %v1623 = vld [vmem:[%s4 + $0x158] sm:$0xf]
  %v1624 = vld [vmem:[%s4 + $0x15c] sm:$0xf]
  %v1625 = vld [vmem:[%s4 + $0x160] sm:$0xf]
  %v1626 = vld [vmem:[%s4 + $0x164] sm:$0xf]
  %v1627 = vld [vmem:[%s4 + $0x168] sm:$0xf]
  %v1628 = vld [vmem:[%s4 + $0x16c] sm:$0xf]
  %v1629 = vld [vmem:[%s4 + $0x170] sm:$0xf]
  %v1630 = vld [vmem:[%s4 + $0x174] sm:$0xf]
  %v1631 = vld [vmem:[%s4 + $0x178] sm:$0xf]
  %v1632 = vld [vmem:[%s4 + $0x17c] sm:$0xf]
  %v1633 = vld [vmem:[%s4 + $0x180] sm:$0xf]
  %v1634 = vld [vmem:[%s4 + $0x184] sm:$0xf]
  %v1635 = vld [vmem:[%s4 + $0x188] sm:$0xf]
  %v1636 = vld [vmem:[%s4 + $0x18c] sm:$0xf]
  %v1737 = vunpack.c.l.b16 %v1537
  %v1738 = vunpack.c.l.b16 %v1538
  %v1739 = vunpack.c.l.b16 %v1539
  %v1740 = vunpack.c.l.b16 %v1540
  %v1741 = vunpack.c.l.b16 %v1541
  %v1742 = vunpack.c.l.b16 %v1542
  %v1743 = vunpack.c.l.b16 %v1543
  %v1744 = vunpack.c.l.b16 %v1544
  %v1745 = vunpack.c.l.b16 %v1545
  %v1746 = vunpack.c.l.b16 %v1546
  %v1747 = vunpack.c.l.b16 %v1547
  %v1748 = vunpack.c.l.b16 %v1548
  %v1749 = vunpack.c.l.b16 %v1549
  %v1750 = vunpack.c.l.b16 %v1550
  %v1751 = vunpack.c.l.b16 %v1551
  %v1752 = vunpack.c.l.b16 %v1552
  %v1753 = vunpack.c.l.b16 %v1553
  %v1754 = vunpack.c.l.b16 %v1554
  %v1755 = vunpack.c.l.b16 %v1555
  %v1756 = vunpack.c.l.b16 %v1556
  %v1757 = vunpack.c.l.b16 %v1557
  %v1758 = vunpack.c.l.b16 %v1558
  %v1759 = vunpack.c.l.b16 %v1559
  %v1760 = vunpack.c.l.b16 %v1560
  %v1761 = vunpack.c.l.b16 %v1561
  %v1762 = vunpack.c.l.b16 %v1562
  %v1763 = vunpack.c.l.b16 %v1563
  %v1764 = vunpack.c.l.b16 %v1564
  %v1765 = vunpack.c.l.b16 %v1565
  %v1766 = vunpack.c.l.b16 %v1566
  %v1767 = vunpack.c.l.b16 %v1567
  %v1768 = vunpack.c.l.b16 %v1568
  %v1769 = vunpack.c.l.b16 %v1569
  %v1770 = vunpack.c.l.b16 %v1570
  %v1771 = vunpack.c.l.b16 %v1571
  %v1772 = vunpack.c.l.b16 %v1572
  %v1773 = vunpack.c.l.b16 %v1573
  %v1774 = vunpack.c.l.b16 %v1574
  %v1775 = vunpack.c.l.b16 %v1575
  %v1776 = vunpack.c.l.b16 %v1576
  %v1777 = vunpack.c.l.b16 %v1577
  %v1778 = vunpack.c.l.b16 %v1578
  %v1779 = vunpack.c.l.b16 %v1579
  %v1780 = vunpack.c.l.b16 %v1580
  %v1781 = vunpack.c.l.b16 %v1581
  %v1782 = vunpack.c.l.b16 %v1582
  %v1783 = vunpack.c.l.b16 %v1583
  %v1784 = vunpack.c.l.b16 %v1584
  %v1785 = vunpack.c.l.b16 %v1585
  %v1786 = vunpack.c.l.b16 %v1586
  %v1787 = vunpack.c.l.b16 %v1587
  %v1788 = vunpack.c.l.b16 %v1588
  %v1789 = vunpack.c.l.b16 %v1589
  %v1790 = vunpack.c.l.b16 %v1590
  %v1791 = vunpack.c.l.b16 %v1591
  %v1792 = vunpack.c.l.b16 %v1592
  %v1793 = vunpack.c.l.b16 %v1593
  %v1794 = vunpack.c.l.b16 %v1594
  %v1795 = vunpack.c.l.b16 %v1595
  %v1796 = vunpack.c.l.b16 %v1596
  %v1797 = vunpack.c.l.b16 %v1597
  %v1798 = vunpack.c.l.b16 %v1598
  %v1799 = vunpack.c.l.b16 %v1599
  %v1800 = vunpack.c.l.b16 %v1600
  %v1801 = vunpack.c.l.b16 %v1601
  %v1802 = vunpack.c.l.b16 %v1602
  %v1803 = vunpack.c.l.b16 %v1603
  %v1804 = vunpack.c.l.b16 %v1604
  %v1805 = vunpack.c.l.b16 %v1605
  %v1806 = vunpack.c.l.b16 %v1606
  %v1807 = vunpack.c.l.b16 %v1607
  %v1808 = vunpack.c.l.b16 %v1608
  %v1809 = vunpack.c.l.b16 %v1609
  %v1810 = vunpack.c.l.b16 %v1610
  %v1811 = vunpack.c.l.b16 %v1611
  %v1812 = vunpack.c.l.b16 %v1612
  %v1813 = vunpack.c.l.b16 %v1613
  %v1814 = vunpack.c.l.b16 %v1614
  %v1815 = vunpack.c.l.b16 %v1615
  %v1816 = vunpack.c.l.b16 %v1616
  %v1817 = vunpack.c.l.b16 %v1617
  %v1818 = vunpack.c.l.b16 %v1618
  %v1819 = vunpack.c.l.b16 %v1619
  %v1820 = vunpack.c.l.b16 %v1620
  %v1821 = vunpack.c.l.b16 %v1621
  %v1822 = vunpack.c.l.b16 %v1622
  %v1823 = vunpack.c.l.b16 %v1623
  %v1824 = vunpack.c.l.b16 %v1624
  %v1825 = vunpack.c.l.b16 %v1625
  %v1826 = vunpack.c.l.b16 %v1626
  %v1827 = vunpack.c.l.b16 %v1627
  %v1828 = vunpack.c.l.b16 %v1628
  %v1829 = vunpack.c.l.b16 %v1629
  %v1830 = vunpack.c.l.b16 %v1630
  %v1831 = vunpack.c.l.b16 %v1631
  %v1832 = vunpack.c.l.b16 %v1632
  %v1833 = vunpack.c.l.b16 %v1633
  %v1834 = vunpack.c.l.b16 %v1634
  %v1835 = vunpack.c.l.b16 %v1635
  %v1836 = vunpack.c.l.b16 %v1636
  %v1837 = vpack.c.b16 %v1738, %v1737
  %v1838 = vpack.c.b16 %v1740, %v1739
  %v1839 = vpack.c.b16 %v1742, %v1741
  %v1840 = vpack.c.b16 %v1744, %v1743
  %v1841 = vpack.c.b16 %v1746, %v1745
  %v1842 = vpack.c.b16 %v1748, %v1747
  %v1843 = vpack.c.b16 %v1750, %v1749
  %v1844 = vpack.c.b16 %v1752, %v1751
  %v1845 = vpack.c.b16 %v1754, %v1753
  %v1846 = vpack.c.b16 %v1756, %v1755
  %v1847 = vpack.c.b16 %v1758, %v1757
  %v1848 = vpack.c.b16 %v1760, %v1759
  %v1849 = vpack.c.b16 %v1762, %v1761
  %v1850 = vpack.c.b16 %v1764, %v1763
  %v1851 = vpack.c.b16 %v1766, %v1765
  %v1852 = vpack.c.b16 %v1768, %v1767
  %v1853 = vpack.c.b16 %v1770, %v1769
  %v1854 = vpack.c.b16 %v1772, %v1771
  %v1855 = vpack.c.b16 %v1774, %v1773
  %v1856 = vpack.c.b16 %v1776, %v1775
  %v1857 = vpack.c.b16 %v1778, %v1777
  %v1858 = vpack.c.b16 %v1780, %v1779
  %v1859 = vpack.c.b16 %v1782, %v1781
  %v1860 = vpack.c.b16 %v1784, %v1783
  %v1861 = vpack.c.b16 %v1786, %v1785
  %v1862 = vpack.c.b16 %v1788, %v1787
  %v1863 = vpack.c.b16 %v1790, %v1789
  %v1864 = vpack.c.b16 %v1792, %v1791
  %v1865 = vpack.c.b16 %v1794, %v1793
  %v1866 = vpack.c.b16 %v1796, %v1795
  %v1867 = vpack.c.b16 %v1798, %v1797
  %v1868 = vpack.c.b16 %v1800, %v1799
  %v1869 = vpack.c.b16 %v1802, %v1801
  %v1870 = vpack.c.b16 %v1804, %v1803
  %v1871 = vpack.c.b16 %v1806, %v1805
  %v1872 = vpack.c.b16 %v1808, %v1807
  %v1873 = vpack.c.b16 %v1810, %v1809
  %v1874 = vpack.c.b16 %v1812, %v1811
  %v1875 = vpack.c.b16 %v1814, %v1813
  %v1876 = vpack.c.b16 %v1816, %v1815
  %v1877 = vpack.c.b16 %v1818, %v1817
  %v1878 = vpack.c.b16 %v1820, %v1819
  %v1879 = vpack.c.b16 %v1822, %v1821
  %v1880 = vpack.c.b16 %v1824, %v1823
  %v1881 = vpack.c.b16 %v1826, %v1825
  %v1882 = vpack.c.b16 %v1828, %v1827
  %v1883 = vpack.c.b16 %v1830, %v1829
  %v1884 = vpack.c.b16 %v1832, %v1831
  %v1885 = vpack.c.b16 %v1834, %v1833
  %v1886 = vpack.c.b16 %v1836, %v1835
  %1937 = vmatprep.subr.bf16.mxu0 0
  %1938 = vmatpush1.bf16.msra.mxu0 %v1837
  %1939 = vmatprep.subr.bf16.mxu0 0
  %1940 = vmatpush1.bf16.msra.mxu0 %v1838
  %1941 = vmatprep.subr.bf16.mxu0 0
  %1942 = vmatpush1.bf16.msra.mxu0 %v1839
  %1943 = vmatprep.subr.bf16.mxu0 0
  %1944 = vmatpush1.bf16.msra.mxu0 %v1840
  %1945 = vmatprep.subr.bf16.mxu0 0
  %1946 = vmatpush1.bf16.msra.mxu0 %v1841
  %1947 = vmatprep.subr.bf16.mxu0 0
  %1948 = vmatpush1.bf16.msra.mxu0 %v1842
  %1949 = vmatprep.subr.bf16.mxu0 0
  %1950 = vmatpush1.bf16.msra.mxu0 %v1843
  %1951 = vmatprep.subr.bf16.mxu0 0
  %1952 = vmatpush1.bf16.msra.mxu0 %v1844
  %1953 = vmatprep.subr.bf16.mxu0 0
  %1954 = vmatpush1.bf16.msra.mxu0 %v1845
  %1955 = vmatprep.subr.bf16.mxu0 0
  %1956 = vmatpush1.bf16.msra.mxu0 %v1846
  %1957 = vmatprep.subr.bf16.mxu0 0
  %1958 = vmatpush1.bf16.msra.mxu0 %v1847
  %1959 = vmatprep.subr.bf16.mxu0 0
  %1960 = vmatpush1.bf16.msra.mxu0 %v1848
  %1961 = vmatprep.subr.bf16.mxu0 0
  %1962 = vmatpush1.bf16.msra.mxu0 %v1849
  %1963 = vmatprep.subr.bf16.mxu0 0
  %1964 = vmatpush1.bf16.msra.mxu0 %v1850
  %1965 = vmatprep.subr.bf16.mxu0 0
  %1966 = vmatpush1.bf16.msra.mxu0 %v1851
  %1967 = vmatprep.subr.bf16.mxu0 0
  %1968 = vmatpush1.bf16.msra.mxu0 %v1852
  %1969 = vmatprep.mubr.bf16.mxu0 %v245
  %1970 = vmatmul.mubr.bf16.gmra.mrb[0].mxu0 %v244
  %v1971 = vpop.f32.mrb[0].mxu0
  %v1972 = vadd.f32 0.0, %v1971
  %v1973 = vpop.f32.mrb[0].mxu0
  %v1974 = vpop.f32.mrb[0].mxu0
  %v1975 = vadd.f32 0.0, %v1974
  %v1976 = vpop.f32.mrb[0].mxu0
  %1977 = vmatprep.mubr.bf16.mxu0 %v252
  %1978 = vmatmul.mubr.bf16.gmra.mrb[0].mxu0 %v251
  %v1979 = vpop.f32.mrb[0].mxu0
  %v1980 = vadd.f32 0.0, %v1979
  %v1981 = vpop.f32.mrb[0].mxu0
  %v1982 = vpop.f32.mrb[0].mxu0
  %v1983 = vadd.f32 0.0, %v1982
  %v1984 = vpop.f32.mrb[0].mxu0
  %1985 = vmatprep.mubr.bf16.mxu0 %v259
  %1986 = vmatmul.mubr.bf16.gmra.mrb[0].mxu0 %v258
  %v1987 = vpop.f32.mrb[0].mxu0
  %v1988 = vadd.f32 0.0, %v1987
  %v1989 = vpop.f32.mrb[0].mxu0
  %v1990 = vpop.f32.mrb[0].mxu0
  %v1991 = vadd.f32 0.0, %v1990
  %v1992 = vpop.f32.mrb[0].mxu0
  %1993 = vmatprep.mubr.bf16.mxu0 %v266
  %1994 = vmatmul.mubr.bf16.gmra.mrb[0].mxu0 %v265
  %v1995 = vpop.f32.mrb[0].mxu0
  %v1996 = vadd.f32 0.0, %v1995
  %v1997 = vpop.f32.mrb[0].mxu0
  %v1998 = vpop.f32.mrb[0].mxu0
  %v1999 = vadd.f32 0.0, %v1998
  %v2000 = vpop.f32.mrb[0].mxu0
  %2001 = vdwg.mxu0
  %2002 = vmatprep.subr.bf16.mxu0 0
  %2003 = vmatpush1.bf16.msra.mxu0 %v1853
  %2004 = vmatprep.subr.bf16.mxu0 0
  %2005 = vmatpush1.bf16.msra.mxu0 %v1854
  %2006 = vmatprep.subr.bf16.mxu0 0
  %2007 = vmatpush1.bf16.msra.mxu0 %v1855
  %2008 = vmatprep.subr.bf16.mxu0 0
  %2009 = vmatpush1.bf16.msra.mxu0 %v1856
  %2010 = vmatprep.subr.bf16.mxu0 0
  %2011 = vmatpush1.bf16.msra.mxu0 %v1857
  %2012 = vmatprep.subr.bf16.mxu0 0
  %2013 = vmatpush1.bf16.msra.mxu0 %v1858
  %2014 = vmatprep.subr.bf16.mxu0 0
  %2015 = vmatpush1.bf16.msra.mxu0 %v1859
  %2016 = vmatprep.subr.bf16.mxu0 0
  %2017 = vmatpush1.bf16.msra.mxu0 %v1860
  %2018 = vmatprep.subr.bf16.mxu0 0
  %2019 = vmatpush1.bf16.msra.mxu0 %v1861
  %2020 = vmatprep.subr.bf16.mxu0 0
  %2021 = vmatpush1.bf16.msra.mxu0 %v1862
  %2022 = vmatprep.subr.bf16.mxu0 0
  %2023 = vmatpush1.bf16.msra.mxu0 %v1863
  %2024 = vmatprep.subr.bf16.mxu0 0
  %2025 = vmatpush1.bf16.msra.mxu0 %v1864
  %2026 = vmatprep.subr.bf16.mxu0 0
  %2027 = vmatpush1.bf16.msra.mxu0 %v1865
  %2028 = vmatprep.subr.bf16.mxu0 0
  %2029 = vmatpush1.bf16.msra.mxu0 %v1866
  %2030 = vmatprep.subr.bf16.mxu0 0
  %2031 = vmatpush1.bf16.msra.mxu0 %v1867
  %2032 = vmatprep.subr.bf16.mxu0 0
  %2033 = vmatpush1.bf16.msra.mxu0 %v1868
  %2034 = vmatprep.mubr.bf16.mxu0 %v247
  %2035 = vmatmul.mubr.bf16.gmra.mrb[0].mxu0 %v246
  %v2036 = vpop.f32.mrb[0].mxu0
  %v2037 = vadd.f32 %v1972, %v2036
  %v2038 = vpop.f32.mrb[0].mxu0
  %v2039 = vpop.f32.mrb[0].mxu0
  %v2040 = vadd.f32 %v1975, %v2039
  %v2041 = vpop.f32.mrb[0].mxu0
  %2042 = vmatprep.mubr.bf16.mxu0 %v254
  %2043 = vmatmul.mubr.bf16.gmra.mrb[0].mxu0 %v253
  %v2044 = vpop.f32.mrb[0].mxu0
  %v2045 = vadd.f32 %v1980, %v2044
  %v2046 = vpop.f32.mrb[0].mxu0
  %v2047 = vpop.f32.mrb[0].mxu0
  %v2048 = vadd.f32 %v1983, %v2047
  %v2049 = vpop.f32.mrb[0].mxu0
  %2050 = vmatprep.mubr.bf16.mxu0 %v261
  %2051 = vmatmul.mubr.bf16.gmra.mrb[0].mxu0 %v260
  %v2052 = vpop.f32.mrb[0].mxu0
  %v2053 = vadd.f32 %v1988, %v2052
  %v2054 = vpop.f32.mrb[0].mxu0
  %v2055 = vpop.f32.mrb[0].mxu0
  %v2056 = vadd.f32 %v1991, %v2055
  %v2057 = vpop.f32.mrb[0].mxu0
  %2058 = vmatprep.mubr.bf16.mxu0 %v268
  %2059 = vmatmul.mubr.bf16.gmra.mrb[0].mxu0 %v267
  %v2060 = vpop.f32.mrb[0].mxu0
  %v2061 = vadd.f32 %v1996, %v2060
  %v2062 = vpop.f32.mrb[0].mxu0
  %v2063 = vpop.f32.mrb[0].mxu0
  %v2064 = vadd.f32 %v1999, %v2063
  %v2065 = vpop.f32.mrb[0].mxu0
  %2066 = vdwg.mxu0
  %2067 = vmatprep.subr.bf16.mxu0 0
  %2068 = vmatpush1.bf16.msra.mxu0 %v1869
  %2069 = vmatprep.subr.bf16.mxu0 0
  %2070 = vmatpush1.bf16.msra.mxu0 %v1870
  %2071 = vmatprep.subr.bf16.mxu0 0
  %2072 = vmatpush1.bf16.msra.mxu0 %v1871
  %2073 = vmatprep.subr.bf16.mxu0 0
  %2074 = vmatpush1.bf16.msra.mxu0 %v1872
  %2075 = vmatprep.subr.bf16.mxu0 0
  %2076 = vmatpush1.bf16.msra.mxu0 %v1873
  %2077 = vmatprep.subr.bf16.mxu0 0
  %2078 = vmatpush1.bf16.msra.mxu0 %v1874
  %2079 = vmatprep.subr.bf16.mxu0 0
  %2080 = vmatpush1.bf16.msra.mxu0 %v1875
  %2081 = vmatprep.subr.bf16.mxu0 0
  %2082 = vmatpush1.bf16.msra.mxu0 %v1876
  %2083 = vmatprep.subr.bf16.mxu0 0
  %2084 = vmatpush1.bf16.msra.mxu0 %v1877
  %2085 = vmatprep.subr.bf16.mxu0 0
  %2086 = vmatpush1.bf16.msra.mxu0 %v1878
  %2087 = vmatprep.subr.bf16.mxu0 0
  %2088 = vmatpush1.bf16.msra.mxu0 %v1879
  %2089 = vmatprep.subr.bf16.mxu0 0
  %2090 = vmatpush1.bf16.msra.mxu0 %v1880
  %2091 = vmatprep.subr.bf16.mxu0 0
  %2092 = vmatpush1.bf16.msra.mxu0 %v1881
  %2093 = vmatprep.subr.bf16.mxu0 0
  %2094 = vmatpush1.bf16.msra.mxu0 %v1882
  %2095 = vmatprep.subr.bf16.mxu0 0
  %2096 = vmatpush1.bf16.msra.mxu0 %v1883
  %2097 = vmatprep.subr.bf16.mxu0 0
  %2098 = vmatpush1.bf16.msra.mxu0 %v1884
  %2099 = vmatprep.mubr.bf16.mxu0 %v249
  %2100 = vmatmul.mubr.bf16.gmra.mrb[0].mxu0 %v248
  %v2101 = vpop.f32.mrb[0].mxu0
  %v2102 = vadd.f32 %v2037, %v2101
  %v2103 = vpop.f32.mrb[0].mxu0
  %v2104 = vpop.f32.mrb[0].mxu0
  %v2105 = vadd.f32 %v2040, %v2104
  %v2106 = vpop.f32.mrb[0].mxu0
  %2107 = vmatprep.mubr.bf16.mxu0 %v256
  %2108 = vmatmul.mubr.bf16.gmra.mrb[0].mxu0 %v255
  %v2109 = vpop.f32.mrb[0].mxu0
  %v2110 = vadd.f32 %v2045, %v2109
  %v2111 = vpop.f32.mrb[0].mxu0
  %v2112 = vpop.f32.mrb[0].mxu0
  %v2113 = vadd.f32 %v2048, %v2112
  %v2114 = vpop.f32.mrb[0].mxu0
  %2115 = vmatprep.mubr.bf16.mxu0 %v263
  %2116 = vmatmul.mubr.bf16.gmra.mrb[0].mxu0 %v262
  %v2117 = vpop.f32.mrb[0].mxu0
  %v2118 = vadd.f32 %v2053, %v2117
  %v2119 = vpop.f32.mrb[0].mxu0
  %v2120 = vpop.f32.mrb[0].mxu0
  %v2121 = vadd.f32 %v2056, %v2120
  %v2122 = vpop.f32.mrb[0].mxu0
  %2123 = vmatprep.mubr.bf16.mxu0 %v270
  %2124 = vmatmul.mubr.bf16.gmra.mrb[0].mxu0 %v269
  %v2125 = vpop.f32.mrb[0].mxu0
  %v2126 = vadd.f32 %v2061, %v2125
  %v2127 = vpop.f32.mrb[0].mxu0
  %v2128 = vpop.f32.mrb[0].mxu0
  %v2129 = vadd.f32 %v2064, %v2128
  %v2130 = vpop.f32.mrb[0].mxu0
  %2131 = vdwg.mxu0
  %2132 = vmatprep.subr.bf16.mxu0 0
  %2133 = vmatpush1.bf16.msra.mxu0 %v1885
  %2134 = vmatprep.subr.bf16.mxu0 0
  %2135 = vmatpush1.bf16.msra.mxu0 %v1886
  %2136 = vmatprep.subr.bf16.mxu0 0
  %2137 = vmatpush1.bf16.msra.mxu0 0
  %2138 = vmatprep.subr.bf16.mxu0 0
  %2139 = vmatpush1.bf16.msra.mxu0 0
  %2140 = vmatprep.subr.bf16.mxu0 0
  %2141 = vmatpush1.bf16.msra.mxu0 0
  %2142 = vmatprep.subr.bf16.mxu0 0
  %2143 = vmatpush1.bf16.msra.mxu0 0
  %2144 = vmatprep.subr.bf16.mxu0 0
  %2145 = vmatpush1.bf16.msra.mxu0 0
  %2146 = vmatprep.subr.bf16.mxu0 0
  %2147 = vmatpush1.bf16.msra.mxu0 0
  %2148 = vmatprep.subr.bf16.mxu0 0
  %2149 = vmatpush1.bf16.msra.mxu0 0
  %2150 = vmatprep.subr.bf16.mxu0 0
  %2151 = vmatpush1.bf16.msra.mxu0 0
  %2152 = vmatprep.subr.bf16.mxu0 0
  %2153 = vmatpush1.bf16.msra.mxu0 0
  %2154 = vmatprep.subr.bf16.mxu0 0
  %2155 = vmatpush1.bf16.msra.mxu0 0
  %2156 = vmatprep.subr.bf16.mxu0 0
  %2157 = vmatpush1.bf16.msra.mxu0 0
  %2158 = vmatprep.subr.bf16.mxu0 0
  %2159 = vmatpush1.bf16.msra.mxu0 0
  %2160 = vmatprep.subr.bf16.mxu0 0
  %2161 = vmatpush1.bf16.msra.mxu0 0
  %2162 = vmatprep.subr.bf16.mxu0 0
  %2163 = vmatpush1.bf16.msra.mxu0 0
  %2164 = vmatprep.mubr.bf16.mxu0 0
  %2165 = vmatmul.mubr.bf16.gmra.mrb[0].mxu0 %v598
  %v2166 = vpop.f32.mrb[0].mxu0
  %v2167 = vadd.f32 %v2102, %v2166
  %v2168 = vpop.f32.mrb[0].mxu0
  %v2169 = vpop.f32.mrb[0].mxu0
  %v2170 = vadd.f32 %v2105, %v2169
  %v2171 = vpop.f32.mrb[0].mxu0
  %2172 = vmatprep.mubr.bf16.mxu0 0
  %2173 = vmatmul.mubr.bf16.gmra.mrb[0].mxu0 %v601
  %v2174 = vpop.f32.mrb[0].mxu0
  %v2175 = vadd.f32 %v2110, %v2174
  %v2176 = vpop.f32.mrb[0].mxu0
  %v2177 = vpop.f32.mrb[0].mxu0
  %v2178 = vadd.f32 %v2113, %v2177
  %v2179 = vpop.f32.mrb[0].mxu0
  %2180 = vmatprep.mubr.bf16.mxu0 0
  %2181 = vmatmul.mubr.bf16.gmra.mrb[0].mxu0 %v604
  %v2182 = vpop.f32.mrb[0].mxu0
  %v2183 = vadd.f32 %v2118, %v2182
  %v2184 = vpop.f32.mrb[0].mxu0
  %v2185 = vpop.f32.mrb[0].mxu0
  %v2186 = vadd.f32 %v2121, %v2185
  %v2187 = vpop.f32.mrb[0].mxu0
  %2188 = vmatprep.mubr.bf16.mxu0 0
  %2189 = vmatmul.mubr.bf16.gmra.mrb[0].mxu0 %v607
  %v2190 = vpop.f32.mrb[0].mxu0
  %v2191 = vadd.f32 %v2126, %v2190
  %v2192 = vpop.f32.mrb[0].mxu0
  %v2193 = vpop.f32.mrb[0].mxu0
  %v2194 = vadd.f32 %v2129, %v2193
  %v2195 = vpop.f32.mrb[0].mxu0
  %2196 = vdwg.mxu0
  %v2197 = vmax.f32 %v1529, %v2167
  %v2198 = vmax.f32 %v1530, %v2170
  %v2199 = vmax.f32 %v1531, %v2175
  %v2200 = vmax.f32 %v1532, %v2178
  %v2201 = vmax.f32 %v1533, %v2183
  %v2202 = vmax.f32 %v1534, %v2186
  %v2203 = vmax.f32 %v1535, %v2191
  %v2204 = vmax.f32 %v1536, %v2194
  %v2205 = vld [vmem:[%s5] sm:$0xf]
  %v2206 = vld [vmem:[%s5 + $0x4] sm:$0xf]
  %v2207 = vld [vmem:[%s5 + $0x8] sm:$0xf]
  %v2208 = vld [vmem:[%s5 + $0xc] sm:$0xf]
  %v2209 = vld [vmem:[%s5 + $0x10] sm:$0xf]
  %v2210 = vld [vmem:[%s5 + $0x14] sm:$0xf]
  %v2211 = vld [vmem:[%s5 + $0x18] sm:$0xf]
  %v2212 = vld [vmem:[%s5 + $0x1c] sm:$0xf]
  %v2213 = vld [vmem:[%s5 + $0x20] sm:$0xf]
  %v2214 = vld [vmem:[%s5 + $0x24] sm:$0xf]
  %v2215 = vld [vmem:[%s5 + $0x28] sm:$0xf]
  %v2216 = vld [vmem:[%s5 + $0x2c] sm:$0xf]
  %v2217 = vld [vmem:[%s5 + $0x30] sm:$0xf]
  %v2218 = vld [vmem:[%s5 + $0x34] sm:$0xf]
  %v2219 = vld [vmem:[%s5 + $0x38] sm:$0xf]
  %v2220 = vld [vmem:[%s5 + $0x3c] sm:$0xf]
  %v2221 = vld [vmem:[%s5 + $0x40] sm:$0xf]
  %v2222 = vld [vmem:[%s5 + $0x44] sm:$0xf]
  %v2223 = vld [vmem:[%s5 + $0x48] sm:$0xf]
  %v2224 = vld [vmem:[%s5 + $0x4c] sm:$0xf]
  %v2225 = vld [vmem:[%s5 + $0x50] sm:$0xf]
  %v2226 = vld [vmem:[%s5 + $0x54] sm:$0xf]
  %v2227 = vld [vmem:[%s5 + $0x58] sm:$0xf]
  %v2228 = vld [vmem:[%s5 + $0x5c] sm:$0xf]
  %v2229 = vld [vmem:[%s5 + $0x60] sm:$0xf]
  %v2230 = vld [vmem:[%s5 + $0x64] sm:$0xf]
  %v2231 = vld [vmem:[%s5 + $0x68] sm:$0xf]
  %v2232 = vld [vmem:[%s5 + $0x6c] sm:$0xf]
  %v2233 = vld [vmem:[%s5 + $0x70] sm:$0xf]
  %v2234 = vld [vmem:[%s5 + $0x74] sm:$0xf]
  %v2235 = vld [vmem:[%s5 + $0x78] sm:$0xf]
  %v2236 = vld [vmem:[%s5 + $0x7c] sm:$0xf]
  %v2237 = vld [vmem:[%s5 + $0x80] sm:$0xf]
  %v2238 = vld [vmem:[%s5 + $0x84] sm:$0xf]
  %v2239 = vld [vmem:[%s5 + $0x88] sm:$0xf]
  %v2240 = vld [vmem:[%s5 + $0x8c] sm:$0xf]
  %v2241 = vld [vmem:[%s5 + $0x90] sm:$0xf]
  %v2242 = vld [vmem:[%s5 + $0x94] sm:$0xf]
  %v2243 = vld [vmem:[%s5 + $0x98] sm:$0xf]
  %v2244 = vld [vmem:[%s5 + $0x9c] sm:$0xf]
  %v2245 = vld [vmem:[%s5 + $0xa0] sm:$0xf]
  %v2246 = vld [vmem:[%s5 + $0xa4] sm:$0xf]
  %v2247 = vld [vmem:[%s5 + $0xa8] sm:$0xf]
  %v2248 = vld [vmem:[%s5 + $0xac] sm:$0xf]
  %v2249 = vld [vmem:[%s5 + $0xb0] sm:$0xf]
  %v2250 = vld [vmem:[%s5 + $0xb4] sm:$0xf]
  %v2251 = vld [vmem:[%s5 + $0xb8] sm:$0xf]
  %v2252 = vld [vmem:[%s5 + $0xbc] sm:$0xf]
  %v2253 = vld [vmem:[%s5 + $0xc0] sm:$0xf]
  %v2254 = vld [vmem:[%s5 + $0xc4] sm:$0xf]
  %v2255 = vld [vmem:[%s5 + $0xc8] sm:$0xf]
  %v2256 = vld [vmem:[%s5 + $0xcc] sm:$0xf]
  %v2257 = vld [vmem:[%s5 + $0xd0] sm:$0xf]
  %v2258 = vld [vmem:[%s5 + $0xd4] sm:$0xf]
  %v2259 = vld [vmem:[%s5 + $0xd8] sm:$0xf]
  %v2260 = vld [vmem:[%s5 + $0xdc] sm:$0xf]
  %v2261 = vld [vmem:[%s5 + $0xe0] sm:$0xf]
  %v2262 = vld [vmem:[%s5 + $0xe4] sm:$0xf]
  %v2263 = vld [vmem:[%s5 + $0xe8] sm:$0xf]
  %v2264 = vld [vmem:[%s5 + $0xec] sm:$0xf]
  %v2265 = vld [vmem:[%s5 + $0xf0] sm:$0xf]
  %v2266 = vld [vmem:[%s5 + $0xf4] sm:$0xf]
  %v2267 = vld [vmem:[%s5 + $0xf8] sm:$0xf]
  %v2268 = vld [vmem:[%s5 + $0xfc] sm:$0xf]
  %v2269 = vld [vmem:[%s5 + $0x100] sm:$0xf]
  %v2270 = vld [vmem:[%s5 + $0x104] sm:$0xf]
  %v2271 = vld [vmem:[%s5 + $0x108] sm:$0xf]
  %v2272 = vld [vmem:[%s5 + $0x10c] sm:$0xf]
  %v2273 = vld [vmem:[%s5 + $0x110] sm:$0xf]
  %v2274 = vld [vmem:[%s5 + $0x114] sm:$0xf]
  %v2275 = vld [vmem:[%s5 + $0x118] sm:$0xf]
  %v2276 = vld [vmem:[%s5 + $0x11c] sm:$0xf]
  %v2277 = vld [vmem:[%s5 + $0x120] sm:$0xf]
  %v2278 = vld [vmem:[%s5 + $0x124] sm:$0xf]
  %v2279 = vld [vmem:[%s5 + $0x128] sm:$0xf]
  %v2280 = vld [vmem:[%s5 + $0x12c] sm:$0xf]
  %v2281 = vld [vmem:[%s5 + $0x130] sm:$0xf]
  %v2282 = vld [vmem:[%s5 + $0x134] sm:$0xf]
  %v2283 = vld [vmem:[%s5 + $0x138] sm:$0xf]
  %v2284 = vld [vmem:[%s5 + $0x13c] sm:$0xf]
  %v2285 = vld [vmem:[%s5 + $0x140] sm:$0xf]
  %v2286 = vld [vmem:[%s5 + $0x144] sm:$0xf]
  %v2287 = vld [vmem:[%s5 + $0x148] sm:$0xf]
  %v2288 = vld [vmem:[%s5 + $0x14c] sm:$0xf]
  %v2289 = vld [vmem:[%s5 + $0x150] sm:$0xf]
  %v2290 = vld [vmem:[%s5 + $0x154] sm:$0xf]
  %v2291 = vld [vmem:[%s5 + $0x158] sm:$0xf]
  %v2292 = vld [vmem:[%s5 + $0x15c] sm:$0xf]
  %v2293 = vld [vmem:[%s5 + $0x160] sm:$0xf]
  %v2294 = vld [vmem:[%s5 + $0x164] sm:$0xf]
  %v2295 = vld [vmem:[%s5 + $0x168] sm:$0xf]
  %v2296 = vld [vmem:[%s5 + $0x16c] sm:$0xf]
  %v2297 = vld [vmem:[%s5 + $0x170] sm:$0xf]
  %v2298 = vld [vmem:[%s5 + $0x174] sm:$0xf]
  %v2299 = vld [vmem:[%s5 + $0x178] sm:$0xf]
  %v2300 = vld [vmem:[%s5 + $0x17c] sm:$0xf]
  %v2301 = vld [vmem:[%s5 + $0x180] sm:$0xf]
  %v2302 = vld [vmem:[%s5 + $0x184] sm:$0xf]
  %v2303 = vld [vmem:[%s5 + $0x188] sm:$0xf]
  %v2304 = vld [vmem:[%s5 + $0x18c] sm:$0xf]
  %v2405 = vunpack.c.l.b16 %v2205
  %v2406 = vunpack.c.l.b16 %v2206
  %v2407 = vunpack.c.l.b16 %v2207
  %v2408 = vunpack.c.l.b16 %v2208
  %v2409 = vunpack.c.l.b16 %v2209
  %v2410 = vunpack.c.l.b16 %v2210
  %v2411 = vunpack.c.l.b16 %v2211
  %v2412 = vunpack.c.l.b16 %v2212
  %v2413 = vunpack.c.l.b16 %v2213
  %v2414 = vunpack.c.l.b16 %v2214
  %v2415 = vunpack.c.l.b16 %v2215
  %v2416 = vunpack.c.l.b16 %v2216
  %v2417 = vunpack.c.l.b16 %v2217
  %v2418 = vunpack.c.l.b16 %v2218
  %v2419 = vunpack.c.l.b16 %v2219
  %v2420 = vunpack.c.l.b16 %v2220
  %v2421 = vunpack.c.l.b16 %v2221
  %v2422 = vunpack.c.l.b16 %v2222
  %v2423 = vunpack.c.l.b16 %v2223
  %v2424 = vunpack.c.l.b16 %v2224
  %v2425 = vunpack.c.l.b16 %v2225
  %v2426 = vunpack.c.l.b16 %v2226
  %v2427 = vunpack.c.l.b16 %v2227
  %v2428 = vunpack.c.l.b16 %v2228
  %v2429 = vunpack.c.l.b16 %v2229
  %v2430 = vunpack.c.l.b16 %v2230
  %v2431 = vunpack.c.l.b16 %v2231
  %v2432 = vunpack.c.l.b16 %v2232
  %v2433 = vunpack.c.l.b16 %v2233
  %v2434 = vunpack.c.l.b16 %v2234
  %v2435 = vunpack.c.l.b16 %v2235
  %v2436 = vunpack.c.l.b16 %v2236
  %v2437 = vunpack.c.l.b16 %v2237
  %v2438 = vunpack.c.l.b16 %v2238
  %v2439 = vunpack.c.l.b16 %v2239
  %v2440 = vunpack.c.l.b16 %v2240
  %v2441 = vunpack.c.l.b16 %v2241
  %v2442 = vunpack.c.l.b16 %v2242
  %v2443 = vunpack.c.l.b16 %v2243
  %v2444 = vunpack.c.l.b16 %v2244
  %v2445 = vunpack.c.l.b16 %v2245
  %v2446 = vunpack.c.l.b16 %v2246
  %v2447 = vunpack.c.l.b16 %v2247
  %v2448 = vunpack.c.l.b16 %v2248
  %v2449 = vunpack.c.l.b16 %v2249
  %v2450 = vunpack.c.l.b16 %v2250
  %v2451 = vunpack.c.l.b16 %v2251
  %v2452 = vunpack.c.l.b16 %v2252
  %v2453 = vunpack.c.l.b16 %v2253
  %v2454 = vunpack.c.l.b16 %v2254
  %v2455 = vunpack.c.l.b16 %v2255
  %v2456 = vunpack.c.l.b16 %v2256
  %v2457 = vunpack.c.l.b16 %v2257
  %v2458 = vunpack.c.l.b16 %v2258
  %v2459 = vunpack.c.l.b16 %v2259
  %v2460 = vunpack.c.l.b16 %v2260
  %v2461 = vunpack.c.l.b16 %v2261
  %v2462 = vunpack.c.l.b16 %v2262
  %v2463 = vunpack.c.l.b16 %v2263
  %v2464 = vunpack.c.l.b16 %v2264
  %v2465 = vunpack.c.l.b16 %v2265
  %v2466 = vunpack.c.l.b16 %v2266
  %v2467 = vunpack.c.l.b16 %v2267
  %v2468 = vunpack.c.l.b16 %v2268
  %v2469 = vunpack.c.l.b16 %v2269
  %v2470 = vunpack.c.l.b16 %v2270
  %v2471 = vunpack.c.l.b16 %v2271
  %v2472 = vunpack.c.l.b16 %v2272
  %v2473 = vunpack.c.l.b16 %v2273
  %v2474 = vunpack.c.l.b16 %v2274
  %v2475 = vunpack.c.l.b16 %v2275
  %v2476 = vunpack.c.l.b16 %v2276
  %v2477 = vunpack.c.l.b16 %v2277
  %v2478 = vunpack.c.l.b16 %v2278
  %v2479 = vunpack.c.l.b16 %v2279
  %v2480 = vunpack.c.l.b16 %v2280
  %v2481 = vunpack.c.l.b16 %v2281
  %v2482 = vunpack.c.l.b16 %v2282
  %v2483 = vunpack.c.l.b16 %v2283
  %v2484 = vunpack.c.l.b16 %v2284
  %v2485 = vunpack.c.l.b16 %v2285
  %v2486 = vunpack.c.l.b16 %v2286
  %v2487 = vunpack.c.l.b16 %v2287
  %v2488 = vunpack.c.l.b16 %v2288
  %v2489 = vunpack.c.l.b16 %v2289
  %v2490 = vunpack.c.l.b16 %v2290
  %v2491 = vunpack.c.l.b16 %v2291
  %v2492 = vunpack.c.l.b16 %v2292
  %v2493 = vunpack.c.l.b16 %v2293
  %v2494 = vunpack.c.l.b16 %v2294
  %v2495 = vunpack.c.l.b16 %v2295
  %v2496 = vunpack.c.l.b16 %v2296
  %v2497 = vunpack.c.l.b16 %v2297
  %v2498 = vunpack.c.l.b16 %v2298
  %v2499 = vunpack.c.l.b16 %v2299
  %v2500 = vunpack.c.l.b16 %v2300
  %v2501 = vunpack.c.l.b16 %v2301
  %v2502 = vunpack.c.l.b16 %v2302
  %v2503 = vunpack.c.l.b16 %v2303
  %v2504 = vunpack.c.l.b16 %v2304
  %v2505 = vpack.c.b16 %v2406, %v2405
  %v2506 = vpack.c.b16 %v2408, %v2407
  %v2507 = vpack.c.b16 %v2410, %v2409
  %v2508 = vpack.c.b16 %v2412, %v2411
  %v2509 = vpack.c.b16 %v2414, %v2413
  %v2510 = vpack.c.b16 %v2416, %v2415
  %v2511 = vpack.c.b16 %v2418, %v2417
  %v2512 = vpack.c.b16 %v2420, %v2419
  %v2513 = vpack.c.b16 %v2422, %v2421
  %v2514 = vpack.c.b16 %v2424, %v2423
  %v2515 = vpack.c.b16 %v2426, %v2425
  %v2516 = vpack.c.b16 %v2428, %v2427
  %v2517 = vpack.c.b16 %v2430, %v2429
  %v2518 = vpack.c.b16 %v2432, %v2431
  %v2519 = vpack.c.b16 %v2434, %v2433
  %v2520 = vpack.c.b16 %v2436, %v2435
  %v2521 = vpack.c.b16 %v2438, %v2437
  %v2522 = vpack.c.b16 %v2440, %v2439
  %v2523 = vpack.c.b16 %v2442, %v2441
  %v2524 = vpack.c.b16 %v2444, %v2443
  %v2525 = vpack.c.b16 %v2446, %v2445
  %v2526 = vpack.c.b16 %v2448, %v2447
  %v2527 = vpack.c.b16 %v2450, %v2449
  %v2528 = vpack.c.b16 %v2452, %v2451
  %v2529 = vpack.c.b16 %v2454, %v2453
  %v2530 = vpack.c.b16 %v2456, %v2455
  %v2531 = vpack.c.b16 %v2458, %v2457
  %v2532 = vpack.c.b16 %v2460, %v2459
  %v2533 = vpack.c.b16 %v2462, %v2461
  %v2534 = vpack.c.b16 %v2464, %v2463
  %v2535 = vpack.c.b16 %v2466, %v2465
  %v2536 = vpack.c.b16 %v2468, %v2467
  %v2537 = vpack.c.b16 %v2470, %v2469
  %v2538 = vpack.c.b16 %v2472, %v2471
  %v2539 = vpack.c.b16 %v2474, %v2473
  %v2540 = vpack.c.b16 %v2476, %v2475
  %v2541 = vpack.c.b16 %v2478, %v2477
  %v2542 = vpack.c.b16 %v2480, %v2479
  %v2543 = vpack.c.b16 %v2482, %v2481
  %v2544 = vpack.c.b16 %v2484, %v2483
  %v2545 = vpack.c.b16 %v2486, %v2485
  %v2546 = vpack.c.b16 %v2488, %v2487
  %v2547 = vpack.c.b16 %v2490, %v2489
  %v2548 = vpack.c.b16 %v2492, %v2491
  %v2549 = vpack.c.b16 %v2494, %v2493
  %v2550 = vpack.c.b16 %v2496, %v2495
  %v2551 = vpack.c.b16 %v2498, %v2497
  %v2552 = vpack.c.b16 %v2500, %v2499
  %v2553 = vpack.c.b16 %v2502, %v2501
  %v2554 = vpack.c.b16 %v2504, %v2503
  %2605 = vmatprep.subr.bf16.mxu0 0
  %2606 = vmatpush1.bf16.msra.mxu0 %v2505
  %2607 = vmatprep.subr.bf16.mxu0 0
  %2608 = vmatpush1.bf16.msra.mxu0 %v2506
  %2609 = vmatprep.subr.bf16.mxu0 0
  %2610 = vmatpush1.bf16.msra.mxu0 %v2507
  %2611 = vmatprep.subr.bf16.mxu0 0
  %2612 = vmatpush1.bf16.msra.mxu0 %v2508
  %2613 = vmatprep.subr.bf16.mxu0 0
  %2614 = vmatpush1.bf16.msra.mxu0 %v2509
  %2615 = vmatprep.subr.bf16.mxu0 0
  %2616 = vmatpush1.bf16.msra.mxu0 %v2510
  %2617 = vmatprep.subr.bf16.mxu0 0
  %2618 = vmatpush1.bf16.msra.mxu0 %v2511
  %2619 = vmatprep.subr.bf16.mxu0 0
  %2620 = vmatpush1.bf16.msra.mxu0 %v2512
  %2621 = vmatprep.subr.bf16.mxu0 0
  %2622 = vmatpush1.bf16.msra.mxu0 %v2513
  %2623 = vmatprep.subr.bf16.mxu0 0
  %2624 = vmatpush1.bf16.msra.mxu0 %v2514
  %2625 = vmatprep.subr.bf16.mxu0 0
  %2626 = vmatpush1.bf16.msra.mxu0 %v2515
  %2627 = vmatprep.subr.bf16.mxu0 0
  %2628 = vmatpush1.bf16.msra.mxu0 %v2516
  %2629 = vmatprep.subr.bf16.mxu0 0
  %2630 = vmatpush1.bf16.msra.mxu0 %v2517
  %2631 = vmatprep.subr.bf16.mxu0 0
  %2632 = vmatpush1.bf16.msra.mxu0 %v2518
  %2633 = vmatprep.subr.bf16.mxu0 0
  %2634 = vmatpush1.bf16.msra.mxu0 %v2519
  %2635 = vmatprep.subr.bf16.mxu0 0
  %2636 = vmatpush1.bf16.msra.mxu0 %v2520
  %2637 = vmatprep.mubr.bf16.mxu0 %v245
  %2638 = vmatmul.mubr.bf16.gmra.mrb[0].mxu0 %v244
  %v2639 = vpop.f32.mrb[0].mxu0
  %v2640 = vadd.f32 0.0, %v2639
  %v2641 = vpop.f32.mrb[0].mxu0
  %v2642 = vpop.f32.mrb[0].mxu0
  %v2643 = vadd.f32 0.0, %v2642
  %v2644 = vpop.f32.mrb[0].mxu0
  %2645 = vmatprep.mubr.bf16.mxu0 %v252
  %2646 = vmatmul.mubr.bf16.gmra.mrb[0].mxu0 %v251
  %v2647 = vpop.f32.mrb[0].mxu0
  %v2648 = vadd.f32 0.0, %v2647
  %v2649 = vpop.f32.mrb[0].mxu0
  %v2650 = vpop.f32.mrb[0].mxu0
  %v2651 = vadd.f32 0.0, %v2650
  %v2652 = vpop.f32.mrb[0].mxu0
  %2653 = vmatprep.mubr.bf16.mxu0 %v259
  %2654 = vmatmul.mubr.bf16.gmra.mrb[0].mxu0 %v258
  %v2655 = vpop.f32.mrb[0].mxu0
  %v2656 = vadd.f32 0.0, %v2655
  %v2657 = vpop.f32.mrb[0].mxu0
  %v2658 = vpop.f32.mrb[0].mxu0
  %v2659 = vadd.f32 0.0, %v2658
  %v2660 = vpop.f32.mrb[0].mxu0
  %2661 = vmatprep.mubr.bf16.mxu0 %v266
  %2662 = vmatmul.mubr.bf16.gmra.mrb[0].mxu0 %v265
  %v2663 = vpop.f32.mrb[0].mxu0
  %v2664 = vadd.f32 0.0, %v2663
  %v2665 = vpop.f32.mrb[0].mxu0
  %v2666 = vpop.f32.mrb[0].mxu0
  %v2667 = vadd.f32 0.0, %v2666
  %v2668 = vpop.f32.mrb[0].mxu0
  %2669 = vdwg.mxu0
  %2670 = vmatprep.subr.bf16.mxu0 0
  %2671 = vmatpush1.bf16.msra.mxu0 %v2521
  %2672 = vmatprep.subr.bf16.mxu0 0
  %2673 = vmatpush1.bf16.msra.mxu0 %v2522
  %2674 = vmatprep.subr.bf16.mxu0 0
  %2675 = vmatpush1.bf16.msra.mxu0 %v2523
  %2676 = vmatprep.subr.bf16.mxu0 0
  %2677 = vmatpush1.bf16.msra.mxu0 %v2524
  %2678 = vmatprep.subr.bf16.mxu0 0
  %2679 = vmatpush1.bf16.msra.mxu0 %v2525
  %2680 = vmatprep.subr.bf16.mxu0 0
  %2681 = vmatpush1.bf16.msra.mxu0 %v2526
  %2682 = vmatprep.subr.bf16.mxu0 0
  %2683 = vmatpush1.bf16.msra.mxu0 %v2527
  %2684 = vmatprep.subr.bf16.mxu0 0
  %2685 = vmatpush1.bf16.msra.mxu0 %v2528
  %2686 = vmatprep.subr.bf16.mxu0 0
  %2687 = vmatpush1.bf16.msra.mxu0 %v2529
  %2688 = vmatprep.subr.bf16.mxu0 0
  %2689 = vmatpush1.bf16.msra.mxu0 %v2530
  %2690 = vmatprep.subr.bf16.mxu0 0
  %2691 = vmatpush1.bf16.msra.mxu0 %v2531
  %2692 = vmatprep.subr.bf16.mxu0 0
  %2693 = vmatpush1.bf16.msra.mxu0 %v2532
  %2694 = vmatprep.subr.bf16.mxu0 0
  %2695 = vmatpush1.bf16.msra.mxu0 %v2533
  %2696 = vmatprep.subr.bf16.mxu0 0
  %2697 = vmatpush1.bf16.msra.mxu0 %v2534
  %2698 = vmatprep.subr.bf16.mxu0 0
  %2699 = vmatpush1.bf16.msra.mxu0 %v2535
  %2700 = vmatprep.subr.bf16.mxu0 0
  %2701 = vmatpush1.bf16.msra.mxu0 %v2536
  %2702 = vmatprep.mubr.bf16.mxu0 %v247
  %2703 = vmatmul.mubr.bf16.gmra.mrb[0].mxu0 %v246
  %v2704 = vpop.f32.mrb[0].mxu0
  %v2705 = vadd.f32 %v2640, %v2704
  %v2706 = vpop.f32.mrb[0].mxu0
  %v2707 = vpop.f32.mrb[0].mxu0
  %v2708 = vadd.f32 %v2643, %v2707
  %v2709 = vpop.f32.mrb[0].mxu0
  %2710 = vmatprep.mubr.bf16.mxu0 %v254
  %2711 = vmatmul.mubr.bf16.gmra.mrb[0].mxu0 %v253
  %v2712 = vpop.f32.mrb[0].mxu0
  %v2713 = vadd.f32 %v2648, %v2712
  %v2714 = vpop.f32.mrb[0].mxu0
  %v2715 = vpop.f32.mrb[0].mxu0
  %v2716 = vadd.f32 %v2651, %v2715
  %v2717 = vpop.f32.mrb[0].mxu0
  %2718 = vmatprep.mubr.bf16.mxu0 %v261
  %2719 = vmatmul.mubr.bf16.gmra.mrb[0].mxu0 %v260
  %v2720 = vpop.f32.mrb[0].mxu0
  %v2721 = vadd.f32 %v2656, %v2720
  %v2722 = vpop.f32.mrb[0].mxu0
  %v2723 = vpop.f32.mrb[0].mxu0
  %v2724 = vadd.f32 %v2659, %v2723
  %v2725 = vpop.f32.mrb[0].mxu0
  %2726 = vmatprep.mubr.bf16.mxu0 %v268
  %2727 = vmatmul.mubr.bf16.gmra.mrb[0].mxu0 %v267
  %v2728 = vpop.f32.mrb[0].mxu0
  %v2729 = vadd.f32 %v2664, %v2728
  %v2730 = vpop.f32.mrb[0].mxu0
  %v2731 = vpop.f32.mrb[0].mxu0
  %v2732 = vadd.f32 %v2667, %v2731
  %v2733 = vpop.f32.mrb[0].mxu0
  %2734 = vdwg.mxu0
  %2735 = vmatprep.subr.bf16.mxu0 0
  %2736 = vmatpush1.bf16.msra.mxu0 %v2537
  %2737 = vmatprep.subr.bf16.mxu0 0
  %2738 = vmatpush1.bf16.msra.mxu0 %v2538
  %2739 = vmatprep.subr.bf16.mxu0 0
  %2740 = vmatpush1.bf16.msra.mxu0 %v2539
  %2741 = vmatprep.subr.bf16.mxu0 0
  %2742 = vmatpush1.bf16.msra.mxu0 %v2540
  %2743 = vmatprep.subr.bf16.mxu0 0
  %2744 = vmatpush1.bf16.msra.mxu0 %v2541
  %2745 = vmatprep.subr.bf16.mxu0 0
  %2746 = vmatpush1.bf16.msra.mxu0 %v2542
  %2747 = vmatprep.subr.bf16.mxu0 0
  %2748 = vmatpush1.bf16.msra.mxu0 %v2543
  %2749 = vmatprep.subr.bf16.mxu0 0
  %2750 = vmatpush1.bf16.msra.mxu0 %v2544
  %2751 = vmatprep.subr.bf16.mxu0 0
  %2752 = vmatpush1.bf16.msra.mxu0 %v2545
  %2753 = vmatprep.subr.bf16.mxu0 0
  %2754 = vmatpush1.bf16.msra.mxu0 %v2546
  %2755 = vmatprep.subr.bf16.mxu0 0
  %2756 = vmatpush1.bf16.msra.mxu0 %v2547
  %2757 = vmatprep.subr.bf16.mxu0 0
  %2758 = vmatpush1.bf16.msra.mxu0 %v2548
  %2759 = vmatprep.subr.bf16.mxu0 0
  %2760 = vmatpush1.bf16.msra.mxu0 %v2549
  %2761 = vmatprep.subr.bf16.mxu0 0
  %2762 = vmatpush1.bf16.msra.mxu0 %v2550
  %2763 = vmatprep.subr.bf16.mxu0 0
  %2764 = vmatpush1.bf16.msra.mxu0 %v2551
  %2765 = vmatprep.subr.bf16.mxu0 0
  %2766 = vmatpush1.bf16.msra.mxu0 %v2552
  %2767 = vmatprep.mubr.bf16.mxu0 %v249
  %2768 = vmatmul.mubr.bf16.gmra.mrb[0].mxu0 %v248
  %v2769 = vpop.f32.mrb[0].mxu0
  %v2770 = vadd.f32 %v2705, %v2769
  %v2771 = vpop.f32.mrb[0].mxu0
  %v2772 = vpop.f32.mrb[0].mxu0
  %v2773 = vadd.f32 %v2708, %v2772
  %v2774 = vpop.f32.mrb[0].mxu0
  %2775 = vmatprep.mubr.bf16.mxu0 %v256
  %2776 = vmatmul.mubr.bf16.gmra.mrb[0].mxu0 %v255
  %v2777 = vpop.f32.mrb[0].mxu0
  %v2778 = vadd.f32 %v2713, %v2777
  %v2779 = vpop.f32.mrb[0].mxu0
  %v2780 = vpop.f32.mrb[0].mxu0
  %v2781 = vadd.f32 %v2716, %v2780
  %v2782 = vpop.f32.mrb[0].mxu0
  %2783 = vmatprep.mubr.bf16.mxu0 %v263
  %2784 = vmatmul.mubr.bf16.gmra.mrb[0].mxu0 %v262
  %v2785 = vpop.f32.mrb[0].mxu0
  %v2786 = vadd.f32 %v2721, %v2785
  %v2787 = vpop.f32.mrb[0].mxu0
  %v2788 = vpop.f32.mrb[0].mxu0
  %v2789 = vadd.f32 %v2724, %v2788
  %v2790 = vpop.f32.mrb[0].mxu0
  %2791 = vmatprep.mubr.bf16.mxu0 %v270
  %2792 = vmatmul.mubr.bf16.gmra.mrb[0].mxu0 %v269
  %v2793 = vpop.f32.mrb[0].mxu0
  %v2794 = vadd.f32 %v2729, %v2793
  %v2795 = vpop.f32.mrb[0].mxu0
  %v2796 = vpop.f32.mrb[0].mxu0
  %v2797 = vadd.f32 %v2732, %v2796
  %v2798 = vpop.f32.mrb[0].mxu0
  %2799 = vdwg.mxu0
  %2800 = vmatprep.subr.bf16.mxu0 0
  %2801 = vmatpush1.bf16.msra.mxu0 %v2553
  %2802 = vmatprep.subr.bf16.mxu0 0
  %2803 = vmatpush1.bf16.msra.mxu0 %v2554
  %2804 = vmatprep.subr.bf16.mxu0 0
  %2805 = vmatpush1.bf16.msra.mxu0 0
  %2806 = vmatprep.subr.bf16.mxu0 0
  %2807 = vmatpush1.bf16.msra.mxu0 0
  %2808 = vmatprep.subr.bf16.mxu0 0
  %2809 = vmatpush1.bf16.msra.mxu0 0
  %2810 = vmatprep.subr.bf16.mxu0 0
  %2811 = vmatpush1.bf16.msra.mxu0 0
  %2812 = vmatprep.subr.bf16.mxu0 0
  %2813 = vmatpush1.bf16.msra.mxu0 0
  %2814 = vmatprep.subr.bf16.mxu0 0
  %2815 = vmatpush1.bf16.msra.mxu0 0
  %2816 = vmatprep.subr.bf16.mxu0 0
  %2817 = vmatpush1.bf16.msra.mxu0 0
  %2818 = vmatprep.subr.bf16.mxu0 0
  %2819 = vmatpush1.bf16.msra.mxu0 0
  %2820 = vmatprep.subr.bf16.mxu0 0
  %2821 = vmatpush1.bf16.msra.mxu0 0
  %2822 = vmatprep.subr.bf16.mxu0 0
  %2823 = vmatpush1.bf16.msra.mxu0 0
  %2824 = vmatprep.subr.bf16.mxu0 0
  %2825 = vmatpush1.bf16.msra.mxu0 0
  %2826 = vmatprep.subr.bf16.mxu0 0
  %2827 = vmatpush1.bf16.msra.mxu0 0
  %2828 = vmatprep.subr.bf16.mxu0 0
  %2829 = vmatpush1.bf16.msra.mxu0 0
  %2830 = vmatprep.subr.bf16.mxu0 0
  %2831 = vmatpush1.bf16.msra.mxu0 0
  %2832 = vmatprep.mubr.bf16.mxu0 0
  %2833 = vmatmul.mubr.bf16.gmra.mrb[0].mxu0 %v598
  %v2834 = vpop.f32.mrb[0].mxu0
  %v2835 = vadd.f32 %v2770, %v2834
  %v2836 = vpop.f32.mrb[0].mxu0
  %v2837 = vpop.f32.mrb[0].mxu0
  %v2838 = vadd.f32 %v2773, %v2837
  %v2839 = vpop.f32.mrb[0].mxu0
  %2840 = vmatprep.mubr.bf16.mxu0 0
  %2841 = vmatmul.mubr.bf16.gmra.mrb[0].mxu0 %v601
  %v2842 = vpop.f32.mrb[0].mxu0
  %v2843 = vadd.f32 %v2778, %v2842
  %v2844 = vpop.f32.mrb[0].mxu0
  %v2845 = vpop.f32.mrb[0].mxu0
  %v2846 = vadd.f32 %v2781, %v2845
  %v2847 = vpop.f32.mrb[0].mxu0
  %2848 = vmatprep.mubr.bf16.mxu0 0
  %2849 = vmatmul.mubr.bf16.gmra.mrb[0].mxu0 %v604
  %v2850 = vpop.f32.mrb[0].mxu0
  %v2851 = vadd.f32 %v2786, %v2850
  %v2852 = vpop.f32.mrb[0].mxu0
  %v2853 = vpop.f32.mrb[0].mxu0
  %v2854 = vadd.f32 %v2789, %v2853
  %v2855 = vpop.f32.mrb[0].mxu0
  %2856 = vmatprep.mubr.bf16.mxu0 0
  %2857 = vmatmul.mubr.bf16.gmra.mrb[0].mxu0 %v607
  %v2858 = vpop.f32.mrb[0].mxu0
  %v2859 = vadd.f32 %v2794, %v2858
  %v2860 = vpop.f32.mrb[0].mxu0
  %v2861 = vpop.f32.mrb[0].mxu0
  %v2862 = vadd.f32 %v2797, %v2861
  %v2863 = vpop.f32.mrb[0].mxu0
  %2864 = vdwg.mxu0
  %v2865 = vmax.f32 %v2197, %v2835
  %v2866 = vmax.f32 %v2198, %v2838
  %v2867 = vmax.f32 %v2199, %v2843
  %v2868 = vmax.f32 %v2200, %v2846
  %v2869 = vmax.f32 %v2201, %v2851
  %v2870 = vmax.f32 %v2202, %v2854
  %v2871 = vmax.f32 %v2203, %v2859
  %v2872 = vmax.f32 %v2204, %v2862
  %v2873 = vld [vmem:[%s1] sm:$0xff]
  %v2874 = vld [vmem:[%s1 + $0x8] sm:$0xff]
  %v2875 = vld [vmem:[%s1 + $0x10] sm:$0xff]
  %v2876 = vld [vmem:[%s1 + $0x18] sm:$0xff]
  %v2877 = vld [vmem:[%s1 + $0x20] sm:$0xff]
  %v2878 = vld [vmem:[%s1 + $0x28] sm:$0xff]
  %v2879 = vld [vmem:[%s1 + $0x30] sm:$0xff]
  %v2880 = vld [vmem:[%s1 + $0x38] sm:$0xff]
  %2882 = vset.pattern.permute.xlu0 0
  %2883 = vperm.xlu0 %2882, %v2873
  %v2884 = vpop.permute.xlu0 %2883
  %2887 = vset.pattern.permute.xlu0 0
  %2888 = vperm.xlu0 %2887, %v2874
  %v2889 = vpop.permute.xlu0 %2888
  %2892 = vset.pattern.permute.xlu0 0
  %2893 = vperm.xlu0 %2892, %v2875
  %v2894 = vpop.permute.xlu0 %2893
  %2897 = vset.pattern.permute.xlu0 0
  %2898 = vperm.xlu0 %2897, %v2876
  %v2899 = vpop.permute.xlu0 %2898
  %2902 = vset.pattern.permute.xlu0 0
  %2903 = vperm.xlu0 %2902, %v2877
  %v2904 = vpop.permute.xlu0 %2903
  %2907 = vset.pattern.permute.xlu0 0
  %2908 = vperm.xlu0 %2907, %v2878
  %v2909 = vpop.permute.xlu0 %2908
  %2912 = vset.pattern.permute.xlu0 0
  %2913 = vperm.xlu0 %2912, %v2879
  %v2914 = vpop.permute.xlu0 %2913
  %2917 = vset.pattern.permute.xlu0 0
  %2918 = vperm.xlu0 %2917, %v2880
  %v2919 = vpop.permute.xlu0 %2918
  %v2921 = vadd.f32 %v2865, %v2884
  %v2922 = vadd.f32 %v2866, %v2889
  %v2923 = vadd.f32 %v2867, %v2894
  %v2924 = vadd.f32 %v2868, %v2899
  %v2925 = vadd.f32 %v2869, %v2904
  %v2926 = vadd.f32 %v2870, %v2909
  %v2927 = vadd.f32 %v2871, %v2914
  %v2928 = vadd.f32 %v2872, %v2919
  %v2929 = vpack.c.bf16 %v2922, %v2921
  %v2930 = vpack.c.bf16 %v2924, %v2923
  %v2931 = vpack.c.bf16 %v2926, %v2925
  %v2932 = vpack.c.bf16 %v2928, %v2927
  %v2937 = vunpack.c.l.b16 %v2929
  %v2938 = vunpack.c.h.b16 %v2929
  %v2939 = vunpack.c.l.b16 %v2930
  %v2940 = vunpack.c.h.b16 %v2930
  %v2941 = vunpack.c.l.b16 %v2931
  %v2942 = vunpack.c.h.b16 %v2931
  %v2943 = vunpack.c.l.b16 %v2932
  %v2944 = vunpack.c.h.b16 %v2932
  %v2945 = vpack.c.b16 %v2937, %v2937
  %v2946 = vpack.c.b16 %v2938, %v2938
  %v2947 = vpack.c.b16 %v2939, %v2939
  %v2948 = vpack.c.b16 %v2940, %v2940
  %v2949 = vpack.c.b16 %v2941, %v2941
  %v2950 = vpack.c.b16 %v2942, %v2942
  %v2951 = vpack.c.b16 %v2943, %v2943
  %v2952 = vpack.c.b16 %v2944, %v2944
  %vm2961 = vcmask 257024
  %2962 = vst.msk [vmem:[%s6] sm:$0xf] %vm2961, %v2945
  %2963 = vst.msk [vmem:[%s6 + $0x4] sm:$0xf] %vm2961, %v2946
  %2964 = vst.msk [vmem:[%s6 + $0x8] sm:$0xf] %vm2961, %v2947
  %2965 = vst.msk [vmem:[%s6 + $0xc] sm:$0xf] %vm2961, %v2948
  %2966 = vst.msk [vmem:[%s6 + $0x10] sm:$0xf] %vm2961, %v2949
  %2967 = vst.msk [vmem:[%s6 + $0x14] sm:$0xf] %vm2961, %v2950
  %2968 = vst.msk [vmem:[%s6 + $0x18] sm:$0xf] %vm2961, %v2951
  %2969 = vst.msk [vmem:[%s6 + $0x1c] sm:$0xf] %vm2961, %v2952
  // Predicated region
  $region26: #{tudui_forward.6} parent=0 // pred_check
    _
  $region27: #{tudui_forward.6} parent=0 // pred_check_branch
    %2971 = sbr.rel (0) target = $region29
  $region28: #{tudui_forward.6} parent=0 // pred_region
    _
  $region29: #{tudui_forward.6} parent=0 // pred_fallthru
    _
  // Predicated region
  $region30: #{tudui_forward.6} parent=0 // pred_check
    _
  $region31: #{tudui_forward.6} parent=0 // pred_check_branch
    %2973 = sbr.rel (0) target = $region33
  $region32: #{tudui_forward.6} parent=0 // pred_region
    _
  $region33: #{tudui_forward.6} parent=0 // pred_fallthru
    _

// kernel: tudui_forward.7
$region0: #{tudui_forward.7}
  #allocation0 [shape = 'u32[]', space=smem, size = 0x4, offset = 0x4, fixed_abs, tag = 'smem constant byte address 0x4 - core index']
  #allocation1 [shape = 'u32[144,128]{1,0:T(1,128)}', space=vmem, size = 0x12000, scoped, tag = 'internal scratch']
  %s0 = inlined_call_operand.vmem [shape: bf16[2,1024], index: 0, kind: input, shape index: {}]
  %s1 = inlined_call_operand.vmem [shape: bf16[1024,64], index: 1, kind: input, shape index: {}]
  %s2 = inlined_call_operand.vmem [shape: f32[1,64], index: 2, kind: input, shape index: {}]
  %s3 = inlined_call_operand.vmem [shape: bf16[64,10], index: 3, kind: input, shape index: {}]
  %s4 = inlined_call_operand.vmem [shape: f32[1,10], index: 4, kind: input, shape index: {}]
  %s5 = inlined_call_operand.hbm [shape: f32[2,10], index: 5, kind: output, shape index: {}]
  %s6 = sld [smem:[#allocation0]]
  $region30: #{tudui_forward.7} parent=0
    _
  %s8 = ssub.s32 1, %s6
  %s9 = scalar_select 0, %s8, %s6
  $region1: #{tudui_forward.7} parent=0
    #allocation2 [shape = 'u8[1024]{0}', space=vmem, size = 0x400, scoped, tag = 'output window, operand 0, single buffered']
    #allocation3 [shape = 's32[1]{0}', space=sflag, size = 0x4, scoped, tag = 'scoped memory for tudui_forward.7']
    %10 = vsyncpa [#allocation3], 0
    // Predicated region
    $region2: #{tudui_forward.7} parent=1 // pred_check
      _
    $region3: #{tudui_forward.7} parent=1 // pred_check_branch
      %12 = sbr.rel (0) target = $region5
    $region4: #{tudui_forward.7} parent=1 // pred_region
      _
    $region5: #{tudui_forward.7} parent=1 // pred_fallthru
      _
    // Predicated region
    $region6: #{tudui_forward.7} parent=1 // pred_check
      _
    $region7: #{tudui_forward.7} parent=1 // pred_check_branch
      %14 = sbr.rel (0) target = $region9
    $region8: #{tudui_forward.7} parent=1 // pred_region
      _
    $region9: #{tudui_forward.7} parent=1 // pred_fallthru
      _
    // Predicated region
    $region10: #{tudui_forward.7} parent=1 // pred_check
      _
    $region11: #{tudui_forward.7} parent=1 // pred_check_branch
      %16 = sbr.rel (0) target = $region13
    $region12: #{tudui_forward.7} parent=1 // pred_region
      _
    $region13: #{tudui_forward.7} parent=1 // pred_fallthru
      _
    // Predicated region
    $region14: #{tudui_forward.7} parent=1 // pred_check
      _
    $region15: #{tudui_forward.7} parent=1 // pred_check_branch
      %18 = sbr.rel (0) target = $region17
    $region16: #{tudui_forward.7} parent=1 // pred_region
      _
    $region17: #{tudui_forward.7} parent=1 // pred_fallthru
      _
    // Predicated region
    $region18: #{tudui_forward.7} parent=1 // pred_check
      _
    $region19: #{tudui_forward.7} parent=1 // pred_check_branch
      %20 = sbr.rel (0) target = $region21
    $region20: #{tudui_forward.7} parent=1 // pred_region
      _
    $region21: #{tudui_forward.7} parent=1 // pred_fallthru
      _
    %v22 = vld [vmem:[%s0] sm:$0xff]
    %v23 = vld [vmem:[%s1] sm:$0xf]
    %v24 = vld [vmem:[%s1 + $0x4] sm:$0xf]
    %v25 = vld [vmem:[%s1 + $0x8] sm:$0xf]
    %v26 = vld [vmem:[%s1 + $0xc] sm:$0xf]
    %v27 = vld [vmem:[%s1 + $0x10] sm:$0xf]
    %v28 = vld [vmem:[%s1 + $0x14] sm:$0xf]
    %v29 = vld [vmem:[%s1 + $0x18] sm:$0xf]
    %v30 = vld [vmem:[%s1 + $0x1c] sm:$0xf]
    %v31 = vld [vmem:[%s1 + $0x20] sm:$0xf]
    %v32 = vld [vmem:[%s1 + $0x24] sm:$0xf]
    %v33 = vld [vmem:[%s1 + $0x28] sm:$0xf]
    %v34 = vld [vmem:[%s1 + $0x2c] sm:$0xf]
    %v35 = vld [vmem:[%s1 + $0x30] sm:$0xf]
    %v36 = vld [vmem:[%s1 + $0x34] sm:$0xf]
    %v37 = vld [vmem:[%s1 + $0x38] sm:$0xf]
    %v38 = vld [vmem:[%s1 + $0x3c] sm:$0xf]
    %v39 = vld [vmem:[%s1 + $0x40] sm:$0xf]
    %v40 = vld [vmem:[%s1 + $0x44] sm:$0xf]
    %v41 = vld [vmem:[%s1 + $0x48] sm:$0xf]
    %v42 = vld [vmem:[%s1 + $0x4c] sm:$0xf]
    %v43 = vld [vmem:[%s1 + $0x50] sm:$0xf]
    %v44 = vld [vmem:[%s1 + $0x54] sm:$0xf]
    %v45 = vld [vmem:[%s1 + $0x58] sm:$0xf]
    %v46 = vld [vmem:[%s1 + $0x5c] sm:$0xf]
    %v47 = vld [vmem:[%s1 + $0x60] sm:$0xf]
    %v48 = vld [vmem:[%s1 + $0x64] sm:$0xf]
    %v49 = vld [vmem:[%s1 + $0x68] sm:$0xf]
    %v50 = vld [vmem:[%s1 + $0x6c] sm:$0xf]
    %v51 = vld [vmem:[%s1 + $0x70] sm:$0xf]
    %v52 = vld [vmem:[%s1 + $0x74] sm:$0xf]
    %v53 = vld [vmem:[%s1 + $0x78] sm:$0xf]
    %v54 = vld [vmem:[%s1 + $0x7c] sm:$0xf]
    %v55 = vld [vmem:[%s1 + $0x80] sm:$0xf]
    %v56 = vld [vmem:[%s1 + $0x84] sm:$0xf]
    %v57 = vld [vmem:[%s1 + $0x88] sm:$0xf]
    %v58 = vld [vmem:[%s1 + $0x8c] sm:$0xf]
    %v59 = vld [vmem:[%s1 + $0x90] sm:$0xf]
    %v60 = vld [vmem:[%s1 + $0x94] sm:$0xf]
    %v61 = vld [vmem:[%s1 + $0x98] sm:$0xf]
    %v62 = vld [vmem:[%s1 + $0x9c] sm:$0xf]
    %v63 = vld [vmem:[%s1 + $0xa0] sm:$0xf]
    %v64 = vld [vmem:[%s1 + $0xa4] sm:$0xf]
    %v65 = vld [vmem:[%s1 + $0xa8] sm:$0xf]
    %v66 = vld [vmem:[%s1 + $0xac] sm:$0xf]
    %v67 = vld [vmem:[%s1 + $0xb0] sm:$0xf]
    %v68 = vld [vmem:[%s1 + $0xb4] sm:$0xf]
    %v69 = vld [vmem:[%s1 + $0xb8] sm:$0xf]
    %v70 = vld [vmem:[%s1 + $0xbc] sm:$0xf]
    %v71 = vld [vmem:[%s1 + $0xc0] sm:$0xf]
    %v72 = vld [vmem:[%s1 + $0xc4] sm:$0xf]
    %v73 = vld [vmem:[%s1 + $0xc8] sm:$0xf]
    %v74 = vld [vmem:[%s1 + $0xcc] sm:$0xf]
    %v75 = vld [vmem:[%s1 + $0xd0] sm:$0xf]
    %v76 = vld [vmem:[%s1 + $0xd4] sm:$0xf]
    %v77 = vld [vmem:[%s1 + $0xd8] sm:$0xf]
    %v78 = vld [vmem:[%s1 + $0xdc] sm:$0xf]
    %v79 = vld [vmem:[%s1 + $0xe0] sm:$0xf]
    %v80 = vld [vmem:[%s1 + $0xe4] sm:$0xf]
    %v81 = vld [vmem:[%s1 + $0xe8] sm:$0xf]
    %v82 = vld [vmem:[%s1 + $0xec] sm:$0xf]
    %v83 = vld [vmem:[%s1 + $0xf0] sm:$0xf]
    %v84 = vld [vmem:[%s1 + $0xf4] sm:$0xf]
    %v85 = vld [vmem:[%s1 + $0xf8] sm:$0xf]
    %v86 = vld [vmem:[%s1 + $0xfc] sm:$0xf]
    %v87 = vld [vmem:[%s1 + $0x100] sm:$0xf]
    %v88 = vld [vmem:[%s1 + $0x104] sm:$0xf]
    %v89 = vld [vmem:[%s1 + $0x108] sm:$0xf]
    %v90 = vld [vmem:[%s1 + $0x10c] sm:$0xf]
    %v91 = vld [vmem:[%s1 + $0x110] sm:$0xf]
    %v92 = vld [vmem:[%s1 + $0x114] sm:$0xf]
    %v93 = vld [vmem:[%s1 + $0x118] sm:$0xf]
    %v94 = vld [vmem:[%s1 + $0x11c] sm:$0xf]
    %v95 = vld [vmem:[%s1 + $0x120] sm:$0xf]
    %v96 = vld [vmem:[%s1 + $0x124] sm:$0xf]
    %v97 = vld [vmem:[%s1 + $0x128] sm:$0xf]
    %v98 = vld [vmem:[%s1 + $0x12c] sm:$0xf]
    %v99 = vld [vmem:[%s1 + $0x130] sm:$0xf]
    %v100 = vld [vmem:[%s1 + $0x134] sm:$0xf]
    %v101 = vld [vmem:[%s1 + $0x138] sm:$0xf]
    %v102 = vld [vmem:[%s1 + $0x13c] sm:$0xf]
    %v103 = vld [vmem:[%s1 + $0x140] sm:$0xf]
    %v104 = vld [vmem:[%s1 + $0x144] sm:$0xf]
    %v105 = vld [vmem:[%s1 + $0x148] sm:$0xf]
    %v106 = vld [vmem:[%s1 + $0x14c] sm:$0xf]
    %v107 = vld [vmem:[%s1 + $0x150] sm:$0xf]
    %v108 = vld [vmem:[%s1 + $0x154] sm:$0xf]
    %v109 = vld [vmem:[%s1 + $0x158] sm:$0xf]
    %v110 = vld [vmem:[%s1 + $0x15c] sm:$0xf]
    %v111 = vld [vmem:[%s1 + $0x160] sm:$0xf]
    %v112 = vld [vmem:[%s1 + $0x164] sm:$0xf]
    %v113 = vld [vmem:[%s1 + $0x168] sm:$0xf]
    %v114 = vld [vmem:[%s1 + $0x16c] sm:$0xf]
    %v115 = vld [vmem:[%s1 + $0x170] sm:$0xf]
    %v116 = vld [vmem:[%s1 + $0x174] sm:$0xf]
    %v117 = vld [vmem:[%s1 + $0x178] sm:$0xf]
    %v118 = vld [vmem:[%s1 + $0x17c] sm:$0xf]
    %v119 = vld [vmem:[%s1 + $0x180] sm:$0xf]
    %v120 = vld [vmem:[%s1 + $0x184] sm:$0xf]
    %v121 = vld [vmem:[%s1 + $0x188] sm:$0xf]
    %v122 = vld [vmem:[%s1 + $0x18c] sm:$0xf]
    %v123 = vld [vmem:[%s1 + $0x190] sm:$0xf]
    %v124 = vld [vmem:[%s1 + $0x194] sm:$0xf]
    %v125 = vld [vmem:[%s1 + $0x198] sm:$0xf]
    %v126 = vld [vmem:[%s1 + $0x19c] sm:$0xf]
    %v127 = vld [vmem:[%s1 + $0x1a0] sm:$0xf]
    %v128 = vld [vmem:[%s1 + $0x1a4] sm:$0xf]
    %v129 = vld [vmem:[%s1 + $0x1a8] sm:$0xf]
    %v130 = vld [vmem:[%s1 + $0x1ac] sm:$0xf]
    %v131 = vld [vmem:[%s1 + $0x1b0] sm:$0xf]
    %v132 = vld [vmem:[%s1 + $0x1b4] sm:$0xf]
    %v133 = vld [vmem:[%s1 + $0x1b8] sm:$0xf]
    %v134 = vld [vmem:[%s1 + $0x1bc] sm:$0xf]
    %v135 = vld [vmem:[%s1 + $0x1c0] sm:$0xf]
    %v136 = vld [vmem:[%s1 + $0x1c4] sm:$0xf]
    %v137 = vld [vmem:[%s1 + $0x1c8] sm:$0xf]
    %v138 = vld [vmem:[%s1 + $0x1cc] sm:$0xf]
    %v139 = vld [vmem:[%s1 + $0x1d0] sm:$0xf]
    %v140 = vld [vmem:[%s1 + $0x1d4] sm:$0xf]
    %v141 = vld [vmem:[%s1 + $0x1d8] sm:$0xf]
    %v142 = vld [vmem:[%s1 + $0x1dc] sm:$0xf]
    %v143 = vld [vmem:[%s1 + $0x1e0] sm:$0xf]
    %v144 = vld [vmem:[%s1 + $0x1e4] sm:$0xf]
    %v145 = vld [vmem:[%s1 + $0x1e8] sm:$0xf]
    %v146 = vld [vmem:[%s1 + $0x1ec] sm:$0xf]
    %v147 = vld [vmem:[%s1 + $0x1f0] sm:$0xf]
    %v148 = vld [vmem:[%s1 + $0x1f4] sm:$0xf]
    %v149 = vld [vmem:[%s1 + $0x1f8] sm:$0xf]
    %v150 = vld [vmem:[%s1 + $0x1fc] sm:$0xf]
    %v151 = vld [vmem:[%s2] sm:$0x1]
    %v153 = vlaneseq
    %v154 = vshrl.u32 %v153, 7
    %v155 = vsub.s32 0, %v154
    %v156 = vrot.slane %v151, %v155
    %v159 = vcombine.high %v22, %v22
    %v161 = vunpack.c.l.s4 1966171168
    %v162 = vunpack.c.0.s8 %v161
    %v163 = vlaneseq
    %v164 = vshrl.u32 %v163, 7
    %v165 = vsub.s32 %v162, %v164
    %v166 = vrot.slane %v22, %v165
    %v168 = vunpack.c.l.s4 1966171168
    %v169 = vunpack.c.0.s8 %v168
    %v170 = vlaneseq
    %v171 = vshrl.u32 %v170, 7
    %v172 = vsub.s32 %v169, %v171
    %v173 = vrot.slane %v159, %v172
    %v174 = vcombine.high %v166, %v166
    %v175 = vcombine.high %v173, %v173
    %v177 = vunpack.c.l.s4 1966171168
    %v178 = vunpack.c.0.s8 %v177
    %v179 = vlaneseq
    %v180 = vshrl.u32 %v179, 7
    %v181 = vsub.s32 %v178, %v180
    %v182 = vrot.slane %v166, %v181
    %v184 = vunpack.c.l.s4 1966171168
    %v185 = vunpack.c.0.s8 %v184
    %v186 = vlaneseq
    %v187 = vshrl.u32 %v186, 7
    %v188 = vsub.s32 %v185, %v187
    %v189 = vrot.slane %v173, %v188
    %v191 = vunpack.c.l.s4 1966171168
    %v192 = vunpack.c.0.s8 %v191
    %v193 = vlaneseq
    %v194 = vshrl.u32 %v193, 7
    %v195 = vsub.s32 %v192, %v194
    %v196 = vrot.slane %v174, %v195
    %v198 = vunpack.c.l.s4 1966171168
    %v199 = vunpack.c.0.s8 %v198
    %v200 = vlaneseq
    %v201 = vshrl.u32 %v200, 7
    %v202 = vsub.s32 %v199, %v201
    %v203 = vrot.slane %v175, %v202
    %v204 = vcombine.high %v182, %v182
    %v205 = vcombine.high %v189, %v189
    %v206 = vcombine.high %v196, %v196
    %v207 = vcombine.high %v203, %v203
    %v344 = vunpack.c.l.b16 %v23
    %v345 = vunpack.c.l.b16 %v24
    %v346 = vunpack.c.l.b16 %v25
    %v347 = vunpack.c.l.b16 %v26
    %v348 = vunpack.c.l.b16 %v27
    %v349 = vunpack.c.l.b16 %v28
    %v350 = vunpack.c.l.b16 %v29
    %v351 = vunpack.c.l.b16 %v30
    %v352 = vunpack.c.l.b16 %v31
    %v353 = vunpack.c.l.b16 %v32
    %v354 = vunpack.c.l.b16 %v33
    %v355 = vunpack.c.l.b16 %v34
    %v356 = vunpack.c.l.b16 %v35
    %v357 = vunpack.c.l.b16 %v36
    %v358 = vunpack.c.l.b16 %v37
    %v359 = vunpack.c.l.b16 %v38
    %v360 = vunpack.c.l.b16 %v39
    %v361 = vunpack.c.l.b16 %v40
    %v362 = vunpack.c.l.b16 %v41
    %v363 = vunpack.c.l.b16 %v42
    %v364 = vunpack.c.l.b16 %v43
    %v365 = vunpack.c.l.b16 %v44
    %v366 = vunpack.c.l.b16 %v45
    %v367 = vunpack.c.l.b16 %v46
    %v368 = vunpack.c.l.b16 %v47
    %v369 = vunpack.c.l.b16 %v48
    %v370 = vunpack.c.l.b16 %v49
    %v371 = vunpack.c.l.b16 %v50
    %v372 = vunpack.c.l.b16 %v51
    %v373 = vunpack.c.l.b16 %v52
    %v374 = vunpack.c.l.b16 %v53
    %v375 = vunpack.c.l.b16 %v54
    %v376 = vunpack.c.l.b16 %v55
    %v377 = vunpack.c.l.b16 %v56
    %v378 = vunpack.c.l.b16 %v57
    %v379 = vunpack.c.l.b16 %v58
    %v380 = vunpack.c.l.b16 %v59
    %v381 = vunpack.c.l.b16 %v60
    %v382 = vunpack.c.l.b16 %v61
    %v383 = vunpack.c.l.b16 %v62
    %v384 = vunpack.c.l.b16 %v63
    %v385 = vunpack.c.l.b16 %v64
    %v386 = vunpack.c.l.b16 %v65
    %v387 = vunpack.c.l.b16 %v66
    %v388 = vunpack.c.l.b16 %v67
    %v389 = vunpack.c.l.b16 %v68
    %v390 = vunpack.c.l.b16 %v69
    %v391 = vunpack.c.l.b16 %v70
    %v392 = vunpack.c.l.b16 %v71
    %v393 = vunpack.c.l.b16 %v72
    %v394 = vunpack.c.l.b16 %v73
    %v395 = vunpack.c.l.b16 %v74
    %v396 = vunpack.c.l.b16 %v75
    %v397 = vunpack.c.l.b16 %v76
    %v398 = vunpack.c.l.b16 %v77
    %v399 = vunpack.c.l.b16 %v78
    %v400 = vunpack.c.l.b16 %v79
    %v401 = vunpack.c.l.b16 %v80
    %v402 = vunpack.c.l.b16 %v81
    %v403 = vunpack.c.l.b16 %v82
    %v404 = vunpack.c.l.b16 %v83
    %v405 = vunpack.c.l.b16 %v84
    %v406 = vunpack.c.l.b16 %v85
    %v407 = vunpack.c.l.b16 %v86
    %v408 = vunpack.c.l.b16 %v87
    %v409 = vunpack.c.l.b16 %v88
    %v410 = vunpack.c.l.b16 %v89
    %v411 = vunpack.c.l.b16 %v90
    %v412 = vunpack.c.l.b16 %v91
    %v413 = vunpack.c.l.b16 %v92
    %v414 = vunpack.c.l.b16 %v93
    %v415 = vunpack.c.l.b16 %v94
    %v416 = vunpack.c.l.b16 %v95
    %v417 = vunpack.c.l.b16 %v96
    %v418 = vunpack.c.l.b16 %v97
    %v419 = vunpack.c.l.b16 %v98
    %v420 = vunpack.c.l.b16 %v99
    %v421 = vunpack.c.l.b16 %v100
    %v422 = vunpack.c.l.b16 %v101
    %v423 = vunpack.c.l.b16 %v102
    %v424 = vunpack.c.l.b16 %v103
    %v425 = vunpack.c.l.b16 %v104
    %v426 = vunpack.c.l.b16 %v105
    %v427 = vunpack.c.l.b16 %v106
    %v428 = vunpack.c.l.b16 %v107
    %v429 = vunpack.c.l.b16 %v108
    %v430 = vunpack.c.l.b16 %v109
    %v431 = vunpack.c.l.b16 %v110
    %v432 = vunpack.c.l.b16 %v111
    %v433 = vunpack.c.l.b16 %v112
    %v434 = vunpack.c.l.b16 %v113
    %v435 = vunpack.c.l.b16 %v114
    %v436 = vunpack.c.l.b16 %v115
    %v437 = vunpack.c.l.b16 %v116
    %v438 = vunpack.c.l.b16 %v117
    %v439 = vunpack.c.l.b16 %v118
    %v440 = vunpack.c.l.b16 %v119
    %v441 = vunpack.c.l.b16 %v120
    %v442 = vunpack.c.l.b16 %v121
    %v443 = vunpack.c.l.b16 %v122
    %v444 = vunpack.c.l.b16 %v123
    %v445 = vunpack.c.l.b16 %v124
    %v446 = vunpack.c.l.b16 %v125
    %v447 = vunpack.c.l.b16 %v126
    %v448 = vunpack.c.l.b16 %v127
    %v449 = vunpack.c.l.b16 %v128
    %v450 = vunpack.c.l.b16 %v129
    %v451 = vunpack.c.l.b16 %v130
    %v452 = vunpack.c.l.b16 %v131
    %v453 = vunpack.c.l.b16 %v132
    %v454 = vunpack.c.l.b16 %v133
    %v455 = vunpack.c.l.b16 %v134
    %v456 = vunpack.c.l.b16 %v135
    %v457 = vunpack.c.l.b16 %v136
    %v458 = vunpack.c.l.b16 %v137
    %v459 = vunpack.c.l.b16 %v138
    %v460 = vunpack.c.l.b16 %v139
    %v461 = vunpack.c.l.b16 %v140
    %v462 = vunpack.c.l.b16 %v141
    %v463 = vunpack.c.l.b16 %v142
    %v464 = vunpack.c.l.b16 %v143
    %v465 = vunpack.c.l.b16 %v144
    %v466 = vunpack.c.l.b16 %v145
    %v467 = vunpack.c.l.b16 %v146
    %v468 = vunpack.c.l.b16 %v147
    %v469 = vunpack.c.l.b16 %v148
    %v470 = vunpack.c.l.b16 %v149
    %v471 = vunpack.c.l.b16 %v150
    %v472 = vpack.c.b16 %v345, %v344
    %v473 = vpack.c.b16 %v347, %v346
    %v474 = vpack.c.b16 %v349, %v348
    %v475 = vpack.c.b16 %v351, %v350
    %v476 = vpack.c.b16 %v353, %v352
    %v477 = vpack.c.b16 %v355, %v354
    %v478 = vpack.c.b16 %v357, %v356
    %v479 = vpack.c.b16 %v359, %v358
    %v480 = vpack.c.b16 %v361, %v360
    %v481 = vpack.c.b16 %v363, %v362
    %v482 = vpack.c.b16 %v365, %v364
    %v483 = vpack.c.b16 %v367, %v366
    %v484 = vpack.c.b16 %v369, %v368
    %v485 = vpack.c.b16 %v371, %v370
    %v486 = vpack.c.b16 %v373, %v372
    %v487 = vpack.c.b16 %v375, %v374
    %v488 = vpack.c.b16 %v377, %v376
    %v489 = vpack.c.b16 %v379, %v378
    %v490 = vpack.c.b16 %v381, %v380
    %v491 = vpack.c.b16 %v383, %v382
    %v492 = vpack.c.b16 %v385, %v384
    %v493 = vpack.c.b16 %v387, %v386
    %v494 = vpack.c.b16 %v389, %v388
    %v495 = vpack.c.b16 %v391, %v390
    %v496 = vpack.c.b16 %v393, %v392
    %v497 = vpack.c.b16 %v395, %v394
    %v498 = vpack.c.b16 %v397, %v396
    %v499 = vpack.c.b16 %v399, %v398
    %v500 = vpack.c.b16 %v401, %v400
    %v501 = vpack.c.b16 %v403, %v402
    %v502 = vpack.c.b16 %v405, %v404
    %v503 = vpack.c.b16 %v407, %v406
    %v504 = vpack.c.b16 %v409, %v408
    %v505 = vpack.c.b16 %v411, %v410
    %v506 = vpack.c.b16 %v413, %v412
    %v507 = vpack.c.b16 %v415, %v414
    %v508 = vpack.c.b16 %v417, %v416
    %v509 = vpack.c.b16 %v419, %v418
    %v510 = vpack.c.b16 %v421, %v420
    %v511 = vpack.c.b16 %v423, %v422
    %v512 = vpack.c.b16 %v425, %v424
    %v513 = vpack.c.b16 %v427, %v426
    %v514 = vpack.c.b16 %v429, %v428
    %v515 = vpack.c.b16 %v431, %v430
    %v516 = vpack.c.b16 %v433, %v432
    %v517 = vpack.c.b16 %v435, %v434
    %v518 = vpack.c.b16 %v437, %v436
    %v519 = vpack.c.b16 %v439, %v438
    %v520 = vpack.c.b16 %v441, %v440
    %v521 = vpack.c.b16 %v443, %v442
    %v522 = vpack.c.b16 %v445, %v444
    %v523 = vpack.c.b16 %v447, %v446
    %v524 = vpack.c.b16 %v449, %v448
    %v525 = vpack.c.b16 %v451, %v450
    %v526 = vpack.c.b16 %v453, %v452
    %v527 = vpack.c.b16 %v455, %v454
    %v528 = vpack.c.b16 %v457, %v456
    %v529 = vpack.c.b16 %v459, %v458
    %v530 = vpack.c.b16 %v461, %v460
    %v531 = vpack.c.b16 %v463, %v462
    %v532 = vpack.c.b16 %v465, %v464
    %v533 = vpack.c.b16 %v467, %v466
    %v534 = vpack.c.b16 %v469, %v468
    %v535 = vpack.c.b16 %v471, %v470
    %600 = vmatprep.subr.bf16.mxu0 0
    %601 = vmatpush1.bf16.msra.mxu0 %v472
    %602 = vmatprep.subr.bf16.mxu0 0
    %603 = vmatpush1.bf16.msra.mxu0 %v473
    %604 = vmatprep.subr.bf16.mxu0 0
    %605 = vmatpush1.bf16.msra.mxu0 %v474
    %606 = vmatprep.subr.bf16.mxu0 0
    %607 = vmatpush1.bf16.msra.mxu0 %v475
    %608 = vmatprep.subr.bf16.mxu0 0
    %609 = vmatpush1.bf16.msra.mxu0 %v476
    %610 = vmatprep.subr.bf16.mxu0 0
    %611 = vmatpush1.bf16.msra.mxu0 %v477
    %612 = vmatprep.subr.bf16.mxu0 0
    %613 = vmatpush1.bf16.msra.mxu0 %v478
    %614 = vmatprep.subr.bf16.mxu0 0
    %615 = vmatpush1.bf16.msra.mxu0 %v479
    %616 = vmatprep.subr.bf16.mxu0 0
    %617 = vmatpush1.bf16.msra.mxu0 %v480
    %618 = vmatprep.subr.bf16.mxu0 0
    %619 = vmatpush1.bf16.msra.mxu0 %v481
    %620 = vmatprep.subr.bf16.mxu0 0
    %621 = vmatpush1.bf16.msra.mxu0 %v482
    %622 = vmatprep.subr.bf16.mxu0 0
    %623 = vmatpush1.bf16.msra.mxu0 %v483
    %624 = vmatprep.subr.bf16.mxu0 0
    %625 = vmatpush1.bf16.msra.mxu0 %v484
    %626 = vmatprep.subr.bf16.mxu0 0
    %627 = vmatpush1.bf16.msra.mxu0 %v485
    %628 = vmatprep.subr.bf16.mxu0 0
    %629 = vmatpush1.bf16.msra.mxu0 %v486
    %630 = vmatprep.subr.bf16.mxu0 0
    %631 = vmatpush1.bf16.msra.mxu0 %v487
    %632 = vmatprep.mubr.bf16.mxu0 %v196
    %633 = vmatmul.mubr.bf16.gmra.mrb[0].mxu0 %v182
    %v634 = vpop.f32.mrb[0].mxu0
    %v635 = vadd.f32 %v156, %v634
    %v636 = vpop.f32.mrb[0].mxu0
    %v637 = vpop.f32.mrb[0].mxu0
    %v638 = vpop.f32.mrb[0].mxu0
    %639 = vdwg.mxu0
    %640 = vmatprep.subr.bf16.mxu0 0
    %641 = vmatpush1.bf16.msra.mxu0 %v488
    %642 = vmatprep.subr.bf16.mxu0 0
    %643 = vmatpush1.bf16.msra.mxu0 %v489
    %644 = vmatprep.subr.bf16.mxu0 0
    %645 = vmatpush1.bf16.msra.mxu0 %v490
    %646 = vmatprep.subr.bf16.mxu0 0
    %647 = vmatpush1.bf16.msra.mxu0 %v491
    %648 = vmatprep.subr.bf16.mxu0 0
    %649 = vmatpush1.bf16.msra.mxu0 %v492
    %650 = vmatprep.subr.bf16.mxu0 0
    %651 = vmatpush1.bf16.msra.mxu0 %v493
    %652 = vmatprep.subr.bf16.mxu0 0
    %653 = vmatpush1.bf16.msra.mxu0 %v494
    %654 = vmatprep.subr.bf16.mxu0 0
    %655 = vmatpush1.bf16.msra.mxu0 %v495
    %656 = vmatprep.subr.bf16.mxu0 0
    %657 = vmatpush1.bf16.msra.mxu0 %v496
    %658 = vmatprep.subr.bf16.mxu0 0
    %659 = vmatpush1.bf16.msra.mxu0 %v497
    %660 = vmatprep.subr.bf16.mxu0 0
    %661 = vmatpush1.bf16.msra.mxu0 %v498
    %662 = vmatprep.subr.bf16.mxu0 0
    %663 = vmatpush1.bf16.msra.mxu0 %v499
    %664 = vmatprep.subr.bf16.mxu0 0
    %665 = vmatpush1.bf16.msra.mxu0 %v500
    %666 = vmatprep.subr.bf16.mxu0 0
    %667 = vmatpush1.bf16.msra.mxu0 %v501
    %668 = vmatprep.subr.bf16.mxu0 0
    %669 = vmatpush1.bf16.msra.mxu0 %v502
    %670 = vmatprep.subr.bf16.mxu0 0
    %671 = vmatpush1.bf16.msra.mxu0 %v503
    %672 = vmatprep.mubr.bf16.mxu0 %v206
    %673 = vmatmul.mubr.bf16.gmra.mrb[0].mxu0 %v204
    %v674 = vpop.f32.mrb[0].mxu0
    %v675 = vadd.f32 %v635, %v674
    %v676 = vpop.f32.mrb[0].mxu0
    %v677 = vpop.f32.mrb[0].mxu0
    %v678 = vpop.f32.mrb[0].mxu0
    %679 = vdwg.mxu0
    %680 = vmatprep.subr.bf16.mxu0 0
    %681 = vmatpush1.bf16.msra.mxu0 %v504
    %682 = vmatprep.subr.bf16.mxu0 0
    %683 = vmatpush1.bf16.msra.mxu0 %v505
    %684 = vmatprep.subr.bf16.mxu0 0
    %685 = vmatpush1.bf16.msra.mxu0 %v506
    %686 = vmatprep.subr.bf16.mxu0 0
    %687 = vmatpush1.bf16.msra.mxu0 %v507
    %688 = vmatprep.subr.bf16.mxu0 0
    %689 = vmatpush1.bf16.msra.mxu0 %v508
    %690 = vmatprep.subr.bf16.mxu0 0
    %691 = vmatpush1.bf16.msra.mxu0 %v509
    %692 = vmatprep.subr.bf16.mxu0 0
    %693 = vmatpush1.bf16.msra.mxu0 %v510
    %694 = vmatprep.subr.bf16.mxu0 0
    %695 = vmatpush1.bf16.msra.mxu0 %v511
    %696 = vmatprep.subr.bf16.mxu0 0
    %697 = vmatpush1.bf16.msra.mxu0 %v512
    %698 = vmatprep.subr.bf16.mxu0 0
    %699 = vmatpush1.bf16.msra.mxu0 %v513
    %700 = vmatprep.subr.bf16.mxu0 0
    %701 = vmatpush1.bf16.msra.mxu0 %v514
    %702 = vmatprep.subr.bf16.mxu0 0
    %703 = vmatpush1.bf16.msra.mxu0 %v515
    %704 = vmatprep.subr.bf16.mxu0 0
    %705 = vmatpush1.bf16.msra.mxu0 %v516
    %706 = vmatprep.subr.bf16.mxu0 0
    %707 = vmatpush1.bf16.msra.mxu0 %v517
    %708 = vmatprep.subr.bf16.mxu0 0
    %709 = vmatpush1.bf16.msra.mxu0 %v518
    %710 = vmatprep.subr.bf16.mxu0 0
    %711 = vmatpush1.bf16.msra.mxu0 %v519
    %712 = vmatprep.mubr.bf16.mxu0 %v203
    %713 = vmatmul.mubr.bf16.gmra.mrb[0].mxu0 %v189
    %v714 = vpop.f32.mrb[0].mxu0
    %v715 = vadd.f32 %v675, %v714
    %v716 = vpop.f32.mrb[0].mxu0
    %v717 = vpop.f32.mrb[0].mxu0
    %v718 = vpop.f32.mrb[0].mxu0
    %719 = vdwg.mxu0
    %720 = vmatprep.subr.bf16.mxu0 0
    %721 = vmatpush1.bf16.msra.mxu0 %v520
    %722 = vmatprep.subr.bf16.mxu0 0
    %723 = vmatpush1.bf16.msra.mxu0 %v521
    %724 = vmatprep.subr.bf16.mxu0 0
    %725 = vmatpush1.bf16.msra.mxu0 %v522
    %726 = vmatprep.subr.bf16.mxu0 0
    %727 = vmatpush1.bf16.msra.mxu0 %v523
    %728 = vmatprep.subr.bf16.mxu0 0
    %729 = vmatpush1.bf16.msra.mxu0 %v524
    %730 = vmatprep.subr.bf16.mxu0 0
    %731 = vmatpush1.bf16.msra.mxu0 %v525
    %732 = vmatprep.subr.bf16.mxu0 0
    %733 = vmatpush1.bf16.msra.mxu0 %v526
    %734 = vmatprep.subr.bf16.mxu0 0
    %735 = vmatpush1.bf16.msra.mxu0 %v527
    %736 = vmatprep.subr.bf16.mxu0 0
    %737 = vmatpush1.bf16.msra.mxu0 %v528
    %738 = vmatprep.subr.bf16.mxu0 0
    %739 = vmatpush1.bf16.msra.mxu0 %v529
    %740 = vmatprep.subr.bf16.mxu0 0
    %741 = vmatpush1.bf16.msra.mxu0 %v530
    %742 = vmatprep.subr.bf16.mxu0 0
    %743 = vmatpush1.bf16.msra.mxu0 %v531
    %744 = vmatprep.subr.bf16.mxu0 0
    %745 = vmatpush1.bf16.msra.mxu0 %v532
    %746 = vmatprep.subr.bf16.mxu0 0
    %747 = vmatpush1.bf16.msra.mxu0 %v533
    %748 = vmatprep.subr.bf16.mxu0 0
    %749 = vmatpush1.bf16.msra.mxu0 %v534
    %750 = vmatprep.subr.bf16.mxu0 0
    %751 = vmatpush1.bf16.msra.mxu0 %v535
    %752 = vmatprep.mubr.bf16.mxu0 %v207
    %753 = vmatmul.mubr.bf16.gmra.mrb[0].mxu0 %v205
    %v754 = vpop.f32.mrb[0].mxu0
    %v755 = vadd.f32 %v715, %v754
    %v756 = vpop.f32.mrb[0].mxu0
    %v757 = vpop.f32.mrb[0].mxu0
    %v758 = vpop.f32.mrb[0].mxu0
    %759 = vdwg.mxu0
    %v760 = vpack.c.bf16 %v755, %v755
    %v761 = vld [vmem:[%s3] sm:$0xf]
    %v762 = vld [vmem:[%s3 + $0x4] sm:$0xf]
    %v763 = vld [vmem:[%s3 + $0x8] sm:$0xf]
    %v764 = vld [vmem:[%s3 + $0xc] sm:$0xf]
    %v765 = vld [vmem:[%s3 + $0x10] sm:$0xf]
    %v766 = vld [vmem:[%s3 + $0x14] sm:$0xf]
    %v767 = vld [vmem:[%s3 + $0x18] sm:$0xf]
    %v768 = vld [vmem:[%s3 + $0x1c] sm:$0xf]
    %v769 = vld [vmem:[%s4] sm:$0x1]
    %v771 = vlaneseq
    %v772 = vshrl.u32 %v771, 7
    %v773 = vsub.s32 0, %v772
    %v774 = vrot.slane %v769, %v773
    %v784 = vunpack.c.l.b16 %v761
    %v785 = vunpack.c.l.b16 %v762
    %v786 = vunpack.c.l.b16 %v763
    %v787 = vunpack.c.l.b16 %v764
    %v788 = vunpack.c.l.b16 %v765
    %v789 = vunpack.c.l.b16 %v766
    %v790 = vunpack.c.l.b16 %v767
    %v791 = vunpack.c.l.b16 %v768
    %v792 = vpack.c.b16 %v785, %v784
    %v793 = vpack.c.b16 %v787, %v786
    %v794 = vpack.c.b16 %v789, %v788
    %v795 = vpack.c.b16 %v791, %v790
    %vm800 = vcmask 523264
    %v802 = vsel %vm800, %v760, 0
    %804 = vmatprep.subr.bf16.mxu0 0
    %805 = vmatpush1.bf16.msra.mxu0 %v792
    %806 = vmatprep.subr.bf16.mxu0 0
    %807 = vmatpush1.bf16.msra.mxu0 %v793
    %808 = vmatprep.subr.bf16.mxu0 0
    %809 = vmatpush1.bf16.msra.mxu0 %v794
    %810 = vmatprep.subr.bf16.mxu0 0
    %811 = vmatpush1.bf16.msra.mxu0 %v795
    %812 = vmatprep.subr.bf16.mxu0 0
    %813 = vmatpush1.bf16.msra.mxu0 0
    %814 = vmatprep.subr.bf16.mxu0 0
    %815 = vmatpush1.bf16.msra.mxu0 0
    %816 = vmatprep.subr.bf16.mxu0 0
    %817 = vmatpush1.bf16.msra.mxu0 0
    %818 = vmatprep.subr.bf16.mxu0 0
    %819 = vmatpush1.bf16.msra.mxu0 0
    %820 = vmatprep.subr.bf16.mxu0 0
    %821 = vmatpush1.bf16.msra.mxu0 0
    %822 = vmatprep.subr.bf16.mxu0 0
    %823 = vmatpush1.bf16.msra.mxu0 0
    %824 = vmatprep.subr.bf16.mxu0 0
    %825 = vmatpush1.bf16.msra.mxu0 0
    %826 = vmatprep.subr.bf16.mxu0 0
    %827 = vmatpush1.bf16.msra.mxu0 0
    %828 = vmatprep.subr.bf16.mxu0 0
    %829 = vmatpush1.bf16.msra.mxu0 0
    %830 = vmatprep.subr.bf16.mxu0 0
    %831 = vmatpush1.bf16.msra.mxu0 0
    %832 = vmatprep.subr.bf16.mxu0 0
    %833 = vmatpush1.bf16.msra.mxu0 0
    %834 = vmatprep.subr.bf16.mxu0 0
    %835 = vmatpush1.bf16.msra.mxu0 0
    %836 = vmatprep.mubr.bf16.mxu0 0
    %837 = vmatmul.mubr.bf16.gmra.mrb[0].mxu0 %v802
    %v838 = vpop.f32.mrb[0].mxu0
    %v839 = vadd.f32 %v774, %v838
    %v840 = vpop.f32.mrb[0].mxu0
    %v841 = vpop.f32.mrb[0].mxu0
    %v842 = vpop.f32.mrb[0].mxu0
    %843 = vdwg.mxu0
    %vm844 = vcmask 74752
    %845 = vst.msk [vmem:[#allocation2] sm:$0x3] %vm844, %v839
    // Predicated region
    $region22: #{tudui_forward.7} parent=1 // pred_check
      _
    $region23: #{tudui_forward.7} parent=1 // pred_check_branch
      %847 = sbr.rel (0) target = $region25
    $region24: #{tudui_forward.7} parent=1 // pred_region
      %s849 = ssub.s32 32, 32
      %850 = vsyncadd [#allocation3], %s849
      %s852 = sshll.u32 [#allocation2], 4
      %s853 = int_to_ptr.vmem [resolvable:$true] %s852
      %855 = dma.vmem_to_hbm [thread:$0]  %s853, 32, %s5, [#allocation3]
    $region25: #{tudui_forward.7} parent=1 // pred_fallthru
      _
    // Predicated region
    $region26: #{tudui_forward.7} parent=1 // pred_check
      _
    $region27: #{tudui_forward.7} parent=1 // pred_check_branch
      %857 = sbr.rel (0) target = $region29
    $region28: #{tudui_forward.7} parent=1 // pred_region
      %858 = dma.done [#allocation3], 32
    $region29: #{tudui_forward.7} parent=1 // pred_fallthru
      _
    %859 = vsyncpa [#allocation3], 1

</llo_original>
